<compile_context>
chip_gen: v7x
topology: tpu7x:2x2x1
jax: 0.10.0
libtpu: 0.0.40
codegen_flags: <defaults>
</compile_context>

<pallas_src>
import functools

import jax
import jax.numpy as jnp
from jax.experimental import pallas as pl
from jax.experimental.pallas import tpu as pltpu

_VMEM_LIMIT = 32 * 1024 * 1024  # safe on v5e/v6e (128 MiB) and v7x (64 MiB)


# ----------------------------------------------------------------------------
# In-kernel helpers
# ----------------------------------------------------------------------------
def _shift_pixels(a, shift):
    """a: (C, HW) value.  Returns s with s[:, p] = a[:, p + shift] (0 if OOB)."""
    if shift == 0:
        return a
    c, n = a.shape
    if shift > 0:
        pad = jnp.zeros((c, shift), a.dtype)
        return jnp.concatenate([a[:, shift:], pad], axis=1)
    pad = jnp.zeros((c, -shift), a.dtype)
    return jnp.concatenate([pad, a[:, : n + shift]], axis=1)


# ----------------------------------------------------------------------------
# Fused kernel: one batch image per grid step.
#   x_ref   : (1, 3, HW)        input image, pixels lane-dense
#   w1_ref  : (9, 16, 3)        conv1 tap weights (BN folded), tap = kh*3+kw
#   b1_ref  : (16, 1)
#   w2_ref  : (9, 32, 16)       conv2 tap weights (BN folded)
#   b2_ref  : (32, 1)
#   wfc_ref : (10, 32, HW)      fc weight, lane-dense (free reshape of (10, 32*HW))
#   bfc_ref : (1, 10)
#   o_ref   : (1, 1, 10)        logits for this image
# ----------------------------------------------------------------------------
def _cnn_fused_kernel(x_ref, w1_ref, b1_ref, w2_ref, b2_ref, wfc_ref, bfc_ref,
                      o_ref, *, H, W, n_cls):
    HW = H * W

    # Column-validity masks for the 3x3 taps.  Row out-of-range taps already
    # read the zero fill produced by _shift_pixels, so only the column wrap
    # (reading a neighbouring row's pixel) needs masking.
    lane = jax.lax.broadcasted_iota(jnp.int32, (1, HW), 1)
    col = lane % W
    ok_left = col >= 1        # tap reads w-1: invalid at w == 0
    ok_right = col <= W - 2   # tap reads w+1: invalid at w == W-1

    def conv3x3_bias_relu(a, w_ref, b_ref):
        # a: (Cin, HW); w_ref: (9, Cout, Cin); b_ref: (Cout, 1)
        acc = None
        for kh in range(3):
            for kw in range(3):
                dh, dw = kh - 1, kw - 1
                xs = _shift_pixels(a, dh * W + dw)
                if dw == -1:
                    xs = jnp.where(ok_left, xs, 0.0)
                elif dw == 1:
                    xs = jnp.where(ok_right, xs, 0.0)
                t = jnp.dot(w_ref[kh * 3 + kw], xs,
                            preferred_element_type=jnp.float32)
                acc = t if acc is None else acc + t
        return jnp.maximum(acc + b_ref[...], 0.0)

    x = x_ref[0]                                     # (3, HW)
    y1 = conv3x3_bias_relu(x, w1_ref, b1_ref)        # (16, HW)
    y2 = conv3x3_bias_relu(y1, w2_ref, b2_ref)       # (32, HW)

    # FC over the implicit PyTorch (C, H, W) flatten:
    #   logits[n] = bfc[n] + sum_{c,p} wfc[n, c, p] * y2[c, p]
    # Done on the VPU/XLU (exact f32, no dot_general -> no hidden weight
    # transpose, no (32,HW)->(1,32*HW) relayout needed).
    cls_lane = jax.lax.broadcasted_iota(jnp.int32, (1, n_cls), 1)
    logits = bfc_ref[...]                            # (1, n_cls)
    for n in range(n_cls):
        s = jnp.sum(wfc_ref[n] * y2, axis=1, keepdims=True)   # (32, 1)
        s = jnp.sum(s, axis=0, keepdims=True)                 # (1, 1)
        logits = logits + jnp.where(cls_lane == n, s, 0.0)
    o_ref[...] = logits.reshape(o_ref.shape)


# ----------------------------------------------------------------------------
# Wrapper
# ----------------------------------------------------------------------------
@jax.jit
def cnn_forward(x_nchw, kp):
    B, C, H, W = x_nchw.shape
    HW = H * W
    n_cls = kp["bfc"].shape[-1]
    x_flat = x_nchw.reshape(B, C, HW)                # free reshape (NCHW order)

    kernel = functools.partial(_cnn_fused_kernel, H=H, W=W, n_cls=n_cls)
    out = pl.pallas_call(
        kernel,
        out_shape=jax.ShapeDtypeStruct((B, 1, n_cls), jnp.float32),
        grid_spec=pltpu.PrefetchScalarGridSpec(
            num_scalar_prefetch=0,
            grid=(B,),
            in_specs=[
                pl.BlockSpec((1, C, HW), lambda b: (b, 0, 0)),
                pl.BlockSpec(kp["w1"].shape, lambda b: (0, 0, 0)),
                pl.BlockSpec(kp["b1"].shape, lambda b: (0, 0)),
                pl.BlockSpec(kp["w2"].shape, lambda b: (0, 0, 0)),
                pl.BlockSpec(kp["b2"].shape, lambda b: (0, 0)),
                pl.BlockSpec(kp["wfc"].shape, lambda b: (0, 0, 0)),
                pl.BlockSpec(kp["bfc"].shape, lambda b: (0, 0)),
            ],
            out_specs=pl.BlockSpec((1, 1, n_cls), lambda b: (b, 0, 0)),
        ),
        compiler_params=pltpu.CompilerParams(
            dimension_semantics=("parallel",),
            vmem_limit_bytes=_VMEM_LIMIT),
    )(x_flat, kp["w1"], kp["b1"], kp["w2"], kp["b2"], kp["wfc"], kp["bfc"])
    return out.reshape(B, n_cls)


# ----------------------------------------------------------------------------
# Parameter preparation (plain JAX, done once): BN folding + layout plumbing.
# ----------------------------------------------------------------------------
def _fold_conv_bn(w_oihw, b_o, gamma, beta, rmean, rvar, eps=1e-5):
    """Fold eval-mode BN into conv weight/bias, return (9, O, I) tap weights."""
    scale = gamma / jnp.sqrt(rvar + eps)                       # (O,)
    w = w_oihw * scale[:, None, None, None]
    b = (b_o - rmean) * scale + beta
    # (O, I, 3, 3) -> (3, 3, O, I) -> (9, O, I), tap index = kh*3 + kw
    w_taps = jnp.transpose(w, (2, 3, 0, 1)).reshape(9, w.shape[0], w.shape[1])
    return w_taps.astype(jnp.float32), b.reshape(-1, 1).astype(jnp.float32)


def prepare_kernel_params(raw, H=32, W=32):
    w1, b1 = _fold_conv_bn(raw["conv1_w"], raw["conv1_b"], raw["bn1_g"],
                           raw["bn1_b"], raw["bn1_m"], raw["bn1_v"])
    w2, b2 = _fold_conv_bn(raw["conv2_w"], raw["conv2_b"], raw["bn2_g"],
                           raw["bn2_b"], raw["bn2_m"], raw["bn2_v"])
    n_cls, kfc = raw["fc_w"].shape
    c2 = raw["conv2_w"].shape[0]
    assert kfc == c2 * H * W
    return {
        "w1": w1, "b1": b1,                                    # (9,16,3), (16,1)
        "w2": w2, "b2": b2,                                    # (9,32,16), (32,1)
        "wfc": raw["fc_w"].reshape(n_cls, c2, H * W).astype(jnp.float32),
        "bfc": raw["fc_b"].reshape(1, n_cls).astype(jnp.float32),
    }


def init_raw_params(key):
    ks = jax.random.split(key, 14)
    f32 = jnp.float32
    return {
        "conv1_w": jax.random.normal(ks[0], (16, 3, 3, 3), f32) * 0.2,
        "conv1_b": jax.random.normal(ks[1], (16,), f32) * 0.1,
        "bn1_g": 1.0 + 0.1 * jax.random.normal(ks[2], (16,), f32),
        "bn1_b": 0.1 * jax.random.normal(ks[3], (16,), f32),
        "bn1_m": 0.1 * jax.random.normal(ks[4], (16,), f32),
        "bn1_v": jax.random.uniform(ks[5], (16,), f32, 0.5, 1.5),
        "conv2_w": jax.random.normal(ks[6], (32, 16, 3, 3), f32) * 0.1,
        "conv2_b": jax.random.normal(ks[7], (32,), f32) * 0.1,
        "bn2_g": 1.0 + 0.1 * jax.random.normal(ks[8], (32,), f32),
        "bn2_b": 0.1 * jax.random.normal(ks[9], (32,), f32),
        "bn2_m": 0.1 * jax.random.normal(ks[10], (32,), f32),
        "bn2_v": jax.random.uniform(ks[11], (32,), f32, 0.5, 1.5),
        "fc_w": jax.random.normal(ks[12], (10, 32 * 32 * 32), f32) * 0.01,
        "fc_b": jax.random.normal(ks[13], (10,), f32) * 0.01,
    }


# ----------------------------------------------------------------------------
# Plain-JAX reference (unfolded conv + eval-BN + ReLU + FC, highest precision).
# ----------------------------------------------------------------------------
def reference_forward(x, raw, eps=1e-5):
    def block(x, w, b, g, bt, m, v):
        y = jax.lax.conv_general_dilated(
            x, w, window_strides=(1, 1), padding=((1, 1), (1, 1)),
            dimension_numbers=("NCHW", "OIHW", "NCHW"),
            precision=jax.lax.Precision.HIGHEST)
        y = y + b[None, :, None, None]
        y = (y - m[None, :, None, None]) * (
            g[None, :, None, None] / jnp.sqrt(v[None, :, None, None] + eps)
        ) + bt[None, :, None, None]
        return jnp.maximum(y, 0.0)

    y = block(x, raw["conv1_w"], raw["conv1_b"], raw["bn1_g"], raw["bn1_b"],
              raw["bn1_m"], raw["bn1_v"])
    y = block(y, raw["conv2_w"], raw["conv2_b"], raw["bn2_g"], raw["bn2_b"],
              raw["bn2_m"], raw["bn2_v"])
    flat = y.reshape(y.shape[0], -1)
    return jnp.dot(flat, raw["fc_w"].T,
                   precision=jax.lax.Precision.HIGHEST) + raw["fc_b"][None, :]


if __name__ == "__main__":
    key = jax.random.PRNGKey(0)
    kx, kp = jax.random.split(key)
    # The fc layer fixes spatial size at 32x32 and input channels at 3.
    x = jax.random.normal(kx, (2, 3, 32, 32), jnp.float32)     # NCHW, batch=2
    raw = init_raw_params(kp)
    params = prepare_kernel_params(raw)

    out = jax.block_until_ready(cnn_forward(x, params))
    assert out.shape == (2, 10)

    ref = jax.block_until_ready(reference_forward(x, raw))
    err = float(jnp.max(jnp.abs(out - ref)))
    # Tolerance covers possible reduced-precision MXU passes for the f32 conv
    # dots vs the Precision.HIGHEST reference; structural bugs give O(0.1+).
    assert err < 3e-2, f"max abs err {err}"

    print("KERNEL_OK")
</pallas_src>

<mosaic_0001>
module attributes {stable_mosaic.version = 11 : i64} {
  func.func @_cnn_fused_kernel(%arg0: i32, %arg1: memref<1x3x1024xf32, #tpu.memory_space<vmem>>, %arg2: memref<9x16x3xf32, #tpu.memory_space<vmem>>, %arg3: memref<16x1xf32, #tpu.memory_space<vmem>>, %arg4: memref<9x32x16xf32, #tpu.memory_space<vmem>>, %arg5: memref<32x1xf32, #tpu.memory_space<vmem>>, %arg6: memref<10x32x1024xf32, #tpu.memory_space<vmem>>, %arg7: memref<1x10xf32, #tpu.memory_space<vmem>>, %arg8: memref<1x1x10xf32, #tpu.memory_space<vmem>>) attributes {dimension_semantics = [#tpu.dimension_semantics<parallel>], iteration_bounds = array<i64: 2>, scalar_prefetch = 0 : i64, scratch_operands = 0 : i64, tpu.core_type = #tpu.core_type<tc>, window_params = [{transform_indices = @transform_0, window_bounds = array<i64: 1, 3, 1024>}, {pipeline_mode = #tpu.pipeline_mode<synchronous>, transform_indices = @transform_1, window_bounds = array<i64: 9, 16, 3>}, {pipeline_mode = #tpu.pipeline_mode<synchronous>, transform_indices = @transform_2, window_bounds = array<i64: 16, 1>}, {pipeline_mode = #tpu.pipeline_mode<synchronous>, transform_indices = @transform_3, window_bounds = array<i64: 9, 32, 16>}, {pipeline_mode = #tpu.pipeline_mode<synchronous>, transform_indices = @transform_4, window_bounds = array<i64: 32, 1>}, {pipeline_mode = #tpu.pipeline_mode<synchronous>, transform_indices = @transform_5, window_bounds = array<i64: 10, 32, 1024>}, {pipeline_mode = #tpu.pipeline_mode<synchronous>, transform_indices = @transform_6, window_bounds = array<i64: 1, 10>}, {transform_indices = @transform_7, window_bounds = array<i64: 1, 1, 10>}]} {
    %0 = tpu.iota {dimensions = array<i32: 1>} : vector<1x1024xi32>
    %c32_i32 = arith.constant 32 : i32
    %c0_i32 = arith.constant 0 : i32
    %1 = arith.cmpi eq, %c32_i32, %c0_i32 : i32
    %c1_i32 = arith.constant 1 : i32
    %2 = arith.select %1, %c1_i32, %c32_i32 : i32
    %3 = vector.broadcast %2 : i32 to vector<1x1024xi32>
    %4 = arith.remsi %0, %3 : vector<1x1024xi32>
    %c0_i32_0 = arith.constant 0 : i32
    %5 = vector.broadcast %c0_i32_0 : i32 to vector<1x1024xi32>
    %6 = arith.cmpi ne, %4, %5 : vector<1x1024xi32>
    %c0_i32_1 = arith.constant 0 : i32
    %7 = vector.broadcast %c0_i32_1 : i32 to vector<1x1024xi32>
    %8 = arith.cmpi slt, %4, %7 : vector<1x1024xi32>
    %c0_i32_2 = arith.constant 0 : i32
    %9 = arith.cmpi slt, %2, %c0_i32_2 : i32
    %10 = vector.broadcast %9 : i1 to vector<1x1024xi1>
    %11 = vector.broadcast %10 : vector<1x1024xi1> to vector<1x1024xi1>
    %12 = arith.xori %8, %11 : vector<1x1024xi1>
    %13 = arith.andi %12, %6 : vector<1x1024xi1>
    %14 = vector.broadcast %2 : i32 to vector<1x1024xi32>
    %15 = arith.addi %4, %14 : vector<1x1024xi32>
    %16 = arith.select %13, %15, %4 : vector<1x1024xi1>, vector<1x1024xi32>
    %c1_i32_3 = arith.constant 1 : i32
    %17 = vector.broadcast %c1_i32_3 : i32 to vector<1x1024xi32>
    %18 = arith.cmpi sge, %16, %17 : vector<1x1024xi32>
    %c30_i32 = arith.constant 30 : i32
    %19 = vector.broadcast %c30_i32 : i32 to vector<1x1024xi32>
    %20 = arith.cmpi sle, %16, %19 : vector<1x1024xi32>
    %c0 = arith.constant 0 : index
    %c0_4 = arith.constant 0 : index
    %c0_5 = arith.constant 0 : index
    %21 = vector.load %arg1[%c0, %c0_4, %c0_5] : memref<1x3x1024xf32, #tpu.memory_space<vmem>>, vector<1x3x1024xf32>
    %22 = vector.shape_cast %21 : vector<1x3x1024xf32> to vector<3x1024xf32>
    %cst = arith.constant 0.000000e+00 : f32
    %23 = vector.broadcast %cst : f32 to vector<3x33xf32>
    %24 = vector.extract_strided_slice %22 {offsets = [0, 0], sizes = [3, 991], strides = [1, 1]} : vector<3x1024xf32> to vector<3x991xf32>
    %25 = tpu.concatenate %23, %24 in 1 : vector<3x33xf32>, vector<3x991xf32> -> vector<3x1024xf32>
    %cst_6 = arith.constant 0.000000e+00 : f32
    %26 = vector.shape_cast %18 : vector<1x1024xi1> to vector<1x1024xi1>
    %27 = vector.broadcast %26 : vector<1x1024xi1> to vector<3x1024xi1>
    %28 = vector.broadcast %cst_6 : f32 to vector<3x1024xf32>
    %29 = arith.select %27, %25, %28 : vector<3x1024xi1>, vector<3x1024xf32>
    %c0_7 = arith.constant 0 : index
    %c0_8 = arith.constant 0 : index
    %c0_9 = arith.constant 0 : index
    %30 = vector.load %arg2[%c0_7, %c0_8, %c0_9] : memref<9x16x3xf32, #tpu.memory_space<vmem>>, vector<1x16x3xf32>
    %31 = vector.shape_cast %30 : vector<1x16x3xf32> to vector<16x3xf32>
    %cst_10 = arith.constant dense<0.000000e+00> : vector<16x1024xf32>
    %32 = tpu.matmul %31, %29, %cst_10 {dimension_numbers = #tpu.dot_dimension_numbers<[1], [0], [0], [1], [0, 0, 1, 1], [], []>} : vector<16x3xf32>, vector<3x1024xf32>, vector<16x1024xf32> -> vector<16x1024xf32>
    %cst_11 = arith.constant 0.000000e+00 : f32
    %33 = vector.broadcast %cst_11 : f32 to vector<3x32xf32>
    %34 = vector.extract_strided_slice %22 {offsets = [0, 0], sizes = [3, 992], strides = [1, 1]} : vector<3x1024xf32> to vector<3x992xf32>
    %35 = tpu.concatenate %33, %34 in 1 : vector<3x32xf32>, vector<3x992xf32> -> vector<3x1024xf32>
    %c1 = arith.constant 1 : index
    %c0_12 = arith.constant 0 : index
    %c0_13 = arith.constant 0 : index
    %36 = vector.load %arg2[%c1, %c0_12, %c0_13] : memref<9x16x3xf32, #tpu.memory_space<vmem>>, vector<1x16x3xf32>
    %37 = vector.shape_cast %36 : vector<1x16x3xf32> to vector<16x3xf32>
    %cst_14 = arith.constant dense<0.000000e+00> : vector<16x1024xf32>
    %38 = tpu.matmul %37, %35, %cst_14 {dimension_numbers = #tpu.dot_dimension_numbers<[1], [0], [0], [1], [0, 0, 1, 1], [], []>} : vector<16x3xf32>, vector<3x1024xf32>, vector<16x1024xf32> -> vector<16x1024xf32>
    %39 = arith.addf %32, %38 : vector<16x1024xf32>
    %cst_15 = arith.constant 0.000000e+00 : f32
    %40 = vector.broadcast %cst_15 : f32 to vector<3x31xf32>
    %41 = vector.extract_strided_slice %22 {offsets = [0, 0], sizes = [3, 993], strides = [1, 1]} : vector<3x1024xf32> to vector<3x993xf32>
    %42 = tpu.concatenate %40, %41 in 1 : vector<3x31xf32>, vector<3x993xf32> -> vector<3x1024xf32>
    %cst_16 = arith.constant 0.000000e+00 : f32
    %43 = vector.shape_cast %20 : vector<1x1024xi1> to vector<1x1024xi1>
    %44 = vector.broadcast %43 : vector<1x1024xi1> to vector<3x1024xi1>
    %45 = vector.broadcast %cst_16 : f32 to vector<3x1024xf32>
    %46 = arith.select %44, %42, %45 : vector<3x1024xi1>, vector<3x1024xf32>
    %c2 = arith.constant 2 : index
    %c0_17 = arith.constant 0 : index
    %c0_18 = arith.constant 0 : index
    %47 = vector.load %arg2[%c2, %c0_17, %c0_18] : memref<9x16x3xf32, #tpu.memory_space<vmem>>, vector<1x16x3xf32>
    %48 = vector.shape_cast %47 : vector<1x16x3xf32> to vector<16x3xf32>
    %cst_19 = arith.constant dense<0.000000e+00> : vector<16x1024xf32>
    %49 = tpu.matmul %48, %46, %cst_19 {dimension_numbers = #tpu.dot_dimension_numbers<[1], [0], [0], [1], [0, 0, 1, 1], [], []>} : vector<16x3xf32>, vector<3x1024xf32>, vector<16x1024xf32> -> vector<16x1024xf32>
    %50 = arith.addf %39, %49 : vector<16x1024xf32>
    %cst_20 = arith.constant 0.000000e+00 : f32
    %51 = vector.broadcast %cst_20 : f32 to vector<3x1xf32>
    %52 = vector.extract_strided_slice %22 {offsets = [0, 0], sizes = [3, 1023], strides = [1, 1]} : vector<3x1024xf32> to vector<3x1023xf32>
    %53 = tpu.concatenate %51, %52 in 1 : vector<3x1xf32>, vector<3x1023xf32> -> vector<3x1024xf32>
    %cst_21 = arith.constant 0.000000e+00 : f32
    %54 = vector.shape_cast %18 : vector<1x1024xi1> to vector<1x1024xi1>
    %55 = vector.broadcast %54 : vector<1x1024xi1> to vector<3x1024xi1>
    %56 = vector.broadcast %cst_21 : f32 to vector<3x1024xf32>
    %57 = arith.select %55, %53, %56 : vector<3x1024xi1>, vector<3x1024xf32>
    %c3 = arith.constant 3 : index
    %c0_22 = arith.constant 0 : index
    %c0_23 = arith.constant 0 : index
    %58 = vector.load %arg2[%c3, %c0_22, %c0_23] : memref<9x16x3xf32, #tpu.memory_space<vmem>>, vector<1x16x3xf32>
    %59 = vector.shape_cast %58 : vector<1x16x3xf32> to vector<16x3xf32>
    %cst_24 = arith.constant dense<0.000000e+00> : vector<16x1024xf32>
    %60 = tpu.matmul %59, %57, %cst_24 {dimension_numbers = #tpu.dot_dimension_numbers<[1], [0], [0], [1], [0, 0, 1, 1], [], []>} : vector<16x3xf32>, vector<3x1024xf32>, vector<16x1024xf32> -> vector<16x1024xf32>
    %61 = arith.addf %50, %60 : vector<16x1024xf32>
    %c4 = arith.constant 4 : index
    %c0_25 = arith.constant 0 : index
    %c0_26 = arith.constant 0 : index
    %62 = vector.load %arg2[%c4, %c0_25, %c0_26] : memref<9x16x3xf32, #tpu.memory_space<vmem>>, vector<1x16x3xf32>
    %63 = vector.shape_cast %62 : vector<1x16x3xf32> to vector<16x3xf32>
    %cst_27 = arith.constant dense<0.000000e+00> : vector<16x1024xf32>
    %64 = tpu.matmul %63, %22, %cst_27 {dimension_numbers = #tpu.dot_dimension_numbers<[1], [0], [0], [1], [0, 0, 1, 1], [], []>} : vector<16x3xf32>, vector<3x1024xf32>, vector<16x1024xf32> -> vector<16x1024xf32>
    %65 = arith.addf %61, %64 : vector<16x1024xf32>
    %cst_28 = arith.constant 0.000000e+00 : f32
    %66 = vector.broadcast %cst_28 : f32 to vector<3x1xf32>
    %67 = vector.extract_strided_slice %22 {offsets = [0, 1], sizes = [3, 1023], strides = [1, 1]} : vector<3x1024xf32> to vector<3x1023xf32>
    %68 = tpu.concatenate %67, %66 in 1 : vector<3x1023xf32>, vector<3x1xf32> -> vector<3x1024xf32>
    %cst_29 = arith.constant 0.000000e+00 : f32
    %69 = vector.shape_cast %20 : vector<1x1024xi1> to vector<1x1024xi1>
    %70 = vector.broadcast %69 : vector<1x1024xi1> to vector<3x1024xi1>
    %71 = vector.broadcast %cst_29 : f32 to vector<3x1024xf32>
    %72 = arith.select %70, %68, %71 : vector<3x1024xi1>, vector<3x1024xf32>
    %c5 = arith.constant 5 : index
    %c0_30 = arith.constant 0 : index
    %c0_31 = arith.constant 0 : index
    %73 = vector.load %arg2[%c5, %c0_30, %c0_31] : memref<9x16x3xf32, #tpu.memory_space<vmem>>, vector<1x16x3xf32>
    %74 = vector.shape_cast %73 : vector<1x16x3xf32> to vector<16x3xf32>
    %cst_32 = arith.constant dense<0.000000e+00> : vector<16x1024xf32>
    %75 = tpu.matmul %74, %72, %cst_32 {dimension_numbers = #tpu.dot_dimension_numbers<[1], [0], [0], [1], [0, 0, 1, 1], [], []>} : vector<16x3xf32>, vector<3x1024xf32>, vector<16x1024xf32> -> vector<16x1024xf32>
    %76 = arith.addf %65, %75 : vector<16x1024xf32>
    %cst_33 = arith.constant 0.000000e+00 : f32
    %77 = vector.broadcast %cst_33 : f32 to vector<3x31xf32>
    %78 = vector.extract_strided_slice %22 {offsets = [0, 31], sizes = [3, 993], strides = [1, 1]} : vector<3x1024xf32> to vector<3x993xf32>
    %79 = tpu.concatenate %78, %77 in 1 : vector<3x993xf32>, vector<3x31xf32> -> vector<3x1024xf32>
    %cst_34 = arith.constant 0.000000e+00 : f32
    %80 = vector.shape_cast %18 : vector<1x1024xi1> to vector<1x1024xi1>
    %81 = vector.broadcast %80 : vector<1x1024xi1> to vector<3x1024xi1>
    %82 = vector.broadcast %cst_34 : f32 to vector<3x1024xf32>
    %83 = arith.select %81, %79, %82 : vector<3x1024xi1>, vector<3x1024xf32>
    %c6 = arith.constant 6 : index
    %c0_35 = arith.constant 0 : index
    %c0_36 = arith.constant 0 : index
    %84 = vector.load %arg2[%c6, %c0_35, %c0_36] : memref<9x16x3xf32, #tpu.memory_space<vmem>>, vector<1x16x3xf32>
    %85 = vector.shape_cast %84 : vector<1x16x3xf32> to vector<16x3xf32>
    %cst_37 = arith.constant dense<0.000000e+00> : vector<16x1024xf32>
    %86 = tpu.matmul %85, %83, %cst_37 {dimension_numbers = #tpu.dot_dimension_numbers<[1], [0], [0], [1], [0, 0, 1, 1], [], []>} : vector<16x3xf32>, vector<3x1024xf32>, vector<16x1024xf32> -> vector<16x1024xf32>
    %87 = arith.addf %76, %86 : vector<16x1024xf32>
    %cst_38 = arith.constant 0.000000e+00 : f32
    %88 = vector.broadcast %cst_38 : f32 to vector<3x32xf32>
    %89 = vector.extract_strided_slice %22 {offsets = [0, 32], sizes = [3, 992], strides = [1, 1]} : vector<3x1024xf32> to vector<3x992xf32>
    %90 = tpu.concatenate %89, %88 in 1 : vector<3x992xf32>, vector<3x32xf32> -> vector<3x1024xf32>
    %c7 = arith.constant 7 : index
    %c0_39 = arith.constant 0 : index
    %c0_40 = arith.constant 0 : index
    %91 = vector.load %arg2[%c7, %c0_39, %c0_40] : memref<9x16x3xf32, #tpu.memory_space<vmem>>, vector<1x16x3xf32>
    %92 = vector.shape_cast %91 : vector<1x16x3xf32> to vector<16x3xf32>
    %cst_41 = arith.constant dense<0.000000e+00> : vector<16x1024xf32>
    %93 = tpu.matmul %92, %90, %cst_41 {dimension_numbers = #tpu.dot_dimension_numbers<[1], [0], [0], [1], [0, 0, 1, 1], [], []>} : vector<16x3xf32>, vector<3x1024xf32>, vector<16x1024xf32> -> vector<16x1024xf32>
    %94 = arith.addf %87, %93 : vector<16x1024xf32>
    %cst_42 = arith.constant 0.000000e+00 : f32
    %95 = vector.broadcast %cst_42 : f32 to vector<3x33xf32>
    %96 = vector.extract_strided_slice %22 {offsets = [0, 33], sizes = [3, 991], strides = [1, 1]} : vector<3x1024xf32> to vector<3x991xf32>
    %97 = tpu.concatenate %96, %95 in 1 : vector<3x991xf32>, vector<3x33xf32> -> vector<3x1024xf32>
    %cst_43 = arith.constant 0.000000e+00 : f32
    %98 = vector.shape_cast %20 : vector<1x1024xi1> to vector<1x1024xi1>
    %99 = vector.broadcast %98 : vector<1x1024xi1> to vector<3x1024xi1>
    %100 = vector.broadcast %cst_43 : f32 to vector<3x1024xf32>
    %101 = arith.select %99, %97, %100 : vector<3x1024xi1>, vector<3x1024xf32>
    %c8 = arith.constant 8 : index
    %c0_44 = arith.constant 0 : index
    %c0_45 = arith.constant 0 : index
    %102 = vector.load %arg2[%c8, %c0_44, %c0_45] : memref<9x16x3xf32, #tpu.memory_space<vmem>>, vector<1x16x3xf32>
    %103 = vector.shape_cast %102 : vector<1x16x3xf32> to vector<16x3xf32>
    %cst_46 = arith.constant dense<0.000000e+00> : vector<16x1024xf32>
    %104 = tpu.matmul %103, %101, %cst_46 {dimension_numbers = #tpu.dot_dimension_numbers<[1], [0], [0], [1], [0, 0, 1, 1], [], []>} : vector<16x3xf32>, vector<3x1024xf32>, vector<16x1024xf32> -> vector<16x1024xf32>
    %105 = arith.addf %94, %104 : vector<16x1024xf32>
    %c0_47 = arith.constant 0 : index
    %c0_48 = arith.constant 0 : index
    %106 = vector.load %arg3[%c0_47, %c0_48] : memref<16x1xf32, #tpu.memory_space<vmem>>, vector<16x1xf32>
    %107 = vector.broadcast %106 : vector<16x1xf32> to vector<16x1024xf32>
    %108 = arith.addf %105, %107 : vector<16x1024xf32>
    %cst_49 = arith.constant 0.000000e+00 : f32
    %109 = vector.broadcast %cst_49 : f32 to vector<16x1024xf32>
    %110 = arith.maximumf %108, %109 : vector<16x1024xf32>
    %cst_50 = arith.constant 0.000000e+00 : f32
    %111 = vector.broadcast %cst_50 : f32 to vector<16x33xf32>
    %112 = vector.extract_strided_slice %110 {offsets = [0, 0], sizes = [16, 991], strides = [1, 1]} : vector<16x1024xf32> to vector<16x991xf32>
    %113 = tpu.concatenate %111, %112 in 1 : vector<16x33xf32>, vector<16x991xf32> -> vector<16x1024xf32>
    %cst_51 = arith.constant 0.000000e+00 : f32
    %114 = vector.shape_cast %18 : vector<1x1024xi1> to vector<1x1024xi1>
    %115 = vector.broadcast %114 : vector<1x1024xi1> to vector<16x1024xi1>
    %116 = vector.broadcast %cst_51 : f32 to vector<16x1024xf32>
    %117 = arith.select %115, %113, %116 : vector<16x1024xi1>, vector<16x1024xf32>
    %c0_52 = arith.constant 0 : index
    %c0_53 = arith.constant 0 : index
    %c0_54 = arith.constant 0 : index
    %118 = vector.load %arg4[%c0_52, %c0_53, %c0_54] : memref<9x32x16xf32, #tpu.memory_space<vmem>>, vector<1x32x16xf32>
    %119 = vector.shape_cast %118 : vector<1x32x16xf32> to vector<32x16xf32>
    %cst_55 = arith.constant dense<0.000000e+00> : vector<32x1024xf32>
    %120 = tpu.matmul %119, %117, %cst_55 {dimension_numbers = #tpu.dot_dimension_numbers<[1], [0], [0], [1], [0, 0, 1, 1], [], []>} : vector<32x16xf32>, vector<16x1024xf32>, vector<32x1024xf32> -> vector<32x1024xf32>
    %cst_56 = arith.constant 0.000000e+00 : f32
    %121 = vector.broadcast %cst_56 : f32 to vector<16x32xf32>
    %122 = vector.extract_strided_slice %110 {offsets = [0, 0], sizes = [16, 992], strides = [1, 1]} : vector<16x1024xf32> to vector<16x992xf32>
    %123 = tpu.concatenate %121, %122 in 1 : vector<16x32xf32>, vector<16x992xf32> -> vector<16x1024xf32>
    %c1_57 = arith.constant 1 : index
    %c0_58 = arith.constant 0 : index
    %c0_59 = arith.constant 0 : index
    %124 = vector.load %arg4[%c1_57, %c0_58, %c0_59] : memref<9x32x16xf32, #tpu.memory_space<vmem>>, vector<1x32x16xf32>
    %125 = vector.shape_cast %124 : vector<1x32x16xf32> to vector<32x16xf32>
    %cst_60 = arith.constant dense<0.000000e+00> : vector<32x1024xf32>
    %126 = tpu.matmul %125, %123, %cst_60 {dimension_numbers = #tpu.dot_dimension_numbers<[1], [0], [0], [1], [0, 0, 1, 1], [], []>} : vector<32x16xf32>, vector<16x1024xf32>, vector<32x1024xf32> -> vector<32x1024xf32>
    %127 = arith.addf %120, %126 : vector<32x1024xf32>
    %cst_61 = arith.constant 0.000000e+00 : f32
    %128 = vector.broadcast %cst_61 : f32 to vector<16x31xf32>
    %129 = vector.extract_strided_slice %110 {offsets = [0, 0], sizes = [16, 993], strides = [1, 1]} : vector<16x1024xf32> to vector<16x993xf32>
    %130 = tpu.concatenate %128, %129 in 1 : vector<16x31xf32>, vector<16x993xf32> -> vector<16x1024xf32>
    %cst_62 = arith.constant 0.000000e+00 : f32
    %131 = vector.shape_cast %20 : vector<1x1024xi1> to vector<1x1024xi1>
    %132 = vector.broadcast %131 : vector<1x1024xi1> to vector<16x1024xi1>
    %133 = vector.broadcast %cst_62 : f32 to vector<16x1024xf32>
    %134 = arith.select %132, %130, %133 : vector<16x1024xi1>, vector<16x1024xf32>
    %c2_63 = arith.constant 2 : index
    %c0_64 = arith.constant 0 : index
    %c0_65 = arith.constant 0 : index
    %135 = vector.load %arg4[%c2_63, %c0_64, %c0_65] : memref<9x32x16xf32, #tpu.memory_space<vmem>>, vector<1x32x16xf32>
    %136 = vector.shape_cast %135 : vector<1x32x16xf32> to vector<32x16xf32>
    %cst_66 = arith.constant dense<0.000000e+00> : vector<32x1024xf32>
    %137 = tpu.matmul %136, %134, %cst_66 {dimension_numbers = #tpu.dot_dimension_numbers<[1], [0], [0], [1], [0, 0, 1, 1], [], []>} : vector<32x16xf32>, vector<16x1024xf32>, vector<32x1024xf32> -> vector<32x1024xf32>
    %138 = arith.addf %127, %137 : vector<32x1024xf32>
    %cst_67 = arith.constant 0.000000e+00 : f32
    %139 = vector.broadcast %cst_67 : f32 to vector<16x1xf32>
    %140 = vector.extract_strided_slice %110 {offsets = [0, 0], sizes = [16, 1023], strides = [1, 1]} : vector<16x1024xf32> to vector<16x1023xf32>
    %141 = tpu.concatenate %139, %140 in 1 : vector<16x1xf32>, vector<16x1023xf32> -> vector<16x1024xf32>
    %cst_68 = arith.constant 0.000000e+00 : f32
    %142 = vector.shape_cast %18 : vector<1x1024xi1> to vector<1x1024xi1>
    %143 = vector.broadcast %142 : vector<1x1024xi1> to vector<16x1024xi1>
    %144 = vector.broadcast %cst_68 : f32 to vector<16x1024xf32>
    %145 = arith.select %143, %141, %144 : vector<16x1024xi1>, vector<16x1024xf32>
    %c3_69 = arith.constant 3 : index
    %c0_70 = arith.constant 0 : index
    %c0_71 = arith.constant 0 : index
    %146 = vector.load %arg4[%c3_69, %c0_70, %c0_71] : memref<9x32x16xf32, #tpu.memory_space<vmem>>, vector<1x32x16xf32>
    %147 = vector.shape_cast %146 : vector<1x32x16xf32> to vector<32x16xf32>
    %cst_72 = arith.constant dense<0.000000e+00> : vector<32x1024xf32>
    %148 = tpu.matmul %147, %145, %cst_72 {dimension_numbers = #tpu.dot_dimension_numbers<[1], [0], [0], [1], [0, 0, 1, 1], [], []>} : vector<32x16xf32>, vector<16x1024xf32>, vector<32x1024xf32> -> vector<32x1024xf32>
    %149 = arith.addf %138, %148 : vector<32x1024xf32>
    %c4_73 = arith.constant 4 : index
    %c0_74 = arith.constant 0 : index
    %c0_75 = arith.constant 0 : index
    %150 = vector.load %arg4[%c4_73, %c0_74, %c0_75] : memref<9x32x16xf32, #tpu.memory_space<vmem>>, vector<1x32x16xf32>
    %151 = vector.shape_cast %150 : vector<1x32x16xf32> to vector<32x16xf32>
    %cst_76 = arith.constant dense<0.000000e+00> : vector<32x1024xf32>
    %152 = tpu.matmul %151, %110, %cst_76 {dimension_numbers = #tpu.dot_dimension_numbers<[1], [0], [0], [1], [0, 0, 1, 1], [], []>} : vector<32x16xf32>, vector<16x1024xf32>, vector<32x1024xf32> -> vector<32x1024xf32>
    %153 = arith.addf %149, %152 : vector<32x1024xf32>
    %cst_77 = arith.constant 0.000000e+00 : f32
    %154 = vector.broadcast %cst_77 : f32 to vector<16x1xf32>
    %155 = vector.extract_strided_slice %110 {offsets = [0, 1], sizes = [16, 1023], strides = [1, 1]} : vector<16x1024xf32> to vector<16x1023xf32>
    %156 = tpu.concatenate %155, %154 in 1 : vector<16x1023xf32>, vector<16x1xf32> -> vector<16x1024xf32>
    %cst_78 = arith.constant 0.000000e+00 : f32
    %157 = vector.shape_cast %20 : vector<1x1024xi1> to vector<1x1024xi1>
    %158 = vector.broadcast %157 : vector<1x1024xi1> to vector<16x1024xi1>
    %159 = vector.broadcast %cst_78 : f32 to vector<16x1024xf32>
    %160 = arith.select %158, %156, %159 : vector<16x1024xi1>, vector<16x1024xf32>
    %c5_79 = arith.constant 5 : index
    %c0_80 = arith.constant 0 : index
    %c0_81 = arith.constant 0 : index
    %161 = vector.load %arg4[%c5_79, %c0_80, %c0_81] : memref<9x32x16xf32, #tpu.memory_space<vmem>>, vector<1x32x16xf32>
    %162 = vector.shape_cast %161 : vector<1x32x16xf32> to vector<32x16xf32>
    %cst_82 = arith.constant dense<0.000000e+00> : vector<32x1024xf32>
    %163 = tpu.matmul %162, %160, %cst_82 {dimension_numbers = #tpu.dot_dimension_numbers<[1], [0], [0], [1], [0, 0, 1, 1], [], []>} : vector<32x16xf32>, vector<16x1024xf32>, vector<32x1024xf32> -> vector<32x1024xf32>
    %164 = arith.addf %153, %163 : vector<32x1024xf32>
    %cst_83 = arith.constant 0.000000e+00 : f32
    %165 = vector.broadcast %cst_83 : f32 to vector<16x31xf32>
    %166 = vector.extract_strided_slice %110 {offsets = [0, 31], sizes = [16, 993], strides = [1, 1]} : vector<16x1024xf32> to vector<16x993xf32>
    %167 = tpu.concatenate %166, %165 in 1 : vector<16x993xf32>, vector<16x31xf32> -> vector<16x1024xf32>
    %cst_84 = arith.constant 0.000000e+00 : f32
    %168 = vector.shape_cast %18 : vector<1x1024xi1> to vector<1x1024xi1>
    %169 = vector.broadcast %168 : vector<1x1024xi1> to vector<16x1024xi1>
    %170 = vector.broadcast %cst_84 : f32 to vector<16x1024xf32>
    %171 = arith.select %169, %167, %170 : vector<16x1024xi1>, vector<16x1024xf32>
    %c6_85 = arith.constant 6 : index
    %c0_86 = arith.constant 0 : index
    %c0_87 = arith.constant 0 : index
    %172 = vector.load %arg4[%c6_85, %c0_86, %c0_87] : memref<9x32x16xf32, #tpu.memory_space<vmem>>, vector<1x32x16xf32>
    %173 = vector.shape_cast %172 : vector<1x32x16xf32> to vector<32x16xf32>
    %cst_88 = arith.constant dense<0.000000e+00> : vector<32x1024xf32>
    %174 = tpu.matmul %173, %171, %cst_88 {dimension_numbers = #tpu.dot_dimension_numbers<[1], [0], [0], [1], [0, 0, 1, 1], [], []>} : vector<32x16xf32>, vector<16x1024xf32>, vector<32x1024xf32> -> vector<32x1024xf32>
    %175 = arith.addf %164, %174 : vector<32x1024xf32>
    %cst_89 = arith.constant 0.000000e+00 : f32
    %176 = vector.broadcast %cst_89 : f32 to vector<16x32xf32>
    %177 = vector.extract_strided_slice %110 {offsets = [0, 32], sizes = [16, 992], strides = [1, 1]} : vector<16x1024xf32> to vector<16x992xf32>
    %178 = tpu.concatenate %177, %176 in 1 : vector<16x992xf32>, vector<16x32xf32> -> vector<16x1024xf32>
    %c7_90 = arith.constant 7 : index
    %c0_91 = arith.constant 0 : index
    %c0_92 = arith.constant 0 : index
    %179 = vector.load %arg4[%c7_90, %c0_91, %c0_92] : memref<9x32x16xf32, #tpu.memory_space<vmem>>, vector<1x32x16xf32>
    %180 = vector.shape_cast %179 : vector<1x32x16xf32> to vector<32x16xf32>
    %cst_93 = arith.constant dense<0.000000e+00> : vector<32x1024xf32>
    %181 = tpu.matmul %180, %178, %cst_93 {dimension_numbers = #tpu.dot_dimension_numbers<[1], [0], [0], [1], [0, 0, 1, 1], [], []>} : vector<32x16xf32>, vector<16x1024xf32>, vector<32x1024xf32> -> vector<32x1024xf32>
    %182 = arith.addf %175, %181 : vector<32x1024xf32>
    %cst_94 = arith.constant 0.000000e+00 : f32
    %183 = vector.broadcast %cst_94 : f32 to vector<16x33xf32>
    %184 = vector.extract_strided_slice %110 {offsets = [0, 33], sizes = [16, 991], strides = [1, 1]} : vector<16x1024xf32> to vector<16x991xf32>
    %185 = tpu.concatenate %184, %183 in 1 : vector<16x991xf32>, vector<16x33xf32> -> vector<16x1024xf32>
    %cst_95 = arith.constant 0.000000e+00 : f32
    %186 = vector.shape_cast %20 : vector<1x1024xi1> to vector<1x1024xi1>
    %187 = vector.broadcast %186 : vector<1x1024xi1> to vector<16x1024xi1>
    %188 = vector.broadcast %cst_95 : f32 to vector<16x1024xf32>
    %189 = arith.select %187, %185, %188 : vector<16x1024xi1>, vector<16x1024xf32>
    %c8_96 = arith.constant 8 : index
    %c0_97 = arith.constant 0 : index
    %c0_98 = arith.constant 0 : index
    %190 = vector.load %arg4[%c8_96, %c0_97, %c0_98] : memref<9x32x16xf32, #tpu.memory_space<vmem>>, vector<1x32x16xf32>
    %191 = vector.shape_cast %190 : vector<1x32x16xf32> to vector<32x16xf32>
    %cst_99 = arith.constant dense<0.000000e+00> : vector<32x1024xf32>
    %192 = tpu.matmul %191, %189, %cst_99 {dimension_numbers = #tpu.dot_dimension_numbers<[1], [0], [0], [1], [0, 0, 1, 1], [], []>} : vector<32x16xf32>, vector<16x1024xf32>, vector<32x1024xf32> -> vector<32x1024xf32>
    %193 = arith.addf %182, %192 : vector<32x1024xf32>
    %c0_100 = arith.constant 0 : index
    %c0_101 = arith.constant 0 : index
    %194 = vector.load %arg5[%c0_100, %c0_101] : memref<32x1xf32, #tpu.memory_space<vmem>>, vector<32x1xf32>
    %195 = vector.broadcast %194 : vector<32x1xf32> to vector<32x1024xf32>
    %196 = arith.addf %193, %195 : vector<32x1024xf32>
    %cst_102 = arith.constant 0.000000e+00 : f32
    %197 = vector.broadcast %cst_102 : f32 to vector<32x1024xf32>
    %198 = arith.maximumf %196, %197 : vector<32x1024xf32>
    %199 = tpu.iota {dimensions = array<i32: 1>} : vector<1x10xi32>
    %c0_103 = arith.constant 0 : index
    %c0_104 = arith.constant 0 : index
    %200 = vector.load %arg7[%c0_103, %c0_104] : memref<1x10xf32, #tpu.memory_space<vmem>>, vector<1x10xf32>
    %c0_105 = arith.constant 0 : index
    %c0_106 = arith.constant 0 : index
    %c0_107 = arith.constant 0 : index
    %201 = vector.load %arg6[%c0_105, %c0_106, %c0_107] : memref<10x32x1024xf32, #tpu.memory_space<vmem>>, vector<1x32x1024xf32>
    %202 = vector.shape_cast %201 : vector<1x32x1024xf32> to vector<32x1024xf32>
    %203 = arith.mulf %202, %198 : vector<32x1024xf32>
    %cst_108 = arith.constant dense<0.000000e+00> : vector<32xf32>
    %204 = vector.multi_reduction <add>, %203, %cst_108 [1] : vector<32x1024xf32> to vector<32xf32>
    %205 = vector.shape_cast %204 : vector<32xf32> to vector<32x1xf32>
    %cst_109 = arith.constant dense<0.000000e+00> : vector<1xf32>
    %206 = vector.multi_reduction <add>, %205, %cst_109 [0] : vector<32x1xf32> to vector<1xf32>
    %207 = vector.shape_cast %206 : vector<1xf32> to vector<1x1xf32>
    %c0_i32_110 = arith.constant 0 : i32
    %208 = vector.broadcast %c0_i32_110 : i32 to vector<1x10xi32>
    %209 = arith.cmpi eq, %199, %208 : vector<1x10xi32>
    %cst_111 = arith.constant 0.000000e+00 : f32
    %210 = vector.shape_cast %207 : vector<1x1xf32> to vector<1x1xf32>
    %211 = vector.broadcast %210 : vector<1x1xf32> to vector<1x10xf32>
    %212 = vector.broadcast %cst_111 : f32 to vector<1x10xf32>
    %213 = arith.select %209, %211, %212 : vector<1x10xi1>, vector<1x10xf32>
    %214 = arith.addf %200, %213 : vector<1x10xf32>
    %c1_112 = arith.constant 1 : index
    %c0_113 = arith.constant 0 : index
    %c0_114 = arith.constant 0 : index
    %215 = vector.load %arg6[%c1_112, %c0_113, %c0_114] : memref<10x32x1024xf32, #tpu.memory_space<vmem>>, vector<1x32x1024xf32>
    %216 = vector.shape_cast %215 : vector<1x32x1024xf32> to vector<32x1024xf32>
    %217 = arith.mulf %216, %198 : vector<32x1024xf32>
    %cst_115 = arith.constant dense<0.000000e+00> : vector<32xf32>
    %218 = vector.multi_reduction <add>, %217, %cst_115 [1] : vector<32x1024xf32> to vector<32xf32>
    %219 = vector.shape_cast %218 : vector<32xf32> to vector<32x1xf32>
    %cst_116 = arith.constant dense<0.000000e+00> : vector<1xf32>
    %220 = vector.multi_reduction <add>, %219, %cst_116 [0] : vector<32x1xf32> to vector<1xf32>
    %221 = vector.shape_cast %220 : vector<1xf32> to vector<1x1xf32>
    %c1_i32_117 = arith.constant 1 : i32
    %222 = vector.broadcast %c1_i32_117 : i32 to vector<1x10xi32>
    %223 = arith.cmpi eq, %199, %222 : vector<1x10xi32>
    %cst_118 = arith.constant 0.000000e+00 : f32
    %224 = vector.shape_cast %221 : vector<1x1xf32> to vector<1x1xf32>
    %225 = vector.broadcast %224 : vector<1x1xf32> to vector<1x10xf32>
    %226 = vector.broadcast %cst_118 : f32 to vector<1x10xf32>
    %227 = arith.select %223, %225, %226 : vector<1x10xi1>, vector<1x10xf32>
    %228 = arith.addf %214, %227 : vector<1x10xf32>
    %c2_119 = arith.constant 2 : index
    %c0_120 = arith.constant 0 : index
    %c0_121 = arith.constant 0 : index
    %229 = vector.load %arg6[%c2_119, %c0_120, %c0_121] : memref<10x32x1024xf32, #tpu.memory_space<vmem>>, vector<1x32x1024xf32>
    %230 = vector.shape_cast %229 : vector<1x32x1024xf32> to vector<32x1024xf32>
    %231 = arith.mulf %230, %198 : vector<32x1024xf32>
    %cst_122 = arith.constant dense<0.000000e+00> : vector<32xf32>
    %232 = vector.multi_reduction <add>, %231, %cst_122 [1] : vector<32x1024xf32> to vector<32xf32>
    %233 = vector.shape_cast %232 : vector<32xf32> to vector<32x1xf32>
    %cst_123 = arith.constant dense<0.000000e+00> : vector<1xf32>
    %234 = vector.multi_reduction <add>, %233, %cst_123 [0] : vector<32x1xf32> to vector<1xf32>
    %235 = vector.shape_cast %234 : vector<1xf32> to vector<1x1xf32>
    %c2_i32 = arith.constant 2 : i32
    %236 = vector.broadcast %c2_i32 : i32 to vector<1x10xi32>
    %237 = arith.cmpi eq, %199, %236 : vector<1x10xi32>
    %cst_124 = arith.constant 0.000000e+00 : f32
    %238 = vector.shape_cast %235 : vector<1x1xf32> to vector<1x1xf32>
    %239 = vector.broadcast %238 : vector<1x1xf32> to vector<1x10xf32>
    %240 = vector.broadcast %cst_124 : f32 to vector<1x10xf32>
    %241 = arith.select %237, %239, %240 : vector<1x10xi1>, vector<1x10xf32>
    %242 = arith.addf %228, %241 : vector<1x10xf32>
    %c3_125 = arith.constant 3 : index
    %c0_126 = arith.constant 0 : index
    %c0_127 = arith.constant 0 : index
    %243 = vector.load %arg6[%c3_125, %c0_126, %c0_127] : memref<10x32x1024xf32, #tpu.memory_space<vmem>>, vector<1x32x1024xf32>
    %244 = vector.shape_cast %243 : vector<1x32x1024xf32> to vector<32x1024xf32>
    %245 = arith.mulf %244, %198 : vector<32x1024xf32>
    %cst_128 = arith.constant dense<0.000000e+00> : vector<32xf32>
    %246 = vector.multi_reduction <add>, %245, %cst_128 [1] : vector<32x1024xf32> to vector<32xf32>
    %247 = vector.shape_cast %246 : vector<32xf32> to vector<32x1xf32>
    %cst_129 = arith.constant dense<0.000000e+00> : vector<1xf32>
    %248 = vector.multi_reduction <add>, %247, %cst_129 [0] : vector<32x1xf32> to vector<1xf32>
    %249 = vector.shape_cast %248 : vector<1xf32> to vector<1x1xf32>
    %c3_i32 = arith.constant 3 : i32
    %250 = vector.broadcast %c3_i32 : i32 to vector<1x10xi32>
    %251 = arith.cmpi eq, %199, %250 : vector<1x10xi32>
    %cst_130 = arith.constant 0.000000e+00 : f32
    %252 = vector.shape_cast %249 : vector<1x1xf32> to vector<1x1xf32>
    %253 = vector.broadcast %252 : vector<1x1xf32> to vector<1x10xf32>
    %254 = vector.broadcast %cst_130 : f32 to vector<1x10xf32>
    %255 = arith.select %251, %253, %254 : vector<1x10xi1>, vector<1x10xf32>
    %256 = arith.addf %242, %255 : vector<1x10xf32>
    %c4_131 = arith.constant 4 : index
    %c0_132 = arith.constant 0 : index
    %c0_133 = arith.constant 0 : index
    %257 = vector.load %arg6[%c4_131, %c0_132, %c0_133] : memref<10x32x1024xf32, #tpu.memory_space<vmem>>, vector<1x32x1024xf32>
    %258 = vector.shape_cast %257 : vector<1x32x1024xf32> to vector<32x1024xf32>
    %259 = arith.mulf %258, %198 : vector<32x1024xf32>
    %cst_134 = arith.constant dense<0.000000e+00> : vector<32xf32>
    %260 = vector.multi_reduction <add>, %259, %cst_134 [1] : vector<32x1024xf32> to vector<32xf32>
    %261 = vector.shape_cast %260 : vector<32xf32> to vector<32x1xf32>
    %cst_135 = arith.constant dense<0.000000e+00> : vector<1xf32>
    %262 = vector.multi_reduction <add>, %261, %cst_135 [0] : vector<32x1xf32> to vector<1xf32>
    %263 = vector.shape_cast %262 : vector<1xf32> to vector<1x1xf32>
    %c4_i32 = arith.constant 4 : i32
    %264 = vector.broadcast %c4_i32 : i32 to vector<1x10xi32>
    %265 = arith.cmpi eq, %199, %264 : vector<1x10xi32>
    %cst_136 = arith.constant 0.000000e+00 : f32
    %266 = vector.shape_cast %263 : vector<1x1xf32> to vector<1x1xf32>
    %267 = vector.broadcast %266 : vector<1x1xf32> to vector<1x10xf32>
    %268 = vector.broadcast %cst_136 : f32 to vector<1x10xf32>
    %269 = arith.select %265, %267, %268 : vector<1x10xi1>, vector<1x10xf32>
    %270 = arith.addf %256, %269 : vector<1x10xf32>
    %c5_137 = arith.constant 5 : index
    %c0_138 = arith.constant 0 : index
    %c0_139 = arith.constant 0 : index
    %271 = vector.load %arg6[%c5_137, %c0_138, %c0_139] : memref<10x32x1024xf32, #tpu.memory_space<vmem>>, vector<1x32x1024xf32>
    %272 = vector.shape_cast %271 : vector<1x32x1024xf32> to vector<32x1024xf32>
    %273 = arith.mulf %272, %198 : vector<32x1024xf32>
    %cst_140 = arith.constant dense<0.000000e+00> : vector<32xf32>
    %274 = vector.multi_reduction <add>, %273, %cst_140 [1] : vector<32x1024xf32> to vector<32xf32>
    %275 = vector.shape_cast %274 : vector<32xf32> to vector<32x1xf32>
    %cst_141 = arith.constant dense<0.000000e+00> : vector<1xf32>
    %276 = vector.multi_reduction <add>, %275, %cst_141 [0] : vector<32x1xf32> to vector<1xf32>
    %277 = vector.shape_cast %276 : vector<1xf32> to vector<1x1xf32>
    %c5_i32 = arith.constant 5 : i32
    %278 = vector.broadcast %c5_i32 : i32 to vector<1x10xi32>
    %279 = arith.cmpi eq, %199, %278 : vector<1x10xi32>
    %cst_142 = arith.constant 0.000000e+00 : f32
    %280 = vector.shape_cast %277 : vector<1x1xf32> to vector<1x1xf32>
    %281 = vector.broadcast %280 : vector<1x1xf32> to vector<1x10xf32>
    %282 = vector.broadcast %cst_142 : f32 to vector<1x10xf32>
    %283 = arith.select %279, %281, %282 : vector<1x10xi1>, vector<1x10xf32>
    %284 = arith.addf %270, %283 : vector<1x10xf32>
    %c6_143 = arith.constant 6 : index
    %c0_144 = arith.constant 0 : index
    %c0_145 = arith.constant 0 : index
    %285 = vector.load %arg6[%c6_143, %c0_144, %c0_145] : memref<10x32x1024xf32, #tpu.memory_space<vmem>>, vector<1x32x1024xf32>
    %286 = vector.shape_cast %285 : vector<1x32x1024xf32> to vector<32x1024xf32>
    %287 = arith.mulf %286, %198 : vector<32x1024xf32>
    %cst_146 = arith.constant dense<0.000000e+00> : vector<32xf32>
    %288 = vector.multi_reduction <add>, %287, %cst_146 [1] : vector<32x1024xf32> to vector<32xf32>
    %289 = vector.shape_cast %288 : vector<32xf32> to vector<32x1xf32>
    %cst_147 = arith.constant dense<0.000000e+00> : vector<1xf32>
    %290 = vector.multi_reduction <add>, %289, %cst_147 [0] : vector<32x1xf32> to vector<1xf32>
    %291 = vector.shape_cast %290 : vector<1xf32> to vector<1x1xf32>
    %c6_i32 = arith.constant 6 : i32
    %292 = vector.broadcast %c6_i32 : i32 to vector<1x10xi32>
    %293 = arith.cmpi eq, %199, %292 : vector<1x10xi32>
    %cst_148 = arith.constant 0.000000e+00 : f32
    %294 = vector.shape_cast %291 : vector<1x1xf32> to vector<1x1xf32>
    %295 = vector.broadcast %294 : vector<1x1xf32> to vector<1x10xf32>
    %296 = vector.broadcast %cst_148 : f32 to vector<1x10xf32>
    %297 = arith.select %293, %295, %296 : vector<1x10xi1>, vector<1x10xf32>
    %298 = arith.addf %284, %297 : vector<1x10xf32>
    %c7_149 = arith.constant 7 : index
    %c0_150 = arith.constant 0 : index
    %c0_151 = arith.constant 0 : index
    %299 = vector.load %arg6[%c7_149, %c0_150, %c0_151] : memref<10x32x1024xf32, #tpu.memory_space<vmem>>, vector<1x32x1024xf32>
    %300 = vector.shape_cast %299 : vector<1x32x1024xf32> to vector<32x1024xf32>
    %301 = arith.mulf %300, %198 : vector<32x1024xf32>
    %cst_152 = arith.constant dense<0.000000e+00> : vector<32xf32>
    %302 = vector.multi_reduction <add>, %301, %cst_152 [1] : vector<32x1024xf32> to vector<32xf32>
    %303 = vector.shape_cast %302 : vector<32xf32> to vector<32x1xf32>
    %cst_153 = arith.constant dense<0.000000e+00> : vector<1xf32>
    %304 = vector.multi_reduction <add>, %303, %cst_153 [0] : vector<32x1xf32> to vector<1xf32>
    %305 = vector.shape_cast %304 : vector<1xf32> to vector<1x1xf32>
    %c7_i32 = arith.constant 7 : i32
    %306 = vector.broadcast %c7_i32 : i32 to vector<1x10xi32>
    %307 = arith.cmpi eq, %199, %306 : vector<1x10xi32>
    %cst_154 = arith.constant 0.000000e+00 : f32
    %308 = vector.shape_cast %305 : vector<1x1xf32> to vector<1x1xf32>
    %309 = vector.broadcast %308 : vector<1x1xf32> to vector<1x10xf32>
    %310 = vector.broadcast %cst_154 : f32 to vector<1x10xf32>
    %311 = arith.select %307, %309, %310 : vector<1x10xi1>, vector<1x10xf32>
    %312 = arith.addf %298, %311 : vector<1x10xf32>
    %c8_155 = arith.constant 8 : index
    %c0_156 = arith.constant 0 : index
    %c0_157 = arith.constant 0 : index
    %313 = vector.load %arg6[%c8_155, %c0_156, %c0_157] : memref<10x32x1024xf32, #tpu.memory_space<vmem>>, vector<1x32x1024xf32>
    %314 = vector.shape_cast %313 : vector<1x32x1024xf32> to vector<32x1024xf32>
    %315 = arith.mulf %314, %198 : vector<32x1024xf32>
    %cst_158 = arith.constant dense<0.000000e+00> : vector<32xf32>
    %316 = vector.multi_reduction <add>, %315, %cst_158 [1] : vector<32x1024xf32> to vector<32xf32>
    %317 = vector.shape_cast %316 : vector<32xf32> to vector<32x1xf32>
    %cst_159 = arith.constant dense<0.000000e+00> : vector<1xf32>
    %318 = vector.multi_reduction <add>, %317, %cst_159 [0] : vector<32x1xf32> to vector<1xf32>
    %319 = vector.shape_cast %318 : vector<1xf32> to vector<1x1xf32>
    %c8_i32 = arith.constant 8 : i32
    %320 = vector.broadcast %c8_i32 : i32 to vector<1x10xi32>
    %321 = arith.cmpi eq, %199, %320 : vector<1x10xi32>
    %cst_160 = arith.constant 0.000000e+00 : f32
    %322 = vector.shape_cast %319 : vector<1x1xf32> to vector<1x1xf32>
    %323 = vector.broadcast %322 : vector<1x1xf32> to vector<1x10xf32>
    %324 = vector.broadcast %cst_160 : f32 to vector<1x10xf32>
    %325 = arith.select %321, %323, %324 : vector<1x10xi1>, vector<1x10xf32>
    %326 = arith.addf %312, %325 : vector<1x10xf32>
    %c9 = arith.constant 9 : index
    %c0_161 = arith.constant 0 : index
    %c0_162 = arith.constant 0 : index
    %327 = vector.load %arg6[%c9, %c0_161, %c0_162] : memref<10x32x1024xf32, #tpu.memory_space<vmem>>, vector<1x32x1024xf32>
    %328 = vector.shape_cast %327 : vector<1x32x1024xf32> to vector<32x1024xf32>
    %329 = arith.mulf %328, %198 : vector<32x1024xf32>
    %cst_163 = arith.constant dense<0.000000e+00> : vector<32xf32>
    %330 = vector.multi_reduction <add>, %329, %cst_163 [1] : vector<32x1024xf32> to vector<32xf32>
    %331 = vector.shape_cast %330 : vector<32xf32> to vector<32x1xf32>
    %cst_164 = arith.constant dense<0.000000e+00> : vector<1xf32>
    %332 = vector.multi_reduction <add>, %331, %cst_164 [0] : vector<32x1xf32> to vector<1xf32>
    %333 = vector.shape_cast %332 : vector<1xf32> to vector<1x1xf32>
    %c9_i32 = arith.constant 9 : i32
    %334 = vector.broadcast %c9_i32 : i32 to vector<1x10xi32>
    %335 = arith.cmpi eq, %199, %334 : vector<1x10xi32>
    %cst_165 = arith.constant 0.000000e+00 : f32
    %336 = vector.shape_cast %333 : vector<1x1xf32> to vector<1x1xf32>
    %337 = vector.broadcast %336 : vector<1x1xf32> to vector<1x10xf32>
    %338 = vector.broadcast %cst_165 : f32 to vector<1x10xf32>
    %339 = arith.select %335, %337, %338 : vector<1x10xi1>, vector<1x10xf32>
    %340 = arith.addf %326, %339 : vector<1x10xf32>
    %341 = vector.shape_cast %340 : vector<1x10xf32> to vector<1x1x10xf32>
    %c0_166 = arith.constant 0 : index
    %c0_167 = arith.constant 0 : index
    %c0_168 = arith.constant 0 : index
    %342 = vector.load %arg8[%c0_166, %c0_167, %c0_168] : memref<1x1x10xf32, #tpu.memory_space<vmem>>, vector<1x1x10xf32>
    tpu.vector_store %arg8[%c0_166, %c0_167, %c0_168], %341 {strides = array<i32>} : memref<1x1x10xf32, #tpu.memory_space<vmem>>, vector<1x1x10xf32>,
    return
  }
  func.func @transform_0(%arg0: i32) -> (i32, i32, i32) {
    %c0_i32 = arith.constant 0 : i32
    %c0_i32_0 = arith.constant 0 : i32
    %c0_i32_1 = arith.constant 0 : i32
    return %arg0, %c0_i32, %c0_i32_0 : i32, i32, i32
  }
  func.func @transform_1(%arg0: i32) -> (i32, i32, i32) {
    %c0_i32 = arith.constant 0 : i32
    %c0_i32_0 = arith.constant 0 : i32
    %c0_i32_1 = arith.constant 0 : i32
    %c0_i32_2 = arith.constant 0 : i32
    return %c0_i32, %c0_i32_0, %c0_i32_1 : i32, i32, i32
  }
  func.func @transform_2(%arg0: i32) -> (i32, i32) {
    %c0_i32 = arith.constant 0 : i32
    %c0_i32_0 = arith.constant 0 : i32
    %c0_i32_1 = arith.constant 0 : i32
    return %c0_i32, %c0_i32_0 : i32, i32
  }
  func.func @transform_3(%arg0: i32) -> (i32, i32, i32) {
    %c0_i32 = arith.constant 0 : i32
    %c0_i32_0 = arith.constant 0 : i32
    %c0_i32_1 = arith.constant 0 : i32
    %c0_i32_2 = arith.constant 0 : i32
    return %c0_i32, %c0_i32_0, %c0_i32_1 : i32, i32, i32
  }
  func.func @transform_4(%arg0: i32) -> (i32, i32) {
    %c0_i32 = arith.constant 0 : i32
    %c0_i32_0 = arith.constant 0 : i32
    %c0_i32_1 = arith.constant 0 : i32
    return %c0_i32, %c0_i32_0 : i32, i32
  }
  func.func @transform_5(%arg0: i32) -> (i32, i32, i32) {
    %c0_i32 = arith.constant 0 : i32
    %c0_i32_0 = arith.constant 0 : i32
    %c0_i32_1 = arith.constant 0 : i32
    %c0_i32_2 = arith.constant 0 : i32
    return %c0_i32, %c0_i32_0, %c0_i32_1 : i32, i32, i32
  }
  func.func @transform_6(%arg0: i32) -> (i32, i32) {
    %c0_i32 = arith.constant 0 : i32
    %c0_i32_0 = arith.constant 0 : i32
    %c0_i32_1 = arith.constant 0 : i32
    return %c0_i32, %c0_i32_0 : i32, i32
  }
  func.func @transform_7(%arg0: i32) -> (i32, i32, i32) {
    %c0_i32 = arith.constant 0 : i32
    %c0_i32_0 = arith.constant 0 : i32
    %c0_i32_1 = arith.constant 0 : i32
    return %arg0, %c0_i32, %c0_i32_0 : i32, i32, i32
  }
}

</mosaic_0001>

<llo_original>
// kernel: cnn_forward.1
$region0: #{cnn_forward.1}
  #allocation0 [shape = 'u32[]', space=smem, size = 0x4, offset = 0x4, fixed_abs, tag = 'smem constant byte address 0x4 - core index']
  #allocation1 [shape = 'u32[144,128]{1,0:T(1,128)}', space=vmem, size = 0x12000, scoped, tag = 'internal scratch']
  %s0 = inlined_call_operand.vmem [shape: f32[2,3,1024], index: 0, kind: input, shape index: {}]
  %s1 = inlined_call_operand.vmem [shape: f32[9,16,3], index: 1, kind: input, shape index: {}]
  %s2 = inlined_call_operand.vmem [shape: f32[16,1], index: 2, kind: input, shape index: {}]
  %s3 = inlined_call_operand.vmem [shape: f32[9,32,16], index: 3, kind: input, shape index: {}]
  %s4 = inlined_call_operand.vmem [shape: f32[32,1], index: 4, kind: input, shape index: {}]
  %s5 = inlined_call_operand.hbm [shape: f32[10,32,1024], index: 5, kind: input, shape index: {}]
  %s6 = inlined_call_operand.hbm [shape: f32[1,10], index: 6, kind: input, shape index: {}]
  %s7 = inlined_call_operand.hbm [shape: f32[2,1,10], index: 7, kind: output, shape index: {}]
  %s8 = sld [smem:[#allocation0]]
  $region69: #{cnn_forward.1} parent=0
    _
  %s10 = ssub.s32 1, %s8
  %s11 = scalar_select 0, %s10, %s8
  $region1: #{cnn_forward.1} parent=0
    #allocation2 [shape = 'u8[1310720]{0}', space=vmem, size = 0x140000, scoped, tag = 'input window, operand 5, single buffered']
    #allocation3 [shape = 's32[2]{0}', space=sflag, size = 0x8, scoped, tag = 'scoped memory for cnn_forward.1']
    #allocation4 [shape = 's32[2]{0}', space=sflag, size = 0x8, scoped, tag = 'scoped memory for cnn_forward.1']
    #allocation5 [shape = 'u8[512]{0}', space=vmem, size = 0x400, scoped, tag = 'input window, operand 6, single buffered']
    #allocation6 [shape = 's32[1]{0}', space=sflag, size = 0x4, scoped, tag = 'scoped memory for cnn_forward.1']
    #allocation7 [shape = 'u8[1024]{0}', space=vmem, size = 0x400, scoped, tag = 'output window, operand 0']
    %12 = vsyncpa [#allocation3], 0
    %13 = vsyncpa [#allocation6], 0
    %14 = vsyncpa [#allocation4], 0
    %s15 = scalar_lea.sflag [#allocation4], 1
    %16 = vsyncpa %s15, 0
    loop: start=0, step=1, limit=4
    $region2: #{cnn_forward.1} parent=1 // loop_pre_header
      _
    $region3: #{cnn_forward.1} parent=1 // loop_header
      %s18 = sphi 0, %s22
      %p19 = scmp.ge.s32.totalorder %s18, 4
      %s28 = sphi 0, %s30
      %s31 = sphi 0, %s28
      %s32 = sphi 0, %s31
      %s48 = sphi 0, %s32
      %s52 = sphi 0, %s52
      %s54 = sphi 0, %s52
      %s55 = sphi 0, %s54
      %s69 = sphi 0, %s55
      %s73 = sphi 0, %s73
      %s75 = sphi 0, %s73
      %s76 = sphi 0, %s75
      %s90 = sphi 0, %s76
      %s94 = sphi 0, %s94
      %s96 = sphi 0, %s94
      %s97 = sphi 0, %s96
      %s111 = sphi 0, %s97
      %s115 = sphi 0, %s115
      %s117 = sphi 0, %s115
      %s118 = sphi 0, %s117
      %s132 = sphi 0, %s118
      %s136 = sphi 0, %s136
      %s138 = sphi 0, %s136
      %s139 = sphi 0, %s138
      %s153 = sphi 0, %s139
      %s157 = sphi 0, %s157
      %s159 = sphi 0, %s157
      %s160 = sphi 0, %s159
      %s174 = sphi 0, %s160
      %s180 = sphi 0, %s182
      %s183 = sphi 0, %s180
      %s184 = sphi 0, %s183
      %s200 = sphi 0, %s184
    $region4: #{cnn_forward.1} parent=1 // loop_header_branch
      %21 = sbr.rel (%p19) target = $region8
    $region5: #{cnn_forward.1} parent=1 // loop_body
      %s23 = ssub.s32 %s18, 1
      %s24 = ssub.s32 %s18, 2
      %s25 = sadd.s32 %s18, 1
      %s26 = ssub.s32 %s18, %s25
      %p27 = scmp.eq.s32.totalorder %s26, 0
      %s29 = sadd.s32 %s28, 1
      %s30 = scalar_select %p27, %s28, %s29
      %p33 = pneg %p27
      %p34 = scmp.eq.s32.totalorder %s18, 1
      %p35 = por %p33, %p34
      %p36 = scmp.ne.s32.totalorder %s28, %s31
      %p37 = scmp.eq.s32.totalorder %s18, 0
      %p38 = por %p36, %p37
      %p39 = scmp.ne.s32.totalorder %s28, %s31
      %p40 = scmp.eq.s32.totalorder %s23, 1
      %p41 = por %p39, %p40
      %p42 = scmp.ne.s32.totalorder %s31, %s32
      %p43 = scmp.eq.s32.totalorder %s23, 0
      %p44 = por %p42, %p43
      %p45 = scmp.ne.s32.totalorder %s31, %s32
      %p46 = scmp.eq.s32.totalorder %s24, 1
      %p47 = por %p45, %p46
      %p49 = scmp.ne.s32.totalorder %s32, %s48
      %p50 = scmp.eq.s32.totalorder %s24, 0
      %p51 = por %p49, %p50
      %s53 = sadd.s32 %s52, 1
      %p56 = scmp.eq.s32.totalorder %s18, 1
      %p57 = scmp.ne.s32.totalorder %s52, %s54
      %p58 = scmp.eq.s32.totalorder %s18, 0
      %p59 = por %p57, %p58
      %p60 = scmp.ne.s32.totalorder %s52, %s54
      %p61 = scmp.eq.s32.totalorder %s23, 1
      %p62 = por %p60, %p61
      %p63 = scmp.ne.s32.totalorder %s54, %s55
      %p64 = scmp.eq.s32.totalorder %s23, 0
      %p65 = por %p63, %p64
      %p66 = scmp.ne.s32.totalorder %s54, %s55
      %p67 = scmp.eq.s32.totalorder %s24, 1
      %p68 = por %p66, %p67
      %p70 = scmp.ne.s32.totalorder %s55, %s69
      %p71 = scmp.eq.s32.totalorder %s24, 0
      %p72 = por %p70, %p71
      %s74 = sadd.s32 %s73, 1
      %p77 = scmp.eq.s32.totalorder %s18, 1
      %p78 = scmp.ne.s32.totalorder %s73, %s75
      %p79 = scmp.eq.s32.totalorder %s18, 0
      %p80 = por %p78, %p79
      %p81 = scmp.ne.s32.totalorder %s73, %s75
      %p82 = scmp.eq.s32.totalorder %s23, 1
      %p83 = por %p81, %p82
      %p84 = scmp.ne.s32.totalorder %s75, %s76
      %p85 = scmp.eq.s32.totalorder %s23, 0
      %p86 = por %p84, %p85
      %p87 = scmp.ne.s32.totalorder %s75, %s76
      %p88 = scmp.eq.s32.totalorder %s24, 1
      %p89 = por %p87, %p88
      %p91 = scmp.ne.s32.totalorder %s76, %s90
      %p92 = scmp.eq.s32.totalorder %s24, 0
      %p93 = por %p91, %p92
      %s95 = sadd.s32 %s94, 1
      %p98 = scmp.eq.s32.totalorder %s18, 1
      %p99 = scmp.ne.s32.totalorder %s94, %s96
      %p100 = scmp.eq.s32.totalorder %s18, 0
      %p101 = por %p99, %p100
      %p102 = scmp.ne.s32.totalorder %s94, %s96
      %p103 = scmp.eq.s32.totalorder %s23, 1
      %p104 = por %p102, %p103
      %p105 = scmp.ne.s32.totalorder %s96, %s97
      %p106 = scmp.eq.s32.totalorder %s23, 0
      %p107 = por %p105, %p106
      %p108 = scmp.ne.s32.totalorder %s96, %s97
      %p109 = scmp.eq.s32.totalorder %s24, 1
      %p110 = por %p108, %p109
      %p112 = scmp.ne.s32.totalorder %s97, %s111
      %p113 = scmp.eq.s32.totalorder %s24, 0
      %p114 = por %p112, %p113
      %s116 = sadd.s32 %s115, 1
      %p119 = scmp.eq.s32.totalorder %s18, 1
      %p120 = scmp.ne.s32.totalorder %s115, %s117
      %p121 = scmp.eq.s32.totalorder %s18, 0
      %p122 = por %p120, %p121
      %p123 = scmp.ne.s32.totalorder %s115, %s117
      %p124 = scmp.eq.s32.totalorder %s23, 1
      %p125 = por %p123, %p124
      %p126 = scmp.ne.s32.totalorder %s117, %s118
      %p127 = scmp.eq.s32.totalorder %s23, 0
      %p128 = por %p126, %p127
      %p129 = scmp.ne.s32.totalorder %s117, %s118
      %p130 = scmp.eq.s32.totalorder %s24, 1
      %p131 = por %p129, %p130
      %p133 = scmp.ne.s32.totalorder %s118, %s132
      %p134 = scmp.eq.s32.totalorder %s24, 0
      %p135 = por %p133, %p134
      %s137 = sadd.s32 %s136, 1
      %p140 = scmp.eq.s32.totalorder %s18, 1
      %p141 = scmp.ne.s32.totalorder %s136, %s138
      %p142 = scmp.eq.s32.totalorder %s18, 0
      %p143 = por %p141, %p142
      %p144 = scmp.ne.s32.totalorder %s136, %s138
      %p145 = scmp.eq.s32.totalorder %s23, 1
      %p146 = por %p144, %p145
      %p147 = scmp.ne.s32.totalorder %s138, %s139
      %p148 = scmp.eq.s32.totalorder %s23, 0
      %p149 = por %p147, %p148
      %p150 = scmp.ne.s32.totalorder %s138, %s139
      %p151 = scmp.eq.s32.totalorder %s24, 1
      %p152 = por %p150, %p151
      %p154 = scmp.ne.s32.totalorder %s139, %s153
      %p155 = scmp.eq.s32.totalorder %s24, 0
      %p156 = por %p154, %p155
      %s158 = sadd.s32 %s157, 1
      %p161 = scmp.eq.s32.totalorder %s18, 1
      %p162 = scmp.ne.s32.totalorder %s157, %s159
      %p163 = scmp.eq.s32.totalorder %s18, 0
      %p164 = por %p162, %p163
      %p165 = scmp.ne.s32.totalorder %s157, %s159
      %p166 = scmp.eq.s32.totalorder %s23, 1
      %p167 = por %p165, %p166
      %p168 = scmp.ne.s32.totalorder %s159, %s160
      %p169 = scmp.eq.s32.totalorder %s23, 0
      %p170 = por %p168, %p169
      %p171 = scmp.ne.s32.totalorder %s159, %s160
      %p172 = scmp.eq.s32.totalorder %s24, 1
      %p173 = por %p171, %p172
      %p175 = scmp.ne.s32.totalorder %s160, %s174
      %p176 = scmp.eq.s32.totalorder %s24, 0
      %p177 = por %p175, %p176
      %s178 = ssub.s32 %s18, %s25
      %p179 = scmp.eq.s32.totalorder %s178, 0
      %s181 = sadd.s32 %s180, 1
      %s182 = scalar_select %p179, %s180, %s181
      %p185 = pneg %p179
      %p186 = scmp.eq.s32.totalorder %s18, 1
      %p187 = por %p185, %p186
      %p188 = scmp.ne.s32.totalorder %s180, %s183
      %p189 = scmp.eq.s32.totalorder %s18, 0
      %p190 = por %p188, %p189
      %p191 = scmp.ne.s32.totalorder %s180, %s183
      %p192 = scmp.eq.s32.totalorder %s23, 1
      %p193 = por %p191, %p192
      %p194 = scmp.ne.s32.totalorder %s183, %s184
      %p195 = scmp.eq.s32.totalorder %s23, 0
      %p196 = por %p194, %p195
      %p197 = scmp.ne.s32.totalorder %s183, %s184
      %p198 = scmp.eq.s32.totalorder %s24, 1
      %p199 = por %p197, %p198
      %p201 = scmp.ne.s32.totalorder %s184, %s200
      %p202 = scmp.eq.s32.totalorder %s24, 0
      %p203 = por %p201, %p202
      %p204 = scmp.le.s32.totalorder 1, %s18
      %p205 = scmp.lt.s32.totalorder %s18, 3
      %p206 = pnand %p204, %p205
      %p207 = pneg %p206
      // Predicated region
      $region9: #{cnn_forward.1} parent=5 // pred_check
        _
      $region10: #{cnn_forward.1} parent=5 // pred_check_branch
        %209 = sbr.rel (%p206) target = $region12
      $region11: #{cnn_forward.1} parent=5 // pred_region
        %s210 = ssub.s32 %s18, 1
        // Predicated region
        $region13: #{cnn_forward.1} parent=11 // pred_check
          %p211 = pneg %p65
        $region14: #{cnn_forward.1} parent=11 // pred_check_branch
          %213 = sbr.rel (%p211) target = $region16
        $region15: #{cnn_forward.1} parent=11 // pred_region
          _
        $region16: #{cnn_forward.1} parent=11 // pred_fallthru
          _
        // Predicated region
        $region17: #{cnn_forward.1} parent=11 // pred_check
          %p214 = pneg %p86
        $region18: #{cnn_forward.1} parent=11 // pred_check_branch
          %216 = sbr.rel (%p214) target = $region20
        $region19: #{cnn_forward.1} parent=11 // pred_region
          _
        $region20: #{cnn_forward.1} parent=11 // pred_fallthru
          _
        // Predicated region
        $region21: #{cnn_forward.1} parent=11 // pred_check
          %p217 = pneg %p107
        $region22: #{cnn_forward.1} parent=11 // pred_check_branch
          %219 = sbr.rel (%p217) target = $region24
        $region23: #{cnn_forward.1} parent=11 // pred_region
          _
        $region24: #{cnn_forward.1} parent=11 // pred_fallthru
          _
        // Predicated region
        $region25: #{cnn_forward.1} parent=11 // pred_check
          %p220 = pneg %p128
        $region26: #{cnn_forward.1} parent=11 // pred_check_branch
          %222 = sbr.rel (%p220) target = $region28
        $region27: #{cnn_forward.1} parent=11 // pred_region
          _
        $region28: #{cnn_forward.1} parent=11 // pred_fallthru
          _
        // Predicated region
        $region29: #{cnn_forward.1} parent=11 // pred_check
          %p223 = pneg %p149
        $region30: #{cnn_forward.1} parent=11 // pred_check_branch
          %225 = sbr.rel (%p223) target = $region32
        $region31: #{cnn_forward.1} parent=11 // pred_region
          %s227 = ssub.s32 40960, 40960
          %228 = vsyncadd [#allocation3], %s227
          %s229 = sshll.u32 [#allocation2], 4
          %s230 = int_to_ptr.vmem [resolvable:$true] %s229
          %235 = dma.hbm_to_vmem [thread:$0]  %s5, 40960, %s230, [#allocation3], 1024, 1024, 64
        $region32: #{cnn_forward.1} parent=11 // pred_fallthru
          _
        // Predicated region
        $region33: #{cnn_forward.1} parent=11 // pred_check
          %p236 = pneg %p170
        $region34: #{cnn_forward.1} parent=11 // pred_check_branch
          %238 = sbr.rel (%p236) target = $region36
        $region35: #{cnn_forward.1} parent=11 // pred_region
          %s240 = ssub.s32 16, 16
          %241 = vsyncadd [#allocation6], %s240
          %s243 = sshll.u32 [#allocation5], 4
          %s244 = int_to_ptr.vmem [resolvable:$true] %s243
          %246 = dma.hbm_to_vmem [thread:$0]  %s6, 16, %s244, [#allocation6]
        $region36: #{cnn_forward.1} parent=11 // pred_fallthru
          _
      $region12: #{cnn_forward.1} parent=5 // pred_fallthru
        _
      %p247 = scmp.lt.s32.totalorder %s18, 2
      // Predicated region
      $region37: #{cnn_forward.1} parent=5 // pred_check
        %p248 = pneg %p247
      $region38: #{cnn_forward.1} parent=5 // pred_check_branch
        %250 = sbr.rel (%p248) target = $region40
      $region39: #{cnn_forward.1} parent=5 // pred_region
        // Predicated region
        $region41: #{cnn_forward.1} parent=39 // pred_check
          %p251 = pneg %p38
        $region42: #{cnn_forward.1} parent=39 // pred_check_branch
          %253 = sbr.rel (%p251) target = $region44
        $region43: #{cnn_forward.1} parent=39 // pred_region
          %p254 = scmp.lt.s32.totalorder %s18, 1
          %s255 = scalar_select %p254, %s18, 1
          %s256 = smul.addr %s255, 8
          %s257 = smul.addr %s256, 4
          %s258 = scalar_lea.vmem %s0, %s257
        $region44: #{cnn_forward.1} parent=39 // pred_fallthru
          _
      $region40: #{cnn_forward.1} parent=5 // pred_fallthru
        _
      %p259 = scmp.le.s32.totalorder 1, %s18
      %p260 = scmp.lt.s32.totalorder %s18, 3
      %p261 = pnand %p259, %p260
      %p262 = pneg %p261
      // Predicated region
      $region45: #{cnn_forward.1} parent=5 // pred_check
        _
      $region46: #{cnn_forward.1} parent=5 // pred_check_branch
        %264 = sbr.rel (%p261) target = $region48
      $region47: #{cnn_forward.1} parent=5 // pred_region
        %s265 = ssub.s32 %s18, 1
        // Predicated region
        $region49: #{cnn_forward.1} parent=47 // pred_check
          %p266 = pneg %p149
        $region50: #{cnn_forward.1} parent=47 // pred_check_branch
          %268 = sbr.rel (%p266) target = $region52
        $region51: #{cnn_forward.1} parent=47 // pred_region
          %269 = dma.done [#allocation3], 40960
        $region52: #{cnn_forward.1} parent=47 // pred_fallthru
          _
        // Predicated region
        $region53: #{cnn_forward.1} parent=47 // pred_check
          %p270 = pneg %p170
        $region54: #{cnn_forward.1} parent=47 // pred_check_branch
          %272 = sbr.rel (%p270) target = $region56
        $region55: #{cnn_forward.1} parent=47 // pred_region
          %273 = dma.done [#allocation6], 16
        $region56: #{cnn_forward.1} parent=47 // pred_fallthru
          _
        %p274 = scmp.lt.s32.totalorder %s23, 1
        %s275 = scalar_select %p274, %s23, 1
        %s276 = smul.addr %s275, 8
        %s277 = smul.addr %s276, 4
        %s278 = scalar_lea.vmem %s0, %s277
        %p279 = pneg %p44
        %p280 = pneg %p41
        %p281 = pneg %p65
        %p282 = pneg %p62
        %p283 = pneg %p86
        %p284 = pneg %p83
        %p285 = pneg %p107
        %p286 = pneg %p104
        %p287 = pneg %p128
        %p288 = pneg %p125
        %p289 = pneg %p149
        %p290 = pneg %p146
        %p291 = pneg %p170
        %p292 = pneg %p167
        %p293 = pneg %p196
        %p294 = pneg %p193
        %s295 = sand.u32 %s183, 1
        %s296 = scalar_lea.sflag [#allocation4], %s295
        %s297 = sand.u32 %s183, 1
        %s298 = scalar_lea.vmem [#allocation7], %s297
        %p299 = scmp.lt.s32.totalorder %s23, 1
        %s300 = scalar_select %p299, %s23, 1
        %s301 = smul.addr %s300, 8
        %s302 = smul.addr %s301, 4
        %s303 = scalar_lea.vmem %s0, %s302
        %v304 = vlaneseq
        %v305 = vand.u32 %v304, 127
        %v306 = vadd.s32 %v305, 128
        %v307 = vadd.s32 %v305, 256
        %v308 = vadd.s32 %v305, 384
        %v309 = vadd.s32 %v305, 512
        %v310 = vadd.s32 %v305, 640
        %v311 = vadd.s32 %v305, 768
        %v312 = vadd.s32 %v305, 896
        %vm313 = vcmp.lt.s32.totalorder %v305, 0
        %v314 = vsub.s32 0, %v305
        %v315 = vsel %vm313, %v314, %v305
        %v316 = vshrl.u32 %v315, 5
        %v317 = vand.u32 %v315, 31
        %v318 = vsub.s32 0, %v317
        %v319 = vsel %vm313, %v318, %v317
        %vm320 = vcmp.lt.s32.totalorder %v306, 0
        %v321 = vsub.s32 0, %v306
        %v322 = vsel %vm320, %v321, %v306
        %v323 = vshrl.u32 %v322, 5
        %v324 = vand.u32 %v322, 31
        %v325 = vsub.s32 0, %v324
        %v326 = vsel %vm320, %v325, %v324
        %vm327 = vcmp.lt.s32.totalorder %v307, 0
        %v328 = vsub.s32 0, %v307
        %v329 = vsel %vm327, %v328, %v307
        %v330 = vshrl.u32 %v329, 5
        %v331 = vand.u32 %v329, 31
        %v332 = vsub.s32 0, %v331
        %v333 = vsel %vm327, %v332, %v331
        %vm334 = vcmp.lt.s32.totalorder %v308, 0
        %v335 = vsub.s32 0, %v308
        %v336 = vsel %vm334, %v335, %v308
        %v337 = vshrl.u32 %v336, 5
        %v338 = vand.u32 %v336, 31
        %v339 = vsub.s32 0, %v338
        %v340 = vsel %vm334, %v339, %v338
        %vm341 = vcmp.lt.s32.totalorder %v309, 0
        %v342 = vsub.s32 0, %v309
        %v343 = vsel %vm341, %v342, %v309
        %v344 = vshrl.u32 %v343, 5
        %v345 = vand.u32 %v343, 31
        %v346 = vsub.s32 0, %v345
        %v347 = vsel %vm341, %v346, %v345
        %vm348 = vcmp.lt.s32.totalorder %v310, 0
        %v349 = vsub.s32 0, %v310
        %v350 = vsel %vm348, %v349, %v310
        %v351 = vshrl.u32 %v350, 5
        %v352 = vand.u32 %v350, 31
        %v353 = vsub.s32 0, %v352
        %v354 = vsel %vm348, %v353, %v352
        %vm355 = vcmp.lt.s32.totalorder %v311, 0
        %v356 = vsub.s32 0, %v311
        %v357 = vsel %vm355, %v356, %v311
        %v358 = vshrl.u32 %v357, 5
        %v359 = vand.u32 %v357, 31
        %v360 = vsub.s32 0, %v359
        %v361 = vsel %vm355, %v360, %v359
        %vm362 = vcmp.lt.s32.totalorder %v312, 0
        %v363 = vsub.s32 0, %v312
        %v364 = vsel %vm362, %v363, %v312
        %v365 = vshrl.u32 %v364, 5
        %v366 = vand.u32 %v364, 31
        %v367 = vsub.s32 0, %v366
        %v368 = vsel %vm362, %v367, %v366
        %vm369 = vcmp.ne.s32.totalorder %v319, 0
        %vm370 = vcmp.ne.s32.totalorder %v326, 0
        %vm371 = vcmp.ne.s32.totalorder %v333, 0
        %vm372 = vcmp.ne.s32.totalorder %v340, 0
        %vm373 = vcmp.ne.s32.totalorder %v347, 0
        %vm374 = vcmp.ne.s32.totalorder %v354, 0
        %vm375 = vcmp.ne.s32.totalorder %v361, 0
        %vm376 = vcmp.ne.s32.totalorder %v368, 0
        %vm377 = vcmp.lt.s32.totalorder %v319, 0
        %vm378 = vcmp.lt.s32.totalorder %v326, 0
        %vm379 = vcmp.lt.s32.totalorder %v333, 0
        %vm380 = vcmp.lt.s32.totalorder %v340, 0
        %vm381 = vcmp.lt.s32.totalorder %v347, 0
        %vm382 = vcmp.lt.s32.totalorder %v354, 0
        %vm383 = vcmp.lt.s32.totalorder %v361, 0
        %vm384 = vcmp.lt.s32.totalorder %v368, 0
        %vm385 = vmand %vm377, %vm369
        %vm386 = vmand %vm378, %vm370
        %vm387 = vmand %vm379, %vm371
        %vm388 = vmand %vm380, %vm372
        %vm389 = vmand %vm381, %vm373
        %vm390 = vmand %vm382, %vm374
        %vm391 = vmand %vm383, %vm375
        %vm392 = vmand %vm384, %vm376
        %v393 = vadd.s32 %v319, 32
        %v394 = vadd.s32 %v326, 32
        %v395 = vadd.s32 %v333, 32
        %v396 = vadd.s32 %v340, 32
        %v397 = vadd.s32 %v347, 32
        %v398 = vadd.s32 %v354, 32
        %v399 = vadd.s32 %v361, 32
        %v400 = vadd.s32 %v368, 32
        %v401 = vsel %vm385, %v393, %v319
        %v402 = vsel %vm386, %v394, %v326
        %v403 = vsel %vm387, %v395, %v333
        %v404 = vsel %vm388, %v396, %v340
        %v405 = vsel %vm389, %v397, %v347
        %v406 = vsel %vm390, %v398, %v354
        %v407 = vsel %vm391, %v399, %v361
        %v408 = vsel %vm392, %v400, %v368
        %vm409 = vcmp.ge.s32.totalorder %v401, 1
        %vm410 = vcmp.ge.s32.totalorder %v402, 1
        %vm411 = vcmp.ge.s32.totalorder %v403, 1
        %vm412 = vcmp.ge.s32.totalorder %v404, 1
        %vm413 = vcmp.ge.s32.totalorder %v405, 1
        %vm414 = vcmp.ge.s32.totalorder %v406, 1
        %vm415 = vcmp.ge.s32.totalorder %v407, 1
        %vm416 = vcmp.ge.s32.totalorder %v408, 1
        %vm417 = vcmp.le.s32.totalorder %v401, 30
        %vm418 = vcmp.le.s32.totalorder %v402, 30
        %vm419 = vcmp.le.s32.totalorder %v403, 30
        %vm420 = vcmp.le.s32.totalorder %v404, 30
        %vm421 = vcmp.le.s32.totalorder %v405, 30
        %vm422 = vcmp.le.s32.totalorder %v406, 30
        %vm423 = vcmp.le.s32.totalorder %v407, 30
        %vm424 = vcmp.le.s32.totalorder %v408, 30
        %v425 = vld [vmem:[%s303] sm:$0x77]
        %v426 = vld [vmem:[%s303 + $0x8] sm:$0x77]
        %v427 = vld [vmem:[%s303 + $0x10] sm:$0x77]
        %v428 = vld [vmem:[%s303 + $0x18] sm:$0x77]
        %v433 = vcombine.high %v425, %v425
        %v434 = vcombine.high %v426, %v426
        %v435 = vcombine.high %v427, %v427
        %v436 = vcombine.high %v428, %v428
        %437 = vrot.lane.b32.xlu0 %v425, 33
        %v438 = vpop.permute.xlu0 %437
        %439 = vrot.lane.b32.xlu0 %v433, 33
        %v440 = vpop.permute.xlu0 %439
        %441 = vrot.lane.b32.xlu0 %v426, 33
        %v442 = vpop.permute.xlu0 %441
        %443 = vrot.lane.b32.xlu0 %v434, 33
        %v444 = vpop.permute.xlu0 %443
        %445 = vrot.lane.b32.xlu0 %v427, 33
        %v446 = vpop.permute.xlu0 %445
        %447 = vrot.lane.b32.xlu0 %v435, 33
        %v448 = vpop.permute.xlu0 %447
        %449 = vrot.lane.b32.xlu0 %v428, 33
        %v450 = vpop.permute.xlu0 %449
        %451 = vrot.lane.b32.xlu0 %v436, 33
        %v452 = vpop.permute.xlu0 %451
        %vm453 = vcmask 269312
        %v454 = vsel %vm453, %v438, %v440
        %v455 = vsel %vm453, %v440, %v442
        %v456 = vsel %vm453, %v442, %v444
        %v457 = vsel %vm453, %v444, %v446
        %v458 = vsel %vm453, %v446, %v448
        %v459 = vsel %vm453, %v448, %v450
        %v460 = vsel %vm453, %v450, %v452
        %v469 = vsel %vm453, 0.0, %v438
        %v470 = vsel %vm409, 1, 0
        %v471 = vsel %vm410, 1, 0
        %v472 = vsel %vm411, 1, 0
        %v473 = vsel %vm412, 1, 0
        %v474 = vsel %vm413, 1, 0
        %v475 = vsel %vm414, 1, 0
        %v476 = vsel %vm415, 1, 0
        %v477 = vsel %vm416, 1, 0
        %vm478 = vcmp.eq.s32.totalorder %v470, 1
        %vm479 = vcmp.eq.s32.totalorder %v471, 1
        %vm480 = vcmp.eq.s32.totalorder %v472, 1
        %vm481 = vcmp.eq.s32.totalorder %v473, 1
        %vm482 = vcmp.eq.s32.totalorder %v474, 1
        %vm483 = vcmp.eq.s32.totalorder %v475, 1
        %vm484 = vcmp.eq.s32.totalorder %v476, 1
        %vm485 = vcmp.eq.s32.totalorder %v477, 1
        %v486 = vsel %vm478, %v469, 0.0
        %v487 = vsel %vm479, %v454, 0.0
        %v488 = vsel %vm480, %v455, 0.0
        %v489 = vsel %vm481, %v456, 0.0
        %v490 = vsel %vm482, %v457, 0.0
        %v491 = vsel %vm483, %v458, 0.0
        %v492 = vsel %vm484, %v459, 0.0
        %v493 = vsel %vm485, %v460, 0.0
        %v494 = vld [vmem:[%s1] sm:$0xff]
        %v495 = vld [vmem:[%s1 + $0x8] sm:$0xff]
        %496 = vrot.lane.b32.xlu0 %v425, 32
        %v497 = vpop.permute.xlu0 %496
        %498 = vrot.lane.b32.xlu0 %v433, 32
        %v499 = vpop.permute.xlu0 %498
        %500 = vrot.lane.b32.xlu0 %v426, 32
        %v501 = vpop.permute.xlu0 %500
        %502 = vrot.lane.b32.xlu0 %v434, 32
        %v503 = vpop.permute.xlu0 %502
        %504 = vrot.lane.b32.xlu0 %v427, 32
        %v505 = vpop.permute.xlu0 %504
        %506 = vrot.lane.b32.xlu0 %v435, 32
        %v507 = vpop.permute.xlu0 %506
        %508 = vrot.lane.b32.xlu0 %v428, 32
        %v509 = vpop.permute.xlu0 %508
        %510 = vrot.lane.b32.xlu0 %v436, 32
        %v511 = vpop.permute.xlu0 %510
        %vm512 = vcmask 261120
        %v513 = vsel %vm512, %v497, %v499
        %v514 = vsel %vm512, %v499, %v501
        %v515 = vsel %vm512, %v501, %v503
        %v516 = vsel %vm512, %v503, %v505
        %v517 = vsel %vm512, %v505, %v507
        %v518 = vsel %vm512, %v507, %v509
        %v519 = vsel %vm512, %v509, %v511
        %v521 = vsel %vm512, 0.0, %v497
        %s522 = scalar_lea.vmem %s1, 16
        %v523 = vld [vmem:[%s522] sm:$0xff]
        %v524 = vld [vmem:[%s522 + $0x8] sm:$0xff]
        %vm525 = vcmask 23552
        %v527 = vsel %vm525, %v523, 0
        %v530 = vsel %vm525, %v524, 0
        %vm532 = vcmask 1042432
        %v534 = vsel %vm532, %v521, 0
        %v536 = vsel %vm532, %v513, 0
        %v538 = vsel %vm532, %v514, 0
        %v540 = vsel %vm532, %v515, 0
        %v542 = vsel %vm532, %v516, 0
        %v544 = vsel %vm532, %v517, 0
        %v546 = vsel %vm532, %v518, 0
        %v548 = vsel %vm532, %v519, 0
        %550 = vmatprep.subr.mxu0 %v536
        %551 = vmatpush1.msra.mxu0 %v534
        %552 = vmatprep.subr.mxu0 0.0
        %553 = vmatpush1.msra.mxu0 0.0
        %554 = vmatprep.subr.mxu0 0.0
        %555 = vmatpush1.msra.mxu0 0.0
        %556 = vmatprep.subr.mxu0 0.0
        %557 = vmatpush1.msra.mxu0 0.0
        %558 = vmatprep.subr.mxu0 0.0
        %559 = vmatpush1.msra.mxu0 0.0
        %560 = vmatprep.subr.mxu0 0.0
        %561 = vmatpush1.msra.mxu0 0.0
        %562 = vmatprep.subr.mxu0 0.0
        %563 = vmatpush1.msra.mxu0 0.0
        %564 = vmatprep.subr.mxu0 0.0
        %565 = vmatpush1.msra.mxu0 0.0
        %566 = vmatprep.subr.mxu0 0.0
        %567 = vmatpush1.msra.mxu0 0.0
        %568 = vmatprep.subr.mxu0 0.0
        %569 = vmatpush1.msra.mxu0 0.0
        %570 = vmatprep.subr.mxu0 0.0
        %571 = vmatpush1.msra.mxu0 0.0
        %572 = vmatprep.subr.mxu0 0.0
        %573 = vmatpush1.msra.mxu0 0.0
        %574 = vmatprep.subr.mxu0 0.0
        %575 = vmatpush1.msra.mxu0 0.0
        %576 = vmatprep.subr.mxu0 0.0
        %577 = vmatpush1.msra.mxu0 0.0
        %578 = vmatprep.subr.mxu0 0.0
        %579 = vmatpush1.msra.mxu0 0.0
        %580 = vmatprep.subr.mxu0 0.0
        %581 = vmatpush1.msra.mxu0 0.0
        %582 = vmatprep.subr.mxu0 0.0
        %583 = vmatpush1.msra.mxu0 0.0
        %584 = vmatprep.subr.mxu0 0.0
        %585 = vmatpush1.msra.mxu0 0.0
        %586 = vmatprep.subr.mxu0 0.0
        %587 = vmatpush1.msra.mxu0 0.0
        %588 = vmatprep.subr.mxu0 0.0
        %589 = vmatpush1.msra.mxu0 0.0
        %590 = vmatprep.subr.mxu0 0.0
        %591 = vmatpush1.msra.mxu0 0.0
        %592 = vmatprep.subr.mxu0 0.0
        %593 = vmatpush1.msra.mxu0 0.0
        %594 = vmatprep.subr.mxu0 0.0
        %595 = vmatpush1.msra.mxu0 0.0
        %596 = vmatprep.subr.mxu0 0.0
        %597 = vmatpush1.msra.mxu0 0.0
        %598 = vmatprep.subr.mxu0 0.0
        %599 = vmatpush1.msra.mxu0 0.0
        %600 = vmatprep.subr.mxu0 0.0
        %601 = vmatpush1.msra.mxu0 0.0
        %602 = vmatprep.subr.mxu0 0.0
        %603 = vmatpush1.msra.mxu0 0.0
        %604 = vmatprep.subr.mxu0 0.0
        %605 = vmatpush1.msra.mxu0 0.0
        %606 = vmatprep.subr.mxu0 0.0
        %607 = vmatpush1.msra.mxu0 0.0
        %608 = vmatprep.subr.mxu0 0.0
        %609 = vmatpush1.msra.mxu0 0.0
        %610 = vmatprep.subr.mxu0 0.0
        %611 = vmatpush1.msra.mxu0 0.0
        %612 = vmatprep.subr.mxu0 0.0
        %613 = vmatpush1.msra.mxu0 0.0
        %614 = vmatprep.mubr.f32.mxu0 0.0
        %615 = vmatmul.mubr.f32.gmra.mrb[0].mxu0 %v527
        %v616 = vpop.f32.mrb[0].mxu0
        %v617 = vadd.f32 0.0, %v616
        %v618 = vpop.f32.mrb[0].mxu0
        %v619 = vadd.f32 0.0, %v618
        %620 = vmatprep.mubr.f32.mxu0 0.0
        %621 = vmatmul.mubr.f32.gmra.mrb[0].mxu0 %v530
        %v622 = vpop.f32.mrb[0].mxu0
        %v623 = vadd.f32 0.0, %v622
        %v624 = vpop.f32.mrb[0].mxu0
        %v625 = vadd.f32 0.0, %v624
        %626 = vdwg.mxu0
        %627 = vmatprep.subr.mxu0 %v540
        %628 = vmatpush1.msra.mxu0 %v538
        %629 = vmatprep.subr.mxu0 0.0
        %630 = vmatpush1.msra.mxu0 0.0
        %631 = vmatprep.subr.mxu0 0.0
        %632 = vmatpush1.msra.mxu0 0.0
        %633 = vmatprep.subr.mxu0 0.0
        %634 = vmatpush1.msra.mxu0 0.0
        %635 = vmatprep.subr.mxu0 0.0
        %636 = vmatpush1.msra.mxu0 0.0
        %637 = vmatprep.subr.mxu0 0.0
        %638 = vmatpush1.msra.mxu0 0.0
        %639 = vmatprep.subr.mxu0 0.0
        %640 = vmatpush1.msra.mxu0 0.0
        %641 = vmatprep.subr.mxu0 0.0
        %642 = vmatpush1.msra.mxu0 0.0
        %643 = vmatprep.subr.mxu0 0.0
        %644 = vmatpush1.msra.mxu0 0.0
        %645 = vmatprep.subr.mxu0 0.0
        %646 = vmatpush1.msra.mxu0 0.0
        %647 = vmatprep.subr.mxu0 0.0
        %648 = vmatpush1.msra.mxu0 0.0
        %649 = vmatprep.subr.mxu0 0.0
        %650 = vmatpush1.msra.mxu0 0.0
        %651 = vmatprep.subr.mxu0 0.0
        %652 = vmatpush1.msra.mxu0 0.0
        %653 = vmatprep.subr.mxu0 0.0
        %654 = vmatpush1.msra.mxu0 0.0
        %655 = vmatprep.subr.mxu0 0.0
        %656 = vmatpush1.msra.mxu0 0.0
        %657 = vmatprep.subr.mxu0 0.0
        %658 = vmatpush1.msra.mxu0 0.0
        %659 = vmatprep.subr.mxu0 0.0
        %660 = vmatpush1.msra.mxu0 0.0
        %661 = vmatprep.subr.mxu0 0.0
        %662 = vmatpush1.msra.mxu0 0.0
        %663 = vmatprep.subr.mxu0 0.0
        %664 = vmatpush1.msra.mxu0 0.0
        %665 = vmatprep.subr.mxu0 0.0
        %666 = vmatpush1.msra.mxu0 0.0
        %667 = vmatprep.subr.mxu0 0.0
        %668 = vmatpush1.msra.mxu0 0.0
        %669 = vmatprep.subr.mxu0 0.0
        %670 = vmatpush1.msra.mxu0 0.0
        %671 = vmatprep.subr.mxu0 0.0
        %672 = vmatpush1.msra.mxu0 0.0
        %673 = vmatprep.subr.mxu0 0.0
        %674 = vmatpush1.msra.mxu0 0.0
        %675 = vmatprep.subr.mxu0 0.0
        %676 = vmatpush1.msra.mxu0 0.0
        %677 = vmatprep.subr.mxu0 0.0
        %678 = vmatpush1.msra.mxu0 0.0
        %679 = vmatprep.subr.mxu0 0.0
        %680 = vmatpush1.msra.mxu0 0.0
        %681 = vmatprep.subr.mxu0 0.0
        %682 = vmatpush1.msra.mxu0 0.0
        %683 = vmatprep.subr.mxu0 0.0
        %684 = vmatpush1.msra.mxu0 0.0
        %685 = vmatprep.subr.mxu0 0.0
        %686 = vmatpush1.msra.mxu0 0.0
        %687 = vmatprep.subr.mxu0 0.0
        %688 = vmatpush1.msra.mxu0 0.0
        %689 = vmatprep.subr.mxu0 0.0
        %690 = vmatpush1.msra.mxu0 0.0
        %691 = vmatprep.mubr.f32.mxu0 0.0
        %692 = vmatmul.mubr.f32.gmra.mrb[0].mxu0 %v527
        %v693 = vpop.f32.mrb[0].mxu0
        %v694 = vadd.f32 0.0, %v693
        %v695 = vpop.f32.mrb[0].mxu0
        %v696 = vadd.f32 0.0, %v695
        %697 = vmatprep.mubr.f32.mxu0 0.0
        %698 = vmatmul.mubr.f32.gmra.mrb[0].mxu0 %v530
        %v699 = vpop.f32.mrb[0].mxu0
        %v700 = vadd.f32 0.0, %v699
        %v701 = vpop.f32.mrb[0].mxu0
        %v702 = vadd.f32 0.0, %v701
        %703 = vdwg.mxu0
        %704 = vmatprep.subr.mxu0 %v544
        %705 = vmatpush1.msra.mxu0 %v542
        %706 = vmatprep.subr.mxu0 0.0
        %707 = vmatpush1.msra.mxu0 0.0
        %708 = vmatprep.subr.mxu0 0.0
        %709 = vmatpush1.msra.mxu0 0.0
        %710 = vmatprep.subr.mxu0 0.0
        %711 = vmatpush1.msra.mxu0 0.0
        %712 = vmatprep.subr.mxu0 0.0
        %713 = vmatpush1.msra.mxu0 0.0
        %714 = vmatprep.subr.mxu0 0.0
        %715 = vmatpush1.msra.mxu0 0.0
        %716 = vmatprep.subr.mxu0 0.0
        %717 = vmatpush1.msra.mxu0 0.0
        %718 = vmatprep.subr.mxu0 0.0
        %719 = vmatpush1.msra.mxu0 0.0
        %720 = vmatprep.subr.mxu0 0.0
        %721 = vmatpush1.msra.mxu0 0.0
        %722 = vmatprep.subr.mxu0 0.0
        %723 = vmatpush1.msra.mxu0 0.0
        %724 = vmatprep.subr.mxu0 0.0
        %725 = vmatpush1.msra.mxu0 0.0
        %726 = vmatprep.subr.mxu0 0.0
        %727 = vmatpush1.msra.mxu0 0.0
        %728 = vmatprep.subr.mxu0 0.0
        %729 = vmatpush1.msra.mxu0 0.0
        %730 = vmatprep.subr.mxu0 0.0
        %731 = vmatpush1.msra.mxu0 0.0
        %732 = vmatprep.subr.mxu0 0.0
        %733 = vmatpush1.msra.mxu0 0.0
        %734 = vmatprep.subr.mxu0 0.0
        %735 = vmatpush1.msra.mxu0 0.0
        %736 = vmatprep.subr.mxu0 0.0
        %737 = vmatpush1.msra.mxu0 0.0
        %738 = vmatprep.subr.mxu0 0.0
        %739 = vmatpush1.msra.mxu0 0.0
        %740 = vmatprep.subr.mxu0 0.0
        %741 = vmatpush1.msra.mxu0 0.0
        %742 = vmatprep.subr.mxu0 0.0
        %743 = vmatpush1.msra.mxu0 0.0
        %744 = vmatprep.subr.mxu0 0.0
        %745 = vmatpush1.msra.mxu0 0.0
        %746 = vmatprep.subr.mxu0 0.0
        %747 = vmatpush1.msra.mxu0 0.0
        %748 = vmatprep.subr.mxu0 0.0
        %749 = vmatpush1.msra.mxu0 0.0
        %750 = vmatprep.subr.mxu0 0.0
        %751 = vmatpush1.msra.mxu0 0.0
        %752 = vmatprep.subr.mxu0 0.0
        %753 = vmatpush1.msra.mxu0 0.0
        %754 = vmatprep.subr.mxu0 0.0
        %755 = vmatpush1.msra.mxu0 0.0
        %756 = vmatprep.subr.mxu0 0.0
        %757 = vmatpush1.msra.mxu0 0.0
        %758 = vmatprep.subr.mxu0 0.0
        %759 = vmatpush1.msra.mxu0 0.0
        %760 = vmatprep.subr.mxu0 0.0
        %761 = vmatpush1.msra.mxu0 0.0
        %762 = vmatprep.subr.mxu0 0.0
        %763 = vmatpush1.msra.mxu0 0.0
        %764 = vmatprep.subr.mxu0 0.0
        %765 = vmatpush1.msra.mxu0 0.0
        %766 = vmatprep.subr.mxu0 0.0
        %767 = vmatpush1.msra.mxu0 0.0
        %768 = vmatprep.mubr.f32.mxu0 0.0
        %769 = vmatmul.mubr.f32.gmra.mrb[0].mxu0 %v527
        %v770 = vpop.f32.mrb[0].mxu0
        %v771 = vadd.f32 0.0, %v770
        %v772 = vpop.f32.mrb[0].mxu0
        %v773 = vadd.f32 0.0, %v772
        %774 = vmatprep.mubr.f32.mxu0 0.0
        %775 = vmatmul.mubr.f32.gmra.mrb[0].mxu0 %v530
        %v776 = vpop.f32.mrb[0].mxu0
        %v777 = vadd.f32 0.0, %v776
        %v778 = vpop.f32.mrb[0].mxu0
        %v779 = vadd.f32 0.0, %v778
        %780 = vdwg.mxu0
        %781 = vmatprep.subr.mxu0 %v548
        %782 = vmatpush1.msra.mxu0 %v546
        %783 = vmatprep.subr.mxu0 0.0
        %784 = vmatpush1.msra.mxu0 0.0
        %785 = vmatprep.subr.mxu0 0.0
        %786 = vmatpush1.msra.mxu0 0.0
        %787 = vmatprep.subr.mxu0 0.0
        %788 = vmatpush1.msra.mxu0 0.0
        %789 = vmatprep.subr.mxu0 0.0
        %790 = vmatpush1.msra.mxu0 0.0
        %791 = vmatprep.subr.mxu0 0.0
        %792 = vmatpush1.msra.mxu0 0.0
        %793 = vmatprep.subr.mxu0 0.0
        %794 = vmatpush1.msra.mxu0 0.0
        %795 = vmatprep.subr.mxu0 0.0
        %796 = vmatpush1.msra.mxu0 0.0
        %797 = vmatprep.subr.mxu0 0.0
        %798 = vmatpush1.msra.mxu0 0.0
        %799 = vmatprep.subr.mxu0 0.0
        %800 = vmatpush1.msra.mxu0 0.0
        %801 = vmatprep.subr.mxu0 0.0
        %802 = vmatpush1.msra.mxu0 0.0
        %803 = vmatprep.subr.mxu0 0.0
        %804 = vmatpush1.msra.mxu0 0.0
        %805 = vmatprep.subr.mxu0 0.0
        %806 = vmatpush1.msra.mxu0 0.0
        %807 = vmatprep.subr.mxu0 0.0
        %808 = vmatpush1.msra.mxu0 0.0
        %809 = vmatprep.subr.mxu0 0.0
        %810 = vmatpush1.msra.mxu0 0.0
        %811 = vmatprep.subr.mxu0 0.0
        %812 = vmatpush1.msra.mxu0 0.0
        %813 = vmatprep.subr.mxu0 0.0
        %814 = vmatpush1.msra.mxu0 0.0
        %815 = vmatprep.subr.mxu0 0.0
        %816 = vmatpush1.msra.mxu0 0.0
        %817 = vmatprep.subr.mxu0 0.0
        %818 = vmatpush1.msra.mxu0 0.0
        %819 = vmatprep.subr.mxu0 0.0
        %820 = vmatpush1.msra.mxu0 0.0
        %821 = vmatprep.subr.mxu0 0.0
        %822 = vmatpush1.msra.mxu0 0.0
        %823 = vmatprep.subr.mxu0 0.0
        %824 = vmatpush1.msra.mxu0 0.0
        %825 = vmatprep.subr.mxu0 0.0
        %826 = vmatpush1.msra.mxu0 0.0
        %827 = vmatprep.subr.mxu0 0.0
        %828 = vmatpush1.msra.mxu0 0.0
        %829 = vmatprep.subr.mxu0 0.0
        %830 = vmatpush1.msra.mxu0 0.0
        %831 = vmatprep.subr.mxu0 0.0
        %832 = vmatpush1.msra.mxu0 0.0
        %833 = vmatprep.subr.mxu0 0.0
        %834 = vmatpush1.msra.mxu0 0.0
        %835 = vmatprep.subr.mxu0 0.0
        %836 = vmatpush1.msra.mxu0 0.0
        %837 = vmatprep.subr.mxu0 0.0
        %838 = vmatpush1.msra.mxu0 0.0
        %839 = vmatprep.subr.mxu0 0.0
        %840 = vmatpush1.msra.mxu0 0.0
        %841 = vmatprep.subr.mxu0 0.0
        %842 = vmatpush1.msra.mxu0 0.0
        %843 = vmatprep.subr.mxu0 0.0
        %844 = vmatpush1.msra.mxu0 0.0
        %845 = vmatprep.mubr.f32.mxu0 0.0
        %846 = vmatmul.mubr.f32.gmra.mrb[0].mxu0 %v527
        %v847 = vpop.f32.mrb[0].mxu0
        %v848 = vadd.f32 0.0, %v847
        %v849 = vpop.f32.mrb[0].mxu0
        %v850 = vadd.f32 0.0, %v849
        %851 = vmatprep.mubr.f32.mxu0 0.0
        %852 = vmatmul.mubr.f32.gmra.mrb[0].mxu0 %v530
        %v853 = vpop.f32.mrb[0].mxu0
        %v854 = vadd.f32 0.0, %v853
        %v855 = vpop.f32.mrb[0].mxu0
        %v856 = vadd.f32 0.0, %v855
        %857 = vdwg.mxu0
        %v859 = vsel %vm525, %v494, 0
        %v862 = vsel %vm525, %v495, 0
        %v865 = vsel %vm532, %v486, 0
        %v868 = vsel %vm532, %v487, 0
        %v871 = vsel %vm532, %v488, 0
        %v874 = vsel %vm532, %v489, 0
        %v877 = vsel %vm532, %v490, 0
        %v880 = vsel %vm532, %v491, 0
        %v883 = vsel %vm532, %v492, 0
        %v886 = vsel %vm532, %v493, 0
        %888 = vmatprep.subr.mxu0 %v868
        %889 = vmatpush1.msra.mxu0 %v865
        %890 = vmatprep.subr.mxu0 0.0
        %891 = vmatpush1.msra.mxu0 0.0
        %892 = vmatprep.subr.mxu0 0.0
        %893 = vmatpush1.msra.mxu0 0.0
        %894 = vmatprep.subr.mxu0 0.0
        %895 = vmatpush1.msra.mxu0 0.0
        %896 = vmatprep.subr.mxu0 0.0
        %897 = vmatpush1.msra.mxu0 0.0
        %898 = vmatprep.subr.mxu0 0.0
        %899 = vmatpush1.msra.mxu0 0.0
        %900 = vmatprep.subr.mxu0 0.0
        %901 = vmatpush1.msra.mxu0 0.0
        %902 = vmatprep.subr.mxu0 0.0
        %903 = vmatpush1.msra.mxu0 0.0
        %904 = vmatprep.subr.mxu0 0.0
        %905 = vmatpush1.msra.mxu0 0.0
        %906 = vmatprep.subr.mxu0 0.0
        %907 = vmatpush1.msra.mxu0 0.0
        %908 = vmatprep.subr.mxu0 0.0
        %909 = vmatpush1.msra.mxu0 0.0
        %910 = vmatprep.subr.mxu0 0.0
        %911 = vmatpush1.msra.mxu0 0.0
        %912 = vmatprep.subr.mxu0 0.0
        %913 = vmatpush1.msra.mxu0 0.0
        %914 = vmatprep.subr.mxu0 0.0
        %915 = vmatpush1.msra.mxu0 0.0
        %916 = vmatprep.subr.mxu0 0.0
        %917 = vmatpush1.msra.mxu0 0.0
        %918 = vmatprep.subr.mxu0 0.0
        %919 = vmatpush1.msra.mxu0 0.0
        %920 = vmatprep.subr.mxu0 0.0
        %921 = vmatpush1.msra.mxu0 0.0
        %922 = vmatprep.subr.mxu0 0.0
        %923 = vmatpush1.msra.mxu0 0.0
        %924 = vmatprep.subr.mxu0 0.0
        %925 = vmatpush1.msra.mxu0 0.0
        %926 = vmatprep.subr.mxu0 0.0
        %927 = vmatpush1.msra.mxu0 0.0
        %928 = vmatprep.subr.mxu0 0.0
        %929 = vmatpush1.msra.mxu0 0.0
        %930 = vmatprep.subr.mxu0 0.0
        %931 = vmatpush1.msra.mxu0 0.0
        %932 = vmatprep.subr.mxu0 0.0
        %933 = vmatpush1.msra.mxu0 0.0
        %934 = vmatprep.subr.mxu0 0.0
        %935 = vmatpush1.msra.mxu0 0.0
        %936 = vmatprep.subr.mxu0 0.0
        %937 = vmatpush1.msra.mxu0 0.0
        %938 = vmatprep.subr.mxu0 0.0
        %939 = vmatpush1.msra.mxu0 0.0
        %940 = vmatprep.subr.mxu0 0.0
        %941 = vmatpush1.msra.mxu0 0.0
        %942 = vmatprep.subr.mxu0 0.0
        %943 = vmatpush1.msra.mxu0 0.0
        %944 = vmatprep.subr.mxu0 0.0
        %945 = vmatpush1.msra.mxu0 0.0
        %946 = vmatprep.subr.mxu0 0.0
        %947 = vmatpush1.msra.mxu0 0.0
        %948 = vmatprep.subr.mxu0 0.0
        %949 = vmatpush1.msra.mxu0 0.0
        %950 = vmatprep.subr.mxu0 0.0
        %951 = vmatpush1.msra.mxu0 0.0
        %952 = vmatprep.mubr.f32.mxu0 0.0
        %953 = vmatmul.mubr.f32.gmra.mrb[0].mxu0 %v859
        %v954 = vpop.f32.mrb[0].mxu0
        %v955 = vadd.f32 %v617, %v954
        %v956 = vpop.f32.mrb[0].mxu0
        %v957 = vadd.f32 %v619, %v956
        %958 = vmatprep.mubr.f32.mxu0 0.0
        %959 = vmatmul.mubr.f32.gmra.mrb[0].mxu0 %v862
        %v960 = vpop.f32.mrb[0].mxu0
        %v961 = vadd.f32 %v623, %v960
        %v962 = vpop.f32.mrb[0].mxu0
        %v963 = vadd.f32 %v625, %v962
        %964 = vdwg.mxu0
        %965 = vmatprep.subr.mxu0 %v874
        %966 = vmatpush1.msra.mxu0 %v871
        %967 = vmatprep.subr.mxu0 0.0
        %968 = vmatpush1.msra.mxu0 0.0
        %969 = vmatprep.subr.mxu0 0.0
        %970 = vmatpush1.msra.mxu0 0.0
        %971 = vmatprep.subr.mxu0 0.0
        %972 = vmatpush1.msra.mxu0 0.0
        %973 = vmatprep.subr.mxu0 0.0
        %974 = vmatpush1.msra.mxu0 0.0
        %975 = vmatprep.subr.mxu0 0.0
        %976 = vmatpush1.msra.mxu0 0.0
        %977 = vmatprep.subr.mxu0 0.0
        %978 = vmatpush1.msra.mxu0 0.0
        %979 = vmatprep.subr.mxu0 0.0
        %980 = vmatpush1.msra.mxu0 0.0
        %981 = vmatprep.subr.mxu0 0.0
        %982 = vmatpush1.msra.mxu0 0.0
        %983 = vmatprep.subr.mxu0 0.0
        %984 = vmatpush1.msra.mxu0 0.0
        %985 = vmatprep.subr.mxu0 0.0
        %986 = vmatpush1.msra.mxu0 0.0
        %987 = vmatprep.subr.mxu0 0.0
        %988 = vmatpush1.msra.mxu0 0.0
        %989 = vmatprep.subr.mxu0 0.0
        %990 = vmatpush1.msra.mxu0 0.0
        %991 = vmatprep.subr.mxu0 0.0
        %992 = vmatpush1.msra.mxu0 0.0
        %993 = vmatprep.subr.mxu0 0.0
        %994 = vmatpush1.msra.mxu0 0.0
        %995 = vmatprep.subr.mxu0 0.0
        %996 = vmatpush1.msra.mxu0 0.0
        %997 = vmatprep.subr.mxu0 0.0
        %998 = vmatpush1.msra.mxu0 0.0
        %999 = vmatprep.subr.mxu0 0.0
        %1000 = vmatpush1.msra.mxu0 0.0
        %1001 = vmatprep.subr.mxu0 0.0
        %1002 = vmatpush1.msra.mxu0 0.0
        %1003 = vmatprep.subr.mxu0 0.0
        %1004 = vmatpush1.msra.mxu0 0.0
        %1005 = vmatprep.subr.mxu0 0.0
        %1006 = vmatpush1.msra.mxu0 0.0
        %1007 = vmatprep.subr.mxu0 0.0
        %1008 = vmatpush1.msra.mxu0 0.0
        %1009 = vmatprep.subr.mxu0 0.0
        %1010 = vmatpush1.msra.mxu0 0.0
        %1011 = vmatprep.subr.mxu0 0.0
        %1012 = vmatpush1.msra.mxu0 0.0
        %1013 = vmatprep.subr.mxu0 0.0
        %1014 = vmatpush1.msra.mxu0 0.0
        %1015 = vmatprep.subr.mxu0 0.0
        %1016 = vmatpush1.msra.mxu0 0.0
        %1017 = vmatprep.subr.mxu0 0.0
        %1018 = vmatpush1.msra.mxu0 0.0
        %1019 = vmatprep.subr.mxu0 0.0
        %1020 = vmatpush1.msra.mxu0 0.0
        %1021 = vmatprep.subr.mxu0 0.0
        %1022 = vmatpush1.msra.mxu0 0.0
        %1023 = vmatprep.subr.mxu0 0.0
        %1024 = vmatpush1.msra.mxu0 0.0
        %1025 = vmatprep.subr.mxu0 0.0
        %1026 = vmatpush1.msra.mxu0 0.0
        %1027 = vmatprep.subr.mxu0 0.0
        %1028 = vmatpush1.msra.mxu0 0.0
        %1029 = vmatprep.mubr.f32.mxu0 0.0
        %1030 = vmatmul.mubr.f32.gmra.mrb[0].mxu0 %v859
        %v1031 = vpop.f32.mrb[0].mxu0
        %v1032 = vadd.f32 %v694, %v1031
        %v1033 = vpop.f32.mrb[0].mxu0
        %v1034 = vadd.f32 %v696, %v1033
        %1035 = vmatprep.mubr.f32.mxu0 0.0
        %1036 = vmatmul.mubr.f32.gmra.mrb[0].mxu0 %v862
        %v1037 = vpop.f32.mrb[0].mxu0
        %v1038 = vadd.f32 %v700, %v1037
        %v1039 = vpop.f32.mrb[0].mxu0
        %v1040 = vadd.f32 %v702, %v1039
        %1041 = vdwg.mxu0
        %1042 = vmatprep.subr.mxu0 %v880
        %1043 = vmatpush1.msra.mxu0 %v877
        %1044 = vmatprep.subr.mxu0 0.0
        %1045 = vmatpush1.msra.mxu0 0.0
        %1046 = vmatprep.subr.mxu0 0.0
        %1047 = vmatpush1.msra.mxu0 0.0
        %1048 = vmatprep.subr.mxu0 0.0
        %1049 = vmatpush1.msra.mxu0 0.0
        %1050 = vmatprep.subr.mxu0 0.0
        %1051 = vmatpush1.msra.mxu0 0.0
        %1052 = vmatprep.subr.mxu0 0.0
        %1053 = vmatpush1.msra.mxu0 0.0
        %1054 = vmatprep.subr.mxu0 0.0
        %1055 = vmatpush1.msra.mxu0 0.0
        %1056 = vmatprep.subr.mxu0 0.0
        %1057 = vmatpush1.msra.mxu0 0.0
        %1058 = vmatprep.subr.mxu0 0.0
        %1059 = vmatpush1.msra.mxu0 0.0
        %1060 = vmatprep.subr.mxu0 0.0
        %1061 = vmatpush1.msra.mxu0 0.0
        %1062 = vmatprep.subr.mxu0 0.0
        %1063 = vmatpush1.msra.mxu0 0.0
        %1064 = vmatprep.subr.mxu0 0.0
        %1065 = vmatpush1.msra.mxu0 0.0
        %1066 = vmatprep.subr.mxu0 0.0
        %1067 = vmatpush1.msra.mxu0 0.0
        %1068 = vmatprep.subr.mxu0 0.0
        %1069 = vmatpush1.msra.mxu0 0.0
        %1070 = vmatprep.subr.mxu0 0.0
        %1071 = vmatpush1.msra.mxu0 0.0
        %1072 = vmatprep.subr.mxu0 0.0
        %1073 = vmatpush1.msra.mxu0 0.0
        %1074 = vmatprep.subr.mxu0 0.0
        %1075 = vmatpush1.msra.mxu0 0.0
        %1076 = vmatprep.subr.mxu0 0.0
        %1077 = vmatpush1.msra.mxu0 0.0
        %1078 = vmatprep.subr.mxu0 0.0
        %1079 = vmatpush1.msra.mxu0 0.0
        %1080 = vmatprep.subr.mxu0 0.0
        %1081 = vmatpush1.msra.mxu0 0.0
        %1082 = vmatprep.subr.mxu0 0.0
        %1083 = vmatpush1.msra.mxu0 0.0
        %1084 = vmatprep.subr.mxu0 0.0
        %1085 = vmatpush1.msra.mxu0 0.0
        %1086 = vmatprep.subr.mxu0 0.0
        %1087 = vmatpush1.msra.mxu0 0.0
        %1088 = vmatprep.subr.mxu0 0.0
        %1089 = vmatpush1.msra.mxu0 0.0
        %1090 = vmatprep.subr.mxu0 0.0
        %1091 = vmatpush1.msra.mxu0 0.0
        %1092 = vmatprep.subr.mxu0 0.0
        %1093 = vmatpush1.msra.mxu0 0.0
        %1094 = vmatprep.subr.mxu0 0.0
        %1095 = vmatpush1.msra.mxu0 0.0
        %1096 = vmatprep.subr.mxu0 0.0
        %1097 = vmatpush1.msra.mxu0 0.0
        %1098 = vmatprep.subr.mxu0 0.0
        %1099 = vmatpush1.msra.mxu0 0.0
        %1100 = vmatprep.subr.mxu0 0.0
        %1101 = vmatpush1.msra.mxu0 0.0
        %1102 = vmatprep.subr.mxu0 0.0
        %1103 = vmatpush1.msra.mxu0 0.0
        %1104 = vmatprep.subr.mxu0 0.0
        %1105 = vmatpush1.msra.mxu0 0.0
        %1106 = vmatprep.mubr.f32.mxu0 0.0
        %1107 = vmatmul.mubr.f32.gmra.mrb[0].mxu0 %v859
        %v1108 = vpop.f32.mrb[0].mxu0
        %v1109 = vadd.f32 %v771, %v1108
        %v1110 = vpop.f32.mrb[0].mxu0
        %v1111 = vadd.f32 %v773, %v1110
        %1112 = vmatprep.mubr.f32.mxu0 0.0
        %1113 = vmatmul.mubr.f32.gmra.mrb[0].mxu0 %v862
        %v1114 = vpop.f32.mrb[0].mxu0
        %v1115 = vadd.f32 %v777, %v1114
        %v1116 = vpop.f32.mrb[0].mxu0
        %v1117 = vadd.f32 %v779, %v1116
        %1118 = vdwg.mxu0
        %1119 = vmatprep.subr.mxu0 %v886
        %1120 = vmatpush1.msra.mxu0 %v883
        %1121 = vmatprep.subr.mxu0 0.0
        %1122 = vmatpush1.msra.mxu0 0.0
        %1123 = vmatprep.subr.mxu0 0.0
        %1124 = vmatpush1.msra.mxu0 0.0
        %1125 = vmatprep.subr.mxu0 0.0
        %1126 = vmatpush1.msra.mxu0 0.0
        %1127 = vmatprep.subr.mxu0 0.0
        %1128 = vmatpush1.msra.mxu0 0.0
        %1129 = vmatprep.subr.mxu0 0.0
        %1130 = vmatpush1.msra.mxu0 0.0
        %1131 = vmatprep.subr.mxu0 0.0
        %1132 = vmatpush1.msra.mxu0 0.0
        %1133 = vmatprep.subr.mxu0 0.0
        %1134 = vmatpush1.msra.mxu0 0.0
        %1135 = vmatprep.subr.mxu0 0.0
        %1136 = vmatpush1.msra.mxu0 0.0
        %1137 = vmatprep.subr.mxu0 0.0
        %1138 = vmatpush1.msra.mxu0 0.0
        %1139 = vmatprep.subr.mxu0 0.0
        %1140 = vmatpush1.msra.mxu0 0.0
        %1141 = vmatprep.subr.mxu0 0.0
        %1142 = vmatpush1.msra.mxu0 0.0
        %1143 = vmatprep.subr.mxu0 0.0
        %1144 = vmatpush1.msra.mxu0 0.0
        %1145 = vmatprep.subr.mxu0 0.0
        %1146 = vmatpush1.msra.mxu0 0.0
        %1147 = vmatprep.subr.mxu0 0.0
        %1148 = vmatpush1.msra.mxu0 0.0
        %1149 = vmatprep.subr.mxu0 0.0
        %1150 = vmatpush1.msra.mxu0 0.0
        %1151 = vmatprep.subr.mxu0 0.0
        %1152 = vmatpush1.msra.mxu0 0.0
        %1153 = vmatprep.subr.mxu0 0.0
        %1154 = vmatpush1.msra.mxu0 0.0
        %1155 = vmatprep.subr.mxu0 0.0
        %1156 = vmatpush1.msra.mxu0 0.0
        %1157 = vmatprep.subr.mxu0 0.0
        %1158 = vmatpush1.msra.mxu0 0.0
        %1159 = vmatprep.subr.mxu0 0.0
        %1160 = vmatpush1.msra.mxu0 0.0
        %1161 = vmatprep.subr.mxu0 0.0
        %1162 = vmatpush1.msra.mxu0 0.0
        %1163 = vmatprep.subr.mxu0 0.0
        %1164 = vmatpush1.msra.mxu0 0.0
        %1165 = vmatprep.subr.mxu0 0.0
        %1166 = vmatpush1.msra.mxu0 0.0
        %1167 = vmatprep.subr.mxu0 0.0
        %1168 = vmatpush1.msra.mxu0 0.0
        %1169 = vmatprep.subr.mxu0 0.0
        %1170 = vmatpush1.msra.mxu0 0.0
        %1171 = vmatprep.subr.mxu0 0.0
        %1172 = vmatpush1.msra.mxu0 0.0
        %1173 = vmatprep.subr.mxu0 0.0
        %1174 = vmatpush1.msra.mxu0 0.0
        %1175 = vmatprep.subr.mxu0 0.0
        %1176 = vmatpush1.msra.mxu0 0.0
        %1177 = vmatprep.subr.mxu0 0.0
        %1178 = vmatpush1.msra.mxu0 0.0
        %1179 = vmatprep.subr.mxu0 0.0
        %1180 = vmatpush1.msra.mxu0 0.0
        %1181 = vmatprep.subr.mxu0 0.0
        %1182 = vmatpush1.msra.mxu0 0.0
        %1183 = vmatprep.mubr.f32.mxu0 0.0
        %1184 = vmatmul.mubr.f32.gmra.mrb[0].mxu0 %v859
        %v1185 = vpop.f32.mrb[0].mxu0
        %v1186 = vadd.f32 %v848, %v1185
        %v1187 = vpop.f32.mrb[0].mxu0
        %v1188 = vadd.f32 %v850, %v1187
        %1189 = vmatprep.mubr.f32.mxu0 0.0
        %1190 = vmatmul.mubr.f32.gmra.mrb[0].mxu0 %v862
        %v1191 = vpop.f32.mrb[0].mxu0
        %v1192 = vadd.f32 %v854, %v1191
        %v1193 = vpop.f32.mrb[0].mxu0
        %v1194 = vadd.f32 %v856, %v1193
        %1195 = vdwg.mxu0
        %1196 = vrot.lane.b32.xlu0 %v425, 31
        %v1197 = vpop.permute.xlu0 %1196
        %1198 = vrot.lane.b32.xlu0 %v433, 31
        %v1199 = vpop.permute.xlu0 %1198
        %1200 = vrot.lane.b32.xlu0 %v426, 31
        %v1201 = vpop.permute.xlu0 %1200
        %1202 = vrot.lane.b32.xlu0 %v434, 31
        %v1203 = vpop.permute.xlu0 %1202
        %1204 = vrot.lane.b32.xlu0 %v427, 31
        %v1205 = vpop.permute.xlu0 %1204
        %1206 = vrot.lane.b32.xlu0 %v435, 31
        %v1207 = vpop.permute.xlu0 %1206
        %1208 = vrot.lane.b32.xlu0 %v428, 31
        %v1209 = vpop.permute.xlu0 %1208
        %1210 = vrot.lane.b32.xlu0 %v436, 31
        %v1211 = vpop.permute.xlu0 %1210
        %vm1212 = vcmask 252928
        %v1213 = vsel %vm1212, %v1197, %v1199
        %v1214 = vsel %vm1212, %v1199, %v1201
        %v1215 = vsel %vm1212, %v1201, %v1203
        %v1216 = vsel %vm1212, %v1203, %v1205
        %v1217 = vsel %vm1212, %v1205, %v1207
        %v1218 = vsel %vm1212, %v1207, %v1209
        %v1219 = vsel %vm1212, %v1209, %v1211
        %v1228 = vsel %vm1212, 0.0, %v1197
        %v1229 = vsel %vm417, 1, 0
        %v1230 = vsel %vm418, 1, 0
        %v1231 = vsel %vm419, 1, 0
        %v1232 = vsel %vm420, 1, 0
        %v1233 = vsel %vm421, 1, 0
        %v1234 = vsel %vm422, 1, 0
        %v1235 = vsel %vm423, 1, 0
        %v1236 = vsel %vm424, 1, 0
        %vm1237 = vcmp.eq.s32.totalorder %v1229, 1
        %vm1238 = vcmp.eq.s32.totalorder %v1230, 1
        %vm1239 = vcmp.eq.s32.totalorder %v1231, 1
        %vm1240 = vcmp.eq.s32.totalorder %v1232, 1
        %vm1241 = vcmp.eq.s32.totalorder %v1233, 1
        %vm1242 = vcmp.eq.s32.totalorder %v1234, 1
        %vm1243 = vcmp.eq.s32.totalorder %v1235, 1
        %vm1244 = vcmp.eq.s32.totalorder %v1236, 1
        %v1245 = vsel %vm1237, %v1228, 0.0
        %v1246 = vsel %vm1238, %v1213, 0.0
        %v1247 = vsel %vm1239, %v1214, 0.0
        %v1248 = vsel %vm1240, %v1215, 0.0
        %v1249 = vsel %vm1241, %v1216, 0.0
        %v1250 = vsel %vm1242, %v1217, 0.0
        %v1251 = vsel %vm1243, %v1218, 0.0
        %v1252 = vsel %vm1244, %v1219, 0.0
        %s1253 = scalar_lea.vmem %s1, 32
        %v1254 = vld [vmem:[%s1253] sm:$0xff]
        %v1255 = vld [vmem:[%s1253 + $0x8] sm:$0xff]
        %v1257 = vsel %vm525, %v1254, 0
        %v1260 = vsel %vm525, %v1255, 0
        %v1263 = vsel %vm532, %v1245, 0
        %v1266 = vsel %vm532, %v1246, 0
        %v1269 = vsel %vm532, %v1247, 0
        %v1272 = vsel %vm532, %v1248, 0
        %v1275 = vsel %vm532, %v1249, 0
        %v1278 = vsel %vm532, %v1250, 0
        %v1281 = vsel %vm532, %v1251, 0
        %v1284 = vsel %vm532, %v1252, 0
        %1286 = vmatprep.subr.mxu0 %v1266
        %1287 = vmatpush1.msra.mxu0 %v1263
        %1288 = vmatprep.subr.mxu0 0.0
        %1289 = vmatpush1.msra.mxu0 0.0
        %1290 = vmatprep.subr.mxu0 0.0
        %1291 = vmatpush1.msra.mxu0 0.0
        %1292 = vmatprep.subr.mxu0 0.0
        %1293 = vmatpush1.msra.mxu0 0.0
        %1294 = vmatprep.subr.mxu0 0.0
        %1295 = vmatpush1.msra.mxu0 0.0
        %1296 = vmatprep.subr.mxu0 0.0
        %1297 = vmatpush1.msra.mxu0 0.0
        %1298 = vmatprep.subr.mxu0 0.0
        %1299 = vmatpush1.msra.mxu0 0.0
        %1300 = vmatprep.subr.mxu0 0.0
        %1301 = vmatpush1.msra.mxu0 0.0
        %1302 = vmatprep.subr.mxu0 0.0
        %1303 = vmatpush1.msra.mxu0 0.0
        %1304 = vmatprep.subr.mxu0 0.0
        %1305 = vmatpush1.msra.mxu0 0.0
        %1306 = vmatprep.subr.mxu0 0.0
        %1307 = vmatpush1.msra.mxu0 0.0
        %1308 = vmatprep.subr.mxu0 0.0
        %1309 = vmatpush1.msra.mxu0 0.0
        %1310 = vmatprep.subr.mxu0 0.0
        %1311 = vmatpush1.msra.mxu0 0.0
        %1312 = vmatprep.subr.mxu0 0.0
        %1313 = vmatpush1.msra.mxu0 0.0
        %1314 = vmatprep.subr.mxu0 0.0
        %1315 = vmatpush1.msra.mxu0 0.0
        %1316 = vmatprep.subr.mxu0 0.0
        %1317 = vmatpush1.msra.mxu0 0.0
        %1318 = vmatprep.subr.mxu0 0.0
        %1319 = vmatpush1.msra.mxu0 0.0
        %1320 = vmatprep.subr.mxu0 0.0
        %1321 = vmatpush1.msra.mxu0 0.0
        %1322 = vmatprep.subr.mxu0 0.0
        %1323 = vmatpush1.msra.mxu0 0.0
        %1324 = vmatprep.subr.mxu0 0.0
        %1325 = vmatpush1.msra.mxu0 0.0
        %1326 = vmatprep.subr.mxu0 0.0
        %1327 = vmatpush1.msra.mxu0 0.0
        %1328 = vmatprep.subr.mxu0 0.0
        %1329 = vmatpush1.msra.mxu0 0.0
        %1330 = vmatprep.subr.mxu0 0.0
        %1331 = vmatpush1.msra.mxu0 0.0
        %1332 = vmatprep.subr.mxu0 0.0
        %1333 = vmatpush1.msra.mxu0 0.0
        %1334 = vmatprep.subr.mxu0 0.0
        %1335 = vmatpush1.msra.mxu0 0.0
        %1336 = vmatprep.subr.mxu0 0.0
        %1337 = vmatpush1.msra.mxu0 0.0
        %1338 = vmatprep.subr.mxu0 0.0
        %1339 = vmatpush1.msra.mxu0 0.0
        %1340 = vmatprep.subr.mxu0 0.0
        %1341 = vmatpush1.msra.mxu0 0.0
        %1342 = vmatprep.subr.mxu0 0.0
        %1343 = vmatpush1.msra.mxu0 0.0
        %1344 = vmatprep.subr.mxu0 0.0
        %1345 = vmatpush1.msra.mxu0 0.0
        %1346 = vmatprep.subr.mxu0 0.0
        %1347 = vmatpush1.msra.mxu0 0.0
        %1348 = vmatprep.subr.mxu0 0.0
        %1349 = vmatpush1.msra.mxu0 0.0
        %1350 = vmatprep.mubr.f32.mxu0 0.0
        %1351 = vmatmul.mubr.f32.gmra.mrb[0].mxu0 %v1257
        %v1352 = vpop.f32.mrb[0].mxu0
        %v1353 = vadd.f32 0.0, %v1352
        %v1354 = vpop.f32.mrb[0].mxu0
        %v1355 = vadd.f32 0.0, %v1354
        %1356 = vmatprep.mubr.f32.mxu0 0.0
        %1357 = vmatmul.mubr.f32.gmra.mrb[0].mxu0 %v1260
        %v1358 = vpop.f32.mrb[0].mxu0
        %v1359 = vadd.f32 0.0, %v1358
        %v1360 = vpop.f32.mrb[0].mxu0
        %v1361 = vadd.f32 0.0, %v1360
        %1362 = vdwg.mxu0
        %1363 = vmatprep.subr.mxu0 %v1272
        %1364 = vmatpush1.msra.mxu0 %v1269
        %1365 = vmatprep.subr.mxu0 0.0
        %1366 = vmatpush1.msra.mxu0 0.0
        %1367 = vmatprep.subr.mxu0 0.0
        %1368 = vmatpush1.msra.mxu0 0.0
        %1369 = vmatprep.subr.mxu0 0.0
        %1370 = vmatpush1.msra.mxu0 0.0
        %1371 = vmatprep.subr.mxu0 0.0
        %1372 = vmatpush1.msra.mxu0 0.0
        %1373 = vmatprep.subr.mxu0 0.0
        %1374 = vmatpush1.msra.mxu0 0.0
        %1375 = vmatprep.subr.mxu0 0.0
        %1376 = vmatpush1.msra.mxu0 0.0
        %1377 = vmatprep.subr.mxu0 0.0
        %1378 = vmatpush1.msra.mxu0 0.0
        %1379 = vmatprep.subr.mxu0 0.0
        %1380 = vmatpush1.msra.mxu0 0.0
        %1381 = vmatprep.subr.mxu0 0.0
        %1382 = vmatpush1.msra.mxu0 0.0
        %1383 = vmatprep.subr.mxu0 0.0
        %1384 = vmatpush1.msra.mxu0 0.0
        %1385 = vmatprep.subr.mxu0 0.0
        %1386 = vmatpush1.msra.mxu0 0.0
        %1387 = vmatprep.subr.mxu0 0.0
        %1388 = vmatpush1.msra.mxu0 0.0
        %1389 = vmatprep.subr.mxu0 0.0
        %1390 = vmatpush1.msra.mxu0 0.0
        %1391 = vmatprep.subr.mxu0 0.0
        %1392 = vmatpush1.msra.mxu0 0.0
        %1393 = vmatprep.subr.mxu0 0.0
        %1394 = vmatpush1.msra.mxu0 0.0
        %1395 = vmatprep.subr.mxu0 0.0
        %1396 = vmatpush1.msra.mxu0 0.0
        %1397 = vmatprep.subr.mxu0 0.0
        %1398 = vmatpush1.msra.mxu0 0.0
        %1399 = vmatprep.subr.mxu0 0.0
        %1400 = vmatpush1.msra.mxu0 0.0
        %1401 = vmatprep.subr.mxu0 0.0
        %1402 = vmatpush1.msra.mxu0 0.0
        %1403 = vmatprep.subr.mxu0 0.0
        %1404 = vmatpush1.msra.mxu0 0.0
        %1405 = vmatprep.subr.mxu0 0.0
        %1406 = vmatpush1.msra.mxu0 0.0
        %1407 = vmatprep.subr.mxu0 0.0
        %1408 = vmatpush1.msra.mxu0 0.0
        %1409 = vmatprep.subr.mxu0 0.0
        %1410 = vmatpush1.msra.mxu0 0.0
        %1411 = vmatprep.subr.mxu0 0.0
        %1412 = vmatpush1.msra.mxu0 0.0
        %1413 = vmatprep.subr.mxu0 0.0
        %1414 = vmatpush1.msra.mxu0 0.0
        %1415 = vmatprep.subr.mxu0 0.0
        %1416 = vmatpush1.msra.mxu0 0.0
        %1417 = vmatprep.subr.mxu0 0.0
        %1418 = vmatpush1.msra.mxu0 0.0
        %1419 = vmatprep.subr.mxu0 0.0
        %1420 = vmatpush1.msra.mxu0 0.0
        %1421 = vmatprep.subr.mxu0 0.0
        %1422 = vmatpush1.msra.mxu0 0.0
        %1423 = vmatprep.subr.mxu0 0.0
        %1424 = vmatpush1.msra.mxu0 0.0
        %1425 = vmatprep.subr.mxu0 0.0
        %1426 = vmatpush1.msra.mxu0 0.0
        %1427 = vmatprep.mubr.f32.mxu0 0.0
        %1428 = vmatmul.mubr.f32.gmra.mrb[0].mxu0 %v1257
        %v1429 = vpop.f32.mrb[0].mxu0
        %v1430 = vadd.f32 0.0, %v1429
        %v1431 = vpop.f32.mrb[0].mxu0
        %v1432 = vadd.f32 0.0, %v1431
        %1433 = vmatprep.mubr.f32.mxu0 0.0
        %1434 = vmatmul.mubr.f32.gmra.mrb[0].mxu0 %v1260
        %v1435 = vpop.f32.mrb[0].mxu0
        %v1436 = vadd.f32 0.0, %v1435
        %v1437 = vpop.f32.mrb[0].mxu0
        %v1438 = vadd.f32 0.0, %v1437
        %1439 = vdwg.mxu0
        %1440 = vmatprep.subr.mxu0 %v1278
        %1441 = vmatpush1.msra.mxu0 %v1275
        %1442 = vmatprep.subr.mxu0 0.0
        %1443 = vmatpush1.msra.mxu0 0.0
        %1444 = vmatprep.subr.mxu0 0.0
        %1445 = vmatpush1.msra.mxu0 0.0
        %1446 = vmatprep.subr.mxu0 0.0
        %1447 = vmatpush1.msra.mxu0 0.0
        %1448 = vmatprep.subr.mxu0 0.0
        %1449 = vmatpush1.msra.mxu0 0.0
        %1450 = vmatprep.subr.mxu0 0.0
        %1451 = vmatpush1.msra.mxu0 0.0
        %1452 = vmatprep.subr.mxu0 0.0
        %1453 = vmatpush1.msra.mxu0 0.0
        %1454 = vmatprep.subr.mxu0 0.0
        %1455 = vmatpush1.msra.mxu0 0.0
        %1456 = vmatprep.subr.mxu0 0.0
        %1457 = vmatpush1.msra.mxu0 0.0
        %1458 = vmatprep.subr.mxu0 0.0
        %1459 = vmatpush1.msra.mxu0 0.0
        %1460 = vmatprep.subr.mxu0 0.0
        %1461 = vmatpush1.msra.mxu0 0.0
        %1462 = vmatprep.subr.mxu0 0.0
        %1463 = vmatpush1.msra.mxu0 0.0
        %1464 = vmatprep.subr.mxu0 0.0
        %1465 = vmatpush1.msra.mxu0 0.0
        %1466 = vmatprep.subr.mxu0 0.0
        %1467 = vmatpush1.msra.mxu0 0.0
        %1468 = vmatprep.subr.mxu0 0.0
        %1469 = vmatpush1.msra.mxu0 0.0
        %1470 = vmatprep.subr.mxu0 0.0
        %1471 = vmatpush1.msra.mxu0 0.0
        %1472 = vmatprep.subr.mxu0 0.0
        %1473 = vmatpush1.msra.mxu0 0.0
        %1474 = vmatprep.subr.mxu0 0.0
        %1475 = vmatpush1.msra.mxu0 0.0
        %1476 = vmatprep.subr.mxu0 0.0
        %1477 = vmatpush1.msra.mxu0 0.0
        %1478 = vmatprep.subr.mxu0 0.0
        %1479 = vmatpush1.msra.mxu0 0.0
        %1480 = vmatprep.subr.mxu0 0.0
        %1481 = vmatpush1.msra.mxu0 0.0
        %1482 = vmatprep.subr.mxu0 0.0
        %1483 = vmatpush1.msra.mxu0 0.0
        %1484 = vmatprep.subr.mxu0 0.0
        %1485 = vmatpush1.msra.mxu0 0.0
        %1486 = vmatprep.subr.mxu0 0.0
        %1487 = vmatpush1.msra.mxu0 0.0
        %1488 = vmatprep.subr.mxu0 0.0
        %1489 = vmatpush1.msra.mxu0 0.0
        %1490 = vmatprep.subr.mxu0 0.0
        %1491 = vmatpush1.msra.mxu0 0.0
        %1492 = vmatprep.subr.mxu0 0.0
        %1493 = vmatpush1.msra.mxu0 0.0
        %1494 = vmatprep.subr.mxu0 0.0
        %1495 = vmatpush1.msra.mxu0 0.0
        %1496 = vmatprep.subr.mxu0 0.0
        %1497 = vmatpush1.msra.mxu0 0.0
        %1498 = vmatprep.subr.mxu0 0.0
        %1499 = vmatpush1.msra.mxu0 0.0
        %1500 = vmatprep.subr.mxu0 0.0
        %1501 = vmatpush1.msra.mxu0 0.0
        %1502 = vmatprep.subr.mxu0 0.0
        %1503 = vmatpush1.msra.mxu0 0.0
        %1504 = vmatprep.mubr.f32.mxu0 0.0
        %1505 = vmatmul.mubr.f32.gmra.mrb[0].mxu0 %v1257
        %v1506 = vpop.f32.mrb[0].mxu0
        %v1507 = vadd.f32 0.0, %v1506
        %v1508 = vpop.f32.mrb[0].mxu0
        %v1509 = vadd.f32 0.0, %v1508
        %1510 = vmatprep.mubr.f32.mxu0 0.0
        %1511 = vmatmul.mubr.f32.gmra.mrb[0].mxu0 %v1260
        %v1512 = vpop.f32.mrb[0].mxu0
        %v1513 = vadd.f32 0.0, %v1512
        %v1514 = vpop.f32.mrb[0].mxu0
        %v1515 = vadd.f32 0.0, %v1514
        %1516 = vdwg.mxu0
        %1517 = vmatprep.subr.mxu0 %v1284
        %1518 = vmatpush1.msra.mxu0 %v1281
        %1519 = vmatprep.subr.mxu0 0.0
        %1520 = vmatpush1.msra.mxu0 0.0
        %1521 = vmatprep.subr.mxu0 0.0
        %1522 = vmatpush1.msra.mxu0 0.0
        %1523 = vmatprep.subr.mxu0 0.0
        %1524 = vmatpush1.msra.mxu0 0.0
        %1525 = vmatprep.subr.mxu0 0.0
        %1526 = vmatpush1.msra.mxu0 0.0
        %1527 = vmatprep.subr.mxu0 0.0
        %1528 = vmatpush1.msra.mxu0 0.0
        %1529 = vmatprep.subr.mxu0 0.0
        %1530 = vmatpush1.msra.mxu0 0.0
        %1531 = vmatprep.subr.mxu0 0.0
        %1532 = vmatpush1.msra.mxu0 0.0
        %1533 = vmatprep.subr.mxu0 0.0
        %1534 = vmatpush1.msra.mxu0 0.0
        %1535 = vmatprep.subr.mxu0 0.0
        %1536 = vmatpush1.msra.mxu0 0.0
        %1537 = vmatprep.subr.mxu0 0.0
        %1538 = vmatpush1.msra.mxu0 0.0
        %1539 = vmatprep.subr.mxu0 0.0
        %1540 = vmatpush1.msra.mxu0 0.0
        %1541 = vmatprep.subr.mxu0 0.0
        %1542 = vmatpush1.msra.mxu0 0.0
        %1543 = vmatprep.subr.mxu0 0.0
        %1544 = vmatpush1.msra.mxu0 0.0
        %1545 = vmatprep.subr.mxu0 0.0
        %1546 = vmatpush1.msra.mxu0 0.0
        %1547 = vmatprep.subr.mxu0 0.0
        %1548 = vmatpush1.msra.mxu0 0.0
        %1549 = vmatprep.subr.mxu0 0.0
        %1550 = vmatpush1.msra.mxu0 0.0
        %1551 = vmatprep.subr.mxu0 0.0
        %1552 = vmatpush1.msra.mxu0 0.0
        %1553 = vmatprep.subr.mxu0 0.0
        %1554 = vmatpush1.msra.mxu0 0.0
        %1555 = vmatprep.subr.mxu0 0.0
        %1556 = vmatpush1.msra.mxu0 0.0
        %1557 = vmatprep.subr.mxu0 0.0
        %1558 = vmatpush1.msra.mxu0 0.0
        %1559 = vmatprep.subr.mxu0 0.0
        %1560 = vmatpush1.msra.mxu0 0.0
        %1561 = vmatprep.subr.mxu0 0.0
        %1562 = vmatpush1.msra.mxu0 0.0
        %1563 = vmatprep.subr.mxu0 0.0
        %1564 = vmatpush1.msra.mxu0 0.0
        %1565 = vmatprep.subr.mxu0 0.0
        %1566 = vmatpush1.msra.mxu0 0.0
        %1567 = vmatprep.subr.mxu0 0.0
        %1568 = vmatpush1.msra.mxu0 0.0
        %1569 = vmatprep.subr.mxu0 0.0
        %1570 = vmatpush1.msra.mxu0 0.0
        %1571 = vmatprep.subr.mxu0 0.0
        %1572 = vmatpush1.msra.mxu0 0.0
        %1573 = vmatprep.subr.mxu0 0.0
        %1574 = vmatpush1.msra.mxu0 0.0
        %1575 = vmatprep.subr.mxu0 0.0
        %1576 = vmatpush1.msra.mxu0 0.0
        %1577 = vmatprep.subr.mxu0 0.0
        %1578 = vmatpush1.msra.mxu0 0.0
        %1579 = vmatprep.subr.mxu0 0.0
        %1580 = vmatpush1.msra.mxu0 0.0
        %1581 = vmatprep.mubr.f32.mxu0 0.0
        %1582 = vmatmul.mubr.f32.gmra.mrb[0].mxu0 %v1257
        %v1583 = vpop.f32.mrb[0].mxu0
        %v1584 = vadd.f32 0.0, %v1583
        %v1585 = vpop.f32.mrb[0].mxu0
        %v1586 = vadd.f32 0.0, %v1585
        %1587 = vmatprep.mubr.f32.mxu0 0.0
        %1588 = vmatmul.mubr.f32.gmra.mrb[0].mxu0 %v1260
        %v1589 = vpop.f32.mrb[0].mxu0
        %v1590 = vadd.f32 0.0, %v1589
        %v1591 = vpop.f32.mrb[0].mxu0
        %v1592 = vadd.f32 0.0, %v1591
        %1593 = vdwg.mxu0
        %v1594 = vadd.f32 %v955, %v1353
        %v1595 = vadd.f32 %v957, %v1355
        %v1596 = vadd.f32 %v1032, %v1430
        %v1597 = vadd.f32 %v1034, %v1432
        %v1598 = vadd.f32 %v1109, %v1507
        %v1599 = vadd.f32 %v1111, %v1509
        %v1600 = vadd.f32 %v1186, %v1584
        %v1601 = vadd.f32 %v1188, %v1586
        %v1602 = vadd.f32 %v961, %v1359
        %v1603 = vadd.f32 %v963, %v1361
        %v1604 = vadd.f32 %v1038, %v1436
        %v1605 = vadd.f32 %v1040, %v1438
        %v1606 = vadd.f32 %v1115, %v1513
        %v1607 = vadd.f32 %v1117, %v1515
        %v1608 = vadd.f32 %v1192, %v1590
        %v1609 = vadd.f32 %v1194, %v1592
        %1610 = vrot.lane.b32.xlu0 %v425, 1
        %v1611 = vpop.permute.xlu0 %1610
        %1612 = vrot.lane.b32.xlu0 %v433, 1
        %v1613 = vpop.permute.xlu0 %1612
        %1614 = vrot.lane.b32.xlu0 %v426, 1
        %v1615 = vpop.permute.xlu0 %1614
        %1616 = vrot.lane.b32.xlu0 %v434, 1
        %v1617 = vpop.permute.xlu0 %1616
        %1618 = vrot.lane.b32.xlu0 %v427, 1
        %v1619 = vpop.permute.xlu0 %1618
        %1620 = vrot.lane.b32.xlu0 %v435, 1
        %v1621 = vpop.permute.xlu0 %1620
        %1622 = vrot.lane.b32.xlu0 %v428, 1
        %v1623 = vpop.permute.xlu0 %1622
        %1624 = vrot.lane.b32.xlu0 %v436, 1
        %v1625 = vpop.permute.xlu0 %1624
        %vm1626 = vcmask 7168
        %v1627 = vsel %vm1626, %v1611, %v1613
        %v1628 = vsel %vm1626, %v1613, %v1615
        %v1629 = vsel %vm1626, %v1615, %v1617
        %v1630 = vsel %vm1626, %v1617, %v1619
        %v1631 = vsel %vm1626, %v1619, %v1621
        %v1632 = vsel %vm1626, %v1621, %v1623
        %v1633 = vsel %vm1626, %v1623, %v1625
        %v1642 = vsel %vm1626, 0.0, %v1611
        %v1643 = vsel %vm478, %v1642, 0.0
        %v1644 = vsel %vm479, %v1627, 0.0
        %v1645 = vsel %vm480, %v1628, 0.0
        %v1646 = vsel %vm481, %v1629, 0.0
        %v1647 = vsel %vm482, %v1630, 0.0
        %v1648 = vsel %vm483, %v1631, 0.0
        %v1649 = vsel %vm484, %v1632, 0.0
        %v1650 = vsel %vm485, %v1633, 0.0
        %s1651 = scalar_lea.vmem %s1, 48
        %v1652 = vld [vmem:[%s1651] sm:$0xff]
        %v1653 = vld [vmem:[%s1651 + $0x8] sm:$0xff]
        %v1655 = vsel %vm525, %v1652, 0
        %v1658 = vsel %vm525, %v1653, 0
        %v1661 = vsel %vm532, %v1643, 0
        %v1664 = vsel %vm532, %v1644, 0
        %v1667 = vsel %vm532, %v1645, 0
        %v1670 = vsel %vm532, %v1646, 0
        %v1673 = vsel %vm532, %v1647, 0
        %v1676 = vsel %vm532, %v1648, 0
        %v1679 = vsel %vm532, %v1649, 0
        %v1682 = vsel %vm532, %v1650, 0
        %1684 = vmatprep.subr.mxu0 %v1664
        %1685 = vmatpush1.msra.mxu0 %v1661
        %1686 = vmatprep.subr.mxu0 0.0
        %1687 = vmatpush1.msra.mxu0 0.0
        %1688 = vmatprep.subr.mxu0 0.0
        %1689 = vmatpush1.msra.mxu0 0.0
        %1690 = vmatprep.subr.mxu0 0.0
        %1691 = vmatpush1.msra.mxu0 0.0
        %1692 = vmatprep.subr.mxu0 0.0
        %1693 = vmatpush1.msra.mxu0 0.0
        %1694 = vmatprep.subr.mxu0 0.0
        %1695 = vmatpush1.msra.mxu0 0.0
        %1696 = vmatprep.subr.mxu0 0.0
        %1697 = vmatpush1.msra.mxu0 0.0
        %1698 = vmatprep.subr.mxu0 0.0
        %1699 = vmatpush1.msra.mxu0 0.0
        %1700 = vmatprep.subr.mxu0 0.0
        %1701 = vmatpush1.msra.mxu0 0.0
        %1702 = vmatprep.subr.mxu0 0.0
        %1703 = vmatpush1.msra.mxu0 0.0
        %1704 = vmatprep.subr.mxu0 0.0
        %1705 = vmatpush1.msra.mxu0 0.0
        %1706 = vmatprep.subr.mxu0 0.0
        %1707 = vmatpush1.msra.mxu0 0.0
        %1708 = vmatprep.subr.mxu0 0.0
        %1709 = vmatpush1.msra.mxu0 0.0
        %1710 = vmatprep.subr.mxu0 0.0
        %1711 = vmatpush1.msra.mxu0 0.0
        %1712 = vmatprep.subr.mxu0 0.0
        %1713 = vmatpush1.msra.mxu0 0.0
        %1714 = vmatprep.subr.mxu0 0.0
        %1715 = vmatpush1.msra.mxu0 0.0
        %1716 = vmatprep.subr.mxu0 0.0
        %1717 = vmatpush1.msra.mxu0 0.0
        %1718 = vmatprep.subr.mxu0 0.0
        %1719 = vmatpush1.msra.mxu0 0.0
        %1720 = vmatprep.subr.mxu0 0.0
        %1721 = vmatpush1.msra.mxu0 0.0
        %1722 = vmatprep.subr.mxu0 0.0
        %1723 = vmatpush1.msra.mxu0 0.0
        %1724 = vmatprep.subr.mxu0 0.0
        %1725 = vmatpush1.msra.mxu0 0.0
        %1726 = vmatprep.subr.mxu0 0.0
        %1727 = vmatpush1.msra.mxu0 0.0
        %1728 = vmatprep.subr.mxu0 0.0
        %1729 = vmatpush1.msra.mxu0 0.0
        %1730 = vmatprep.subr.mxu0 0.0
        %1731 = vmatpush1.msra.mxu0 0.0
        %1732 = vmatprep.subr.mxu0 0.0
        %1733 = vmatpush1.msra.mxu0 0.0
        %1734 = vmatprep.subr.mxu0 0.0
        %1735 = vmatpush1.msra.mxu0 0.0
        %1736 = vmatprep.subr.mxu0 0.0
        %1737 = vmatpush1.msra.mxu0 0.0
        %1738 = vmatprep.subr.mxu0 0.0
        %1739 = vmatpush1.msra.mxu0 0.0
        %1740 = vmatprep.subr.mxu0 0.0
        %1741 = vmatpush1.msra.mxu0 0.0
        %1742 = vmatprep.subr.mxu0 0.0
        %1743 = vmatpush1.msra.mxu0 0.0
        %1744 = vmatprep.subr.mxu0 0.0
        %1745 = vmatpush1.msra.mxu0 0.0
        %1746 = vmatprep.subr.mxu0 0.0
        %1747 = vmatpush1.msra.mxu0 0.0
        %1748 = vmatprep.mubr.f32.mxu0 0.0
        %1749 = vmatmul.mubr.f32.gmra.mrb[0].mxu0 %v1655
        %v1750 = vpop.f32.mrb[0].mxu0
        %v1751 = vadd.f32 0.0, %v1750
        %v1752 = vpop.f32.mrb[0].mxu0
        %v1753 = vadd.f32 0.0, %v1752
        %1754 = vmatprep.mubr.f32.mxu0 0.0
        %1755 = vmatmul.mubr.f32.gmra.mrb[0].mxu0 %v1658
        %v1756 = vpop.f32.mrb[0].mxu0
        %v1757 = vadd.f32 0.0, %v1756
        %v1758 = vpop.f32.mrb[0].mxu0
        %v1759 = vadd.f32 0.0, %v1758
        %1760 = vdwg.mxu0
        %1761 = vmatprep.subr.mxu0 %v1670
        %1762 = vmatpush1.msra.mxu0 %v1667
        %1763 = vmatprep.subr.mxu0 0.0
        %1764 = vmatpush1.msra.mxu0 0.0
        %1765 = vmatprep.subr.mxu0 0.0
        %1766 = vmatpush1.msra.mxu0 0.0
        %1767 = vmatprep.subr.mxu0 0.0
        %1768 = vmatpush1.msra.mxu0 0.0
        %1769 = vmatprep.subr.mxu0 0.0
        %1770 = vmatpush1.msra.mxu0 0.0
        %1771 = vmatprep.subr.mxu0 0.0
        %1772 = vmatpush1.msra.mxu0 0.0
        %1773 = vmatprep.subr.mxu0 0.0
        %1774 = vmatpush1.msra.mxu0 0.0
        %1775 = vmatprep.subr.mxu0 0.0
        %1776 = vmatpush1.msra.mxu0 0.0
        %1777 = vmatprep.subr.mxu0 0.0
        %1778 = vmatpush1.msra.mxu0 0.0
        %1779 = vmatprep.subr.mxu0 0.0
        %1780 = vmatpush1.msra.mxu0 0.0
        %1781 = vmatprep.subr.mxu0 0.0
        %1782 = vmatpush1.msra.mxu0 0.0
        %1783 = vmatprep.subr.mxu0 0.0
        %1784 = vmatpush1.msra.mxu0 0.0
        %1785 = vmatprep.subr.mxu0 0.0
        %1786 = vmatpush1.msra.mxu0 0.0
        %1787 = vmatprep.subr.mxu0 0.0
        %1788 = vmatpush1.msra.mxu0 0.0
        %1789 = vmatprep.subr.mxu0 0.0
        %1790 = vmatpush1.msra.mxu0 0.0
        %1791 = vmatprep.subr.mxu0 0.0
        %1792 = vmatpush1.msra.mxu0 0.0
        %1793 = vmatprep.subr.mxu0 0.0
        %1794 = vmatpush1.msra.mxu0 0.0
        %1795 = vmatprep.subr.mxu0 0.0
        %1796 = vmatpush1.msra.mxu0 0.0
        %1797 = vmatprep.subr.mxu0 0.0
        %1798 = vmatpush1.msra.mxu0 0.0
        %1799 = vmatprep.subr.mxu0 0.0
        %1800 = vmatpush1.msra.mxu0 0.0
        %1801 = vmatprep.subr.mxu0 0.0
        %1802 = vmatpush1.msra.mxu0 0.0
        %1803 = vmatprep.subr.mxu0 0.0
        %1804 = vmatpush1.msra.mxu0 0.0
        %1805 = vmatprep.subr.mxu0 0.0
        %1806 = vmatpush1.msra.mxu0 0.0
        %1807 = vmatprep.subr.mxu0 0.0
        %1808 = vmatpush1.msra.mxu0 0.0
        %1809 = vmatprep.subr.mxu0 0.0
        %1810 = vmatpush1.msra.mxu0 0.0
        %1811 = vmatprep.subr.mxu0 0.0
        %1812 = vmatpush1.msra.mxu0 0.0
        %1813 = vmatprep.subr.mxu0 0.0
        %1814 = vmatpush1.msra.mxu0 0.0
        %1815 = vmatprep.subr.mxu0 0.0
        %1816 = vmatpush1.msra.mxu0 0.0
        %1817 = vmatprep.subr.mxu0 0.0
        %1818 = vmatpush1.msra.mxu0 0.0
        %1819 = vmatprep.subr.mxu0 0.0
        %1820 = vmatpush1.msra.mxu0 0.0
        %1821 = vmatprep.subr.mxu0 0.0
        %1822 = vmatpush1.msra.mxu0 0.0
        %1823 = vmatprep.subr.mxu0 0.0
        %1824 = vmatpush1.msra.mxu0 0.0
        %1825 = vmatprep.mubr.f32.mxu0 0.0
        %1826 = vmatmul.mubr.f32.gmra.mrb[0].mxu0 %v1655
        %v1827 = vpop.f32.mrb[0].mxu0
        %v1828 = vadd.f32 0.0, %v1827
        %v1829 = vpop.f32.mrb[0].mxu0
        %v1830 = vadd.f32 0.0, %v1829
        %1831 = vmatprep.mubr.f32.mxu0 0.0
        %1832 = vmatmul.mubr.f32.gmra.mrb[0].mxu0 %v1658
        %v1833 = vpop.f32.mrb[0].mxu0
        %v1834 = vadd.f32 0.0, %v1833
        %v1835 = vpop.f32.mrb[0].mxu0
        %v1836 = vadd.f32 0.0, %v1835
        %1837 = vdwg.mxu0
        %1838 = vmatprep.subr.mxu0 %v1676
        %1839 = vmatpush1.msra.mxu0 %v1673
        %1840 = vmatprep.subr.mxu0 0.0
        %1841 = vmatpush1.msra.mxu0 0.0
        %1842 = vmatprep.subr.mxu0 0.0
        %1843 = vmatpush1.msra.mxu0 0.0
        %1844 = vmatprep.subr.mxu0 0.0
        %1845 = vmatpush1.msra.mxu0 0.0
        %1846 = vmatprep.subr.mxu0 0.0
        %1847 = vmatpush1.msra.mxu0 0.0
        %1848 = vmatprep.subr.mxu0 0.0
        %1849 = vmatpush1.msra.mxu0 0.0
        %1850 = vmatprep.subr.mxu0 0.0
        %1851 = vmatpush1.msra.mxu0 0.0
        %1852 = vmatprep.subr.mxu0 0.0
        %1853 = vmatpush1.msra.mxu0 0.0
        %1854 = vmatprep.subr.mxu0 0.0
        %1855 = vmatpush1.msra.mxu0 0.0
        %1856 = vmatprep.subr.mxu0 0.0
        %1857 = vmatpush1.msra.mxu0 0.0
        %1858 = vmatprep.subr.mxu0 0.0
        %1859 = vmatpush1.msra.mxu0 0.0
        %1860 = vmatprep.subr.mxu0 0.0
        %1861 = vmatpush1.msra.mxu0 0.0
        %1862 = vmatprep.subr.mxu0 0.0
        %1863 = vmatpush1.msra.mxu0 0.0
        %1864 = vmatprep.subr.mxu0 0.0
        %1865 = vmatpush1.msra.mxu0 0.0
        %1866 = vmatprep.subr.mxu0 0.0
        %1867 = vmatpush1.msra.mxu0 0.0
        %1868 = vmatprep.subr.mxu0 0.0
        %1869 = vmatpush1.msra.mxu0 0.0
        %1870 = vmatprep.subr.mxu0 0.0
        %1871 = vmatpush1.msra.mxu0 0.0
        %1872 = vmatprep.subr.mxu0 0.0
        %1873 = vmatpush1.msra.mxu0 0.0
        %1874 = vmatprep.subr.mxu0 0.0
        %1875 = vmatpush1.msra.mxu0 0.0
        %1876 = vmatprep.subr.mxu0 0.0
        %1877 = vmatpush1.msra.mxu0 0.0
        %1878 = vmatprep.subr.mxu0 0.0
        %1879 = vmatpush1.msra.mxu0 0.0
        %1880 = vmatprep.subr.mxu0 0.0
        %1881 = vmatpush1.msra.mxu0 0.0
        %1882 = vmatprep.subr.mxu0 0.0
        %1883 = vmatpush1.msra.mxu0 0.0
        %1884 = vmatprep.subr.mxu0 0.0
        %1885 = vmatpush1.msra.mxu0 0.0
        %1886 = vmatprep.subr.mxu0 0.0
        %1887 = vmatpush1.msra.mxu0 0.0
        %1888 = vmatprep.subr.mxu0 0.0
        %1889 = vmatpush1.msra.mxu0 0.0
        %1890 = vmatprep.subr.mxu0 0.0
        %1891 = vmatpush1.msra.mxu0 0.0
        %1892 = vmatprep.subr.mxu0 0.0
        %1893 = vmatpush1.msra.mxu0 0.0
        %1894 = vmatprep.subr.mxu0 0.0
        %1895 = vmatpush1.msra.mxu0 0.0
        %1896 = vmatprep.subr.mxu0 0.0
        %1897 = vmatpush1.msra.mxu0 0.0
        %1898 = vmatprep.subr.mxu0 0.0
        %1899 = vmatpush1.msra.mxu0 0.0
        %1900 = vmatprep.subr.mxu0 0.0
        %1901 = vmatpush1.msra.mxu0 0.0
        %1902 = vmatprep.mubr.f32.mxu0 0.0
        %1903 = vmatmul.mubr.f32.gmra.mrb[0].mxu0 %v1655
        %v1904 = vpop.f32.mrb[0].mxu0
        %v1905 = vadd.f32 0.0, %v1904
        %v1906 = vpop.f32.mrb[0].mxu0
        %v1907 = vadd.f32 0.0, %v1906
        %1908 = vmatprep.mubr.f32.mxu0 0.0
        %1909 = vmatmul.mubr.f32.gmra.mrb[0].mxu0 %v1658
        %v1910 = vpop.f32.mrb[0].mxu0
        %v1911 = vadd.f32 0.0, %v1910
        %v1912 = vpop.f32.mrb[0].mxu0
        %v1913 = vadd.f32 0.0, %v1912
        %1914 = vdwg.mxu0
        %1915 = vmatprep.subr.mxu0 %v1682
        %1916 = vmatpush1.msra.mxu0 %v1679
        %1917 = vmatprep.subr.mxu0 0.0
        %1918 = vmatpush1.msra.mxu0 0.0
        %1919 = vmatprep.subr.mxu0 0.0
        %1920 = vmatpush1.msra.mxu0 0.0
        %1921 = vmatprep.subr.mxu0 0.0
        %1922 = vmatpush1.msra.mxu0 0.0
        %1923 = vmatprep.subr.mxu0 0.0
        %1924 = vmatpush1.msra.mxu0 0.0
        %1925 = vmatprep.subr.mxu0 0.0
        %1926 = vmatpush1.msra.mxu0 0.0
        %1927 = vmatprep.subr.mxu0 0.0
        %1928 = vmatpush1.msra.mxu0 0.0
        %1929 = vmatprep.subr.mxu0 0.0
        %1930 = vmatpush1.msra.mxu0 0.0
        %1931 = vmatprep.subr.mxu0 0.0
        %1932 = vmatpush1.msra.mxu0 0.0
        %1933 = vmatprep.subr.mxu0 0.0
        %1934 = vmatpush1.msra.mxu0 0.0
        %1935 = vmatprep.subr.mxu0 0.0
        %1936 = vmatpush1.msra.mxu0 0.0
        %1937 = vmatprep.subr.mxu0 0.0
        %1938 = vmatpush1.msra.mxu0 0.0
        %1939 = vmatprep.subr.mxu0 0.0
        %1940 = vmatpush1.msra.mxu0 0.0
        %1941 = vmatprep.subr.mxu0 0.0
        %1942 = vmatpush1.msra.mxu0 0.0
        %1943 = vmatprep.subr.mxu0 0.0
        %1944 = vmatpush1.msra.mxu0 0.0
        %1945 = vmatprep.subr.mxu0 0.0
        %1946 = vmatpush1.msra.mxu0 0.0
        %1947 = vmatprep.subr.mxu0 0.0
        %1948 = vmatpush1.msra.mxu0 0.0
        %1949 = vmatprep.subr.mxu0 0.0
        %1950 = vmatpush1.msra.mxu0 0.0
        %1951 = vmatprep.subr.mxu0 0.0
        %1952 = vmatpush1.msra.mxu0 0.0
        %1953 = vmatprep.subr.mxu0 0.0
        %1954 = vmatpush1.msra.mxu0 0.0
        %1955 = vmatprep.subr.mxu0 0.0
        %1956 = vmatpush1.msra.mxu0 0.0
        %1957 = vmatprep.subr.mxu0 0.0
        %1958 = vmatpush1.msra.mxu0 0.0
        %1959 = vmatprep.subr.mxu0 0.0
        %1960 = vmatpush1.msra.mxu0 0.0
        %1961 = vmatprep.subr.mxu0 0.0
        %1962 = vmatpush1.msra.mxu0 0.0
        %1963 = vmatprep.subr.mxu0 0.0
        %1964 = vmatpush1.msra.mxu0 0.0
        %1965 = vmatprep.subr.mxu0 0.0
        %1966 = vmatpush1.msra.mxu0 0.0
        %1967 = vmatprep.subr.mxu0 0.0
        %1968 = vmatpush1.msra.mxu0 0.0
        %1969 = vmatprep.subr.mxu0 0.0
        %1970 = vmatpush1.msra.mxu0 0.0
        %1971 = vmatprep.subr.mxu0 0.0
        %1972 = vmatpush1.msra.mxu0 0.0
        %1973 = vmatprep.subr.mxu0 0.0
        %1974 = vmatpush1.msra.mxu0 0.0
        %1975 = vmatprep.subr.mxu0 0.0
        %1976 = vmatpush1.msra.mxu0 0.0
        %1977 = vmatprep.subr.mxu0 0.0
        %1978 = vmatpush1.msra.mxu0 0.0
        %1979 = vmatprep.mubr.f32.mxu0 0.0
        %1980 = vmatmul.mubr.f32.gmra.mrb[0].mxu0 %v1655
        %v1981 = vpop.f32.mrb[0].mxu0
        %v1982 = vadd.f32 0.0, %v1981
        %v1983 = vpop.f32.mrb[0].mxu0
        %v1984 = vadd.f32 0.0, %v1983
        %1985 = vmatprep.mubr.f32.mxu0 0.0
        %1986 = vmatmul.mubr.f32.gmra.mrb[0].mxu0 %v1658
        %v1987 = vpop.f32.mrb[0].mxu0
        %v1988 = vadd.f32 0.0, %v1987
        %v1989 = vpop.f32.mrb[0].mxu0
        %v1990 = vadd.f32 0.0, %v1989
        %1991 = vdwg.mxu0
        %v1992 = vadd.f32 %v1594, %v1751
        %v1993 = vadd.f32 %v1595, %v1753
        %v1994 = vadd.f32 %v1596, %v1828
        %v1995 = vadd.f32 %v1597, %v1830
        %v1996 = vadd.f32 %v1598, %v1905
        %v1997 = vadd.f32 %v1599, %v1907
        %v1998 = vadd.f32 %v1600, %v1982
        %v1999 = vadd.f32 %v1601, %v1984
        %v2000 = vadd.f32 %v1602, %v1757
        %v2001 = vadd.f32 %v1603, %v1759
        %v2002 = vadd.f32 %v1604, %v1834
        %v2003 = vadd.f32 %v1605, %v1836
        %v2004 = vadd.f32 %v1606, %v1911
        %v2005 = vadd.f32 %v1607, %v1913
        %v2006 = vadd.f32 %v1608, %v1988
        %v2007 = vadd.f32 %v1609, %v1990
        %s2008 = scalar_lea.vmem %s1, 64
        %v2009 = vld [vmem:[%s2008] sm:$0xff]
        %v2010 = vld [vmem:[%s2008 + $0x8] sm:$0xff]
        %v2012 = vsel %vm525, %v2009, 0
        %v2015 = vsel %vm525, %v2010, 0
        %v2017 = vsel %vm532, %v425, 0
        %v2019 = vsel %vm532, %v433, 0
        %v2021 = vsel %vm532, %v426, 0
        %v2023 = vsel %vm532, %v434, 0
        %v2025 = vsel %vm532, %v427, 0
        %v2027 = vsel %vm532, %v435, 0
        %v2029 = vsel %vm532, %v428, 0
        %v2031 = vsel %vm532, %v436, 0
        %2033 = vmatprep.subr.mxu0 %v2019
        %2034 = vmatpush1.msra.mxu0 %v2017
        %2035 = vmatprep.subr.mxu0 0.0
        %2036 = vmatpush1.msra.mxu0 0.0
        %2037 = vmatprep.subr.mxu0 0.0
        %2038 = vmatpush1.msra.mxu0 0.0
        %2039 = vmatprep.subr.mxu0 0.0
        %2040 = vmatpush1.msra.mxu0 0.0
        %2041 = vmatprep.subr.mxu0 0.0
        %2042 = vmatpush1.msra.mxu0 0.0
        %2043 = vmatprep.subr.mxu0 0.0
        %2044 = vmatpush1.msra.mxu0 0.0
        %2045 = vmatprep.subr.mxu0 0.0
        %2046 = vmatpush1.msra.mxu0 0.0
        %2047 = vmatprep.subr.mxu0 0.0
        %2048 = vmatpush1.msra.mxu0 0.0
        %2049 = vmatprep.subr.mxu0 0.0
        %2050 = vmatpush1.msra.mxu0 0.0
        %2051 = vmatprep.subr.mxu0 0.0
        %2052 = vmatpush1.msra.mxu0 0.0
        %2053 = vmatprep.subr.mxu0 0.0
        %2054 = vmatpush1.msra.mxu0 0.0
        %2055 = vmatprep.subr.mxu0 0.0
        %2056 = vmatpush1.msra.mxu0 0.0
        %2057 = vmatprep.subr.mxu0 0.0
        %2058 = vmatpush1.msra.mxu0 0.0
        %2059 = vmatprep.subr.mxu0 0.0
        %2060 = vmatpush1.msra.mxu0 0.0
        %2061 = vmatprep.subr.mxu0 0.0
        %2062 = vmatpush1.msra.mxu0 0.0
        %2063 = vmatprep.subr.mxu0 0.0
        %2064 = vmatpush1.msra.mxu0 0.0
        %2065 = vmatprep.subr.mxu0 0.0
        %2066 = vmatpush1.msra.mxu0 0.0
        %2067 = vmatprep.subr.mxu0 0.0
        %2068 = vmatpush1.msra.mxu0 0.0
        %2069 = vmatprep.subr.mxu0 0.0
        %2070 = vmatpush1.msra.mxu0 0.0
        %2071 = vmatprep.subr.mxu0 0.0
        %2072 = vmatpush1.msra.mxu0 0.0
        %2073 = vmatprep.subr.mxu0 0.0
        %2074 = vmatpush1.msra.mxu0 0.0
        %2075 = vmatprep.subr.mxu0 0.0
        %2076 = vmatpush1.msra.mxu0 0.0
        %2077 = vmatprep.subr.mxu0 0.0
        %2078 = vmatpush1.msra.mxu0 0.0
        %2079 = vmatprep.subr.mxu0 0.0
        %2080 = vmatpush1.msra.mxu0 0.0
        %2081 = vmatprep.subr.mxu0 0.0
        %2082 = vmatpush1.msra.mxu0 0.0
        %2083 = vmatprep.subr.mxu0 0.0
        %2084 = vmatpush1.msra.mxu0 0.0
        %2085 = vmatprep.subr.mxu0 0.0
        %2086 = vmatpush1.msra.mxu0 0.0
        %2087 = vmatprep.subr.mxu0 0.0
        %2088 = vmatpush1.msra.mxu0 0.0
        %2089 = vmatprep.subr.mxu0 0.0
        %2090 = vmatpush1.msra.mxu0 0.0
        %2091 = vmatprep.subr.mxu0 0.0
        %2092 = vmatpush1.msra.mxu0 0.0
        %2093 = vmatprep.subr.mxu0 0.0
        %2094 = vmatpush1.msra.mxu0 0.0
        %2095 = vmatprep.subr.mxu0 0.0
        %2096 = vmatpush1.msra.mxu0 0.0
        %2097 = vmatprep.mubr.f32.mxu0 0.0
        %2098 = vmatmul.mubr.f32.gmra.mrb[0].mxu0 %v2012
        %v2099 = vpop.f32.mrb[0].mxu0
        %v2100 = vadd.f32 0.0, %v2099
        %v2101 = vpop.f32.mrb[0].mxu0
        %v2102 = vadd.f32 0.0, %v2101
        %2103 = vmatprep.mubr.f32.mxu0 0.0
        %2104 = vmatmul.mubr.f32.gmra.mrb[0].mxu0 %v2015
        %v2105 = vpop.f32.mrb[0].mxu0
        %v2106 = vadd.f32 0.0, %v2105
        %v2107 = vpop.f32.mrb[0].mxu0
        %v2108 = vadd.f32 0.0, %v2107
        %2109 = vdwg.mxu0
        %2110 = vmatprep.subr.mxu0 %v2023
        %2111 = vmatpush1.msra.mxu0 %v2021
        %2112 = vmatprep.subr.mxu0 0.0
        %2113 = vmatpush1.msra.mxu0 0.0
        %2114 = vmatprep.subr.mxu0 0.0
        %2115 = vmatpush1.msra.mxu0 0.0
        %2116 = vmatprep.subr.mxu0 0.0
        %2117 = vmatpush1.msra.mxu0 0.0
        %2118 = vmatprep.subr.mxu0 0.0
        %2119 = vmatpush1.msra.mxu0 0.0
        %2120 = vmatprep.subr.mxu0 0.0
        %2121 = vmatpush1.msra.mxu0 0.0
        %2122 = vmatprep.subr.mxu0 0.0
        %2123 = vmatpush1.msra.mxu0 0.0
        %2124 = vmatprep.subr.mxu0 0.0
        %2125 = vmatpush1.msra.mxu0 0.0
        %2126 = vmatprep.subr.mxu0 0.0
        %2127 = vmatpush1.msra.mxu0 0.0
        %2128 = vmatprep.subr.mxu0 0.0
        %2129 = vmatpush1.msra.mxu0 0.0
        %2130 = vmatprep.subr.mxu0 0.0
        %2131 = vmatpush1.msra.mxu0 0.0
        %2132 = vmatprep.subr.mxu0 0.0
        %2133 = vmatpush1.msra.mxu0 0.0
        %2134 = vmatprep.subr.mxu0 0.0
        %2135 = vmatpush1.msra.mxu0 0.0
        %2136 = vmatprep.subr.mxu0 0.0
        %2137 = vmatpush1.msra.mxu0 0.0
        %2138 = vmatprep.subr.mxu0 0.0
        %2139 = vmatpush1.msra.mxu0 0.0
        %2140 = vmatprep.subr.mxu0 0.0
        %2141 = vmatpush1.msra.mxu0 0.0
        %2142 = vmatprep.subr.mxu0 0.0
        %2143 = vmatpush1.msra.mxu0 0.0
        %2144 = vmatprep.subr.mxu0 0.0
        %2145 = vmatpush1.msra.mxu0 0.0
        %2146 = vmatprep.subr.mxu0 0.0
        %2147 = vmatpush1.msra.mxu0 0.0
        %2148 = vmatprep.subr.mxu0 0.0
        %2149 = vmatpush1.msra.mxu0 0.0
        %2150 = vmatprep.subr.mxu0 0.0
        %2151 = vmatpush1.msra.mxu0 0.0
        %2152 = vmatprep.subr.mxu0 0.0
        %2153 = vmatpush1.msra.mxu0 0.0
        %2154 = vmatprep.subr.mxu0 0.0
        %2155 = vmatpush1.msra.mxu0 0.0
        %2156 = vmatprep.subr.mxu0 0.0
        %2157 = vmatpush1.msra.mxu0 0.0
        %2158 = vmatprep.subr.mxu0 0.0
        %2159 = vmatpush1.msra.mxu0 0.0
        %2160 = vmatprep.subr.mxu0 0.0
        %2161 = vmatpush1.msra.mxu0 0.0
        %2162 = vmatprep.subr.mxu0 0.0
        %2163 = vmatpush1.msra.mxu0 0.0
        %2164 = vmatprep.subr.mxu0 0.0
        %2165 = vmatpush1.msra.mxu0 0.0
        %2166 = vmatprep.subr.mxu0 0.0
        %2167 = vmatpush1.msra.mxu0 0.0
        %2168 = vmatprep.subr.mxu0 0.0
        %2169 = vmatpush1.msra.mxu0 0.0
        %2170 = vmatprep.subr.mxu0 0.0
        %2171 = vmatpush1.msra.mxu0 0.0
        %2172 = vmatprep.subr.mxu0 0.0
        %2173 = vmatpush1.msra.mxu0 0.0
        %2174 = vmatprep.mubr.f32.mxu0 0.0
        %2175 = vmatmul.mubr.f32.gmra.mrb[0].mxu0 %v2012
        %v2176 = vpop.f32.mrb[0].mxu0
        %v2177 = vadd.f32 0.0, %v2176
        %v2178 = vpop.f32.mrb[0].mxu0
        %v2179 = vadd.f32 0.0, %v2178
        %2180 = vmatprep.mubr.f32.mxu0 0.0
        %2181 = vmatmul.mubr.f32.gmra.mrb[0].mxu0 %v2015
        %v2182 = vpop.f32.mrb[0].mxu0
        %v2183 = vadd.f32 0.0, %v2182
        %v2184 = vpop.f32.mrb[0].mxu0
        %v2185 = vadd.f32 0.0, %v2184
        %2186 = vdwg.mxu0
        %2187 = vmatprep.subr.mxu0 %v2027
        %2188 = vmatpush1.msra.mxu0 %v2025
        %2189 = vmatprep.subr.mxu0 0.0
        %2190 = vmatpush1.msra.mxu0 0.0
        %2191 = vmatprep.subr.mxu0 0.0
        %2192 = vmatpush1.msra.mxu0 0.0
        %2193 = vmatprep.subr.mxu0 0.0
        %2194 = vmatpush1.msra.mxu0 0.0
        %2195 = vmatprep.subr.mxu0 0.0
        %2196 = vmatpush1.msra.mxu0 0.0
        %2197 = vmatprep.subr.mxu0 0.0
        %2198 = vmatpush1.msra.mxu0 0.0
        %2199 = vmatprep.subr.mxu0 0.0
        %2200 = vmatpush1.msra.mxu0 0.0
        %2201 = vmatprep.subr.mxu0 0.0
        %2202 = vmatpush1.msra.mxu0 0.0
        %2203 = vmatprep.subr.mxu0 0.0
        %2204 = vmatpush1.msra.mxu0 0.0
        %2205 = vmatprep.subr.mxu0 0.0
        %2206 = vmatpush1.msra.mxu0 0.0
        %2207 = vmatprep.subr.mxu0 0.0
        %2208 = vmatpush1.msra.mxu0 0.0
        %2209 = vmatprep.subr.mxu0 0.0
        %2210 = vmatpush1.msra.mxu0 0.0
        %2211 = vmatprep.subr.mxu0 0.0
        %2212 = vmatpush1.msra.mxu0 0.0
        %2213 = vmatprep.subr.mxu0 0.0
        %2214 = vmatpush1.msra.mxu0 0.0
        %2215 = vmatprep.subr.mxu0 0.0
        %2216 = vmatpush1.msra.mxu0 0.0
        %2217 = vmatprep.subr.mxu0 0.0
        %2218 = vmatpush1.msra.mxu0 0.0
        %2219 = vmatprep.subr.mxu0 0.0
        %2220 = vmatpush1.msra.mxu0 0.0
        %2221 = vmatprep.subr.mxu0 0.0
        %2222 = vmatpush1.msra.mxu0 0.0
        %2223 = vmatprep.subr.mxu0 0.0
        %2224 = vmatpush1.msra.mxu0 0.0
        %2225 = vmatprep.subr.mxu0 0.0
        %2226 = vmatpush1.msra.mxu0 0.0
        %2227 = vmatprep.subr.mxu0 0.0
        %2228 = vmatpush1.msra.mxu0 0.0
        %2229 = vmatprep.subr.mxu0 0.0
        %2230 = vmatpush1.msra.mxu0 0.0
        %2231 = vmatprep.subr.mxu0 0.0
        %2232 = vmatpush1.msra.mxu0 0.0
        %2233 = vmatprep.subr.mxu0 0.0
        %2234 = vmatpush1.msra.mxu0 0.0
        %2235 = vmatprep.subr.mxu0 0.0
        %2236 = vmatpush1.msra.mxu0 0.0
        %2237 = vmatprep.subr.mxu0 0.0
        %2238 = vmatpush1.msra.mxu0 0.0
        %2239 = vmatprep.subr.mxu0 0.0
        %2240 = vmatpush1.msra.mxu0 0.0
        %2241 = vmatprep.subr.mxu0 0.0
        %2242 = vmatpush1.msra.mxu0 0.0
        %2243 = vmatprep.subr.mxu0 0.0
        %2244 = vmatpush1.msra.mxu0 0.0
        %2245 = vmatprep.subr.mxu0 0.0
        %2246 = vmatpush1.msra.mxu0 0.0
        %2247 = vmatprep.subr.mxu0 0.0
        %2248 = vmatpush1.msra.mxu0 0.0
        %2249 = vmatprep.subr.mxu0 0.0
        %2250 = vmatpush1.msra.mxu0 0.0
        %2251 = vmatprep.mubr.f32.mxu0 0.0
        %2252 = vmatmul.mubr.f32.gmra.mrb[0].mxu0 %v2012
        %v2253 = vpop.f32.mrb[0].mxu0
        %v2254 = vadd.f32 0.0, %v2253
        %v2255 = vpop.f32.mrb[0].mxu0
        %v2256 = vadd.f32 0.0, %v2255
        %2257 = vmatprep.mubr.f32.mxu0 0.0
        %2258 = vmatmul.mubr.f32.gmra.mrb[0].mxu0 %v2015
        %v2259 = vpop.f32.mrb[0].mxu0
        %v2260 = vadd.f32 0.0, %v2259
        %v2261 = vpop.f32.mrb[0].mxu0
        %v2262 = vadd.f32 0.0, %v2261
        %2263 = vdwg.mxu0
        %2264 = vmatprep.subr.mxu0 %v2031
        %2265 = vmatpush1.msra.mxu0 %v2029
        %2266 = vmatprep.subr.mxu0 0.0
        %2267 = vmatpush1.msra.mxu0 0.0
        %2268 = vmatprep.subr.mxu0 0.0
        %2269 = vmatpush1.msra.mxu0 0.0
        %2270 = vmatprep.subr.mxu0 0.0
        %2271 = vmatpush1.msra.mxu0 0.0
        %2272 = vmatprep.subr.mxu0 0.0
        %2273 = vmatpush1.msra.mxu0 0.0
        %2274 = vmatprep.subr.mxu0 0.0
        %2275 = vmatpush1.msra.mxu0 0.0
        %2276 = vmatprep.subr.mxu0 0.0
        %2277 = vmatpush1.msra.mxu0 0.0
        %2278 = vmatprep.subr.mxu0 0.0
        %2279 = vmatpush1.msra.mxu0 0.0
        %2280 = vmatprep.subr.mxu0 0.0
        %2281 = vmatpush1.msra.mxu0 0.0
        %2282 = vmatprep.subr.mxu0 0.0
        %2283 = vmatpush1.msra.mxu0 0.0
        %2284 = vmatprep.subr.mxu0 0.0
        %2285 = vmatpush1.msra.mxu0 0.0
        %2286 = vmatprep.subr.mxu0 0.0
        %2287 = vmatpush1.msra.mxu0 0.0
        %2288 = vmatprep.subr.mxu0 0.0
        %2289 = vmatpush1.msra.mxu0 0.0
        %2290 = vmatprep.subr.mxu0 0.0
        %2291 = vmatpush1.msra.mxu0 0.0
        %2292 = vmatprep.subr.mxu0 0.0
        %2293 = vmatpush1.msra.mxu0 0.0
        %2294 = vmatprep.subr.mxu0 0.0
        %2295 = vmatpush1.msra.mxu0 0.0
        %2296 = vmatprep.subr.mxu0 0.0
        %2297 = vmatpush1.msra.mxu0 0.0
        %2298 = vmatprep.subr.mxu0 0.0
        %2299 = vmatpush1.msra.mxu0 0.0
        %2300 = vmatprep.subr.mxu0 0.0
        %2301 = vmatpush1.msra.mxu0 0.0
        %2302 = vmatprep.subr.mxu0 0.0
        %2303 = vmatpush1.msra.mxu0 0.0
        %2304 = vmatprep.subr.mxu0 0.0
        %2305 = vmatpush1.msra.mxu0 0.0
        %2306 = vmatprep.subr.mxu0 0.0
        %2307 = vmatpush1.msra.mxu0 0.0
        %2308 = vmatprep.subr.mxu0 0.0
        %2309 = vmatpush1.msra.mxu0 0.0
        %2310 = vmatprep.subr.mxu0 0.0
        %2311 = vmatpush1.msra.mxu0 0.0
        %2312 = vmatprep.subr.mxu0 0.0
        %2313 = vmatpush1.msra.mxu0 0.0
        %2314 = vmatprep.subr.mxu0 0.0
        %2315 = vmatpush1.msra.mxu0 0.0
        %2316 = vmatprep.subr.mxu0 0.0
        %2317 = vmatpush1.msra.mxu0 0.0
        %2318 = vmatprep.subr.mxu0 0.0
        %2319 = vmatpush1.msra.mxu0 0.0
        %2320 = vmatprep.subr.mxu0 0.0
        %2321 = vmatpush1.msra.mxu0 0.0
        %2322 = vmatprep.subr.mxu0 0.0
        %2323 = vmatpush1.msra.mxu0 0.0
        %2324 = vmatprep.subr.mxu0 0.0
        %2325 = vmatpush1.msra.mxu0 0.0
        %2326 = vmatprep.subr.mxu0 0.0
        %2327 = vmatpush1.msra.mxu0 0.0
        %2328 = vmatprep.mubr.f32.mxu0 0.0
        %2329 = vmatmul.mubr.f32.gmra.mrb[0].mxu0 %v2012
        %v2330 = vpop.f32.mrb[0].mxu0
        %v2331 = vadd.f32 0.0, %v2330
        %v2332 = vpop.f32.mrb[0].mxu0
        %v2333 = vadd.f32 0.0, %v2332
        %2334 = vmatprep.mubr.f32.mxu0 0.0
        %2335 = vmatmul.mubr.f32.gmra.mrb[0].mxu0 %v2015
        %v2336 = vpop.f32.mrb[0].mxu0
        %v2337 = vadd.f32 0.0, %v2336
        %v2338 = vpop.f32.mrb[0].mxu0
        %v2339 = vadd.f32 0.0, %v2338
        %2340 = vdwg.mxu0
        %v2341 = vadd.f32 %v1992, %v2100
        %v2342 = vadd.f32 %v1993, %v2102
        %v2343 = vadd.f32 %v1994, %v2177
        %v2344 = vadd.f32 %v1995, %v2179
        %v2345 = vadd.f32 %v1996, %v2254
        %v2346 = vadd.f32 %v1997, %v2256
        %v2347 = vadd.f32 %v1998, %v2331
        %v2348 = vadd.f32 %v1999, %v2333
        %v2349 = vadd.f32 %v2000, %v2106
        %v2350 = vadd.f32 %v2001, %v2108
        %v2351 = vadd.f32 %v2002, %v2183
        %v2352 = vadd.f32 %v2003, %v2185
        %v2353 = vadd.f32 %v2004, %v2260
        %v2354 = vadd.f32 %v2005, %v2262
        %v2355 = vadd.f32 %v2006, %v2337
        %v2356 = vadd.f32 %v2007, %v2339
        %2357 = vrot.lane.b32.xlu0 %v425, 127
        %v2358 = vpop.permute.xlu0 %2357
        %2359 = vrot.lane.b32.xlu0 %v433, 127
        %v2360 = vpop.permute.xlu0 %2359
        %2361 = vrot.lane.b32.xlu0 %v426, 127
        %v2362 = vpop.permute.xlu0 %2361
        %2363 = vrot.lane.b32.xlu0 %v434, 127
        %v2364 = vpop.permute.xlu0 %2363
        %2365 = vrot.lane.b32.xlu0 %v427, 127
        %v2366 = vpop.permute.xlu0 %2365
        %2367 = vrot.lane.b32.xlu0 %v435, 127
        %v2368 = vpop.permute.xlu0 %2367
        %2369 = vrot.lane.b32.xlu0 %v428, 127
        %v2370 = vpop.permute.xlu0 %2369
        %2371 = vrot.lane.b32.xlu0 %v436, 127
        %v2372 = vpop.permute.xlu0 %2371
        %vm2373 = vcmask 1039360
        %v2374 = vsel %vm2373, %v2358, %v2360
        %v2375 = vsel %vm2373, %v2360, %v2362
        %v2376 = vsel %vm2373, %v2362, %v2364
        %v2377 = vsel %vm2373, %v2364, %v2366
        %v2378 = vsel %vm2373, %v2366, %v2368
        %v2379 = vsel %vm2373, %v2368, %v2370
        %v2380 = vsel %vm2373, %v2370, %v2372
        %v2389 = vsel %vm2373, %v2372, 0.0
        %v2390 = vsel %vm1237, %v2374, 0.0
        %v2391 = vsel %vm1238, %v2375, 0.0
        %v2392 = vsel %vm1239, %v2376, 0.0
        %v2393 = vsel %vm1240, %v2377, 0.0
        %v2394 = vsel %vm1241, %v2378, 0.0
        %v2395 = vsel %vm1242, %v2379, 0.0
        %v2396 = vsel %vm1243, %v2380, 0.0
        %v2397 = vsel %vm1244, %v2389, 0.0
        %s2398 = scalar_lea.vmem %s1, 80
        %v2399 = vld [vmem:[%s2398] sm:$0xff]
        %v2400 = vld [vmem:[%s2398 + $0x8] sm:$0xff]
        %v2402 = vsel %vm525, %v2399, 0
        %v2405 = vsel %vm525, %v2400, 0
        %v2408 = vsel %vm532, %v2390, 0
        %v2411 = vsel %vm532, %v2391, 0
        %v2414 = vsel %vm532, %v2392, 0
        %v2417 = vsel %vm532, %v2393, 0
        %v2420 = vsel %vm532, %v2394, 0
        %v2423 = vsel %vm532, %v2395, 0
        %v2426 = vsel %vm532, %v2396, 0
        %v2429 = vsel %vm532, %v2397, 0
        %2431 = vmatprep.subr.mxu0 %v2411
        %2432 = vmatpush1.msra.mxu0 %v2408
        %2433 = vmatprep.subr.mxu0 0.0
        %2434 = vmatpush1.msra.mxu0 0.0
        %2435 = vmatprep.subr.mxu0 0.0
        %2436 = vmatpush1.msra.mxu0 0.0
        %2437 = vmatprep.subr.mxu0 0.0
        %2438 = vmatpush1.msra.mxu0 0.0
        %2439 = vmatprep.subr.mxu0 0.0
        %2440 = vmatpush1.msra.mxu0 0.0
        %2441 = vmatprep.subr.mxu0 0.0
        %2442 = vmatpush1.msra.mxu0 0.0
        %2443 = vmatprep.subr.mxu0 0.0
        %2444 = vmatpush1.msra.mxu0 0.0
        %2445 = vmatprep.subr.mxu0 0.0
        %2446 = vmatpush1.msra.mxu0 0.0
        %2447 = vmatprep.subr.mxu0 0.0
        %2448 = vmatpush1.msra.mxu0 0.0
        %2449 = vmatprep.subr.mxu0 0.0
        %2450 = vmatpush1.msra.mxu0 0.0
        %2451 = vmatprep.subr.mxu0 0.0
        %2452 = vmatpush1.msra.mxu0 0.0
        %2453 = vmatprep.subr.mxu0 0.0
        %2454 = vmatpush1.msra.mxu0 0.0
        %2455 = vmatprep.subr.mxu0 0.0
        %2456 = vmatpush1.msra.mxu0 0.0
        %2457 = vmatprep.subr.mxu0 0.0
        %2458 = vmatpush1.msra.mxu0 0.0
        %2459 = vmatprep.subr.mxu0 0.0
        %2460 = vmatpush1.msra.mxu0 0.0
        %2461 = vmatprep.subr.mxu0 0.0
        %2462 = vmatpush1.msra.mxu0 0.0
        %2463 = vmatprep.subr.mxu0 0.0
        %2464 = vmatpush1.msra.mxu0 0.0
        %2465 = vmatprep.subr.mxu0 0.0
        %2466 = vmatpush1.msra.mxu0 0.0
        %2467 = vmatprep.subr.mxu0 0.0
        %2468 = vmatpush1.msra.mxu0 0.0
        %2469 = vmatprep.subr.mxu0 0.0
        %2470 = vmatpush1.msra.mxu0 0.0
        %2471 = vmatprep.subr.mxu0 0.0
        %2472 = vmatpush1.msra.mxu0 0.0
        %2473 = vmatprep.subr.mxu0 0.0
        %2474 = vmatpush1.msra.mxu0 0.0
        %2475 = vmatprep.subr.mxu0 0.0
        %2476 = vmatpush1.msra.mxu0 0.0
        %2477 = vmatprep.subr.mxu0 0.0
        %2478 = vmatpush1.msra.mxu0 0.0
        %2479 = vmatprep.subr.mxu0 0.0
        %2480 = vmatpush1.msra.mxu0 0.0
        %2481 = vmatprep.subr.mxu0 0.0
        %2482 = vmatpush1.msra.mxu0 0.0
        %2483 = vmatprep.subr.mxu0 0.0
        %2484 = vmatpush1.msra.mxu0 0.0
        %2485 = vmatprep.subr.mxu0 0.0
        %2486 = vmatpush1.msra.mxu0 0.0
        %2487 = vmatprep.subr.mxu0 0.0
        %2488 = vmatpush1.msra.mxu0 0.0
        %2489 = vmatprep.subr.mxu0 0.0
        %2490 = vmatpush1.msra.mxu0 0.0
        %2491 = vmatprep.subr.mxu0 0.0
        %2492 = vmatpush1.msra.mxu0 0.0
        %2493 = vmatprep.subr.mxu0 0.0
        %2494 = vmatpush1.msra.mxu0 0.0
        %2495 = vmatprep.mubr.f32.mxu0 0.0
        %2496 = vmatmul.mubr.f32.gmra.mrb[0].mxu0 %v2402
        %v2497 = vpop.f32.mrb[0].mxu0
        %v2498 = vadd.f32 0.0, %v2497
        %v2499 = vpop.f32.mrb[0].mxu0
        %v2500 = vadd.f32 0.0, %v2499
        %2501 = vmatprep.mubr.f32.mxu0 0.0
        %2502 = vmatmul.mubr.f32.gmra.mrb[0].mxu0 %v2405
        %v2503 = vpop.f32.mrb[0].mxu0
        %v2504 = vadd.f32 0.0, %v2503
        %v2505 = vpop.f32.mrb[0].mxu0
        %v2506 = vadd.f32 0.0, %v2505
        %2507 = vdwg.mxu0
        %2508 = vmatprep.subr.mxu0 %v2417
        %2509 = vmatpush1.msra.mxu0 %v2414
        %2510 = vmatprep.subr.mxu0 0.0
        %2511 = vmatpush1.msra.mxu0 0.0
        %2512 = vmatprep.subr.mxu0 0.0
        %2513 = vmatpush1.msra.mxu0 0.0
        %2514 = vmatprep.subr.mxu0 0.0
        %2515 = vmatpush1.msra.mxu0 0.0
        %2516 = vmatprep.subr.mxu0 0.0
        %2517 = vmatpush1.msra.mxu0 0.0
        %2518 = vmatprep.subr.mxu0 0.0
        %2519 = vmatpush1.msra.mxu0 0.0
        %2520 = vmatprep.subr.mxu0 0.0
        %2521 = vmatpush1.msra.mxu0 0.0
        %2522 = vmatprep.subr.mxu0 0.0
        %2523 = vmatpush1.msra.mxu0 0.0
        %2524 = vmatprep.subr.mxu0 0.0
        %2525 = vmatpush1.msra.mxu0 0.0
        %2526 = vmatprep.subr.mxu0 0.0
        %2527 = vmatpush1.msra.mxu0 0.0
        %2528 = vmatprep.subr.mxu0 0.0
        %2529 = vmatpush1.msra.mxu0 0.0
        %2530 = vmatprep.subr.mxu0 0.0
        %2531 = vmatpush1.msra.mxu0 0.0
        %2532 = vmatprep.subr.mxu0 0.0
        %2533 = vmatpush1.msra.mxu0 0.0
        %2534 = vmatprep.subr.mxu0 0.0
        %2535 = vmatpush1.msra.mxu0 0.0
        %2536 = vmatprep.subr.mxu0 0.0
        %2537 = vmatpush1.msra.mxu0 0.0
        %2538 = vmatprep.subr.mxu0 0.0
        %2539 = vmatpush1.msra.mxu0 0.0
        %2540 = vmatprep.subr.mxu0 0.0
        %2541 = vmatpush1.msra.mxu0 0.0
        %2542 = vmatprep.subr.mxu0 0.0
        %2543 = vmatpush1.msra.mxu0 0.0
        %2544 = vmatprep.subr.mxu0 0.0
        %2545 = vmatpush1.msra.mxu0 0.0
        %2546 = vmatprep.subr.mxu0 0.0
        %2547 = vmatpush1.msra.mxu0 0.0
        %2548 = vmatprep.subr.mxu0 0.0
        %2549 = vmatpush1.msra.mxu0 0.0
        %2550 = vmatprep.subr.mxu0 0.0
        %2551 = vmatpush1.msra.mxu0 0.0
        %2552 = vmatprep.subr.mxu0 0.0
        %2553 = vmatpush1.msra.mxu0 0.0
        %2554 = vmatprep.subr.mxu0 0.0
        %2555 = vmatpush1.msra.mxu0 0.0
        %2556 = vmatprep.subr.mxu0 0.0
        %2557 = vmatpush1.msra.mxu0 0.0
        %2558 = vmatprep.subr.mxu0 0.0
        %2559 = vmatpush1.msra.mxu0 0.0
        %2560 = vmatprep.subr.mxu0 0.0
        %2561 = vmatpush1.msra.mxu0 0.0
        %2562 = vmatprep.subr.mxu0 0.0
        %2563 = vmatpush1.msra.mxu0 0.0
        %2564 = vmatprep.subr.mxu0 0.0
        %2565 = vmatpush1.msra.mxu0 0.0
        %2566 = vmatprep.subr.mxu0 0.0
        %2567 = vmatpush1.msra.mxu0 0.0
        %2568 = vmatprep.subr.mxu0 0.0
        %2569 = vmatpush1.msra.mxu0 0.0
        %2570 = vmatprep.subr.mxu0 0.0
        %2571 = vmatpush1.msra.mxu0 0.0
        %2572 = vmatprep.mubr.f32.mxu0 0.0
        %2573 = vmatmul.mubr.f32.gmra.mrb[0].mxu0 %v2402
        %v2574 = vpop.f32.mrb[0].mxu0
        %v2575 = vadd.f32 0.0, %v2574
        %v2576 = vpop.f32.mrb[0].mxu0
        %v2577 = vadd.f32 0.0, %v2576
        %2578 = vmatprep.mubr.f32.mxu0 0.0
        %2579 = vmatmul.mubr.f32.gmra.mrb[0].mxu0 %v2405
        %v2580 = vpop.f32.mrb[0].mxu0
        %v2581 = vadd.f32 0.0, %v2580
        %v2582 = vpop.f32.mrb[0].mxu0
        %v2583 = vadd.f32 0.0, %v2582
        %2584 = vdwg.mxu0
        %2585 = vmatprep.subr.mxu0 %v2423
        %2586 = vmatpush1.msra.mxu0 %v2420
        %2587 = vmatprep.subr.mxu0 0.0
        %2588 = vmatpush1.msra.mxu0 0.0
        %2589 = vmatprep.subr.mxu0 0.0
        %2590 = vmatpush1.msra.mxu0 0.0
        %2591 = vmatprep.subr.mxu0 0.0
        %2592 = vmatpush1.msra.mxu0 0.0
        %2593 = vmatprep.subr.mxu0 0.0
        %2594 = vmatpush1.msra.mxu0 0.0
        %2595 = vmatprep.subr.mxu0 0.0
        %2596 = vmatpush1.msra.mxu0 0.0
        %2597 = vmatprep.subr.mxu0 0.0
        %2598 = vmatpush1.msra.mxu0 0.0
        %2599 = vmatprep.subr.mxu0 0.0
        %2600 = vmatpush1.msra.mxu0 0.0
        %2601 = vmatprep.subr.mxu0 0.0
        %2602 = vmatpush1.msra.mxu0 0.0
        %2603 = vmatprep.subr.mxu0 0.0
        %2604 = vmatpush1.msra.mxu0 0.0
        %2605 = vmatprep.subr.mxu0 0.0
        %2606 = vmatpush1.msra.mxu0 0.0
        %2607 = vmatprep.subr.mxu0 0.0
        %2608 = vmatpush1.msra.mxu0 0.0
        %2609 = vmatprep.subr.mxu0 0.0
        %2610 = vmatpush1.msra.mxu0 0.0
        %2611 = vmatprep.subr.mxu0 0.0
        %2612 = vmatpush1.msra.mxu0 0.0
        %2613 = vmatprep.subr.mxu0 0.0
        %2614 = vmatpush1.msra.mxu0 0.0
        %2615 = vmatprep.subr.mxu0 0.0
        %2616 = vmatpush1.msra.mxu0 0.0
        %2617 = vmatprep.subr.mxu0 0.0
        %2618 = vmatpush1.msra.mxu0 0.0
        %2619 = vmatprep.subr.mxu0 0.0
        %2620 = vmatpush1.msra.mxu0 0.0
        %2621 = vmatprep.subr.mxu0 0.0
        %2622 = vmatpush1.msra.mxu0 0.0
        %2623 = vmatprep.subr.mxu0 0.0
        %2624 = vmatpush1.msra.mxu0 0.0
        %2625 = vmatprep.subr.mxu0 0.0
        %2626 = vmatpush1.msra.mxu0 0.0
        %2627 = vmatprep.subr.mxu0 0.0
        %2628 = vmatpush1.msra.mxu0 0.0
        %2629 = vmatprep.subr.mxu0 0.0
        %2630 = vmatpush1.msra.mxu0 0.0
        %2631 = vmatprep.subr.mxu0 0.0
        %2632 = vmatpush1.msra.mxu0 0.0
        %2633 = vmatprep.subr.mxu0 0.0
        %2634 = vmatpush1.msra.mxu0 0.0
        %2635 = vmatprep.subr.mxu0 0.0
        %2636 = vmatpush1.msra.mxu0 0.0
        %2637 = vmatprep.subr.mxu0 0.0
        %2638 = vmatpush1.msra.mxu0 0.0
        %2639 = vmatprep.subr.mxu0 0.0
        %2640 = vmatpush1.msra.mxu0 0.0
        %2641 = vmatprep.subr.mxu0 0.0
        %2642 = vmatpush1.msra.mxu0 0.0
        %2643 = vmatprep.subr.mxu0 0.0
        %2644 = vmatpush1.msra.mxu0 0.0
        %2645 = vmatprep.subr.mxu0 0.0
        %2646 = vmatpush1.msra.mxu0 0.0
        %2647 = vmatprep.subr.mxu0 0.0
        %2648 = vmatpush1.msra.mxu0 0.0
        %2649 = vmatprep.mubr.f32.mxu0 0.0
        %2650 = vmatmul.mubr.f32.gmra.mrb[0].mxu0 %v2402
        %v2651 = vpop.f32.mrb[0].mxu0
        %v2652 = vadd.f32 0.0, %v2651
        %v2653 = vpop.f32.mrb[0].mxu0
        %v2654 = vadd.f32 0.0, %v2653
        %2655 = vmatprep.mubr.f32.mxu0 0.0
        %2656 = vmatmul.mubr.f32.gmra.mrb[0].mxu0 %v2405
        %v2657 = vpop.f32.mrb[0].mxu0
        %v2658 = vadd.f32 0.0, %v2657
        %v2659 = vpop.f32.mrb[0].mxu0
        %v2660 = vadd.f32 0.0, %v2659
        %2661 = vdwg.mxu0
        %2662 = vmatprep.subr.mxu0 %v2429
        %2663 = vmatpush1.msra.mxu0 %v2426
        %2664 = vmatprep.subr.mxu0 0.0
        %2665 = vmatpush1.msra.mxu0 0.0
        %2666 = vmatprep.subr.mxu0 0.0
        %2667 = vmatpush1.msra.mxu0 0.0
        %2668 = vmatprep.subr.mxu0 0.0
        %2669 = vmatpush1.msra.mxu0 0.0
        %2670 = vmatprep.subr.mxu0 0.0
        %2671 = vmatpush1.msra.mxu0 0.0
        %2672 = vmatprep.subr.mxu0 0.0
        %2673 = vmatpush1.msra.mxu0 0.0
        %2674 = vmatprep.subr.mxu0 0.0
        %2675 = vmatpush1.msra.mxu0 0.0
        %2676 = vmatprep.subr.mxu0 0.0
        %2677 = vmatpush1.msra.mxu0 0.0
        %2678 = vmatprep.subr.mxu0 0.0
        %2679 = vmatpush1.msra.mxu0 0.0
        %2680 = vmatprep.subr.mxu0 0.0
        %2681 = vmatpush1.msra.mxu0 0.0
        %2682 = vmatprep.subr.mxu0 0.0
        %2683 = vmatpush1.msra.mxu0 0.0
        %2684 = vmatprep.subr.mxu0 0.0
        %2685 = vmatpush1.msra.mxu0 0.0
        %2686 = vmatprep.subr.mxu0 0.0
        %2687 = vmatpush1.msra.mxu0 0.0
        %2688 = vmatprep.subr.mxu0 0.0
        %2689 = vmatpush1.msra.mxu0 0.0
        %2690 = vmatprep.subr.mxu0 0.0
        %2691 = vmatpush1.msra.mxu0 0.0
        %2692 = vmatprep.subr.mxu0 0.0
        %2693 = vmatpush1.msra.mxu0 0.0
        %2694 = vmatprep.subr.mxu0 0.0
        %2695 = vmatpush1.msra.mxu0 0.0
        %2696 = vmatprep.subr.mxu0 0.0
        %2697 = vmatpush1.msra.mxu0 0.0
        %2698 = vmatprep.subr.mxu0 0.0
        %2699 = vmatpush1.msra.mxu0 0.0
        %2700 = vmatprep.subr.mxu0 0.0
        %2701 = vmatpush1.msra.mxu0 0.0
        %2702 = vmatprep.subr.mxu0 0.0
        %2703 = vmatpush1.msra.mxu0 0.0
        %2704 = vmatprep.subr.mxu0 0.0
        %2705 = vmatpush1.msra.mxu0 0.0
        %2706 = vmatprep.subr.mxu0 0.0
        %2707 = vmatpush1.msra.mxu0 0.0
        %2708 = vmatprep.subr.mxu0 0.0
        %2709 = vmatpush1.msra.mxu0 0.0
        %2710 = vmatprep.subr.mxu0 0.0
        %2711 = vmatpush1.msra.mxu0 0.0
        %2712 = vmatprep.subr.mxu0 0.0
        %2713 = vmatpush1.msra.mxu0 0.0
        %2714 = vmatprep.subr.mxu0 0.0
        %2715 = vmatpush1.msra.mxu0 0.0
        %2716 = vmatprep.subr.mxu0 0.0
        %2717 = vmatpush1.msra.mxu0 0.0
        %2718 = vmatprep.subr.mxu0 0.0
        %2719 = vmatpush1.msra.mxu0 0.0
        %2720 = vmatprep.subr.mxu0 0.0
        %2721 = vmatpush1.msra.mxu0 0.0
        %2722 = vmatprep.subr.mxu0 0.0
        %2723 = vmatpush1.msra.mxu0 0.0
        %2724 = vmatprep.subr.mxu0 0.0
        %2725 = vmatpush1.msra.mxu0 0.0
        %2726 = vmatprep.mubr.f32.mxu0 0.0
        %2727 = vmatmul.mubr.f32.gmra.mrb[0].mxu0 %v2402
        %v2728 = vpop.f32.mrb[0].mxu0
        %v2729 = vadd.f32 0.0, %v2728
        %v2730 = vpop.f32.mrb[0].mxu0
        %v2731 = vadd.f32 0.0, %v2730
        %2732 = vmatprep.mubr.f32.mxu0 0.0
        %2733 = vmatmul.mubr.f32.gmra.mrb[0].mxu0 %v2405
        %v2734 = vpop.f32.mrb[0].mxu0
        %v2735 = vadd.f32 0.0, %v2734
        %v2736 = vpop.f32.mrb[0].mxu0
        %v2737 = vadd.f32 0.0, %v2736
        %2738 = vdwg.mxu0
        %v2739 = vadd.f32 %v2341, %v2498
        %v2740 = vadd.f32 %v2342, %v2500
        %v2741 = vadd.f32 %v2343, %v2575
        %v2742 = vadd.f32 %v2344, %v2577
        %v2743 = vadd.f32 %v2345, %v2652
        %v2744 = vadd.f32 %v2346, %v2654
        %v2745 = vadd.f32 %v2347, %v2729
        %v2746 = vadd.f32 %v2348, %v2731
        %v2747 = vadd.f32 %v2349, %v2504
        %v2748 = vadd.f32 %v2350, %v2506
        %v2749 = vadd.f32 %v2351, %v2581
        %v2750 = vadd.f32 %v2352, %v2583
        %v2751 = vadd.f32 %v2353, %v2658
        %v2752 = vadd.f32 %v2354, %v2660
        %v2753 = vadd.f32 %v2355, %v2735
        %v2754 = vadd.f32 %v2356, %v2737
        %2755 = vrot.lane.b32.xlu0 %v425, 97
        %v2756 = vpop.permute.xlu0 %2755
        %2757 = vrot.lane.b32.xlu0 %v433, 97
        %v2758 = vpop.permute.xlu0 %2757
        %2759 = vrot.lane.b32.xlu0 %v426, 97
        %v2760 = vpop.permute.xlu0 %2759
        %2761 = vrot.lane.b32.xlu0 %v434, 97
        %v2762 = vpop.permute.xlu0 %2761
        %2763 = vrot.lane.b32.xlu0 %v427, 97
        %v2764 = vpop.permute.xlu0 %2763
        %2765 = vrot.lane.b32.xlu0 %v435, 97
        %v2766 = vpop.permute.xlu0 %2765
        %2767 = vrot.lane.b32.xlu0 %v428, 97
        %v2768 = vpop.permute.xlu0 %2767
        %2769 = vrot.lane.b32.xlu0 %v436, 97
        %v2770 = vpop.permute.xlu0 %2769
        %vm2771 = vcmask 793600
        %v2772 = vsel %vm2771, %v2756, %v2758
        %v2773 = vsel %vm2771, %v2758, %v2760
        %v2774 = vsel %vm2771, %v2760, %v2762
        %v2775 = vsel %vm2771, %v2762, %v2764
        %v2776 = vsel %vm2771, %v2764, %v2766
        %v2777 = vsel %vm2771, %v2766, %v2768
        %v2778 = vsel %vm2771, %v2768, %v2770
        %v2787 = vsel %vm2771, %v2770, 0.0
        %v2788 = vsel %vm478, %v2772, 0.0
        %v2789 = vsel %vm479, %v2773, 0.0
        %v2790 = vsel %vm480, %v2774, 0.0
        %v2791 = vsel %vm481, %v2775, 0.0
        %v2792 = vsel %vm482, %v2776, 0.0
        %v2793 = vsel %vm483, %v2777, 0.0
        %v2794 = vsel %vm484, %v2778, 0.0
        %v2795 = vsel %vm485, %v2787, 0.0
        %s2796 = scalar_lea.vmem %s1, 96
        %v2797 = vld [vmem:[%s2796] sm:$0xff]
        %v2798 = vld [vmem:[%s2796 + $0x8] sm:$0xff]
        %v2800 = vsel %vm525, %v2797, 0
        %v2803 = vsel %vm525, %v2798, 0
        %v2806 = vsel %vm532, %v2788, 0
        %v2809 = vsel %vm532, %v2789, 0
        %v2812 = vsel %vm532, %v2790, 0
        %v2815 = vsel %vm532, %v2791, 0
        %v2818 = vsel %vm532, %v2792, 0
        %v2821 = vsel %vm532, %v2793, 0
        %v2824 = vsel %vm532, %v2794, 0
        %v2827 = vsel %vm532, %v2795, 0
        %2829 = vmatprep.subr.mxu0 %v2809
        %2830 = vmatpush1.msra.mxu0 %v2806
        %2831 = vmatprep.subr.mxu0 0.0
        %2832 = vmatpush1.msra.mxu0 0.0
        %2833 = vmatprep.subr.mxu0 0.0
        %2834 = vmatpush1.msra.mxu0 0.0
        %2835 = vmatprep.subr.mxu0 0.0
        %2836 = vmatpush1.msra.mxu0 0.0
        %2837 = vmatprep.subr.mxu0 0.0
        %2838 = vmatpush1.msra.mxu0 0.0
        %2839 = vmatprep.subr.mxu0 0.0
        %2840 = vmatpush1.msra.mxu0 0.0
        %2841 = vmatprep.subr.mxu0 0.0
        %2842 = vmatpush1.msra.mxu0 0.0
        %2843 = vmatprep.subr.mxu0 0.0
        %2844 = vmatpush1.msra.mxu0 0.0
        %2845 = vmatprep.subr.mxu0 0.0
        %2846 = vmatpush1.msra.mxu0 0.0
        %2847 = vmatprep.subr.mxu0 0.0
        %2848 = vmatpush1.msra.mxu0 0.0
        %2849 = vmatprep.subr.mxu0 0.0
        %2850 = vmatpush1.msra.mxu0 0.0
        %2851 = vmatprep.subr.mxu0 0.0
        %2852 = vmatpush1.msra.mxu0 0.0
        %2853 = vmatprep.subr.mxu0 0.0
        %2854 = vmatpush1.msra.mxu0 0.0
        %2855 = vmatprep.subr.mxu0 0.0
        %2856 = vmatpush1.msra.mxu0 0.0
        %2857 = vmatprep.subr.mxu0 0.0
        %2858 = vmatpush1.msra.mxu0 0.0
        %2859 = vmatprep.subr.mxu0 0.0
        %2860 = vmatpush1.msra.mxu0 0.0
        %2861 = vmatprep.subr.mxu0 0.0
        %2862 = vmatpush1.msra.mxu0 0.0
        %2863 = vmatprep.subr.mxu0 0.0
        %2864 = vmatpush1.msra.mxu0 0.0
        %2865 = vmatprep.subr.mxu0 0.0
        %2866 = vmatpush1.msra.mxu0 0.0
        %2867 = vmatprep.subr.mxu0 0.0
        %2868 = vmatpush1.msra.mxu0 0.0
        %2869 = vmatprep.subr.mxu0 0.0
        %2870 = vmatpush1.msra.mxu0 0.0
        %2871 = vmatprep.subr.mxu0 0.0
        %2872 = vmatpush1.msra.mxu0 0.0
        %2873 = vmatprep.subr.mxu0 0.0
        %2874 = vmatpush1.msra.mxu0 0.0
        %2875 = vmatprep.subr.mxu0 0.0
        %2876 = vmatpush1.msra.mxu0 0.0
        %2877 = vmatprep.subr.mxu0 0.0
        %2878 = vmatpush1.msra.mxu0 0.0
        %2879 = vmatprep.subr.mxu0 0.0
        %2880 = vmatpush1.msra.mxu0 0.0
        %2881 = vmatprep.subr.mxu0 0.0
        %2882 = vmatpush1.msra.mxu0 0.0
        %2883 = vmatprep.subr.mxu0 0.0
        %2884 = vmatpush1.msra.mxu0 0.0
        %2885 = vmatprep.subr.mxu0 0.0
        %2886 = vmatpush1.msra.mxu0 0.0
        %2887 = vmatprep.subr.mxu0 0.0
        %2888 = vmatpush1.msra.mxu0 0.0
        %2889 = vmatprep.subr.mxu0 0.0
        %2890 = vmatpush1.msra.mxu0 0.0
        %2891 = vmatprep.subr.mxu0 0.0
        %2892 = vmatpush1.msra.mxu0 0.0
        %2893 = vmatprep.mubr.f32.mxu0 0.0
        %2894 = vmatmul.mubr.f32.gmra.mrb[0].mxu0 %v2800
        %v2895 = vpop.f32.mrb[0].mxu0
        %v2896 = vadd.f32 0.0, %v2895
        %v2897 = vpop.f32.mrb[0].mxu0
        %v2898 = vadd.f32 0.0, %v2897
        %2899 = vmatprep.mubr.f32.mxu0 0.0
        %2900 = vmatmul.mubr.f32.gmra.mrb[0].mxu0 %v2803
        %v2901 = vpop.f32.mrb[0].mxu0
        %v2902 = vadd.f32 0.0, %v2901
        %v2903 = vpop.f32.mrb[0].mxu0
        %v2904 = vadd.f32 0.0, %v2903
        %2905 = vdwg.mxu0
        %2906 = vmatprep.subr.mxu0 %v2815
        %2907 = vmatpush1.msra.mxu0 %v2812
        %2908 = vmatprep.subr.mxu0 0.0
        %2909 = vmatpush1.msra.mxu0 0.0
        %2910 = vmatprep.subr.mxu0 0.0
        %2911 = vmatpush1.msra.mxu0 0.0
        %2912 = vmatprep.subr.mxu0 0.0
        %2913 = vmatpush1.msra.mxu0 0.0
        %2914 = vmatprep.subr.mxu0 0.0
        %2915 = vmatpush1.msra.mxu0 0.0
        %2916 = vmatprep.subr.mxu0 0.0
        %2917 = vmatpush1.msra.mxu0 0.0
        %2918 = vmatprep.subr.mxu0 0.0
        %2919 = vmatpush1.msra.mxu0 0.0
        %2920 = vmatprep.subr.mxu0 0.0
        %2921 = vmatpush1.msra.mxu0 0.0
        %2922 = vmatprep.subr.mxu0 0.0
        %2923 = vmatpush1.msra.mxu0 0.0
        %2924 = vmatprep.subr.mxu0 0.0
        %2925 = vmatpush1.msra.mxu0 0.0
        %2926 = vmatprep.subr.mxu0 0.0
        %2927 = vmatpush1.msra.mxu0 0.0
        %2928 = vmatprep.subr.mxu0 0.0
        %2929 = vmatpush1.msra.mxu0 0.0
        %2930 = vmatprep.subr.mxu0 0.0
        %2931 = vmatpush1.msra.mxu0 0.0
        %2932 = vmatprep.subr.mxu0 0.0
        %2933 = vmatpush1.msra.mxu0 0.0
        %2934 = vmatprep.subr.mxu0 0.0
        %2935 = vmatpush1.msra.mxu0 0.0
        %2936 = vmatprep.subr.mxu0 0.0
        %2937 = vmatpush1.msra.mxu0 0.0
        %2938 = vmatprep.subr.mxu0 0.0
        %2939 = vmatpush1.msra.mxu0 0.0
        %2940 = vmatprep.subr.mxu0 0.0
        %2941 = vmatpush1.msra.mxu0 0.0
        %2942 = vmatprep.subr.mxu0 0.0
        %2943 = vmatpush1.msra.mxu0 0.0
        %2944 = vmatprep.subr.mxu0 0.0
        %2945 = vmatpush1.msra.mxu0 0.0
        %2946 = vmatprep.subr.mxu0 0.0
        %2947 = vmatpush1.msra.mxu0 0.0
        %2948 = vmatprep.subr.mxu0 0.0
        %2949 = vmatpush1.msra.mxu0 0.0
        %2950 = vmatprep.subr.mxu0 0.0
        %2951 = vmatpush1.msra.mxu0 0.0
        %2952 = vmatprep.subr.mxu0 0.0
        %2953 = vmatpush1.msra.mxu0 0.0
        %2954 = vmatprep.subr.mxu0 0.0
        %2955 = vmatpush1.msra.mxu0 0.0
        %2956 = vmatprep.subr.mxu0 0.0
        %2957 = vmatpush1.msra.mxu0 0.0
        %2958 = vmatprep.subr.mxu0 0.0
        %2959 = vmatpush1.msra.mxu0 0.0
        %2960 = vmatprep.subr.mxu0 0.0
        %2961 = vmatpush1.msra.mxu0 0.0
        %2962 = vmatprep.subr.mxu0 0.0
        %2963 = vmatpush1.msra.mxu0 0.0
        %2964 = vmatprep.subr.mxu0 0.0
        %2965 = vmatpush1.msra.mxu0 0.0
        %2966 = vmatprep.subr.mxu0 0.0
        %2967 = vmatpush1.msra.mxu0 0.0
        %2968 = vmatprep.subr.mxu0 0.0
        %2969 = vmatpush1.msra.mxu0 0.0
        %2970 = vmatprep.mubr.f32.mxu0 0.0
        %2971 = vmatmul.mubr.f32.gmra.mrb[0].mxu0 %v2800
        %v2972 = vpop.f32.mrb[0].mxu0
        %v2973 = vadd.f32 0.0, %v2972
        %v2974 = vpop.f32.mrb[0].mxu0
        %v2975 = vadd.f32 0.0, %v2974
        %2976 = vmatprep.mubr.f32.mxu0 0.0
        %2977 = vmatmul.mubr.f32.gmra.mrb[0].mxu0 %v2803
        %v2978 = vpop.f32.mrb[0].mxu0
        %v2979 = vadd.f32 0.0, %v2978
        %v2980 = vpop.f32.mrb[0].mxu0
        %v2981 = vadd.f32 0.0, %v2980
        %2982 = vdwg.mxu0
        %2983 = vmatprep.subr.mxu0 %v2821
        %2984 = vmatpush1.msra.mxu0 %v2818
        %2985 = vmatprep.subr.mxu0 0.0
        %2986 = vmatpush1.msra.mxu0 0.0
        %2987 = vmatprep.subr.mxu0 0.0
        %2988 = vmatpush1.msra.mxu0 0.0
        %2989 = vmatprep.subr.mxu0 0.0
        %2990 = vmatpush1.msra.mxu0 0.0
        %2991 = vmatprep.subr.mxu0 0.0
        %2992 = vmatpush1.msra.mxu0 0.0
        %2993 = vmatprep.subr.mxu0 0.0
        %2994 = vmatpush1.msra.mxu0 0.0
        %2995 = vmatprep.subr.mxu0 0.0
        %2996 = vmatpush1.msra.mxu0 0.0
        %2997 = vmatprep.subr.mxu0 0.0
        %2998 = vmatpush1.msra.mxu0 0.0
        %2999 = vmatprep.subr.mxu0 0.0
        %3000 = vmatpush1.msra.mxu0 0.0
        %3001 = vmatprep.subr.mxu0 0.0
        %3002 = vmatpush1.msra.mxu0 0.0
        %3003 = vmatprep.subr.mxu0 0.0
        %3004 = vmatpush1.msra.mxu0 0.0
        %3005 = vmatprep.subr.mxu0 0.0
        %3006 = vmatpush1.msra.mxu0 0.0
        %3007 = vmatprep.subr.mxu0 0.0
        %3008 = vmatpush1.msra.mxu0 0.0
        %3009 = vmatprep.subr.mxu0 0.0
        %3010 = vmatpush1.msra.mxu0 0.0
        %3011 = vmatprep.subr.mxu0 0.0
        %3012 = vmatpush1.msra.mxu0 0.0
        %3013 = vmatprep.subr.mxu0 0.0
        %3014 = vmatpush1.msra.mxu0 0.0
        %3015 = vmatprep.subr.mxu0 0.0
        %3016 = vmatpush1.msra.mxu0 0.0
        %3017 = vmatprep.subr.mxu0 0.0
        %3018 = vmatpush1.msra.mxu0 0.0
        %3019 = vmatprep.subr.mxu0 0.0
        %3020 = vmatpush1.msra.mxu0 0.0
        %3021 = vmatprep.subr.mxu0 0.0
        %3022 = vmatpush1.msra.mxu0 0.0
        %3023 = vmatprep.subr.mxu0 0.0
        %3024 = vmatpush1.msra.mxu0 0.0
        %3025 = vmatprep.subr.mxu0 0.0
        %3026 = vmatpush1.msra.mxu0 0.0
        %3027 = vmatprep.subr.mxu0 0.0
        %3028 = vmatpush1.msra.mxu0 0.0
        %3029 = vmatprep.subr.mxu0 0.0
        %3030 = vmatpush1.msra.mxu0 0.0
        %3031 = vmatprep.subr.mxu0 0.0
        %3032 = vmatpush1.msra.mxu0 0.0
        %3033 = vmatprep.subr.mxu0 0.0
        %3034 = vmatpush1.msra.mxu0 0.0
        %3035 = vmatprep.subr.mxu0 0.0
        %3036 = vmatpush1.msra.mxu0 0.0
        %3037 = vmatprep.subr.mxu0 0.0
        %3038 = vmatpush1.msra.mxu0 0.0
        %3039 = vmatprep.subr.mxu0 0.0
        %3040 = vmatpush1.msra.mxu0 0.0
        %3041 = vmatprep.subr.mxu0 0.0
        %3042 = vmatpush1.msra.mxu0 0.0
        %3043 = vmatprep.subr.mxu0 0.0
        %3044 = vmatpush1.msra.mxu0 0.0
        %3045 = vmatprep.subr.mxu0 0.0
        %3046 = vmatpush1.msra.mxu0 0.0
        %3047 = vmatprep.mubr.f32.mxu0 0.0
        %3048 = vmatmul.mubr.f32.gmra.mrb[0].mxu0 %v2800
        %v3049 = vpop.f32.mrb[0].mxu0
        %v3050 = vadd.f32 0.0, %v3049
        %v3051 = vpop.f32.mrb[0].mxu0
        %v3052 = vadd.f32 0.0, %v3051
        %3053 = vmatprep.mubr.f32.mxu0 0.0
        %3054 = vmatmul.mubr.f32.gmra.mrb[0].mxu0 %v2803
        %v3055 = vpop.f32.mrb[0].mxu0
        %v3056 = vadd.f32 0.0, %v3055
        %v3057 = vpop.f32.mrb[0].mxu0
        %v3058 = vadd.f32 0.0, %v3057
        %3059 = vdwg.mxu0
        %3060 = vmatprep.subr.mxu0 %v2827
        %3061 = vmatpush1.msra.mxu0 %v2824
        %3062 = vmatprep.subr.mxu0 0.0
        %3063 = vmatpush1.msra.mxu0 0.0
        %3064 = vmatprep.subr.mxu0 0.0
        %3065 = vmatpush1.msra.mxu0 0.0
        %3066 = vmatprep.subr.mxu0 0.0
        %3067 = vmatpush1.msra.mxu0 0.0
        %3068 = vmatprep.subr.mxu0 0.0
        %3069 = vmatpush1.msra.mxu0 0.0
        %3070 = vmatprep.subr.mxu0 0.0
        %3071 = vmatpush1.msra.mxu0 0.0
        %3072 = vmatprep.subr.mxu0 0.0
        %3073 = vmatpush1.msra.mxu0 0.0
        %3074 = vmatprep.subr.mxu0 0.0
        %3075 = vmatpush1.msra.mxu0 0.0
        %3076 = vmatprep.subr.mxu0 0.0
        %3077 = vmatpush1.msra.mxu0 0.0
        %3078 = vmatprep.subr.mxu0 0.0
        %3079 = vmatpush1.msra.mxu0 0.0
        %3080 = vmatprep.subr.mxu0 0.0
        %3081 = vmatpush1.msra.mxu0 0.0
        %3082 = vmatprep.subr.mxu0 0.0
        %3083 = vmatpush1.msra.mxu0 0.0
        %3084 = vmatprep.subr.mxu0 0.0
        %3085 = vmatpush1.msra.mxu0 0.0
        %3086 = vmatprep.subr.mxu0 0.0
        %3087 = vmatpush1.msra.mxu0 0.0
        %3088 = vmatprep.subr.mxu0 0.0
        %3089 = vmatpush1.msra.mxu0 0.0
        %3090 = vmatprep.subr.mxu0 0.0
        %3091 = vmatpush1.msra.mxu0 0.0
        %3092 = vmatprep.subr.mxu0 0.0
        %3093 = vmatpush1.msra.mxu0 0.0
        %3094 = vmatprep.subr.mxu0 0.0
        %3095 = vmatpush1.msra.mxu0 0.0
        %3096 = vmatprep.subr.mxu0 0.0
        %3097 = vmatpush1.msra.mxu0 0.0
        %3098 = vmatprep.subr.mxu0 0.0
        %3099 = vmatpush1.msra.mxu0 0.0
        %3100 = vmatprep.subr.mxu0 0.0
        %3101 = vmatpush1.msra.mxu0 0.0
        %3102 = vmatprep.subr.mxu0 0.0
        %3103 = vmatpush1.msra.mxu0 0.0
        %3104 = vmatprep.subr.mxu0 0.0
        %3105 = vmatpush1.msra.mxu0 0.0
        %3106 = vmatprep.subr.mxu0 0.0
        %3107 = vmatpush1.msra.mxu0 0.0
        %3108 = vmatprep.subr.mxu0 0.0
        %3109 = vmatpush1.msra.mxu0 0.0
        %3110 = vmatprep.subr.mxu0 0.0
        %3111 = vmatpush1.msra.mxu0 0.0
        %3112 = vmatprep.subr.mxu0 0.0
        %3113 = vmatpush1.msra.mxu0 0.0
        %3114 = vmatprep.subr.mxu0 0.0
        %3115 = vmatpush1.msra.mxu0 0.0
        %3116 = vmatprep.subr.mxu0 0.0
        %3117 = vmatpush1.msra.mxu0 0.0
        %3118 = vmatprep.subr.mxu0 0.0
        %3119 = vmatpush1.msra.mxu0 0.0
        %3120 = vmatprep.subr.mxu0 0.0
        %3121 = vmatpush1.msra.mxu0 0.0
        %3122 = vmatprep.subr.mxu0 0.0
        %3123 = vmatpush1.msra.mxu0 0.0
        %3124 = vmatprep.mubr.f32.mxu0 0.0
        %3125 = vmatmul.mubr.f32.gmra.mrb[0].mxu0 %v2800
        %v3126 = vpop.f32.mrb[0].mxu0
        %v3127 = vadd.f32 0.0, %v3126
        %v3128 = vpop.f32.mrb[0].mxu0
        %v3129 = vadd.f32 0.0, %v3128
        %3130 = vmatprep.mubr.f32.mxu0 0.0
        %3131 = vmatmul.mubr.f32.gmra.mrb[0].mxu0 %v2803
        %v3132 = vpop.f32.mrb[0].mxu0
        %v3133 = vadd.f32 0.0, %v3132
        %v3134 = vpop.f32.mrb[0].mxu0
        %v3135 = vadd.f32 0.0, %v3134
        %3136 = vdwg.mxu0
        %v3137 = vadd.f32 %v2739, %v2896
        %v3138 = vadd.f32 %v2740, %v2898
        %v3139 = vadd.f32 %v2741, %v2973
        %v3140 = vadd.f32 %v2742, %v2975
        %v3141 = vadd.f32 %v2743, %v3050
        %v3142 = vadd.f32 %v2744, %v3052
        %v3143 = vadd.f32 %v2745, %v3127
        %v3144 = vadd.f32 %v2746, %v3129
        %v3145 = vadd.f32 %v2747, %v2902
        %v3146 = vadd.f32 %v2748, %v2904
        %v3147 = vadd.f32 %v2749, %v2979
        %v3148 = vadd.f32 %v2750, %v2981
        %v3149 = vadd.f32 %v2751, %v3056
        %v3150 = vadd.f32 %v2752, %v3058
        %v3151 = vadd.f32 %v2753, %v3133
        %v3152 = vadd.f32 %v2754, %v3135
        %3153 = vrot.lane.b32.xlu0 %v425, 96
        %v3154 = vpop.permute.xlu0 %3153
        %3155 = vrot.lane.b32.xlu0 %v433, 96
        %v3156 = vpop.permute.xlu0 %3155
        %3157 = vrot.lane.b32.xlu0 %v426, 96
        %v3158 = vpop.permute.xlu0 %3157
        %3159 = vrot.lane.b32.xlu0 %v434, 96
        %v3160 = vpop.permute.xlu0 %3159
        %3161 = vrot.lane.b32.xlu0 %v427, 96
        %v3162 = vpop.permute.xlu0 %3161
        %3163 = vrot.lane.b32.xlu0 %v435, 96
        %v3164 = vpop.permute.xlu0 %3163
        %3165 = vrot.lane.b32.xlu0 %v428, 96
        %v3166 = vpop.permute.xlu0 %3165
        %3167 = vrot.lane.b32.xlu0 %v436, 96
        %v3168 = vpop.permute.xlu0 %3167
        %vm3169 = vcmask 785408
        %v3170 = vsel %vm3169, %v3154, %v3156
        %v3171 = vsel %vm3169, %v3156, %v3158
        %v3172 = vsel %vm3169, %v3158, %v3160
        %v3173 = vsel %vm3169, %v3160, %v3162
        %v3174 = vsel %vm3169, %v3162, %v3164
        %v3175 = vsel %vm3169, %v3164, %v3166
        %v3176 = vsel %vm3169, %v3166, %v3168
        %v3178 = vsel %vm3169, %v3168, 0.0
        %s3179 = scalar_lea.vmem %s1, 112
        %v3180 = vld [vmem:[%s3179] sm:$0xff]
        %v3181 = vld [vmem:[%s3179 + $0x8] sm:$0xff]
        %v3183 = vsel %vm525, %v3180, 0
        %v3186 = vsel %vm525, %v3181, 0
        %v3188 = vsel %vm532, %v3170, 0
        %v3190 = vsel %vm532, %v3171, 0
        %v3192 = vsel %vm532, %v3172, 0
        %v3194 = vsel %vm532, %v3173, 0
        %v3196 = vsel %vm532, %v3174, 0
        %v3198 = vsel %vm532, %v3175, 0
        %v3200 = vsel %vm532, %v3176, 0
        %v3203 = vsel %vm532, %v3178, 0
        %3205 = vmatprep.subr.mxu0 %v3190
        %3206 = vmatpush1.msra.mxu0 %v3188
        %3207 = vmatprep.subr.mxu0 0.0
        %3208 = vmatpush1.msra.mxu0 0.0
        %3209 = vmatprep.subr.mxu0 0.0
        %3210 = vmatpush1.msra.mxu0 0.0
        %3211 = vmatprep.subr.mxu0 0.0
        %3212 = vmatpush1.msra.mxu0 0.0
        %3213 = vmatprep.subr.mxu0 0.0
        %3214 = vmatpush1.msra.mxu0 0.0
        %3215 = vmatprep.subr.mxu0 0.0
        %3216 = vmatpush1.msra.mxu0 0.0
        %3217 = vmatprep.subr.mxu0 0.0
        %3218 = vmatpush1.msra.mxu0 0.0
        %3219 = vmatprep.subr.mxu0 0.0
        %3220 = vmatpush1.msra.mxu0 0.0
        %3221 = vmatprep.subr.mxu0 0.0
        %3222 = vmatpush1.msra.mxu0 0.0
        %3223 = vmatprep.subr.mxu0 0.0
        %3224 = vmatpush1.msra.mxu0 0.0
        %3225 = vmatprep.subr.mxu0 0.0
        %3226 = vmatpush1.msra.mxu0 0.0
        %3227 = vmatprep.subr.mxu0 0.0
        %3228 = vmatpush1.msra.mxu0 0.0
        %3229 = vmatprep.subr.mxu0 0.0
        %3230 = vmatpush1.msra.mxu0 0.0
        %3231 = vmatprep.subr.mxu0 0.0
        %3232 = vmatpush1.msra.mxu0 0.0
        %3233 = vmatprep.subr.mxu0 0.0
        %3234 = vmatpush1.msra.mxu0 0.0
        %3235 = vmatprep.subr.mxu0 0.0
        %3236 = vmatpush1.msra.mxu0 0.0
        %3237 = vmatprep.subr.mxu0 0.0
        %3238 = vmatpush1.msra.mxu0 0.0
        %3239 = vmatprep.subr.mxu0 0.0
        %3240 = vmatpush1.msra.mxu0 0.0
        %3241 = vmatprep.subr.mxu0 0.0
        %3242 = vmatpush1.msra.mxu0 0.0
        %3243 = vmatprep.subr.mxu0 0.0
        %3244 = vmatpush1.msra.mxu0 0.0
        %3245 = vmatprep.subr.mxu0 0.0
        %3246 = vmatpush1.msra.mxu0 0.0
        %3247 = vmatprep.subr.mxu0 0.0
        %3248 = vmatpush1.msra.mxu0 0.0
        %3249 = vmatprep.subr.mxu0 0.0
        %3250 = vmatpush1.msra.mxu0 0.0
        %3251 = vmatprep.subr.mxu0 0.0
        %3252 = vmatpush1.msra.mxu0 0.0
        %3253 = vmatprep.subr.mxu0 0.0
        %3254 = vmatpush1.msra.mxu0 0.0
        %3255 = vmatprep.subr.mxu0 0.0
        %3256 = vmatpush1.msra.mxu0 0.0
        %3257 = vmatprep.subr.mxu0 0.0
        %3258 = vmatpush1.msra.mxu0 0.0
        %3259 = vmatprep.subr.mxu0 0.0
        %3260 = vmatpush1.msra.mxu0 0.0
        %3261 = vmatprep.subr.mxu0 0.0
        %3262 = vmatpush1.msra.mxu0 0.0
        %3263 = vmatprep.subr.mxu0 0.0
        %3264 = vmatpush1.msra.mxu0 0.0
        %3265 = vmatprep.subr.mxu0 0.0
        %3266 = vmatpush1.msra.mxu0 0.0
        %3267 = vmatprep.subr.mxu0 0.0
        %3268 = vmatpush1.msra.mxu0 0.0
        %3269 = vmatprep.mubr.f32.mxu0 0.0
        %3270 = vmatmul.mubr.f32.gmra.mrb[0].mxu0 %v3183
        %v3271 = vpop.f32.mrb[0].mxu0
        %v3272 = vadd.f32 0.0, %v3271
        %v3273 = vpop.f32.mrb[0].mxu0
        %v3274 = vadd.f32 0.0, %v3273
        %3275 = vmatprep.mubr.f32.mxu0 0.0
        %3276 = vmatmul.mubr.f32.gmra.mrb[0].mxu0 %v3186
        %v3277 = vpop.f32.mrb[0].mxu0
        %v3278 = vadd.f32 0.0, %v3277
        %v3279 = vpop.f32.mrb[0].mxu0
        %v3280 = vadd.f32 0.0, %v3279
        %3281 = vdwg.mxu0
        %3282 = vmatprep.subr.mxu0 %v3194
        %3283 = vmatpush1.msra.mxu0 %v3192
        %3284 = vmatprep.subr.mxu0 0.0
        %3285 = vmatpush1.msra.mxu0 0.0
        %3286 = vmatprep.subr.mxu0 0.0
        %3287 = vmatpush1.msra.mxu0 0.0
        %3288 = vmatprep.subr.mxu0 0.0
        %3289 = vmatpush1.msra.mxu0 0.0
        %3290 = vmatprep.subr.mxu0 0.0
        %3291 = vmatpush1.msra.mxu0 0.0
        %3292 = vmatprep.subr.mxu0 0.0
        %3293 = vmatpush1.msra.mxu0 0.0
        %3294 = vmatprep.subr.mxu0 0.0
        %3295 = vmatpush1.msra.mxu0 0.0
        %3296 = vmatprep.subr.mxu0 0.0
        %3297 = vmatpush1.msra.mxu0 0.0
        %3298 = vmatprep.subr.mxu0 0.0
        %3299 = vmatpush1.msra.mxu0 0.0
        %3300 = vmatprep.subr.mxu0 0.0
        %3301 = vmatpush1.msra.mxu0 0.0
        %3302 = vmatprep.subr.mxu0 0.0
        %3303 = vmatpush1.msra.mxu0 0.0
        %3304 = vmatprep.subr.mxu0 0.0
        %3305 = vmatpush1.msra.mxu0 0.0
        %3306 = vmatprep.subr.mxu0 0.0
        %3307 = vmatpush1.msra.mxu0 0.0
        %3308 = vmatprep.subr.mxu0 0.0
        %3309 = vmatpush1.msra.mxu0 0.0
        %3310 = vmatprep.subr.mxu0 0.0
        %3311 = vmatpush1.msra.mxu0 0.0
        %3312 = vmatprep.subr.mxu0 0.0
        %3313 = vmatpush1.msra.mxu0 0.0
        %3314 = vmatprep.subr.mxu0 0.0
        %3315 = vmatpush1.msra.mxu0 0.0
        %3316 = vmatprep.subr.mxu0 0.0
        %3317 = vmatpush1.msra.mxu0 0.0
        %3318 = vmatprep.subr.mxu0 0.0
        %3319 = vmatpush1.msra.mxu0 0.0
        %3320 = vmatprep.subr.mxu0 0.0
        %3321 = vmatpush1.msra.mxu0 0.0
        %3322 = vmatprep.subr.mxu0 0.0
        %3323 = vmatpush1.msra.mxu0 0.0
        %3324 = vmatprep.subr.mxu0 0.0
        %3325 = vmatpush1.msra.mxu0 0.0
        %3326 = vmatprep.subr.mxu0 0.0
        %3327 = vmatpush1.msra.mxu0 0.0
        %3328 = vmatprep.subr.mxu0 0.0
        %3329 = vmatpush1.msra.mxu0 0.0
        %3330 = vmatprep.subr.mxu0 0.0
        %3331 = vmatpush1.msra.mxu0 0.0
        %3332 = vmatprep.subr.mxu0 0.0
        %3333 = vmatpush1.msra.mxu0 0.0
        %3334 = vmatprep.subr.mxu0 0.0
        %3335 = vmatpush1.msra.mxu0 0.0
        %3336 = vmatprep.subr.mxu0 0.0
        %3337 = vmatpush1.msra.mxu0 0.0
        %3338 = vmatprep.subr.mxu0 0.0
        %3339 = vmatpush1.msra.mxu0 0.0
        %3340 = vmatprep.subr.mxu0 0.0
        %3341 = vmatpush1.msra.mxu0 0.0
        %3342 = vmatprep.subr.mxu0 0.0
        %3343 = vmatpush1.msra.mxu0 0.0
        %3344 = vmatprep.subr.mxu0 0.0
        %3345 = vmatpush1.msra.mxu0 0.0
        %3346 = vmatprep.mubr.f32.mxu0 0.0
        %3347 = vmatmul.mubr.f32.gmra.mrb[0].mxu0 %v3183
        %v3348 = vpop.f32.mrb[0].mxu0
        %v3349 = vadd.f32 0.0, %v3348
        %v3350 = vpop.f32.mrb[0].mxu0
        %v3351 = vadd.f32 0.0, %v3350
        %3352 = vmatprep.mubr.f32.mxu0 0.0
        %3353 = vmatmul.mubr.f32.gmra.mrb[0].mxu0 %v3186
        %v3354 = vpop.f32.mrb[0].mxu0
        %v3355 = vadd.f32 0.0, %v3354
        %v3356 = vpop.f32.mrb[0].mxu0
        %v3357 = vadd.f32 0.0, %v3356
        %3358 = vdwg.mxu0
        %3359 = vmatprep.subr.mxu0 %v3198
        %3360 = vmatpush1.msra.mxu0 %v3196
        %3361 = vmatprep.subr.mxu0 0.0
        %3362 = vmatpush1.msra.mxu0 0.0
        %3363 = vmatprep.subr.mxu0 0.0
        %3364 = vmatpush1.msra.mxu0 0.0
        %3365 = vmatprep.subr.mxu0 0.0
        %3366 = vmatpush1.msra.mxu0 0.0
        %3367 = vmatprep.subr.mxu0 0.0
        %3368 = vmatpush1.msra.mxu0 0.0
        %3369 = vmatprep.subr.mxu0 0.0
        %3370 = vmatpush1.msra.mxu0 0.0
        %3371 = vmatprep.subr.mxu0 0.0
        %3372 = vmatpush1.msra.mxu0 0.0
        %3373 = vmatprep.subr.mxu0 0.0
        %3374 = vmatpush1.msra.mxu0 0.0
        %3375 = vmatprep.subr.mxu0 0.0
        %3376 = vmatpush1.msra.mxu0 0.0
        %3377 = vmatprep.subr.mxu0 0.0
        %3378 = vmatpush1.msra.mxu0 0.0
        %3379 = vmatprep.subr.mxu0 0.0
        %3380 = vmatpush1.msra.mxu0 0.0
        %3381 = vmatprep.subr.mxu0 0.0
        %3382 = vmatpush1.msra.mxu0 0.0
        %3383 = vmatprep.subr.mxu0 0.0
        %3384 = vmatpush1.msra.mxu0 0.0
        %3385 = vmatprep.subr.mxu0 0.0
        %3386 = vmatpush1.msra.mxu0 0.0
        %3387 = vmatprep.subr.mxu0 0.0
        %3388 = vmatpush1.msra.mxu0 0.0
        %3389 = vmatprep.subr.mxu0 0.0
        %3390 = vmatpush1.msra.mxu0 0.0
        %3391 = vmatprep.subr.mxu0 0.0
        %3392 = vmatpush1.msra.mxu0 0.0
        %3393 = vmatprep.subr.mxu0 0.0
        %3394 = vmatpush1.msra.mxu0 0.0
        %3395 = vmatprep.subr.mxu0 0.0
        %3396 = vmatpush1.msra.mxu0 0.0
        %3397 = vmatprep.subr.mxu0 0.0
        %3398 = vmatpush1.msra.mxu0 0.0
        %3399 = vmatprep.subr.mxu0 0.0
        %3400 = vmatpush1.msra.mxu0 0.0
        %3401 = vmatprep.subr.mxu0 0.0
        %3402 = vmatpush1.msra.mxu0 0.0
        %3403 = vmatprep.subr.mxu0 0.0
        %3404 = vmatpush1.msra.mxu0 0.0
        %3405 = vmatprep.subr.mxu0 0.0
        %3406 = vmatpush1.msra.mxu0 0.0
        %3407 = vmatprep.subr.mxu0 0.0
        %3408 = vmatpush1.msra.mxu0 0.0
        %3409 = vmatprep.subr.mxu0 0.0
        %3410 = vmatpush1.msra.mxu0 0.0
        %3411 = vmatprep.subr.mxu0 0.0
        %3412 = vmatpush1.msra.mxu0 0.0
        %3413 = vmatprep.subr.mxu0 0.0
        %3414 = vmatpush1.msra.mxu0 0.0
        %3415 = vmatprep.subr.mxu0 0.0
        %3416 = vmatpush1.msra.mxu0 0.0
        %3417 = vmatprep.subr.mxu0 0.0
        %3418 = vmatpush1.msra.mxu0 0.0
        %3419 = vmatprep.subr.mxu0 0.0
        %3420 = vmatpush1.msra.mxu0 0.0
        %3421 = vmatprep.subr.mxu0 0.0
        %3422 = vmatpush1.msra.mxu0 0.0
        %3423 = vmatprep.mubr.f32.mxu0 0.0
        %3424 = vmatmul.mubr.f32.gmra.mrb[0].mxu0 %v3183
        %v3425 = vpop.f32.mrb[0].mxu0
        %v3426 = vadd.f32 0.0, %v3425
        %v3427 = vpop.f32.mrb[0].mxu0
        %v3428 = vadd.f32 0.0, %v3427
        %3429 = vmatprep.mubr.f32.mxu0 0.0
        %3430 = vmatmul.mubr.f32.gmra.mrb[0].mxu0 %v3186
        %v3431 = vpop.f32.mrb[0].mxu0
        %v3432 = vadd.f32 0.0, %v3431
        %v3433 = vpop.f32.mrb[0].mxu0
        %v3434 = vadd.f32 0.0, %v3433
        %3435 = vdwg.mxu0
        %3436 = vmatprep.subr.mxu0 %v3203
        %3437 = vmatpush1.msra.mxu0 %v3200
        %3438 = vmatprep.subr.mxu0 0.0
        %3439 = vmatpush1.msra.mxu0 0.0
        %3440 = vmatprep.subr.mxu0 0.0
        %3441 = vmatpush1.msra.mxu0 0.0
        %3442 = vmatprep.subr.mxu0 0.0
        %3443 = vmatpush1.msra.mxu0 0.0
        %3444 = vmatprep.subr.mxu0 0.0
        %3445 = vmatpush1.msra.mxu0 0.0
        %3446 = vmatprep.subr.mxu0 0.0
        %3447 = vmatpush1.msra.mxu0 0.0
        %3448 = vmatprep.subr.mxu0 0.0
        %3449 = vmatpush1.msra.mxu0 0.0
        %3450 = vmatprep.subr.mxu0 0.0
        %3451 = vmatpush1.msra.mxu0 0.0
        %3452 = vmatprep.subr.mxu0 0.0
        %3453 = vmatpush1.msra.mxu0 0.0
        %3454 = vmatprep.subr.mxu0 0.0
        %3455 = vmatpush1.msra.mxu0 0.0
        %3456 = vmatprep.subr.mxu0 0.0
        %3457 = vmatpush1.msra.mxu0 0.0
        %3458 = vmatprep.subr.mxu0 0.0
        %3459 = vmatpush1.msra.mxu0 0.0
        %3460 = vmatprep.subr.mxu0 0.0
        %3461 = vmatpush1.msra.mxu0 0.0
        %3462 = vmatprep.subr.mxu0 0.0
        %3463 = vmatpush1.msra.mxu0 0.0
        %3464 = vmatprep.subr.mxu0 0.0
        %3465 = vmatpush1.msra.mxu0 0.0
        %3466 = vmatprep.subr.mxu0 0.0
        %3467 = vmatpush1.msra.mxu0 0.0
        %3468 = vmatprep.subr.mxu0 0.0
        %3469 = vmatpush1.msra.mxu0 0.0
        %3470 = vmatprep.subr.mxu0 0.0
        %3471 = vmatpush1.msra.mxu0 0.0
        %3472 = vmatprep.subr.mxu0 0.0
        %3473 = vmatpush1.msra.mxu0 0.0
        %3474 = vmatprep.subr.mxu0 0.0
        %3475 = vmatpush1.msra.mxu0 0.0
        %3476 = vmatprep.subr.mxu0 0.0
        %3477 = vmatpush1.msra.mxu0 0.0
        %3478 = vmatprep.subr.mxu0 0.0
        %3479 = vmatpush1.msra.mxu0 0.0
        %3480 = vmatprep.subr.mxu0 0.0
        %3481 = vmatpush1.msra.mxu0 0.0
        %3482 = vmatprep.subr.mxu0 0.0
        %3483 = vmatpush1.msra.mxu0 0.0
        %3484 = vmatprep.subr.mxu0 0.0
        %3485 = vmatpush1.msra.mxu0 0.0
        %3486 = vmatprep.subr.mxu0 0.0
        %3487 = vmatpush1.msra.mxu0 0.0
        %3488 = vmatprep.subr.mxu0 0.0
        %3489 = vmatpush1.msra.mxu0 0.0
        %3490 = vmatprep.subr.mxu0 0.0
        %3491 = vmatpush1.msra.mxu0 0.0
        %3492 = vmatprep.subr.mxu0 0.0
        %3493 = vmatpush1.msra.mxu0 0.0
        %3494 = vmatprep.subr.mxu0 0.0
        %3495 = vmatpush1.msra.mxu0 0.0
        %3496 = vmatprep.subr.mxu0 0.0
        %3497 = vmatpush1.msra.mxu0 0.0
        %3498 = vmatprep.subr.mxu0 0.0
        %3499 = vmatpush1.msra.mxu0 0.0
        %3500 = vmatprep.mubr.f32.mxu0 0.0
        %3501 = vmatmul.mubr.f32.gmra.mrb[0].mxu0 %v3183
        %v3502 = vpop.f32.mrb[0].mxu0
        %v3503 = vadd.f32 0.0, %v3502
        %v3504 = vpop.f32.mrb[0].mxu0
        %v3505 = vadd.f32 0.0, %v3504
        %3506 = vmatprep.mubr.f32.mxu0 0.0
        %3507 = vmatmul.mubr.f32.gmra.mrb[0].mxu0 %v3186
        %v3508 = vpop.f32.mrb[0].mxu0
        %v3509 = vadd.f32 0.0, %v3508
        %v3510 = vpop.f32.mrb[0].mxu0
        %v3511 = vadd.f32 0.0, %v3510
        %3512 = vdwg.mxu0
        %v3513 = vadd.f32 %v3137, %v3272
        %v3514 = vadd.f32 %v3138, %v3274
        %v3515 = vadd.f32 %v3139, %v3349
        %v3516 = vadd.f32 %v3140, %v3351
        %v3517 = vadd.f32 %v3141, %v3426
        %v3518 = vadd.f32 %v3142, %v3428
        %v3519 = vadd.f32 %v3143, %v3503
        %v3520 = vadd.f32 %v3144, %v3505
        %v3521 = vadd.f32 %v3145, %v3278
        %v3522 = vadd.f32 %v3146, %v3280
        %v3523 = vadd.f32 %v3147, %v3355
        %v3524 = vadd.f32 %v3148, %v3357
        %v3525 = vadd.f32 %v3149, %v3432
        %v3526 = vadd.f32 %v3150, %v3434
        %v3527 = vadd.f32 %v3151, %v3509
        %v3528 = vadd.f32 %v3152, %v3511
        %3529 = vrot.lane.b32.xlu0 %v425, 95
        %v3530 = vpop.permute.xlu0 %3529
        %3531 = vrot.lane.b32.xlu0 %v433, 95
        %v3532 = vpop.permute.xlu0 %3531
        %3533 = vrot.lane.b32.xlu0 %v426, 95
        %v3534 = vpop.permute.xlu0 %3533
        %3535 = vrot.lane.b32.xlu0 %v434, 95
        %v3536 = vpop.permute.xlu0 %3535
        %3537 = vrot.lane.b32.xlu0 %v427, 95
        %v3538 = vpop.permute.xlu0 %3537
        %3539 = vrot.lane.b32.xlu0 %v435, 95
        %v3540 = vpop.permute.xlu0 %3539
        %3541 = vrot.lane.b32.xlu0 %v428, 95
        %v3542 = vpop.permute.xlu0 %3541
        %3543 = vrot.lane.b32.xlu0 %v436, 95
        %v3544 = vpop.permute.xlu0 %3543
        %vm3545 = vcmask 777216
        %v3546 = vsel %vm3545, %v3530, %v3532
        %v3547 = vsel %vm3545, %v3532, %v3534
        %v3548 = vsel %vm3545, %v3534, %v3536
        %v3549 = vsel %vm3545, %v3536, %v3538
        %v3550 = vsel %vm3545, %v3538, %v3540
        %v3551 = vsel %vm3545, %v3540, %v3542
        %v3552 = vsel %vm3545, %v3542, %v3544
        %v3561 = vsel %vm3545, %v3544, 0.0
        %v3562 = vsel %vm1237, %v3546, 0.0
        %v3563 = vsel %vm1238, %v3547, 0.0
        %v3564 = vsel %vm1239, %v3548, 0.0
        %v3565 = vsel %vm1240, %v3549, 0.0
        %v3566 = vsel %vm1241, %v3550, 0.0
        %v3567 = vsel %vm1242, %v3551, 0.0
        %v3568 = vsel %vm1243, %v3552, 0.0
        %v3569 = vsel %vm1244, %v3561, 0.0
        %s3570 = scalar_lea.vmem %s1, 128
        %v3571 = vld [vmem:[%s3570] sm:$0xff]
        %v3572 = vld [vmem:[%s3570 + $0x8] sm:$0xff]
        %v3574 = vsel %vm525, %v3571, 0
        %v3577 = vsel %vm525, %v3572, 0
        %v3580 = vsel %vm532, %v3562, 0
        %v3583 = vsel %vm532, %v3563, 0
        %v3586 = vsel %vm532, %v3564, 0
        %v3589 = vsel %vm532, %v3565, 0
        %v3592 = vsel %vm532, %v3566, 0
        %v3595 = vsel %vm532, %v3567, 0
        %v3598 = vsel %vm532, %v3568, 0
        %v3601 = vsel %vm532, %v3569, 0
        %3603 = vmatprep.subr.mxu0 %v3583
        %3604 = vmatpush1.msra.mxu0 %v3580
        %3605 = vmatprep.subr.mxu0 0.0
        %3606 = vmatpush1.msra.mxu0 0.0
        %3607 = vmatprep.subr.mxu0 0.0
        %3608 = vmatpush1.msra.mxu0 0.0
        %3609 = vmatprep.subr.mxu0 0.0
        %3610 = vmatpush1.msra.mxu0 0.0
        %3611 = vmatprep.subr.mxu0 0.0
        %3612 = vmatpush1.msra.mxu0 0.0
        %3613 = vmatprep.subr.mxu0 0.0
        %3614 = vmatpush1.msra.mxu0 0.0
        %3615 = vmatprep.subr.mxu0 0.0
        %3616 = vmatpush1.msra.mxu0 0.0
        %3617 = vmatprep.subr.mxu0 0.0
        %3618 = vmatpush1.msra.mxu0 0.0
        %3619 = vmatprep.subr.mxu0 0.0
        %3620 = vmatpush1.msra.mxu0 0.0
        %3621 = vmatprep.subr.mxu0 0.0
        %3622 = vmatpush1.msra.mxu0 0.0
        %3623 = vmatprep.subr.mxu0 0.0
        %3624 = vmatpush1.msra.mxu0 0.0
        %3625 = vmatprep.subr.mxu0 0.0
        %3626 = vmatpush1.msra.mxu0 0.0
        %3627 = vmatprep.subr.mxu0 0.0
        %3628 = vmatpush1.msra.mxu0 0.0
        %3629 = vmatprep.subr.mxu0 0.0
        %3630 = vmatpush1.msra.mxu0 0.0
        %3631 = vmatprep.subr.mxu0 0.0
        %3632 = vmatpush1.msra.mxu0 0.0
        %3633 = vmatprep.subr.mxu0 0.0
        %3634 = vmatpush1.msra.mxu0 0.0
        %3635 = vmatprep.subr.mxu0 0.0
        %3636 = vmatpush1.msra.mxu0 0.0
        %3637 = vmatprep.subr.mxu0 0.0
        %3638 = vmatpush1.msra.mxu0 0.0
        %3639 = vmatprep.subr.mxu0 0.0
        %3640 = vmatpush1.msra.mxu0 0.0
        %3641 = vmatprep.subr.mxu0 0.0
        %3642 = vmatpush1.msra.mxu0 0.0
        %3643 = vmatprep.subr.mxu0 0.0
        %3644 = vmatpush1.msra.mxu0 0.0
        %3645 = vmatprep.subr.mxu0 0.0
        %3646 = vmatpush1.msra.mxu0 0.0
        %3647 = vmatprep.subr.mxu0 0.0
        %3648 = vmatpush1.msra.mxu0 0.0
        %3649 = vmatprep.subr.mxu0 0.0
        %3650 = vmatpush1.msra.mxu0 0.0
        %3651 = vmatprep.subr.mxu0 0.0
        %3652 = vmatpush1.msra.mxu0 0.0
        %3653 = vmatprep.subr.mxu0 0.0
        %3654 = vmatpush1.msra.mxu0 0.0
        %3655 = vmatprep.subr.mxu0 0.0
        %3656 = vmatpush1.msra.mxu0 0.0
        %3657 = vmatprep.subr.mxu0 0.0
        %3658 = vmatpush1.msra.mxu0 0.0
        %3659 = vmatprep.subr.mxu0 0.0
        %3660 = vmatpush1.msra.mxu0 0.0
        %3661 = vmatprep.subr.mxu0 0.0
        %3662 = vmatpush1.msra.mxu0 0.0
        %3663 = vmatprep.subr.mxu0 0.0
        %3664 = vmatpush1.msra.mxu0 0.0
        %3665 = vmatprep.subr.mxu0 0.0
        %3666 = vmatpush1.msra.mxu0 0.0
        %3667 = vmatprep.mubr.f32.mxu0 0.0
        %3668 = vmatmul.mubr.f32.gmra.mrb[0].mxu0 %v3574
        %v3669 = vpop.f32.mrb[0].mxu0
        %v3670 = vadd.f32 0.0, %v3669
        %v3671 = vpop.f32.mrb[0].mxu0
        %v3672 = vadd.f32 0.0, %v3671
        %3673 = vmatprep.mubr.f32.mxu0 0.0
        %3674 = vmatmul.mubr.f32.gmra.mrb[0].mxu0 %v3577
        %v3675 = vpop.f32.mrb[0].mxu0
        %v3676 = vadd.f32 0.0, %v3675
        %v3677 = vpop.f32.mrb[0].mxu0
        %v3678 = vadd.f32 0.0, %v3677
        %3679 = vdwg.mxu0
        %3680 = vmatprep.subr.mxu0 %v3589
        %3681 = vmatpush1.msra.mxu0 %v3586
        %3682 = vmatprep.subr.mxu0 0.0
        %3683 = vmatpush1.msra.mxu0 0.0
        %3684 = vmatprep.subr.mxu0 0.0
        %3685 = vmatpush1.msra.mxu0 0.0
        %3686 = vmatprep.subr.mxu0 0.0
        %3687 = vmatpush1.msra.mxu0 0.0
        %3688 = vmatprep.subr.mxu0 0.0
        %3689 = vmatpush1.msra.mxu0 0.0
        %3690 = vmatprep.subr.mxu0 0.0
        %3691 = vmatpush1.msra.mxu0 0.0
        %3692 = vmatprep.subr.mxu0 0.0
        %3693 = vmatpush1.msra.mxu0 0.0
        %3694 = vmatprep.subr.mxu0 0.0
        %3695 = vmatpush1.msra.mxu0 0.0
        %3696 = vmatprep.subr.mxu0 0.0
        %3697 = vmatpush1.msra.mxu0 0.0
        %3698 = vmatprep.subr.mxu0 0.0
        %3699 = vmatpush1.msra.mxu0 0.0
        %3700 = vmatprep.subr.mxu0 0.0
        %3701 = vmatpush1.msra.mxu0 0.0
        %3702 = vmatprep.subr.mxu0 0.0
        %3703 = vmatpush1.msra.mxu0 0.0
        %3704 = vmatprep.subr.mxu0 0.0
        %3705 = vmatpush1.msra.mxu0 0.0
        %3706 = vmatprep.subr.mxu0 0.0
        %3707 = vmatpush1.msra.mxu0 0.0
        %3708 = vmatprep.subr.mxu0 0.0
        %3709 = vmatpush1.msra.mxu0 0.0
        %3710 = vmatprep.subr.mxu0 0.0
        %3711 = vmatpush1.msra.mxu0 0.0
        %3712 = vmatprep.subr.mxu0 0.0
        %3713 = vmatpush1.msra.mxu0 0.0
        %3714 = vmatprep.subr.mxu0 0.0
        %3715 = vmatpush1.msra.mxu0 0.0
        %3716 = vmatprep.subr.mxu0 0.0
        %3717 = vmatpush1.msra.mxu0 0.0
        %3718 = vmatprep.subr.mxu0 0.0
        %3719 = vmatpush1.msra.mxu0 0.0
        %3720 = vmatprep.subr.mxu0 0.0
        %3721 = vmatpush1.msra.mxu0 0.0
        %3722 = vmatprep.subr.mxu0 0.0
        %3723 = vmatpush1.msra.mxu0 0.0
        %3724 = vmatprep.subr.mxu0 0.0
        %3725 = vmatpush1.msra.mxu0 0.0
        %3726 = vmatprep.subr.mxu0 0.0
        %3727 = vmatpush1.msra.mxu0 0.0
        %3728 = vmatprep.subr.mxu0 0.0
        %3729 = vmatpush1.msra.mxu0 0.0
        %3730 = vmatprep.subr.mxu0 0.0
        %3731 = vmatpush1.msra.mxu0 0.0
        %3732 = vmatprep.subr.mxu0 0.0
        %3733 = vmatpush1.msra.mxu0 0.0
        %3734 = vmatprep.subr.mxu0 0.0
        %3735 = vmatpush1.msra.mxu0 0.0
        %3736 = vmatprep.subr.mxu0 0.0
        %3737 = vmatpush1.msra.mxu0 0.0
        %3738 = vmatprep.subr.mxu0 0.0
        %3739 = vmatpush1.msra.mxu0 0.0
        %3740 = vmatprep.subr.mxu0 0.0
        %3741 = vmatpush1.msra.mxu0 0.0
        %3742 = vmatprep.subr.mxu0 0.0
        %3743 = vmatpush1.msra.mxu0 0.0
        %3744 = vmatprep.mubr.f32.mxu0 0.0
        %3745 = vmatmul.mubr.f32.gmra.mrb[0].mxu0 %v3574
        %v3746 = vpop.f32.mrb[0].mxu0
        %v3747 = vadd.f32 0.0, %v3746
        %v3748 = vpop.f32.mrb[0].mxu0
        %v3749 = vadd.f32 0.0, %v3748
        %3750 = vmatprep.mubr.f32.mxu0 0.0
        %3751 = vmatmul.mubr.f32.gmra.mrb[0].mxu0 %v3577
        %v3752 = vpop.f32.mrb[0].mxu0
        %v3753 = vadd.f32 0.0, %v3752
        %v3754 = vpop.f32.mrb[0].mxu0
        %v3755 = vadd.f32 0.0, %v3754
        %3756 = vdwg.mxu0
        %3757 = vmatprep.subr.mxu0 %v3595
        %3758 = vmatpush1.msra.mxu0 %v3592
        %3759 = vmatprep.subr.mxu0 0.0
        %3760 = vmatpush1.msra.mxu0 0.0
        %3761 = vmatprep.subr.mxu0 0.0
        %3762 = vmatpush1.msra.mxu0 0.0
        %3763 = vmatprep.subr.mxu0 0.0
        %3764 = vmatpush1.msra.mxu0 0.0
        %3765 = vmatprep.subr.mxu0 0.0
        %3766 = vmatpush1.msra.mxu0 0.0
        %3767 = vmatprep.subr.mxu0 0.0
        %3768 = vmatpush1.msra.mxu0 0.0
        %3769 = vmatprep.subr.mxu0 0.0
        %3770 = vmatpush1.msra.mxu0 0.0
        %3771 = vmatprep.subr.mxu0 0.0
        %3772 = vmatpush1.msra.mxu0 0.0
        %3773 = vmatprep.subr.mxu0 0.0
        %3774 = vmatpush1.msra.mxu0 0.0
        %3775 = vmatprep.subr.mxu0 0.0
        %3776 = vmatpush1.msra.mxu0 0.0
        %3777 = vmatprep.subr.mxu0 0.0
        %3778 = vmatpush1.msra.mxu0 0.0
        %3779 = vmatprep.subr.mxu0 0.0
        %3780 = vmatpush1.msra.mxu0 0.0
        %3781 = vmatprep.subr.mxu0 0.0
        %3782 = vmatpush1.msra.mxu0 0.0
        %3783 = vmatprep.subr.mxu0 0.0
        %3784 = vmatpush1.msra.mxu0 0.0
        %3785 = vmatprep.subr.mxu0 0.0
        %3786 = vmatpush1.msra.mxu0 0.0
        %3787 = vmatprep.subr.mxu0 0.0
        %3788 = vmatpush1.msra.mxu0 0.0
        %3789 = vmatprep.subr.mxu0 0.0
        %3790 = vmatpush1.msra.mxu0 0.0
        %3791 = vmatprep.subr.mxu0 0.0
        %3792 = vmatpush1.msra.mxu0 0.0
        %3793 = vmatprep.subr.mxu0 0.0
        %3794 = vmatpush1.msra.mxu0 0.0
        %3795 = vmatprep.subr.mxu0 0.0
        %3796 = vmatpush1.msra.mxu0 0.0
        %3797 = vmatprep.subr.mxu0 0.0
        %3798 = vmatpush1.msra.mxu0 0.0
        %3799 = vmatprep.subr.mxu0 0.0
        %3800 = vmatpush1.msra.mxu0 0.0
        %3801 = vmatprep.subr.mxu0 0.0
        %3802 = vmatpush1.msra.mxu0 0.0
        %3803 = vmatprep.subr.mxu0 0.0
        %3804 = vmatpush1.msra.mxu0 0.0
        %3805 = vmatprep.subr.mxu0 0.0
        %3806 = vmatpush1.msra.mxu0 0.0
        %3807 = vmatprep.subr.mxu0 0.0
        %3808 = vmatpush1.msra.mxu0 0.0
        %3809 = vmatprep.subr.mxu0 0.0
        %3810 = vmatpush1.msra.mxu0 0.0
        %3811 = vmatprep.subr.mxu0 0.0
        %3812 = vmatpush1.msra.mxu0 0.0
        %3813 = vmatprep.subr.mxu0 0.0
        %3814 = vmatpush1.msra.mxu0 0.0
        %3815 = vmatprep.subr.mxu0 0.0
        %3816 = vmatpush1.msra.mxu0 0.0
        %3817 = vmatprep.subr.mxu0 0.0
        %3818 = vmatpush1.msra.mxu0 0.0
        %3819 = vmatprep.subr.mxu0 0.0
        %3820 = vmatpush1.msra.mxu0 0.0
        %3821 = vmatprep.mubr.f32.mxu0 0.0
        %3822 = vmatmul.mubr.f32.gmra.mrb[0].mxu0 %v3574
        %v3823 = vpop.f32.mrb[0].mxu0
        %v3824 = vadd.f32 0.0, %v3823
        %v3825 = vpop.f32.mrb[0].mxu0
        %v3826 = vadd.f32 0.0, %v3825
        %3827 = vmatprep.mubr.f32.mxu0 0.0
        %3828 = vmatmul.mubr.f32.gmra.mrb[0].mxu0 %v3577
        %v3829 = vpop.f32.mrb[0].mxu0
        %v3830 = vadd.f32 0.0, %v3829
        %v3831 = vpop.f32.mrb[0].mxu0
        %v3832 = vadd.f32 0.0, %v3831
        %3833 = vdwg.mxu0
        %3834 = vmatprep.subr.mxu0 %v3601
        %3835 = vmatpush1.msra.mxu0 %v3598
        %3836 = vmatprep.subr.mxu0 0.0
        %3837 = vmatpush1.msra.mxu0 0.0
        %3838 = vmatprep.subr.mxu0 0.0
        %3839 = vmatpush1.msra.mxu0 0.0
        %3840 = vmatprep.subr.mxu0 0.0
        %3841 = vmatpush1.msra.mxu0 0.0
        %3842 = vmatprep.subr.mxu0 0.0
        %3843 = vmatpush1.msra.mxu0 0.0
        %3844 = vmatprep.subr.mxu0 0.0
        %3845 = vmatpush1.msra.mxu0 0.0
        %3846 = vmatprep.subr.mxu0 0.0
        %3847 = vmatpush1.msra.mxu0 0.0
        %3848 = vmatprep.subr.mxu0 0.0
        %3849 = vmatpush1.msra.mxu0 0.0
        %3850 = vmatprep.subr.mxu0 0.0
        %3851 = vmatpush1.msra.mxu0 0.0
        %3852 = vmatprep.subr.mxu0 0.0
        %3853 = vmatpush1.msra.mxu0 0.0
        %3854 = vmatprep.subr.mxu0 0.0
        %3855 = vmatpush1.msra.mxu0 0.0
        %3856 = vmatprep.subr.mxu0 0.0
        %3857 = vmatpush1.msra.mxu0 0.0
        %3858 = vmatprep.subr.mxu0 0.0
        %3859 = vmatpush1.msra.mxu0 0.0
        %3860 = vmatprep.subr.mxu0 0.0
        %3861 = vmatpush1.msra.mxu0 0.0
        %3862 = vmatprep.subr.mxu0 0.0
        %3863 = vmatpush1.msra.mxu0 0.0
        %3864 = vmatprep.subr.mxu0 0.0
        %3865 = vmatpush1.msra.mxu0 0.0
        %3866 = vmatprep.subr.mxu0 0.0
        %3867 = vmatpush1.msra.mxu0 0.0
        %3868 = vmatprep.subr.mxu0 0.0
        %3869 = vmatpush1.msra.mxu0 0.0
        %3870 = vmatprep.subr.mxu0 0.0
        %3871 = vmatpush1.msra.mxu0 0.0
        %3872 = vmatprep.subr.mxu0 0.0
        %3873 = vmatpush1.msra.mxu0 0.0
        %3874 = vmatprep.subr.mxu0 0.0
        %3875 = vmatpush1.msra.mxu0 0.0
        %3876 = vmatprep.subr.mxu0 0.0
        %3877 = vmatpush1.msra.mxu0 0.0
        %3878 = vmatprep.subr.mxu0 0.0
        %3879 = vmatpush1.msra.mxu0 0.0
        %3880 = vmatprep.subr.mxu0 0.0
        %3881 = vmatpush1.msra.mxu0 0.0
        %3882 = vmatprep.subr.mxu0 0.0
        %3883 = vmatpush1.msra.mxu0 0.0
        %3884 = vmatprep.subr.mxu0 0.0
        %3885 = vmatpush1.msra.mxu0 0.0
        %3886 = vmatprep.subr.mxu0 0.0
        %3887 = vmatpush1.msra.mxu0 0.0
        %3888 = vmatprep.subr.mxu0 0.0
        %3889 = vmatpush1.msra.mxu0 0.0
        %3890 = vmatprep.subr.mxu0 0.0
        %3891 = vmatpush1.msra.mxu0 0.0
        %3892 = vmatprep.subr.mxu0 0.0
        %3893 = vmatpush1.msra.mxu0 0.0
        %3894 = vmatprep.subr.mxu0 0.0
        %3895 = vmatpush1.msra.mxu0 0.0
        %3896 = vmatprep.subr.mxu0 0.0
        %3897 = vmatpush1.msra.mxu0 0.0
        %3898 = vmatprep.mubr.f32.mxu0 0.0
        %3899 = vmatmul.mubr.f32.gmra.mrb[0].mxu0 %v3574
        %v3900 = vpop.f32.mrb[0].mxu0
        %v3901 = vadd.f32 0.0, %v3900
        %v3902 = vpop.f32.mrb[0].mxu0
        %v3903 = vadd.f32 0.0, %v3902
        %3904 = vmatprep.mubr.f32.mxu0 0.0
        %3905 = vmatmul.mubr.f32.gmra.mrb[0].mxu0 %v3577
        %v3906 = vpop.f32.mrb[0].mxu0
        %v3907 = vadd.f32 0.0, %v3906
        %v3908 = vpop.f32.mrb[0].mxu0
        %v3909 = vadd.f32 0.0, %v3908
        %3910 = vdwg.mxu0
        %v3911 = vadd.f32 %v3513, %v3670
        %v3912 = vadd.f32 %v3514, %v3672
        %v3913 = vadd.f32 %v3515, %v3747
        %v3914 = vadd.f32 %v3516, %v3749
        %v3915 = vadd.f32 %v3517, %v3824
        %v3916 = vadd.f32 %v3518, %v3826
        %v3917 = vadd.f32 %v3519, %v3901
        %v3918 = vadd.f32 %v3520, %v3903
        %v3919 = vadd.f32 %v3521, %v3676
        %v3920 = vadd.f32 %v3522, %v3678
        %v3921 = vadd.f32 %v3523, %v3753
        %v3922 = vadd.f32 %v3524, %v3755
        %v3923 = vadd.f32 %v3525, %v3830
        %v3924 = vadd.f32 %v3526, %v3832
        %v3925 = vadd.f32 %v3527, %v3907
        %v3926 = vadd.f32 %v3528, %v3909
        %v3927 = vld [vmem:[%s2] sm:$0xff]
        %v3928 = vld [vmem:[%s2 + $0x8] sm:$0xff]
        %3930 = vset.pattern.permute.xlu0 0
        %3931 = vperm.xlu0 %3930, %v3927
        %v3932 = vpop.permute.xlu0 %3931
        %3935 = vset.pattern.permute.xlu0 0
        %3936 = vperm.xlu0 %3935, %v3928
        %v3937 = vpop.permute.xlu0 %3936
        %v3939 = vadd.f32 %v3911, %v3932
        %v3940 = vadd.f32 %v3912, %v3932
        %v3941 = vadd.f32 %v3913, %v3932
        %v3942 = vadd.f32 %v3914, %v3932
        %v3943 = vadd.f32 %v3915, %v3932
        %v3944 = vadd.f32 %v3916, %v3932
        %v3945 = vadd.f32 %v3917, %v3932
        %v3946 = vadd.f32 %v3918, %v3932
        %v3947 = vadd.f32 %v3919, %v3937
        %v3948 = vadd.f32 %v3920, %v3937
        %v3949 = vadd.f32 %v3921, %v3937
        %v3950 = vadd.f32 %v3922, %v3937
        %v3951 = vadd.f32 %v3923, %v3937
        %v3952 = vadd.f32 %v3924, %v3937
        %v3953 = vadd.f32 %v3925, %v3937
        %v3954 = vadd.f32 %v3926, %v3937
        %v3955 = vmax.f32 %v3939, 0.0
        %v3956 = vmax.f32 %v3940, 0.0
        %v3957 = vmax.f32 %v3941, 0.0
        %v3958 = vmax.f32 %v3942, 0.0
        %v3959 = vmax.f32 %v3943, 0.0
        %v3960 = vmax.f32 %v3944, 0.0
        %v3961 = vmax.f32 %v3945, 0.0
        %v3962 = vmax.f32 %v3946, 0.0
        %v3963 = vmax.f32 %v3947, 0.0
        %v3964 = vmax.f32 %v3948, 0.0
        %v3965 = vmax.f32 %v3949, 0.0
        %v3966 = vmax.f32 %v3950, 0.0
        %v3967 = vmax.f32 %v3951, 0.0
        %v3968 = vmax.f32 %v3952, 0.0
        %v3969 = vmax.f32 %v3953, 0.0
        %v3970 = vmax.f32 %v3954, 0.0
        %3987 = vrot.lane.b32.xlu0 %v3955, 33
        %v3988 = vpop.permute.xlu0 %3987
        %3989 = vrot.lane.b32.xlu0 %v3956, 33
        %v3990 = vpop.permute.xlu0 %3989
        %3991 = vrot.lane.b32.xlu0 %v3957, 33
        %v3992 = vpop.permute.xlu0 %3991
        %3993 = vrot.lane.b32.xlu0 %v3958, 33
        %v3994 = vpop.permute.xlu0 %3993
        %3995 = vrot.lane.b32.xlu0 %v3959, 33
        %v3996 = vpop.permute.xlu0 %3995
        %3997 = vrot.lane.b32.xlu0 %v3960, 33
        %v3998 = vpop.permute.xlu0 %3997
        %3999 = vrot.lane.b32.xlu0 %v3961, 33
        %v4000 = vpop.permute.xlu0 %3999
        %4001 = vrot.lane.b32.xlu0 %v3962, 33
        %v4002 = vpop.permute.xlu0 %4001
        %4003 = vrot.lane.b32.xlu0 %v3963, 33
        %v4004 = vpop.permute.xlu0 %4003
        %4005 = vrot.lane.b32.xlu0 %v3964, 33
        %v4006 = vpop.permute.xlu0 %4005
        %4007 = vrot.lane.b32.xlu0 %v3965, 33
        %v4008 = vpop.permute.xlu0 %4007
        %4009 = vrot.lane.b32.xlu0 %v3966, 33
        %v4010 = vpop.permute.xlu0 %4009
        %4011 = vrot.lane.b32.xlu0 %v3967, 33
        %v4012 = vpop.permute.xlu0 %4011
        %4013 = vrot.lane.b32.xlu0 %v3968, 33
        %v4014 = vpop.permute.xlu0 %4013
        %4015 = vrot.lane.b32.xlu0 %v3969, 33
        %v4016 = vpop.permute.xlu0 %4015
        %4017 = vrot.lane.b32.xlu0 %v3970, 33
        %v4018 = vpop.permute.xlu0 %4017
        %v4019 = vsel %vm453, %v3988, %v3990
        %v4020 = vsel %vm453, %v3990, %v3992
        %v4021 = vsel %vm453, %v3992, %v3994
        %v4022 = vsel %vm453, %v3994, %v3996
        %v4023 = vsel %vm453, %v3996, %v3998
        %v4024 = vsel %vm453, %v3998, %v4000
        %v4025 = vsel %vm453, %v4000, %v4002
        %v4026 = vsel %vm453, %v4004, %v4006
        %v4027 = vsel %vm453, %v4006, %v4008
        %v4028 = vsel %vm453, %v4008, %v4010
        %v4029 = vsel %vm453, %v4010, %v4012
        %v4030 = vsel %vm453, %v4012, %v4014
        %v4031 = vsel %vm453, %v4014, %v4016
        %v4032 = vsel %vm453, %v4016, %v4018
        %v4049 = vsel %vm453, 0.0, %v3988
        %v4050 = vsel %vm453, 0.0, %v4004
        %v4051 = vsel %vm478, %v4049, 0.0
        %v4052 = vsel %vm479, %v4019, 0.0
        %v4053 = vsel %vm480, %v4020, 0.0
        %v4054 = vsel %vm481, %v4021, 0.0
        %v4055 = vsel %vm482, %v4022, 0.0
        %v4056 = vsel %vm483, %v4023, 0.0
        %v4057 = vsel %vm484, %v4024, 0.0
        %v4058 = vsel %vm485, %v4025, 0.0
        %v4059 = vsel %vm478, %v4050, 0.0
        %v4060 = vsel %vm479, %v4026, 0.0
        %v4061 = vsel %vm480, %v4027, 0.0
        %v4062 = vsel %vm481, %v4028, 0.0
        %v4063 = vsel %vm482, %v4029, 0.0
        %v4064 = vsel %vm483, %v4030, 0.0
        %v4065 = vsel %vm484, %v4031, 0.0
        %v4066 = vsel %vm485, %v4032, 0.0
        %v4067 = vld [vmem:[%s3] sm:$0xff]
        %v4068 = vld [vmem:[%s3 + $0x8] sm:$0xff]
        %v4069 = vld [vmem:[%s3 + $0x10] sm:$0xff]
        %v4070 = vld [vmem:[%s3 + $0x18] sm:$0xff]
        %4071 = vrot.lane.b32.xlu0 %v3955, 32
        %v4072 = vpop.permute.xlu0 %4071
        %4073 = vrot.lane.b32.xlu0 %v3956, 32
        %v4074 = vpop.permute.xlu0 %4073
        %4075 = vrot.lane.b32.xlu0 %v3957, 32
        %v4076 = vpop.permute.xlu0 %4075
        %4077 = vrot.lane.b32.xlu0 %v3958, 32
        %v4078 = vpop.permute.xlu0 %4077
        %4079 = vrot.lane.b32.xlu0 %v3959, 32
        %v4080 = vpop.permute.xlu0 %4079
        %4081 = vrot.lane.b32.xlu0 %v3960, 32
        %v4082 = vpop.permute.xlu0 %4081
        %4083 = vrot.lane.b32.xlu0 %v3961, 32
        %v4084 = vpop.permute.xlu0 %4083
        %4085 = vrot.lane.b32.xlu0 %v3962, 32
        %v4086 = vpop.permute.xlu0 %4085
        %4087 = vrot.lane.b32.xlu0 %v3963, 32
        %v4088 = vpop.permute.xlu0 %4087
        %4089 = vrot.lane.b32.xlu0 %v3964, 32
        %v4090 = vpop.permute.xlu0 %4089
        %4091 = vrot.lane.b32.xlu0 %v3965, 32
        %v4092 = vpop.permute.xlu0 %4091
        %4093 = vrot.lane.b32.xlu0 %v3966, 32
        %v4094 = vpop.permute.xlu0 %4093
        %4095 = vrot.lane.b32.xlu0 %v3967, 32
        %v4096 = vpop.permute.xlu0 %4095
        %4097 = vrot.lane.b32.xlu0 %v3968, 32
        %v4098 = vpop.permute.xlu0 %4097
        %4099 = vrot.lane.b32.xlu0 %v3969, 32
        %v4100 = vpop.permute.xlu0 %4099
        %4101 = vrot.lane.b32.xlu0 %v3970, 32
        %v4102 = vpop.permute.xlu0 %4101
        %v4103 = vsel %vm512, %v4072, %v4074
        %v4104 = vsel %vm512, %v4074, %v4076
        %v4105 = vsel %vm512, %v4076, %v4078
        %v4106 = vsel %vm512, %v4078, %v4080
        %v4107 = vsel %vm512, %v4080, %v4082
        %v4108 = vsel %vm512, %v4082, %v4084
        %v4109 = vsel %vm512, %v4084, %v4086
        %v4110 = vsel %vm512, %v4088, %v4090
        %v4111 = vsel %vm512, %v4090, %v4092
        %v4112 = vsel %vm512, %v4092, %v4094
        %v4113 = vsel %vm512, %v4094, %v4096
        %v4114 = vsel %vm512, %v4096, %v4098
        %v4115 = vsel %vm512, %v4098, %v4100
        %v4116 = vsel %vm512, %v4100, %v4102
        %v4133 = vsel %vm512, 0.0, %v4072
        %v4134 = vsel %vm512, 0.0, %v4088
        %s4135 = scalar_lea.vmem %s3, 32
        %v4136 = vld [vmem:[%s4135] sm:$0xff]
        %v4137 = vld [vmem:[%s4135 + $0x8] sm:$0xff]
        %v4138 = vld [vmem:[%s4135 + $0x10] sm:$0xff]
        %v4139 = vld [vmem:[%s4135 + $0x18] sm:$0xff]
        %vm4140 = vcmask 130048
        %v4142 = vsel %vm4140, %v4136, 0
        %v4145 = vsel %vm4140, %v4137, 0
        %v4148 = vsel %vm4140, %v4138, 0
        %v4151 = vsel %vm4140, %v4139, 0
        %4153 = vmatprep.subr.mxu0 %v4103
        %4154 = vmatpush1.msra.mxu0 %v4133
        %4155 = vmatprep.subr.mxu0 %v4110
        %4156 = vmatpush1.msra.mxu0 %v4134
        %4157 = vmatprep.subr.mxu0 0.0
        %4158 = vmatpush1.msra.mxu0 0.0
        %4159 = vmatprep.subr.mxu0 0.0
        %4160 = vmatpush1.msra.mxu0 0.0
        %4161 = vmatprep.subr.mxu0 0.0
        %4162 = vmatpush1.msra.mxu0 0.0
        %4163 = vmatprep.subr.mxu0 0.0
        %4164 = vmatpush1.msra.mxu0 0.0
        %4165 = vmatprep.subr.mxu0 0.0
        %4166 = vmatpush1.msra.mxu0 0.0
        %4167 = vmatprep.subr.mxu0 0.0
        %4168 = vmatpush1.msra.mxu0 0.0
        %4169 = vmatprep.subr.mxu0 0.0
        %4170 = vmatpush1.msra.mxu0 0.0
        %4171 = vmatprep.subr.mxu0 0.0
        %4172 = vmatpush1.msra.mxu0 0.0
        %4173 = vmatprep.subr.mxu0 0.0
        %4174 = vmatpush1.msra.mxu0 0.0
        %4175 = vmatprep.subr.mxu0 0.0
        %4176 = vmatpush1.msra.mxu0 0.0
        %4177 = vmatprep.subr.mxu0 0.0
        %4178 = vmatpush1.msra.mxu0 0.0
        %4179 = vmatprep.subr.mxu0 0.0
        %4180 = vmatpush1.msra.mxu0 0.0
        %4181 = vmatprep.subr.mxu0 0.0
        %4182 = vmatpush1.msra.mxu0 0.0
        %4183 = vmatprep.subr.mxu0 0.0
        %4184 = vmatpush1.msra.mxu0 0.0
        %4185 = vmatprep.subr.mxu0 0.0
        %4186 = vmatpush1.msra.mxu0 0.0
        %4187 = vmatprep.subr.mxu0 0.0
        %4188 = vmatpush1.msra.mxu0 0.0
        %4189 = vmatprep.subr.mxu0 0.0
        %4190 = vmatpush1.msra.mxu0 0.0
        %4191 = vmatprep.subr.mxu0 0.0
        %4192 = vmatpush1.msra.mxu0 0.0
        %4193 = vmatprep.subr.mxu0 0.0
        %4194 = vmatpush1.msra.mxu0 0.0
        %4195 = vmatprep.subr.mxu0 0.0
        %4196 = vmatpush1.msra.mxu0 0.0
        %4197 = vmatprep.subr.mxu0 0.0
        %4198 = vmatpush1.msra.mxu0 0.0
        %4199 = vmatprep.subr.mxu0 0.0
        %4200 = vmatpush1.msra.mxu0 0.0
        %4201 = vmatprep.subr.mxu0 0.0
        %4202 = vmatpush1.msra.mxu0 0.0
        %4203 = vmatprep.subr.mxu0 0.0
        %4204 = vmatpush1.msra.mxu0 0.0
        %4205 = vmatprep.subr.mxu0 0.0
        %4206 = vmatpush1.msra.mxu0 0.0
        %4207 = vmatprep.subr.mxu0 0.0
        %4208 = vmatpush1.msra.mxu0 0.0
        %4209 = vmatprep.subr.mxu0 0.0
        %4210 = vmatpush1.msra.mxu0 0.0
        %4211 = vmatprep.subr.mxu0 0.0
        %4212 = vmatpush1.msra.mxu0 0.0
        %4213 = vmatprep.subr.mxu0 0.0
        %4214 = vmatpush1.msra.mxu0 0.0
        %4215 = vmatprep.subr.mxu0 0.0
        %4216 = vmatpush1.msra.mxu0 0.0
        %4217 = vmatprep.mubr.f32.mxu0 0.0
        %4218 = vmatmul.mubr.f32.gmra.mrb[0].mxu0 %v4142
        %v4219 = vpop.f32.mrb[0].mxu0
        %v4220 = vadd.f32 0.0, %v4219
        %v4221 = vpop.f32.mrb[0].mxu0
        %v4222 = vadd.f32 0.0, %v4221
        %4223 = vmatprep.mubr.f32.mxu0 0.0
        %4224 = vmatmul.mubr.f32.gmra.mrb[0].mxu0 %v4145
        %v4225 = vpop.f32.mrb[0].mxu0
        %v4226 = vadd.f32 0.0, %v4225
        %v4227 = vpop.f32.mrb[0].mxu0
        %v4228 = vadd.f32 0.0, %v4227
        %4229 = vmatprep.mubr.f32.mxu0 0.0
        %4230 = vmatmul.mubr.f32.gmra.mrb[0].mxu0 %v4148
        %v4231 = vpop.f32.mrb[0].mxu0
        %v4232 = vadd.f32 0.0, %v4231
        %v4233 = vpop.f32.mrb[0].mxu0
        %v4234 = vadd.f32 0.0, %v4233
        %4235 = vmatprep.mubr.f32.mxu0 0.0
        %4236 = vmatmul.mubr.f32.gmra.mrb[0].mxu0 %v4151
        %v4237 = vpop.f32.mrb[0].mxu0
        %v4238 = vadd.f32 0.0, %v4237
        %v4239 = vpop.f32.mrb[0].mxu0
        %v4240 = vadd.f32 0.0, %v4239
        %4241 = vdwg.mxu0
        %4242 = vmatprep.subr.mxu0 %v4105
        %4243 = vmatpush1.msra.mxu0 %v4104
        %4244 = vmatprep.subr.mxu0 %v4112
        %4245 = vmatpush1.msra.mxu0 %v4111
        %4246 = vmatprep.subr.mxu0 0.0
        %4247 = vmatpush1.msra.mxu0 0.0
        %4248 = vmatprep.subr.mxu0 0.0
        %4249 = vmatpush1.msra.mxu0 0.0
        %4250 = vmatprep.subr.mxu0 0.0
        %4251 = vmatpush1.msra.mxu0 0.0
        %4252 = vmatprep.subr.mxu0 0.0
        %4253 = vmatpush1.msra.mxu0 0.0
        %4254 = vmatprep.subr.mxu0 0.0
        %4255 = vmatpush1.msra.mxu0 0.0
        %4256 = vmatprep.subr.mxu0 0.0
        %4257 = vmatpush1.msra.mxu0 0.0
        %4258 = vmatprep.subr.mxu0 0.0
        %4259 = vmatpush1.msra.mxu0 0.0
        %4260 = vmatprep.subr.mxu0 0.0
        %4261 = vmatpush1.msra.mxu0 0.0
        %4262 = vmatprep.subr.mxu0 0.0
        %4263 = vmatpush1.msra.mxu0 0.0
        %4264 = vmatprep.subr.mxu0 0.0
        %4265 = vmatpush1.msra.mxu0 0.0
        %4266 = vmatprep.subr.mxu0 0.0
        %4267 = vmatpush1.msra.mxu0 0.0
        %4268 = vmatprep.subr.mxu0 0.0
        %4269 = vmatpush1.msra.mxu0 0.0
        %4270 = vmatprep.subr.mxu0 0.0
        %4271 = vmatpush1.msra.mxu0 0.0
        %4272 = vmatprep.subr.mxu0 0.0
        %4273 = vmatpush1.msra.mxu0 0.0
        %4274 = vmatprep.subr.mxu0 0.0
        %4275 = vmatpush1.msra.mxu0 0.0
        %4276 = vmatprep.subr.mxu0 0.0
        %4277 = vmatpush1.msra.mxu0 0.0
        %4278 = vmatprep.subr.mxu0 0.0
        %4279 = vmatpush1.msra.mxu0 0.0
        %4280 = vmatprep.subr.mxu0 0.0
        %4281 = vmatpush1.msra.mxu0 0.0
        %4282 = vmatprep.subr.mxu0 0.0
        %4283 = vmatpush1.msra.mxu0 0.0
        %4284 = vmatprep.subr.mxu0 0.0
        %4285 = vmatpush1.msra.mxu0 0.0
        %4286 = vmatprep.subr.mxu0 0.0
        %4287 = vmatpush1.msra.mxu0 0.0
        %4288 = vmatprep.subr.mxu0 0.0
        %4289 = vmatpush1.msra.mxu0 0.0
        %4290 = vmatprep.subr.mxu0 0.0
        %4291 = vmatpush1.msra.mxu0 0.0
        %4292 = vmatprep.subr.mxu0 0.0
        %4293 = vmatpush1.msra.mxu0 0.0
        %4294 = vmatprep.subr.mxu0 0.0
        %4295 = vmatpush1.msra.mxu0 0.0
        %4296 = vmatprep.subr.mxu0 0.0
        %4297 = vmatpush1.msra.mxu0 0.0
        %4298 = vmatprep.subr.mxu0 0.0
        %4299 = vmatpush1.msra.mxu0 0.0
        %4300 = vmatprep.subr.mxu0 0.0
        %4301 = vmatpush1.msra.mxu0 0.0
        %4302 = vmatprep.subr.mxu0 0.0
        %4303 = vmatpush1.msra.mxu0 0.0
        %4304 = vmatprep.subr.mxu0 0.0
        %4305 = vmatpush1.msra.mxu0 0.0
        %4306 = vmatprep.mubr.f32.mxu0 0.0
        %4307 = vmatmul.mubr.f32.gmra.mrb[0].mxu0 %v4142
        %v4308 = vpop.f32.mrb[0].mxu0
        %v4309 = vadd.f32 0.0, %v4308
        %v4310 = vpop.f32.mrb[0].mxu0
        %v4311 = vadd.f32 0.0, %v4310
        %4312 = vmatprep.mubr.f32.mxu0 0.0
        %4313 = vmatmul.mubr.f32.gmra.mrb[0].mxu0 %v4145
        %v4314 = vpop.f32.mrb[0].mxu0
        %v4315 = vadd.f32 0.0, %v4314
        %v4316 = vpop.f32.mrb[0].mxu0
        %v4317 = vadd.f32 0.0, %v4316
        %4318 = vmatprep.mubr.f32.mxu0 0.0
        %4319 = vmatmul.mubr.f32.gmra.mrb[0].mxu0 %v4148
        %v4320 = vpop.f32.mrb[0].mxu0
        %v4321 = vadd.f32 0.0, %v4320
        %v4322 = vpop.f32.mrb[0].mxu0
        %v4323 = vadd.f32 0.0, %v4322
        %4324 = vmatprep.mubr.f32.mxu0 0.0
        %4325 = vmatmul.mubr.f32.gmra.mrb[0].mxu0 %v4151
        %v4326 = vpop.f32.mrb[0].mxu0
        %v4327 = vadd.f32 0.0, %v4326
        %v4328 = vpop.f32.mrb[0].mxu0
        %v4329 = vadd.f32 0.0, %v4328
        %4330 = vdwg.mxu0
        %4331 = vmatprep.subr.mxu0 %v4107
        %4332 = vmatpush1.msra.mxu0 %v4106
        %4333 = vmatprep.subr.mxu0 %v4114
        %4334 = vmatpush1.msra.mxu0 %v4113
        %4335 = vmatprep.subr.mxu0 0.0
        %4336 = vmatpush1.msra.mxu0 0.0
        %4337 = vmatprep.subr.mxu0 0.0
        %4338 = vmatpush1.msra.mxu0 0.0
        %4339 = vmatprep.subr.mxu0 0.0
        %4340 = vmatpush1.msra.mxu0 0.0
        %4341 = vmatprep.subr.mxu0 0.0
        %4342 = vmatpush1.msra.mxu0 0.0
        %4343 = vmatprep.subr.mxu0 0.0
        %4344 = vmatpush1.msra.mxu0 0.0
        %4345 = vmatprep.subr.mxu0 0.0
        %4346 = vmatpush1.msra.mxu0 0.0
        %4347 = vmatprep.subr.mxu0 0.0
        %4348 = vmatpush1.msra.mxu0 0.0
        %4349 = vmatprep.subr.mxu0 0.0
        %4350 = vmatpush1.msra.mxu0 0.0
        %4351 = vmatprep.subr.mxu0 0.0
        %4352 = vmatpush1.msra.mxu0 0.0
        %4353 = vmatprep.subr.mxu0 0.0
        %4354 = vmatpush1.msra.mxu0 0.0
        %4355 = vmatprep.subr.mxu0 0.0
        %4356 = vmatpush1.msra.mxu0 0.0
        %4357 = vmatprep.subr.mxu0 0.0
        %4358 = vmatpush1.msra.mxu0 0.0
        %4359 = vmatprep.subr.mxu0 0.0
        %4360 = vmatpush1.msra.mxu0 0.0
        %4361 = vmatprep.subr.mxu0 0.0
        %4362 = vmatpush1.msra.mxu0 0.0
        %4363 = vmatprep.subr.mxu0 0.0
        %4364 = vmatpush1.msra.mxu0 0.0
        %4365 = vmatprep.subr.mxu0 0.0
        %4366 = vmatpush1.msra.mxu0 0.0
        %4367 = vmatprep.subr.mxu0 0.0
        %4368 = vmatpush1.msra.mxu0 0.0
        %4369 = vmatprep.subr.mxu0 0.0
        %4370 = vmatpush1.msra.mxu0 0.0
        %4371 = vmatprep.subr.mxu0 0.0
        %4372 = vmatpush1.msra.mxu0 0.0
        %4373 = vmatprep.subr.mxu0 0.0
        %4374 = vmatpush1.msra.mxu0 0.0
        %4375 = vmatprep.subr.mxu0 0.0
        %4376 = vmatpush1.msra.mxu0 0.0
        %4377 = vmatprep.subr.mxu0 0.0
        %4378 = vmatpush1.msra.mxu0 0.0
        %4379 = vmatprep.subr.mxu0 0.0
        %4380 = vmatpush1.msra.mxu0 0.0
        %4381 = vmatprep.subr.mxu0 0.0
        %4382 = vmatpush1.msra.mxu0 0.0
        %4383 = vmatprep.subr.mxu0 0.0
        %4384 = vmatpush1.msra.mxu0 0.0
        %4385 = vmatprep.subr.mxu0 0.0
        %4386 = vmatpush1.msra.mxu0 0.0
        %4387 = vmatprep.subr.mxu0 0.0
        %4388 = vmatpush1.msra.mxu0 0.0
        %4389 = vmatprep.subr.mxu0 0.0
        %4390 = vmatpush1.msra.mxu0 0.0
        %4391 = vmatprep.subr.mxu0 0.0
        %4392 = vmatpush1.msra.mxu0 0.0
        %4393 = vmatprep.subr.mxu0 0.0
        %4394 = vmatpush1.msra.mxu0 0.0
        %4395 = vmatprep.mubr.f32.mxu0 0.0
        %4396 = vmatmul.mubr.f32.gmra.mrb[0].mxu0 %v4142
        %v4397 = vpop.f32.mrb[0].mxu0
        %v4398 = vadd.f32 0.0, %v4397
        %v4399 = vpop.f32.mrb[0].mxu0
        %v4400 = vadd.f32 0.0, %v4399
        %4401 = vmatprep.mubr.f32.mxu0 0.0
        %4402 = vmatmul.mubr.f32.gmra.mrb[0].mxu0 %v4145
        %v4403 = vpop.f32.mrb[0].mxu0
        %v4404 = vadd.f32 0.0, %v4403
        %v4405 = vpop.f32.mrb[0].mxu0
        %v4406 = vadd.f32 0.0, %v4405
        %4407 = vmatprep.mubr.f32.mxu0 0.0
        %4408 = vmatmul.mubr.f32.gmra.mrb[0].mxu0 %v4148
        %v4409 = vpop.f32.mrb[0].mxu0
        %v4410 = vadd.f32 0.0, %v4409
        %v4411 = vpop.f32.mrb[0].mxu0
        %v4412 = vadd.f32 0.0, %v4411
        %4413 = vmatprep.mubr.f32.mxu0 0.0
        %4414 = vmatmul.mubr.f32.gmra.mrb[0].mxu0 %v4151
        %v4415 = vpop.f32.mrb[0].mxu0
        %v4416 = vadd.f32 0.0, %v4415
        %v4417 = vpop.f32.mrb[0].mxu0
        %v4418 = vadd.f32 0.0, %v4417
        %4419 = vdwg.mxu0
        %4420 = vmatprep.subr.mxu0 %v4109
        %4421 = vmatpush1.msra.mxu0 %v4108
        %4422 = vmatprep.subr.mxu0 %v4116
        %4423 = vmatpush1.msra.mxu0 %v4115
        %4424 = vmatprep.subr.mxu0 0.0
        %4425 = vmatpush1.msra.mxu0 0.0
        %4426 = vmatprep.subr.mxu0 0.0
        %4427 = vmatpush1.msra.mxu0 0.0
        %4428 = vmatprep.subr.mxu0 0.0
        %4429 = vmatpush1.msra.mxu0 0.0
        %4430 = vmatprep.subr.mxu0 0.0
        %4431 = vmatpush1.msra.mxu0 0.0
        %4432 = vmatprep.subr.mxu0 0.0
        %4433 = vmatpush1.msra.mxu0 0.0
        %4434 = vmatprep.subr.mxu0 0.0
        %4435 = vmatpush1.msra.mxu0 0.0
        %4436 = vmatprep.subr.mxu0 0.0
        %4437 = vmatpush1.msra.mxu0 0.0
        %4438 = vmatprep.subr.mxu0 0.0
        %4439 = vmatpush1.msra.mxu0 0.0
        %4440 = vmatprep.subr.mxu0 0.0
        %4441 = vmatpush1.msra.mxu0 0.0
        %4442 = vmatprep.subr.mxu0 0.0
        %4443 = vmatpush1.msra.mxu0 0.0
        %4444 = vmatprep.subr.mxu0 0.0
        %4445 = vmatpush1.msra.mxu0 0.0
        %4446 = vmatprep.subr.mxu0 0.0
        %4447 = vmatpush1.msra.mxu0 0.0
        %4448 = vmatprep.subr.mxu0 0.0
        %4449 = vmatpush1.msra.mxu0 0.0
        %4450 = vmatprep.subr.mxu0 0.0
        %4451 = vmatpush1.msra.mxu0 0.0
        %4452 = vmatprep.subr.mxu0 0.0
        %4453 = vmatpush1.msra.mxu0 0.0
        %4454 = vmatprep.subr.mxu0 0.0
        %4455 = vmatpush1.msra.mxu0 0.0
        %4456 = vmatprep.subr.mxu0 0.0
        %4457 = vmatpush1.msra.mxu0 0.0
        %4458 = vmatprep.subr.mxu0 0.0
        %4459 = vmatpush1.msra.mxu0 0.0
        %4460 = vmatprep.subr.mxu0 0.0
        %4461 = vmatpush1.msra.mxu0 0.0
        %4462 = vmatprep.subr.mxu0 0.0
        %4463 = vmatpush1.msra.mxu0 0.0
        %4464 = vmatprep.subr.mxu0 0.0
        %4465 = vmatpush1.msra.mxu0 0.0
        %4466 = vmatprep.subr.mxu0 0.0
        %4467 = vmatpush1.msra.mxu0 0.0
        %4468 = vmatprep.subr.mxu0 0.0
        %4469 = vmatpush1.msra.mxu0 0.0
        %4470 = vmatprep.subr.mxu0 0.0
        %4471 = vmatpush1.msra.mxu0 0.0
        %4472 = vmatprep.subr.mxu0 0.0
        %4473 = vmatpush1.msra.mxu0 0.0
        %4474 = vmatprep.subr.mxu0 0.0
        %4475 = vmatpush1.msra.mxu0 0.0
        %4476 = vmatprep.subr.mxu0 0.0
        %4477 = vmatpush1.msra.mxu0 0.0
        %4478 = vmatprep.subr.mxu0 0.0
        %4479 = vmatpush1.msra.mxu0 0.0
        %4480 = vmatprep.subr.mxu0 0.0
        %4481 = vmatpush1.msra.mxu0 0.0
        %4482 = vmatprep.subr.mxu0 0.0
        %4483 = vmatpush1.msra.mxu0 0.0
        %4484 = vmatprep.mubr.f32.mxu0 0.0
        %4485 = vmatmul.mubr.f32.gmra.mrb[0].mxu0 %v4142
        %v4486 = vpop.f32.mrb[0].mxu0
        %v4487 = vadd.f32 0.0, %v4486
        %v4488 = vpop.f32.mrb[0].mxu0
        %v4489 = vadd.f32 0.0, %v4488
        %4490 = vmatprep.mubr.f32.mxu0 0.0
        %4491 = vmatmul.mubr.f32.gmra.mrb[0].mxu0 %v4145
        %v4492 = vpop.f32.mrb[0].mxu0
        %v4493 = vadd.f32 0.0, %v4492
        %v4494 = vpop.f32.mrb[0].mxu0
        %v4495 = vadd.f32 0.0, %v4494
        %4496 = vmatprep.mubr.f32.mxu0 0.0
        %4497 = vmatmul.mubr.f32.gmra.mrb[0].mxu0 %v4148
        %v4498 = vpop.f32.mrb[0].mxu0
        %v4499 = vadd.f32 0.0, %v4498
        %v4500 = vpop.f32.mrb[0].mxu0
        %v4501 = vadd.f32 0.0, %v4500
        %4502 = vmatprep.mubr.f32.mxu0 0.0
        %4503 = vmatmul.mubr.f32.gmra.mrb[0].mxu0 %v4151
        %v4504 = vpop.f32.mrb[0].mxu0
        %v4505 = vadd.f32 0.0, %v4504
        %v4506 = vpop.f32.mrb[0].mxu0
        %v4507 = vadd.f32 0.0, %v4506
        %4508 = vdwg.mxu0
        %v4510 = vsel %vm4140, %v4067, 0
        %v4513 = vsel %vm4140, %v4068, 0
        %v4516 = vsel %vm4140, %v4069, 0
        %v4519 = vsel %vm4140, %v4070, 0
        %4521 = vmatprep.subr.mxu0 %v4052
        %4522 = vmatpush1.msra.mxu0 %v4051
        %4523 = vmatprep.subr.mxu0 %v4060
        %4524 = vmatpush1.msra.mxu0 %v4059
        %4525 = vmatprep.subr.mxu0 0.0
        %4526 = vmatpush1.msra.mxu0 0.0
        %4527 = vmatprep.subr.mxu0 0.0
        %4528 = vmatpush1.msra.mxu0 0.0
        %4529 = vmatprep.subr.mxu0 0.0
        %4530 = vmatpush1.msra.mxu0 0.0
        %4531 = vmatprep.subr.mxu0 0.0
        %4532 = vmatpush1.msra.mxu0 0.0
        %4533 = vmatprep.subr.mxu0 0.0
        %4534 = vmatpush1.msra.mxu0 0.0
        %4535 = vmatprep.subr.mxu0 0.0
        %4536 = vmatpush1.msra.mxu0 0.0
        %4537 = vmatprep.subr.mxu0 0.0
        %4538 = vmatpush1.msra.mxu0 0.0
        %4539 = vmatprep.subr.mxu0 0.0
        %4540 = vmatpush1.msra.mxu0 0.0
        %4541 = vmatprep.subr.mxu0 0.0
        %4542 = vmatpush1.msra.mxu0 0.0
        %4543 = vmatprep.subr.mxu0 0.0
        %4544 = vmatpush1.msra.mxu0 0.0
        %4545 = vmatprep.subr.mxu0 0.0
        %4546 = vmatpush1.msra.mxu0 0.0
        %4547 = vmatprep.subr.mxu0 0.0
        %4548 = vmatpush1.msra.mxu0 0.0
        %4549 = vmatprep.subr.mxu0 0.0
        %4550 = vmatpush1.msra.mxu0 0.0
        %4551 = vmatprep.subr.mxu0 0.0
        %4552 = vmatpush1.msra.mxu0 0.0
        %4553 = vmatprep.subr.mxu0 0.0
        %4554 = vmatpush1.msra.mxu0 0.0
        %4555 = vmatprep.subr.mxu0 0.0
        %4556 = vmatpush1.msra.mxu0 0.0
        %4557 = vmatprep.subr.mxu0 0.0
        %4558 = vmatpush1.msra.mxu0 0.0
        %4559 = vmatprep.subr.mxu0 0.0
        %4560 = vmatpush1.msra.mxu0 0.0
        %4561 = vmatprep.subr.mxu0 0.0
        %4562 = vmatpush1.msra.mxu0 0.0
        %4563 = vmatprep.subr.mxu0 0.0
        %4564 = vmatpush1.msra.mxu0 0.0
        %4565 = vmatprep.subr.mxu0 0.0
        %4566 = vmatpush1.msra.mxu0 0.0
        %4567 = vmatprep.subr.mxu0 0.0
        %4568 = vmatpush1.msra.mxu0 0.0
        %4569 = vmatprep.subr.mxu0 0.0
        %4570 = vmatpush1.msra.mxu0 0.0
        %4571 = vmatprep.subr.mxu0 0.0
        %4572 = vmatpush1.msra.mxu0 0.0
        %4573 = vmatprep.subr.mxu0 0.0
        %4574 = vmatpush1.msra.mxu0 0.0
        %4575 = vmatprep.subr.mxu0 0.0
        %4576 = vmatpush1.msra.mxu0 0.0
        %4577 = vmatprep.subr.mxu0 0.0
        %4578 = vmatpush1.msra.mxu0 0.0
        %4579 = vmatprep.subr.mxu0 0.0
        %4580 = vmatpush1.msra.mxu0 0.0
        %4581 = vmatprep.subr.mxu0 0.0
        %4582 = vmatpush1.msra.mxu0 0.0
        %4583 = vmatprep.subr.mxu0 0.0
        %4584 = vmatpush1.msra.mxu0 0.0
        %4585 = vmatprep.mubr.f32.mxu0 0.0
        %4586 = vmatmul.mubr.f32.gmra.mrb[0].mxu0 %v4510
        %v4587 = vpop.f32.mrb[0].mxu0
        %v4588 = vadd.f32 %v4220, %v4587
        %v4589 = vpop.f32.mrb[0].mxu0
        %v4590 = vadd.f32 %v4222, %v4589
        %4591 = vmatprep.mubr.f32.mxu0 0.0
        %4592 = vmatmul.mubr.f32.gmra.mrb[0].mxu0 %v4513
        %v4593 = vpop.f32.mrb[0].mxu0
        %v4594 = vadd.f32 %v4226, %v4593
        %v4595 = vpop.f32.mrb[0].mxu0
        %v4596 = vadd.f32 %v4228, %v4595
        %4597 = vmatprep.mubr.f32.mxu0 0.0
        %4598 = vmatmul.mubr.f32.gmra.mrb[0].mxu0 %v4516
        %v4599 = vpop.f32.mrb[0].mxu0
        %v4600 = vadd.f32 %v4232, %v4599
        %v4601 = vpop.f32.mrb[0].mxu0
        %v4602 = vadd.f32 %v4234, %v4601
        %4603 = vmatprep.mubr.f32.mxu0 0.0
        %4604 = vmatmul.mubr.f32.gmra.mrb[0].mxu0 %v4519
        %v4605 = vpop.f32.mrb[0].mxu0
        %v4606 = vadd.f32 %v4238, %v4605
        %v4607 = vpop.f32.mrb[0].mxu0
        %v4608 = vadd.f32 %v4240, %v4607
        %4609 = vdwg.mxu0
        %4610 = vmatprep.subr.mxu0 %v4054
        %4611 = vmatpush1.msra.mxu0 %v4053
        %4612 = vmatprep.subr.mxu0 %v4062
        %4613 = vmatpush1.msra.mxu0 %v4061
        %4614 = vmatprep.subr.mxu0 0.0
        %4615 = vmatpush1.msra.mxu0 0.0
        %4616 = vmatprep.subr.mxu0 0.0
        %4617 = vmatpush1.msra.mxu0 0.0
        %4618 = vmatprep.subr.mxu0 0.0
        %4619 = vmatpush1.msra.mxu0 0.0
        %4620 = vmatprep.subr.mxu0 0.0
        %4621 = vmatpush1.msra.mxu0 0.0
        %4622 = vmatprep.subr.mxu0 0.0
        %4623 = vmatpush1.msra.mxu0 0.0
        %4624 = vmatprep.subr.mxu0 0.0
        %4625 = vmatpush1.msra.mxu0 0.0
        %4626 = vmatprep.subr.mxu0 0.0
        %4627 = vmatpush1.msra.mxu0 0.0
        %4628 = vmatprep.subr.mxu0 0.0
        %4629 = vmatpush1.msra.mxu0 0.0
        %4630 = vmatprep.subr.mxu0 0.0
        %4631 = vmatpush1.msra.mxu0 0.0
        %4632 = vmatprep.subr.mxu0 0.0
        %4633 = vmatpush1.msra.mxu0 0.0
        %4634 = vmatprep.subr.mxu0 0.0
        %4635 = vmatpush1.msra.mxu0 0.0
        %4636 = vmatprep.subr.mxu0 0.0
        %4637 = vmatpush1.msra.mxu0 0.0
        %4638 = vmatprep.subr.mxu0 0.0
        %4639 = vmatpush1.msra.mxu0 0.0
        %4640 = vmatprep.subr.mxu0 0.0
        %4641 = vmatpush1.msra.mxu0 0.0
        %4642 = vmatprep.subr.mxu0 0.0
        %4643 = vmatpush1.msra.mxu0 0.0
        %4644 = vmatprep.subr.mxu0 0.0
        %4645 = vmatpush1.msra.mxu0 0.0
        %4646 = vmatprep.subr.mxu0 0.0
        %4647 = vmatpush1.msra.mxu0 0.0
        %4648 = vmatprep.subr.mxu0 0.0
        %4649 = vmatpush1.msra.mxu0 0.0
        %4650 = vmatprep.subr.mxu0 0.0
        %4651 = vmatpush1.msra.mxu0 0.0
        %4652 = vmatprep.subr.mxu0 0.0
        %4653 = vmatpush1.msra.mxu0 0.0
        %4654 = vmatprep.subr.mxu0 0.0
        %4655 = vmatpush1.msra.mxu0 0.0
        %4656 = vmatprep.subr.mxu0 0.0
        %4657 = vmatpush1.msra.mxu0 0.0
        %4658 = vmatprep.subr.mxu0 0.0
        %4659 = vmatpush1.msra.mxu0 0.0
        %4660 = vmatprep.subr.mxu0 0.0
        %4661 = vmatpush1.msra.mxu0 0.0
        %4662 = vmatprep.subr.mxu0 0.0
        %4663 = vmatpush1.msra.mxu0 0.0
        %4664 = vmatprep.subr.mxu0 0.0
        %4665 = vmatpush1.msra.mxu0 0.0
        %4666 = vmatprep.subr.mxu0 0.0
        %4667 = vmatpush1.msra.mxu0 0.0
        %4668 = vmatprep.subr.mxu0 0.0
        %4669 = vmatpush1.msra.mxu0 0.0
        %4670 = vmatprep.subr.mxu0 0.0
        %4671 = vmatpush1.msra.mxu0 0.0
        %4672 = vmatprep.subr.mxu0 0.0
        %4673 = vmatpush1.msra.mxu0 0.0
        %4674 = vmatprep.mubr.f32.mxu0 0.0
        %4675 = vmatmul.mubr.f32.gmra.mrb[0].mxu0 %v4510
        %v4676 = vpop.f32.mrb[0].mxu0
        %v4677 = vadd.f32 %v4309, %v4676
        %v4678 = vpop.f32.mrb[0].mxu0
        %v4679 = vadd.f32 %v4311, %v4678
        %4680 = vmatprep.mubr.f32.mxu0 0.0
        %4681 = vmatmul.mubr.f32.gmra.mrb[0].mxu0 %v4513
        %v4682 = vpop.f32.mrb[0].mxu0
        %v4683 = vadd.f32 %v4315, %v4682
        %v4684 = vpop.f32.mrb[0].mxu0
        %v4685 = vadd.f32 %v4317, %v4684
        %4686 = vmatprep.mubr.f32.mxu0 0.0
        %4687 = vmatmul.mubr.f32.gmra.mrb[0].mxu0 %v4516
        %v4688 = vpop.f32.mrb[0].mxu0
        %v4689 = vadd.f32 %v4321, %v4688
        %v4690 = vpop.f32.mrb[0].mxu0
        %v4691 = vadd.f32 %v4323, %v4690
        %4692 = vmatprep.mubr.f32.mxu0 0.0
        %4693 = vmatmul.mubr.f32.gmra.mrb[0].mxu0 %v4519
        %v4694 = vpop.f32.mrb[0].mxu0
        %v4695 = vadd.f32 %v4327, %v4694
        %v4696 = vpop.f32.mrb[0].mxu0
        %v4697 = vadd.f32 %v4329, %v4696
        %4698 = vdwg.mxu0
        %4699 = vmatprep.subr.mxu0 %v4056
        %4700 = vmatpush1.msra.mxu0 %v4055
        %4701 = vmatprep.subr.mxu0 %v4064
        %4702 = vmatpush1.msra.mxu0 %v4063
        %4703 = vmatprep.subr.mxu0 0.0
        %4704 = vmatpush1.msra.mxu0 0.0
        %4705 = vmatprep.subr.mxu0 0.0
        %4706 = vmatpush1.msra.mxu0 0.0
        %4707 = vmatprep.subr.mxu0 0.0
        %4708 = vmatpush1.msra.mxu0 0.0
        %4709 = vmatprep.subr.mxu0 0.0
        %4710 = vmatpush1.msra.mxu0 0.0
        %4711 = vmatprep.subr.mxu0 0.0
        %4712 = vmatpush1.msra.mxu0 0.0
        %4713 = vmatprep.subr.mxu0 0.0
        %4714 = vmatpush1.msra.mxu0 0.0
        %4715 = vmatprep.subr.mxu0 0.0
        %4716 = vmatpush1.msra.mxu0 0.0
        %4717 = vmatprep.subr.mxu0 0.0
        %4718 = vmatpush1.msra.mxu0 0.0
        %4719 = vmatprep.subr.mxu0 0.0
        %4720 = vmatpush1.msra.mxu0 0.0
        %4721 = vmatprep.subr.mxu0 0.0
        %4722 = vmatpush1.msra.mxu0 0.0
        %4723 = vmatprep.subr.mxu0 0.0
        %4724 = vmatpush1.msra.mxu0 0.0
        %4725 = vmatprep.subr.mxu0 0.0
        %4726 = vmatpush1.msra.mxu0 0.0
        %4727 = vmatprep.subr.mxu0 0.0
        %4728 = vmatpush1.msra.mxu0 0.0
        %4729 = vmatprep.subr.mxu0 0.0
        %4730 = vmatpush1.msra.mxu0 0.0
        %4731 = vmatprep.subr.mxu0 0.0
        %4732 = vmatpush1.msra.mxu0 0.0
        %4733 = vmatprep.subr.mxu0 0.0
        %4734 = vmatpush1.msra.mxu0 0.0
        %4735 = vmatprep.subr.mxu0 0.0
        %4736 = vmatpush1.msra.mxu0 0.0
        %4737 = vmatprep.subr.mxu0 0.0
        %4738 = vmatpush1.msra.mxu0 0.0
        %4739 = vmatprep.subr.mxu0 0.0
        %4740 = vmatpush1.msra.mxu0 0.0
        %4741 = vmatprep.subr.mxu0 0.0
        %4742 = vmatpush1.msra.mxu0 0.0
        %4743 = vmatprep.subr.mxu0 0.0
        %4744 = vmatpush1.msra.mxu0 0.0
        %4745 = vmatprep.subr.mxu0 0.0
        %4746 = vmatpush1.msra.mxu0 0.0
        %4747 = vmatprep.subr.mxu0 0.0
        %4748 = vmatpush1.msra.mxu0 0.0
        %4749 = vmatprep.subr.mxu0 0.0
        %4750 = vmatpush1.msra.mxu0 0.0
        %4751 = vmatprep.subr.mxu0 0.0
        %4752 = vmatpush1.msra.mxu0 0.0
        %4753 = vmatprep.subr.mxu0 0.0
        %4754 = vmatpush1.msra.mxu0 0.0
        %4755 = vmatprep.subr.mxu0 0.0
        %4756 = vmatpush1.msra.mxu0 0.0
        %4757 = vmatprep.subr.mxu0 0.0
        %4758 = vmatpush1.msra.mxu0 0.0
        %4759 = vmatprep.subr.mxu0 0.0
        %4760 = vmatpush1.msra.mxu0 0.0
        %4761 = vmatprep.subr.mxu0 0.0
        %4762 = vmatpush1.msra.mxu0 0.0
        %4763 = vmatprep.mubr.f32.mxu0 0.0
        %4764 = vmatmul.mubr.f32.gmra.mrb[0].mxu0 %v4510
        %v4765 = vpop.f32.mrb[0].mxu0
        %v4766 = vadd.f32 %v4398, %v4765
        %v4767 = vpop.f32.mrb[0].mxu0
        %v4768 = vadd.f32 %v4400, %v4767
        %4769 = vmatprep.mubr.f32.mxu0 0.0
        %4770 = vmatmul.mubr.f32.gmra.mrb[0].mxu0 %v4513
        %v4771 = vpop.f32.mrb[0].mxu0
        %v4772 = vadd.f32 %v4404, %v4771
        %v4773 = vpop.f32.mrb[0].mxu0
        %v4774 = vadd.f32 %v4406, %v4773
        %4775 = vmatprep.mubr.f32.mxu0 0.0
        %4776 = vmatmul.mubr.f32.gmra.mrb[0].mxu0 %v4516
        %v4777 = vpop.f32.mrb[0].mxu0
        %v4778 = vadd.f32 %v4410, %v4777
        %v4779 = vpop.f32.mrb[0].mxu0
        %v4780 = vadd.f32 %v4412, %v4779
        %4781 = vmatprep.mubr.f32.mxu0 0.0
        %4782 = vmatmul.mubr.f32.gmra.mrb[0].mxu0 %v4519
        %v4783 = vpop.f32.mrb[0].mxu0
        %v4784 = vadd.f32 %v4416, %v4783
        %v4785 = vpop.f32.mrb[0].mxu0
        %v4786 = vadd.f32 %v4418, %v4785
        %4787 = vdwg.mxu0
        %4788 = vmatprep.subr.mxu0 %v4058
        %4789 = vmatpush1.msra.mxu0 %v4057
        %4790 = vmatprep.subr.mxu0 %v4066
        %4791 = vmatpush1.msra.mxu0 %v4065
        %4792 = vmatprep.subr.mxu0 0.0
        %4793 = vmatpush1.msra.mxu0 0.0
        %4794 = vmatprep.subr.mxu0 0.0
        %4795 = vmatpush1.msra.mxu0 0.0
        %4796 = vmatprep.subr.mxu0 0.0
        %4797 = vmatpush1.msra.mxu0 0.0
        %4798 = vmatprep.subr.mxu0 0.0
        %4799 = vmatpush1.msra.mxu0 0.0
        %4800 = vmatprep.subr.mxu0 0.0
        %4801 = vmatpush1.msra.mxu0 0.0
        %4802 = vmatprep.subr.mxu0 0.0
        %4803 = vmatpush1.msra.mxu0 0.0
        %4804 = vmatprep.subr.mxu0 0.0
        %4805 = vmatpush1.msra.mxu0 0.0
        %4806 = vmatprep.subr.mxu0 0.0
        %4807 = vmatpush1.msra.mxu0 0.0
        %4808 = vmatprep.subr.mxu0 0.0
        %4809 = vmatpush1.msra.mxu0 0.0
        %4810 = vmatprep.subr.mxu0 0.0
        %4811 = vmatpush1.msra.mxu0 0.0
        %4812 = vmatprep.subr.mxu0 0.0
        %4813 = vmatpush1.msra.mxu0 0.0
        %4814 = vmatprep.subr.mxu0 0.0
        %4815 = vmatpush1.msra.mxu0 0.0
        %4816 = vmatprep.subr.mxu0 0.0
        %4817 = vmatpush1.msra.mxu0 0.0
        %4818 = vmatprep.subr.mxu0 0.0
        %4819 = vmatpush1.msra.mxu0 0.0
        %4820 = vmatprep.subr.mxu0 0.0
        %4821 = vmatpush1.msra.mxu0 0.0
        %4822 = vmatprep.subr.mxu0 0.0
        %4823 = vmatpush1.msra.mxu0 0.0
        %4824 = vmatprep.subr.mxu0 0.0
        %4825 = vmatpush1.msra.mxu0 0.0
        %4826 = vmatprep.subr.mxu0 0.0
        %4827 = vmatpush1.msra.mxu0 0.0
        %4828 = vmatprep.subr.mxu0 0.0
        %4829 = vmatpush1.msra.mxu0 0.0
        %4830 = vmatprep.subr.mxu0 0.0
        %4831 = vmatpush1.msra.mxu0 0.0
        %4832 = vmatprep.subr.mxu0 0.0
        %4833 = vmatpush1.msra.mxu0 0.0
        %4834 = vmatprep.subr.mxu0 0.0
        %4835 = vmatpush1.msra.mxu0 0.0
        %4836 = vmatprep.subr.mxu0 0.0
        %4837 = vmatpush1.msra.mxu0 0.0
        %4838 = vmatprep.subr.mxu0 0.0
        %4839 = vmatpush1.msra.mxu0 0.0
        %4840 = vmatprep.subr.mxu0 0.0
        %4841 = vmatpush1.msra.mxu0 0.0
        %4842 = vmatprep.subr.mxu0 0.0
        %4843 = vmatpush1.msra.mxu0 0.0
        %4844 = vmatprep.subr.mxu0 0.0
        %4845 = vmatpush1.msra.mxu0 0.0
        %4846 = vmatprep.subr.mxu0 0.0
        %4847 = vmatpush1.msra.mxu0 0.0
        %4848 = vmatprep.subr.mxu0 0.0
        %4849 = vmatpush1.msra.mxu0 0.0
        %4850 = vmatprep.subr.mxu0 0.0
        %4851 = vmatpush1.msra.mxu0 0.0
        %4852 = vmatprep.mubr.f32.mxu0 0.0
        %4853 = vmatmul.mubr.f32.gmra.mrb[0].mxu0 %v4510
        %v4854 = vpop.f32.mrb[0].mxu0
        %v4855 = vadd.f32 %v4487, %v4854
        %v4856 = vpop.f32.mrb[0].mxu0
        %v4857 = vadd.f32 %v4489, %v4856
        %4858 = vmatprep.mubr.f32.mxu0 0.0
        %4859 = vmatmul.mubr.f32.gmra.mrb[0].mxu0 %v4513
        %v4860 = vpop.f32.mrb[0].mxu0
        %v4861 = vadd.f32 %v4493, %v4860
        %v4862 = vpop.f32.mrb[0].mxu0
        %v4863 = vadd.f32 %v4495, %v4862
        %4864 = vmatprep.mubr.f32.mxu0 0.0
        %4865 = vmatmul.mubr.f32.gmra.mrb[0].mxu0 %v4516
        %v4866 = vpop.f32.mrb[0].mxu0
        %v4867 = vadd.f32 %v4499, %v4866
        %v4868 = vpop.f32.mrb[0].mxu0
        %v4869 = vadd.f32 %v4501, %v4868
        %4870 = vmatprep.mubr.f32.mxu0 0.0
        %4871 = vmatmul.mubr.f32.gmra.mrb[0].mxu0 %v4519
        %v4872 = vpop.f32.mrb[0].mxu0
        %v4873 = vadd.f32 %v4505, %v4872
        %v4874 = vpop.f32.mrb[0].mxu0
        %v4875 = vadd.f32 %v4507, %v4874
        %4876 = vdwg.mxu0
        %4877 = vrot.lane.b32.xlu0 %v3955, 31
        %v4878 = vpop.permute.xlu0 %4877
        %4879 = vrot.lane.b32.xlu0 %v3956, 31
        %v4880 = vpop.permute.xlu0 %4879
        %4881 = vrot.lane.b32.xlu0 %v3957, 31
        %v4882 = vpop.permute.xlu0 %4881
        %4883 = vrot.lane.b32.xlu0 %v3958, 31
        %v4884 = vpop.permute.xlu0 %4883
        %4885 = vrot.lane.b32.xlu0 %v3959, 31
        %v4886 = vpop.permute.xlu0 %4885
        %4887 = vrot.lane.b32.xlu0 %v3960, 31
        %v4888 = vpop.permute.xlu0 %4887
        %4889 = vrot.lane.b32.xlu0 %v3961, 31
        %v4890 = vpop.permute.xlu0 %4889
        %4891 = vrot.lane.b32.xlu0 %v3962, 31
        %v4892 = vpop.permute.xlu0 %4891
        %4893 = vrot.lane.b32.xlu0 %v3963, 31
        %v4894 = vpop.permute.xlu0 %4893
        %4895 = vrot.lane.b32.xlu0 %v3964, 31
        %v4896 = vpop.permute.xlu0 %4895
        %4897 = vrot.lane.b32.xlu0 %v3965, 31
        %v4898 = vpop.permute.xlu0 %4897
        %4899 = vrot.lane.b32.xlu0 %v3966, 31
        %v4900 = vpop.permute.xlu0 %4899
        %4901 = vrot.lane.b32.xlu0 %v3967, 31
        %v4902 = vpop.permute.xlu0 %4901
        %4903 = vrot.lane.b32.xlu0 %v3968, 31
        %v4904 = vpop.permute.xlu0 %4903
        %4905 = vrot.lane.b32.xlu0 %v3969, 31
        %v4906 = vpop.permute.xlu0 %4905
        %4907 = vrot.lane.b32.xlu0 %v3970, 31
        %v4908 = vpop.permute.xlu0 %4907
        %v4909 = vsel %vm1212, %v4878, %v4880
        %v4910 = vsel %vm1212, %v4880, %v4882
        %v4911 = vsel %vm1212, %v4882, %v4884
        %v4912 = vsel %vm1212, %v4884, %v4886
        %v4913 = vsel %vm1212, %v4886, %v4888
        %v4914 = vsel %vm1212, %v4888, %v4890
        %v4915 = vsel %vm1212, %v4890, %v4892
        %v4916 = vsel %vm1212, %v4894, %v4896
        %v4917 = vsel %vm1212, %v4896, %v4898
        %v4918 = vsel %vm1212, %v4898, %v4900
        %v4919 = vsel %vm1212, %v4900, %v4902
        %v4920 = vsel %vm1212, %v4902, %v4904
        %v4921 = vsel %vm1212, %v4904, %v4906
        %v4922 = vsel %vm1212, %v4906, %v4908
        %v4939 = vsel %vm1212, 0.0, %v4878
        %v4940 = vsel %vm1212, 0.0, %v4894
        %v4941 = vsel %vm1237, %v4939, 0.0
        %v4942 = vsel %vm1238, %v4909, 0.0
        %v4943 = vsel %vm1239, %v4910, 0.0
        %v4944 = vsel %vm1240, %v4911, 0.0
        %v4945 = vsel %vm1241, %v4912, 0.0
        %v4946 = vsel %vm1242, %v4913, 0.0
        %v4947 = vsel %vm1243, %v4914, 0.0
        %v4948 = vsel %vm1244, %v4915, 0.0
        %v4949 = vsel %vm1237, %v4940, 0.0
        %v4950 = vsel %vm1238, %v4916, 0.0
        %v4951 = vsel %vm1239, %v4917, 0.0
        %v4952 = vsel %vm1240, %v4918, 0.0
        %v4953 = vsel %vm1241, %v4919, 0.0
        %v4954 = vsel %vm1242, %v4920, 0.0
        %v4955 = vsel %vm1243, %v4921, 0.0
        %v4956 = vsel %vm1244, %v4922, 0.0
        %s4957 = scalar_lea.vmem %s3, 64
        %v4958 = vld [vmem:[%s4957] sm:$0xff]
        %v4959 = vld [vmem:[%s4957 + $0x8] sm:$0xff]
        %v4960 = vld [vmem:[%s4957 + $0x10] sm:$0xff]
        %v4961 = vld [vmem:[%s4957 + $0x18] sm:$0xff]
        %v4963 = vsel %vm4140, %v4958, 0
        %v4966 = vsel %vm4140, %v4959, 0
        %v4969 = vsel %vm4140, %v4960, 0
        %v4972 = vsel %vm4140, %v4961, 0
        %4974 = vmatprep.subr.mxu0 %v4942
        %4975 = vmatpush1.msra.mxu0 %v4941
        %4976 = vmatprep.subr.mxu0 %v4950
        %4977 = vmatpush1.msra.mxu0 %v4949
        %4978 = vmatprep.subr.mxu0 0.0
        %4979 = vmatpush1.msra.mxu0 0.0
        %4980 = vmatprep.subr.mxu0 0.0
        %4981 = vmatpush1.msra.mxu0 0.0
        %4982 = vmatprep.subr.mxu0 0.0
        %4983 = vmatpush1.msra.mxu0 0.0
        %4984 = vmatprep.subr.mxu0 0.0
        %4985 = vmatpush1.msra.mxu0 0.0
        %4986 = vmatprep.subr.mxu0 0.0
        %4987 = vmatpush1.msra.mxu0 0.0
        %4988 = vmatprep.subr.mxu0 0.0
        %4989 = vmatpush1.msra.mxu0 0.0
        %4990 = vmatprep.subr.mxu0 0.0
        %4991 = vmatpush1.msra.mxu0 0.0
        %4992 = vmatprep.subr.mxu0 0.0
        %4993 = vmatpush1.msra.mxu0 0.0
        %4994 = vmatprep.subr.mxu0 0.0
        %4995 = vmatpush1.msra.mxu0 0.0
        %4996 = vmatprep.subr.mxu0 0.0
        %4997 = vmatpush1.msra.mxu0 0.0
        %4998 = vmatprep.subr.mxu0 0.0
        %4999 = vmatpush1.msra.mxu0 0.0
        %5000 = vmatprep.subr.mxu0 0.0
        %5001 = vmatpush1.msra.mxu0 0.0
        %5002 = vmatprep.subr.mxu0 0.0
        %5003 = vmatpush1.msra.mxu0 0.0
        %5004 = vmatprep.subr.mxu0 0.0
        %5005 = vmatpush1.msra.mxu0 0.0
        %5006 = vmatprep.subr.mxu0 0.0
        %5007 = vmatpush1.msra.mxu0 0.0
        %5008 = vmatprep.subr.mxu0 0.0
        %5009 = vmatpush1.msra.mxu0 0.0
        %5010 = vmatprep.subr.mxu0 0.0
        %5011 = vmatpush1.msra.mxu0 0.0
        %5012 = vmatprep.subr.mxu0 0.0
        %5013 = vmatpush1.msra.mxu0 0.0
        %5014 = vmatprep.subr.mxu0 0.0
        %5015 = vmatpush1.msra.mxu0 0.0
        %5016 = vmatprep.subr.mxu0 0.0
        %5017 = vmatpush1.msra.mxu0 0.0
        %5018 = vmatprep.subr.mxu0 0.0
        %5019 = vmatpush1.msra.mxu0 0.0
        %5020 = vmatprep.subr.mxu0 0.0
        %5021 = vmatpush1.msra.mxu0 0.0
        %5022 = vmatprep.subr.mxu0 0.0
        %5023 = vmatpush1.msra.mxu0 0.0
        %5024 = vmatprep.subr.mxu0 0.0
        %5025 = vmatpush1.msra.mxu0 0.0
        %5026 = vmatprep.subr.mxu0 0.0
        %5027 = vmatpush1.msra.mxu0 0.0
        %5028 = vmatprep.subr.mxu0 0.0
        %5029 = vmatpush1.msra.mxu0 0.0
        %5030 = vmatprep.subr.mxu0 0.0
        %5031 = vmatpush1.msra.mxu0 0.0
        %5032 = vmatprep.subr.mxu0 0.0
        %5033 = vmatpush1.msra.mxu0 0.0
        %5034 = vmatprep.subr.mxu0 0.0
        %5035 = vmatpush1.msra.mxu0 0.0
        %5036 = vmatprep.subr.mxu0 0.0
        %5037 = vmatpush1.msra.mxu0 0.0
        %5038 = vmatprep.mubr.f32.mxu0 0.0
        %5039 = vmatmul.mubr.f32.gmra.mrb[0].mxu0 %v4963
        %v5040 = vpop.f32.mrb[0].mxu0
        %v5041 = vadd.f32 0.0, %v5040
        %v5042 = vpop.f32.mrb[0].mxu0
        %v5043 = vadd.f32 0.0, %v5042
        %5044 = vmatprep.mubr.f32.mxu0 0.0
        %5045 = vmatmul.mubr.f32.gmra.mrb[0].mxu0 %v4966
        %v5046 = vpop.f32.mrb[0].mxu0
        %v5047 = vadd.f32 0.0, %v5046
        %v5048 = vpop.f32.mrb[0].mxu0
        %v5049 = vadd.f32 0.0, %v5048
        %5050 = vmatprep.mubr.f32.mxu0 0.0
        %5051 = vmatmul.mubr.f32.gmra.mrb[0].mxu0 %v4969
        %v5052 = vpop.f32.mrb[0].mxu0
        %v5053 = vadd.f32 0.0, %v5052
        %v5054 = vpop.f32.mrb[0].mxu0
        %v5055 = vadd.f32 0.0, %v5054
        %5056 = vmatprep.mubr.f32.mxu0 0.0
        %5057 = vmatmul.mubr.f32.gmra.mrb[0].mxu0 %v4972
        %v5058 = vpop.f32.mrb[0].mxu0
        %v5059 = vadd.f32 0.0, %v5058
        %v5060 = vpop.f32.mrb[0].mxu0
        %v5061 = vadd.f32 0.0, %v5060
        %5062 = vdwg.mxu0
        %5063 = vmatprep.subr.mxu0 %v4944
        %5064 = vmatpush1.msra.mxu0 %v4943
        %5065 = vmatprep.subr.mxu0 %v4952
        %5066 = vmatpush1.msra.mxu0 %v4951
        %5067 = vmatprep.subr.mxu0 0.0
        %5068 = vmatpush1.msra.mxu0 0.0
        %5069 = vmatprep.subr.mxu0 0.0
        %5070 = vmatpush1.msra.mxu0 0.0
        %5071 = vmatprep.subr.mxu0 0.0
        %5072 = vmatpush1.msra.mxu0 0.0
        %5073 = vmatprep.subr.mxu0 0.0
        %5074 = vmatpush1.msra.mxu0 0.0
        %5075 = vmatprep.subr.mxu0 0.0
        %5076 = vmatpush1.msra.mxu0 0.0
        %5077 = vmatprep.subr.mxu0 0.0
        %5078 = vmatpush1.msra.mxu0 0.0
        %5079 = vmatprep.subr.mxu0 0.0
        %5080 = vmatpush1.msra.mxu0 0.0
        %5081 = vmatprep.subr.mxu0 0.0
        %5082 = vmatpush1.msra.mxu0 0.0
        %5083 = vmatprep.subr.mxu0 0.0
        %5084 = vmatpush1.msra.mxu0 0.0
        %5085 = vmatprep.subr.mxu0 0.0
        %5086 = vmatpush1.msra.mxu0 0.0
        %5087 = vmatprep.subr.mxu0 0.0
        %5088 = vmatpush1.msra.mxu0 0.0
        %5089 = vmatprep.subr.mxu0 0.0
        %5090 = vmatpush1.msra.mxu0 0.0
        %5091 = vmatprep.subr.mxu0 0.0
        %5092 = vmatpush1.msra.mxu0 0.0
        %5093 = vmatprep.subr.mxu0 0.0
        %5094 = vmatpush1.msra.mxu0 0.0
        %5095 = vmatprep.subr.mxu0 0.0
        %5096 = vmatpush1.msra.mxu0 0.0
        %5097 = vmatprep.subr.mxu0 0.0
        %5098 = vmatpush1.msra.mxu0 0.0
        %5099 = vmatprep.subr.mxu0 0.0
        %5100 = vmatpush1.msra.mxu0 0.0
        %5101 = vmatprep.subr.mxu0 0.0
        %5102 = vmatpush1.msra.mxu0 0.0
        %5103 = vmatprep.subr.mxu0 0.0
        %5104 = vmatpush1.msra.mxu0 0.0
        %5105 = vmatprep.subr.mxu0 0.0
        %5106 = vmatpush1.msra.mxu0 0.0
        %5107 = vmatprep.subr.mxu0 0.0
        %5108 = vmatpush1.msra.mxu0 0.0
        %5109 = vmatprep.subr.mxu0 0.0
        %5110 = vmatpush1.msra.mxu0 0.0
        %5111 = vmatprep.subr.mxu0 0.0
        %5112 = vmatpush1.msra.mxu0 0.0
        %5113 = vmatprep.subr.mxu0 0.0
        %5114 = vmatpush1.msra.mxu0 0.0
        %5115 = vmatprep.subr.mxu0 0.0
        %5116 = vmatpush1.msra.mxu0 0.0
        %5117 = vmatprep.subr.mxu0 0.0
        %5118 = vmatpush1.msra.mxu0 0.0
        %5119 = vmatprep.subr.mxu0 0.0
        %5120 = vmatpush1.msra.mxu0 0.0
        %5121 = vmatprep.subr.mxu0 0.0
        %5122 = vmatpush1.msra.mxu0 0.0
        %5123 = vmatprep.subr.mxu0 0.0
        %5124 = vmatpush1.msra.mxu0 0.0
        %5125 = vmatprep.subr.mxu0 0.0
        %5126 = vmatpush1.msra.mxu0 0.0
        %5127 = vmatprep.mubr.f32.mxu0 0.0
        %5128 = vmatmul.mubr.f32.gmra.mrb[0].mxu0 %v4963
        %v5129 = vpop.f32.mrb[0].mxu0
        %v5130 = vadd.f32 0.0, %v5129
        %v5131 = vpop.f32.mrb[0].mxu0
        %v5132 = vadd.f32 0.0, %v5131
        %5133 = vmatprep.mubr.f32.mxu0 0.0
        %5134 = vmatmul.mubr.f32.gmra.mrb[0].mxu0 %v4966
        %v5135 = vpop.f32.mrb[0].mxu0
        %v5136 = vadd.f32 0.0, %v5135
        %v5137 = vpop.f32.mrb[0].mxu0
        %v5138 = vadd.f32 0.0, %v5137
        %5139 = vmatprep.mubr.f32.mxu0 0.0
        %5140 = vmatmul.mubr.f32.gmra.mrb[0].mxu0 %v4969
        %v5141 = vpop.f32.mrb[0].mxu0
        %v5142 = vadd.f32 0.0, %v5141
        %v5143 = vpop.f32.mrb[0].mxu0
        %v5144 = vadd.f32 0.0, %v5143
        %5145 = vmatprep.mubr.f32.mxu0 0.0
        %5146 = vmatmul.mubr.f32.gmra.mrb[0].mxu0 %v4972
        %v5147 = vpop.f32.mrb[0].mxu0
        %v5148 = vadd.f32 0.0, %v5147
        %v5149 = vpop.f32.mrb[0].mxu0
        %v5150 = vadd.f32 0.0, %v5149
        %5151 = vdwg.mxu0
        %5152 = vmatprep.subr.mxu0 %v4946
        %5153 = vmatpush1.msra.mxu0 %v4945
        %5154 = vmatprep.subr.mxu0 %v4954
        %5155 = vmatpush1.msra.mxu0 %v4953
        %5156 = vmatprep.subr.mxu0 0.0
        %5157 = vmatpush1.msra.mxu0 0.0
        %5158 = vmatprep.subr.mxu0 0.0
        %5159 = vmatpush1.msra.mxu0 0.0
        %5160 = vmatprep.subr.mxu0 0.0
        %5161 = vmatpush1.msra.mxu0 0.0
        %5162 = vmatprep.subr.mxu0 0.0
        %5163 = vmatpush1.msra.mxu0 0.0
        %5164 = vmatprep.subr.mxu0 0.0
        %5165 = vmatpush1.msra.mxu0 0.0
        %5166 = vmatprep.subr.mxu0 0.0
        %5167 = vmatpush1.msra.mxu0 0.0
        %5168 = vmatprep.subr.mxu0 0.0
        %5169 = vmatpush1.msra.mxu0 0.0
        %5170 = vmatprep.subr.mxu0 0.0
        %5171 = vmatpush1.msra.mxu0 0.0
        %5172 = vmatprep.subr.mxu0 0.0
        %5173 = vmatpush1.msra.mxu0 0.0
        %5174 = vmatprep.subr.mxu0 0.0
        %5175 = vmatpush1.msra.mxu0 0.0
        %5176 = vmatprep.subr.mxu0 0.0
        %5177 = vmatpush1.msra.mxu0 0.0
        %5178 = vmatprep.subr.mxu0 0.0
        %5179 = vmatpush1.msra.mxu0 0.0
        %5180 = vmatprep.subr.mxu0 0.0
        %5181 = vmatpush1.msra.mxu0 0.0
        %5182 = vmatprep.subr.mxu0 0.0
        %5183 = vmatpush1.msra.mxu0 0.0
        %5184 = vmatprep.subr.mxu0 0.0
        %5185 = vmatpush1.msra.mxu0 0.0
        %5186 = vmatprep.subr.mxu0 0.0
        %5187 = vmatpush1.msra.mxu0 0.0
        %5188 = vmatprep.subr.mxu0 0.0
        %5189 = vmatpush1.msra.mxu0 0.0
        %5190 = vmatprep.subr.mxu0 0.0
        %5191 = vmatpush1.msra.mxu0 0.0
        %5192 = vmatprep.subr.mxu0 0.0
        %5193 = vmatpush1.msra.mxu0 0.0
        %5194 = vmatprep.subr.mxu0 0.0
        %5195 = vmatpush1.msra.mxu0 0.0
        %5196 = vmatprep.subr.mxu0 0.0
        %5197 = vmatpush1.msra.mxu0 0.0
        %5198 = vmatprep.subr.mxu0 0.0
        %5199 = vmatpush1.msra.mxu0 0.0
        %5200 = vmatprep.subr.mxu0 0.0
        %5201 = vmatpush1.msra.mxu0 0.0
        %5202 = vmatprep.subr.mxu0 0.0
        %5203 = vmatpush1.msra.mxu0 0.0
        %5204 = vmatprep.subr.mxu0 0.0
        %5205 = vmatpush1.msra.mxu0 0.0
        %5206 = vmatprep.subr.mxu0 0.0
        %5207 = vmatpush1.msra.mxu0 0.0
        %5208 = vmatprep.subr.mxu0 0.0
        %5209 = vmatpush1.msra.mxu0 0.0
        %5210 = vmatprep.subr.mxu0 0.0
        %5211 = vmatpush1.msra.mxu0 0.0
        %5212 = vmatprep.subr.mxu0 0.0
        %5213 = vmatpush1.msra.mxu0 0.0
        %5214 = vmatprep.subr.mxu0 0.0
        %5215 = vmatpush1.msra.mxu0 0.0
        %5216 = vmatprep.mubr.f32.mxu0 0.0
        %5217 = vmatmul.mubr.f32.gmra.mrb[0].mxu0 %v4963
        %v5218 = vpop.f32.mrb[0].mxu0
        %v5219 = vadd.f32 0.0, %v5218
        %v5220 = vpop.f32.mrb[0].mxu0
        %v5221 = vadd.f32 0.0, %v5220
        %5222 = vmatprep.mubr.f32.mxu0 0.0
        %5223 = vmatmul.mubr.f32.gmra.mrb[0].mxu0 %v4966
        %v5224 = vpop.f32.mrb[0].mxu0
        %v5225 = vadd.f32 0.0, %v5224
        %v5226 = vpop.f32.mrb[0].mxu0
        %v5227 = vadd.f32 0.0, %v5226
        %5228 = vmatprep.mubr.f32.mxu0 0.0
        %5229 = vmatmul.mubr.f32.gmra.mrb[0].mxu0 %v4969
        %v5230 = vpop.f32.mrb[0].mxu0
        %v5231 = vadd.f32 0.0, %v5230
        %v5232 = vpop.f32.mrb[0].mxu0
        %v5233 = vadd.f32 0.0, %v5232
        %5234 = vmatprep.mubr.f32.mxu0 0.0
        %5235 = vmatmul.mubr.f32.gmra.mrb[0].mxu0 %v4972
        %v5236 = vpop.f32.mrb[0].mxu0
        %v5237 = vadd.f32 0.0, %v5236
        %v5238 = vpop.f32.mrb[0].mxu0
        %v5239 = vadd.f32 0.0, %v5238
        %5240 = vdwg.mxu0
        %5241 = vmatprep.subr.mxu0 %v4948
        %5242 = vmatpush1.msra.mxu0 %v4947
        %5243 = vmatprep.subr.mxu0 %v4956
        %5244 = vmatpush1.msra.mxu0 %v4955
        %5245 = vmatprep.subr.mxu0 0.0
        %5246 = vmatpush1.msra.mxu0 0.0
        %5247 = vmatprep.subr.mxu0 0.0
        %5248 = vmatpush1.msra.mxu0 0.0
        %5249 = vmatprep.subr.mxu0 0.0
        %5250 = vmatpush1.msra.mxu0 0.0
        %5251 = vmatprep.subr.mxu0 0.0
        %5252 = vmatpush1.msra.mxu0 0.0
        %5253 = vmatprep.subr.mxu0 0.0
        %5254 = vmatpush1.msra.mxu0 0.0
        %5255 = vmatprep.subr.mxu0 0.0
        %5256 = vmatpush1.msra.mxu0 0.0
        %5257 = vmatprep.subr.mxu0 0.0
        %5258 = vmatpush1.msra.mxu0 0.0
        %5259 = vmatprep.subr.mxu0 0.0
        %5260 = vmatpush1.msra.mxu0 0.0
        %5261 = vmatprep.subr.mxu0 0.0
        %5262 = vmatpush1.msra.mxu0 0.0
        %5263 = vmatprep.subr.mxu0 0.0
        %5264 = vmatpush1.msra.mxu0 0.0
        %5265 = vmatprep.subr.mxu0 0.0
        %5266 = vmatpush1.msra.mxu0 0.0
        %5267 = vmatprep.subr.mxu0 0.0
        %5268 = vmatpush1.msra.mxu0 0.0
        %5269 = vmatprep.subr.mxu0 0.0
        %5270 = vmatpush1.msra.mxu0 0.0
        %5271 = vmatprep.subr.mxu0 0.0
        %5272 = vmatpush1.msra.mxu0 0.0
        %5273 = vmatprep.subr.mxu0 0.0
        %5274 = vmatpush1.msra.mxu0 0.0
        %5275 = vmatprep.subr.mxu0 0.0
        %5276 = vmatpush1.msra.mxu0 0.0
        %5277 = vmatprep.subr.mxu0 0.0
        %5278 = vmatpush1.msra.mxu0 0.0
        %5279 = vmatprep.subr.mxu0 0.0
        %5280 = vmatpush1.msra.mxu0 0.0
        %5281 = vmatprep.subr.mxu0 0.0
        %5282 = vmatpush1.msra.mxu0 0.0
        %5283 = vmatprep.subr.mxu0 0.0
        %5284 = vmatpush1.msra.mxu0 0.0
        %5285 = vmatprep.subr.mxu0 0.0
        %5286 = vmatpush1.msra.mxu0 0.0
        %5287 = vmatprep.subr.mxu0 0.0
        %5288 = vmatpush1.msra.mxu0 0.0
        %5289 = vmatprep.subr.mxu0 0.0
        %5290 = vmatpush1.msra.mxu0 0.0
        %5291 = vmatprep.subr.mxu0 0.0
        %5292 = vmatpush1.msra.mxu0 0.0
        %5293 = vmatprep.subr.mxu0 0.0
        %5294 = vmatpush1.msra.mxu0 0.0
        %5295 = vmatprep.subr.mxu0 0.0
        %5296 = vmatpush1.msra.mxu0 0.0
        %5297 = vmatprep.subr.mxu0 0.0
        %5298 = vmatpush1.msra.mxu0 0.0
        %5299 = vmatprep.subr.mxu0 0.0
        %5300 = vmatpush1.msra.mxu0 0.0
        %5301 = vmatprep.subr.mxu0 0.0
        %5302 = vmatpush1.msra.mxu0 0.0
        %5303 = vmatprep.subr.mxu0 0.0
        %5304 = vmatpush1.msra.mxu0 0.0
        %5305 = vmatprep.mubr.f32.mxu0 0.0
        %5306 = vmatmul.mubr.f32.gmra.mrb[0].mxu0 %v4963
        %v5307 = vpop.f32.mrb[0].mxu0
        %v5308 = vadd.f32 0.0, %v5307
        %v5309 = vpop.f32.mrb[0].mxu0
        %v5310 = vadd.f32 0.0, %v5309
        %5311 = vmatprep.mubr.f32.mxu0 0.0
        %5312 = vmatmul.mubr.f32.gmra.mrb[0].mxu0 %v4966
        %v5313 = vpop.f32.mrb[0].mxu0
        %v5314 = vadd.f32 0.0, %v5313
        %v5315 = vpop.f32.mrb[0].mxu0
        %v5316 = vadd.f32 0.0, %v5315
        %5317 = vmatprep.mubr.f32.mxu0 0.0
        %5318 = vmatmul.mubr.f32.gmra.mrb[0].mxu0 %v4969
        %v5319 = vpop.f32.mrb[0].mxu0
        %v5320 = vadd.f32 0.0, %v5319
        %v5321 = vpop.f32.mrb[0].mxu0
        %v5322 = vadd.f32 0.0, %v5321
        %5323 = vmatprep.mubr.f32.mxu0 0.0
        %5324 = vmatmul.mubr.f32.gmra.mrb[0].mxu0 %v4972
        %v5325 = vpop.f32.mrb[0].mxu0
        %v5326 = vadd.f32 0.0, %v5325
        %v5327 = vpop.f32.mrb[0].mxu0
        %v5328 = vadd.f32 0.0, %v5327
        %5329 = vdwg.mxu0
        %v5330 = vadd.f32 %v4588, %v5041
        %v5331 = vadd.f32 %v4590, %v5043
        %v5332 = vadd.f32 %v4677, %v5130
        %v5333 = vadd.f32 %v4679, %v5132
        %v5334 = vadd.f32 %v4766, %v5219
        %v5335 = vadd.f32 %v4768, %v5221
        %v5336 = vadd.f32 %v4855, %v5308
        %v5337 = vadd.f32 %v4857, %v5310
        %v5338 = vadd.f32 %v4594, %v5047
        %v5339 = vadd.f32 %v4596, %v5049
        %v5340 = vadd.f32 %v4683, %v5136
        %v5341 = vadd.f32 %v4685, %v5138
        %v5342 = vadd.f32 %v4772, %v5225
        %v5343 = vadd.f32 %v4774, %v5227
        %v5344 = vadd.f32 %v4861, %v5314
        %v5345 = vadd.f32 %v4863, %v5316
        %v5346 = vadd.f32 %v4600, %v5053
        %v5347 = vadd.f32 %v4602, %v5055
        %v5348 = vadd.f32 %v4689, %v5142
        %v5349 = vadd.f32 %v4691, %v5144
        %v5350 = vadd.f32 %v4778, %v5231
        %v5351 = vadd.f32 %v4780, %v5233
        %v5352 = vadd.f32 %v4867, %v5320
        %v5353 = vadd.f32 %v4869, %v5322
        %v5354 = vadd.f32 %v4606, %v5059
        %v5355 = vadd.f32 %v4608, %v5061
        %v5356 = vadd.f32 %v4695, %v5148
        %v5357 = vadd.f32 %v4697, %v5150
        %v5358 = vadd.f32 %v4784, %v5237
        %v5359 = vadd.f32 %v4786, %v5239
        %v5360 = vadd.f32 %v4873, %v5326
        %v5361 = vadd.f32 %v4875, %v5328
        %5362 = vrot.lane.b32.xlu0 %v3955, 1
        %v5363 = vpop.permute.xlu0 %5362
        %5364 = vrot.lane.b32.xlu0 %v3956, 1
        %v5365 = vpop.permute.xlu0 %5364
        %5366 = vrot.lane.b32.xlu0 %v3957, 1
        %v5367 = vpop.permute.xlu0 %5366
        %5368 = vrot.lane.b32.xlu0 %v3958, 1
        %v5369 = vpop.permute.xlu0 %5368
        %5370 = vrot.lane.b32.xlu0 %v3959, 1
        %v5371 = vpop.permute.xlu0 %5370
        %5372 = vrot.lane.b32.xlu0 %v3960, 1
        %v5373 = vpop.permute.xlu0 %5372
        %5374 = vrot.lane.b32.xlu0 %v3961, 1
        %v5375 = vpop.permute.xlu0 %5374
        %5376 = vrot.lane.b32.xlu0 %v3962, 1
        %v5377 = vpop.permute.xlu0 %5376
        %5378 = vrot.lane.b32.xlu0 %v3963, 1
        %v5379 = vpop.permute.xlu0 %5378
        %5380 = vrot.lane.b32.xlu0 %v3964, 1
        %v5381 = vpop.permute.xlu0 %5380
        %5382 = vrot.lane.b32.xlu0 %v3965, 1
        %v5383 = vpop.permute.xlu0 %5382
        %5384 = vrot.lane.b32.xlu0 %v3966, 1
        %v5385 = vpop.permute.xlu0 %5384
        %5386 = vrot.lane.b32.xlu0 %v3967, 1
        %v5387 = vpop.permute.xlu0 %5386
        %5388 = vrot.lane.b32.xlu0 %v3968, 1
        %v5389 = vpop.permute.xlu0 %5388
        %5390 = vrot.lane.b32.xlu0 %v3969, 1
        %v5391 = vpop.permute.xlu0 %5390
        %5392 = vrot.lane.b32.xlu0 %v3970, 1
        %v5393 = vpop.permute.xlu0 %5392
        %v5394 = vsel %vm1626, %v5363, %v5365
        %v5395 = vsel %vm1626, %v5365, %v5367
        %v5396 = vsel %vm1626, %v5367, %v5369
        %v5397 = vsel %vm1626, %v5369, %v5371
        %v5398 = vsel %vm1626, %v5371, %v5373
        %v5399 = vsel %vm1626, %v5373, %v5375
        %v5400 = vsel %vm1626, %v5375, %v5377
        %v5401 = vsel %vm1626, %v5379, %v5381
        %v5402 = vsel %vm1626, %v5381, %v5383
        %v5403 = vsel %vm1626, %v5383, %v5385
        %v5404 = vsel %vm1626, %v5385, %v5387
        %v5405 = vsel %vm1626, %v5387, %v5389
        %v5406 = vsel %vm1626, %v5389, %v5391
        %v5407 = vsel %vm1626, %v5391, %v5393
        %v5424 = vsel %vm1626, 0.0, %v5363
        %v5425 = vsel %vm1626, 0.0, %v5379
        %v5426 = vsel %vm478, %v5424, 0.0
        %v5427 = vsel %vm479, %v5394, 0.0
        %v5428 = vsel %vm480, %v5395, 0.0
        %v5429 = vsel %vm481, %v5396, 0.0
        %v5430 = vsel %vm482, %v5397, 0.0
        %v5431 = vsel %vm483, %v5398, 0.0
        %v5432 = vsel %vm484, %v5399, 0.0
        %v5433 = vsel %vm485, %v5400, 0.0
        %v5434 = vsel %vm478, %v5425, 0.0
        %v5435 = vsel %vm479, %v5401, 0.0
        %v5436 = vsel %vm480, %v5402, 0.0
        %v5437 = vsel %vm481, %v5403, 0.0
        %v5438 = vsel %vm482, %v5404, 0.0
        %v5439 = vsel %vm483, %v5405, 0.0
        %v5440 = vsel %vm484, %v5406, 0.0
        %v5441 = vsel %vm485, %v5407, 0.0
        %s5442 = scalar_lea.vmem %s3, 96
        %v5443 = vld [vmem:[%s5442] sm:$0xff]
        %v5444 = vld [vmem:[%s5442 + $0x8] sm:$0xff]
        %v5445 = vld [vmem:[%s5442 + $0x10] sm:$0xff]
        %v5446 = vld [vmem:[%s5442 + $0x18] sm:$0xff]
        %v5448 = vsel %vm4140, %v5443, 0
        %v5451 = vsel %vm4140, %v5444, 0
        %v5454 = vsel %vm4140, %v5445, 0
        %v5457 = vsel %vm4140, %v5446, 0
        %5459 = vmatprep.subr.mxu0 %v5427
        %5460 = vmatpush1.msra.mxu0 %v5426
        %5461 = vmatprep.subr.mxu0 %v5435
        %5462 = vmatpush1.msra.mxu0 %v5434
        %5463 = vmatprep.subr.mxu0 0.0
        %5464 = vmatpush1.msra.mxu0 0.0
        %5465 = vmatprep.subr.mxu0 0.0
        %5466 = vmatpush1.msra.mxu0 0.0
        %5467 = vmatprep.subr.mxu0 0.0
        %5468 = vmatpush1.msra.mxu0 0.0
        %5469 = vmatprep.subr.mxu0 0.0
        %5470 = vmatpush1.msra.mxu0 0.0
        %5471 = vmatprep.subr.mxu0 0.0
        %5472 = vmatpush1.msra.mxu0 0.0
        %5473 = vmatprep.subr.mxu0 0.0
        %5474 = vmatpush1.msra.mxu0 0.0
        %5475 = vmatprep.subr.mxu0 0.0
        %5476 = vmatpush1.msra.mxu0 0.0
        %5477 = vmatprep.subr.mxu0 0.0
        %5478 = vmatpush1.msra.mxu0 0.0
        %5479 = vmatprep.subr.mxu0 0.0
        %5480 = vmatpush1.msra.mxu0 0.0
        %5481 = vmatprep.subr.mxu0 0.0
        %5482 = vmatpush1.msra.mxu0 0.0
        %5483 = vmatprep.subr.mxu0 0.0
        %5484 = vmatpush1.msra.mxu0 0.0
        %5485 = vmatprep.subr.mxu0 0.0
        %5486 = vmatpush1.msra.mxu0 0.0
        %5487 = vmatprep.subr.mxu0 0.0
        %5488 = vmatpush1.msra.mxu0 0.0
        %5489 = vmatprep.subr.mxu0 0.0
        %5490 = vmatpush1.msra.mxu0 0.0
        %5491 = vmatprep.subr.mxu0 0.0
        %5492 = vmatpush1.msra.mxu0 0.0
        %5493 = vmatprep.subr.mxu0 0.0
        %5494 = vmatpush1.msra.mxu0 0.0
        %5495 = vmatprep.subr.mxu0 0.0
        %5496 = vmatpush1.msra.mxu0 0.0
        %5497 = vmatprep.subr.mxu0 0.0
        %5498 = vmatpush1.msra.mxu0 0.0
        %5499 = vmatprep.subr.mxu0 0.0
        %5500 = vmatpush1.msra.mxu0 0.0
        %5501 = vmatprep.subr.mxu0 0.0
        %5502 = vmatpush1.msra.mxu0 0.0
        %5503 = vmatprep.subr.mxu0 0.0
        %5504 = vmatpush1.msra.mxu0 0.0
        %5505 = vmatprep.subr.mxu0 0.0
        %5506 = vmatpush1.msra.mxu0 0.0
        %5507 = vmatprep.subr.mxu0 0.0
        %5508 = vmatpush1.msra.mxu0 0.0
        %5509 = vmatprep.subr.mxu0 0.0
        %5510 = vmatpush1.msra.mxu0 0.0
        %5511 = vmatprep.subr.mxu0 0.0
        %5512 = vmatpush1.msra.mxu0 0.0
        %5513 = vmatprep.subr.mxu0 0.0
        %5514 = vmatpush1.msra.mxu0 0.0
        %5515 = vmatprep.subr.mxu0 0.0
        %5516 = vmatpush1.msra.mxu0 0.0
        %5517 = vmatprep.subr.mxu0 0.0
        %5518 = vmatpush1.msra.mxu0 0.0
        %5519 = vmatprep.subr.mxu0 0.0
        %5520 = vmatpush1.msra.mxu0 0.0
        %5521 = vmatprep.subr.mxu0 0.0
        %5522 = vmatpush1.msra.mxu0 0.0
        %5523 = vmatprep.mubr.f32.mxu0 0.0
        %5524 = vmatmul.mubr.f32.gmra.mrb[0].mxu0 %v5448
        %v5525 = vpop.f32.mrb[0].mxu0
        %v5526 = vadd.f32 0.0, %v5525
        %v5527 = vpop.f32.mrb[0].mxu0
        %v5528 = vadd.f32 0.0, %v5527
        %5529 = vmatprep.mubr.f32.mxu0 0.0
        %5530 = vmatmul.mubr.f32.gmra.mrb[0].mxu0 %v5451
        %v5531 = vpop.f32.mrb[0].mxu0
        %v5532 = vadd.f32 0.0, %v5531
        %v5533 = vpop.f32.mrb[0].mxu0
        %v5534 = vadd.f32 0.0, %v5533
        %5535 = vmatprep.mubr.f32.mxu0 0.0
        %5536 = vmatmul.mubr.f32.gmra.mrb[0].mxu0 %v5454
        %v5537 = vpop.f32.mrb[0].mxu0
        %v5538 = vadd.f32 0.0, %v5537
        %v5539 = vpop.f32.mrb[0].mxu0
        %v5540 = vadd.f32 0.0, %v5539
        %5541 = vmatprep.mubr.f32.mxu0 0.0
        %5542 = vmatmul.mubr.f32.gmra.mrb[0].mxu0 %v5457
        %v5543 = vpop.f32.mrb[0].mxu0
        %v5544 = vadd.f32 0.0, %v5543
        %v5545 = vpop.f32.mrb[0].mxu0
        %v5546 = vadd.f32 0.0, %v5545
        %5547 = vdwg.mxu0
        %5548 = vmatprep.subr.mxu0 %v5429
        %5549 = vmatpush1.msra.mxu0 %v5428
        %5550 = vmatprep.subr.mxu0 %v5437
        %5551 = vmatpush1.msra.mxu0 %v5436
        %5552 = vmatprep.subr.mxu0 0.0
        %5553 = vmatpush1.msra.mxu0 0.0
        %5554 = vmatprep.subr.mxu0 0.0
        %5555 = vmatpush1.msra.mxu0 0.0
        %5556 = vmatprep.subr.mxu0 0.0
        %5557 = vmatpush1.msra.mxu0 0.0
        %5558 = vmatprep.subr.mxu0 0.0
        %5559 = vmatpush1.msra.mxu0 0.0
        %5560 = vmatprep.subr.mxu0 0.0
        %5561 = vmatpush1.msra.mxu0 0.0
        %5562 = vmatprep.subr.mxu0 0.0
        %5563 = vmatpush1.msra.mxu0 0.0
        %5564 = vmatprep.subr.mxu0 0.0
        %5565 = vmatpush1.msra.mxu0 0.0
        %5566 = vmatprep.subr.mxu0 0.0
        %5567 = vmatpush1.msra.mxu0 0.0
        %5568 = vmatprep.subr.mxu0 0.0
        %5569 = vmatpush1.msra.mxu0 0.0
        %5570 = vmatprep.subr.mxu0 0.0
        %5571 = vmatpush1.msra.mxu0 0.0
        %5572 = vmatprep.subr.mxu0 0.0
        %5573 = vmatpush1.msra.mxu0 0.0
        %5574 = vmatprep.subr.mxu0 0.0
        %5575 = vmatpush1.msra.mxu0 0.0
        %5576 = vmatprep.subr.mxu0 0.0
        %5577 = vmatpush1.msra.mxu0 0.0
        %5578 = vmatprep.subr.mxu0 0.0
        %5579 = vmatpush1.msra.mxu0 0.0
        %5580 = vmatprep.subr.mxu0 0.0
        %5581 = vmatpush1.msra.mxu0 0.0
        %5582 = vmatprep.subr.mxu0 0.0
        %5583 = vmatpush1.msra.mxu0 0.0
        %5584 = vmatprep.subr.mxu0 0.0
        %5585 = vmatpush1.msra.mxu0 0.0
        %5586 = vmatprep.subr.mxu0 0.0
        %5587 = vmatpush1.msra.mxu0 0.0
        %5588 = vmatprep.subr.mxu0 0.0
        %5589 = vmatpush1.msra.mxu0 0.0
        %5590 = vmatprep.subr.mxu0 0.0
        %5591 = vmatpush1.msra.mxu0 0.0
        %5592 = vmatprep.subr.mxu0 0.0
        %5593 = vmatpush1.msra.mxu0 0.0
        %5594 = vmatprep.subr.mxu0 0.0
        %5595 = vmatpush1.msra.mxu0 0.0
        %5596 = vmatprep.subr.mxu0 0.0
        %5597 = vmatpush1.msra.mxu0 0.0
        %5598 = vmatprep.subr.mxu0 0.0
        %5599 = vmatpush1.msra.mxu0 0.0
        %5600 = vmatprep.subr.mxu0 0.0
        %5601 = vmatpush1.msra.mxu0 0.0
        %5602 = vmatprep.subr.mxu0 0.0
        %5603 = vmatpush1.msra.mxu0 0.0
        %5604 = vmatprep.subr.mxu0 0.0
        %5605 = vmatpush1.msra.mxu0 0.0
        %5606 = vmatprep.subr.mxu0 0.0
        %5607 = vmatpush1.msra.mxu0 0.0
        %5608 = vmatprep.subr.mxu0 0.0
        %5609 = vmatpush1.msra.mxu0 0.0
        %5610 = vmatprep.subr.mxu0 0.0
        %5611 = vmatpush1.msra.mxu0 0.0
        %5612 = vmatprep.mubr.f32.mxu0 0.0
        %5613 = vmatmul.mubr.f32.gmra.mrb[0].mxu0 %v5448
        %v5614 = vpop.f32.mrb[0].mxu0
        %v5615 = vadd.f32 0.0, %v5614
        %v5616 = vpop.f32.mrb[0].mxu0
        %v5617 = vadd.f32 0.0, %v5616
        %5618 = vmatprep.mubr.f32.mxu0 0.0
        %5619 = vmatmul.mubr.f32.gmra.mrb[0].mxu0 %v5451
        %v5620 = vpop.f32.mrb[0].mxu0
        %v5621 = vadd.f32 0.0, %v5620
        %v5622 = vpop.f32.mrb[0].mxu0
        %v5623 = vadd.f32 0.0, %v5622
        %5624 = vmatprep.mubr.f32.mxu0 0.0
        %5625 = vmatmul.mubr.f32.gmra.mrb[0].mxu0 %v5454
        %v5626 = vpop.f32.mrb[0].mxu0
        %v5627 = vadd.f32 0.0, %v5626
        %v5628 = vpop.f32.mrb[0].mxu0
        %v5629 = vadd.f32 0.0, %v5628
        %5630 = vmatprep.mubr.f32.mxu0 0.0
        %5631 = vmatmul.mubr.f32.gmra.mrb[0].mxu0 %v5457
        %v5632 = vpop.f32.mrb[0].mxu0
        %v5633 = vadd.f32 0.0, %v5632
        %v5634 = vpop.f32.mrb[0].mxu0
        %v5635 = vadd.f32 0.0, %v5634
        %5636 = vdwg.mxu0
        %5637 = vmatprep.subr.mxu0 %v5431
        %5638 = vmatpush1.msra.mxu0 %v5430
        %5639 = vmatprep.subr.mxu0 %v5439
        %5640 = vmatpush1.msra.mxu0 %v5438
        %5641 = vmatprep.subr.mxu0 0.0
        %5642 = vmatpush1.msra.mxu0 0.0
        %5643 = vmatprep.subr.mxu0 0.0
        %5644 = vmatpush1.msra.mxu0 0.0
        %5645 = vmatprep.subr.mxu0 0.0
        %5646 = vmatpush1.msra.mxu0 0.0
        %5647 = vmatprep.subr.mxu0 0.0
        %5648 = vmatpush1.msra.mxu0 0.0
        %5649 = vmatprep.subr.mxu0 0.0
        %5650 = vmatpush1.msra.mxu0 0.0
        %5651 = vmatprep.subr.mxu0 0.0
        %5652 = vmatpush1.msra.mxu0 0.0
        %5653 = vmatprep.subr.mxu0 0.0
        %5654 = vmatpush1.msra.mxu0 0.0
        %5655 = vmatprep.subr.mxu0 0.0
        %5656 = vmatpush1.msra.mxu0 0.0
        %5657 = vmatprep.subr.mxu0 0.0
        %5658 = vmatpush1.msra.mxu0 0.0
        %5659 = vmatprep.subr.mxu0 0.0
        %5660 = vmatpush1.msra.mxu0 0.0
        %5661 = vmatprep.subr.mxu0 0.0
        %5662 = vmatpush1.msra.mxu0 0.0
        %5663 = vmatprep.subr.mxu0 0.0
        %5664 = vmatpush1.msra.mxu0 0.0
        %5665 = vmatprep.subr.mxu0 0.0
        %5666 = vmatpush1.msra.mxu0 0.0
        %5667 = vmatprep.subr.mxu0 0.0
        %5668 = vmatpush1.msra.mxu0 0.0
        %5669 = vmatprep.subr.mxu0 0.0
        %5670 = vmatpush1.msra.mxu0 0.0
        %5671 = vmatprep.subr.mxu0 0.0
        %5672 = vmatpush1.msra.mxu0 0.0
        %5673 = vmatprep.subr.mxu0 0.0
        %5674 = vmatpush1.msra.mxu0 0.0
        %5675 = vmatprep.subr.mxu0 0.0
        %5676 = vmatpush1.msra.mxu0 0.0
        %5677 = vmatprep.subr.mxu0 0.0
        %5678 = vmatpush1.msra.mxu0 0.0
        %5679 = vmatprep.subr.mxu0 0.0
        %5680 = vmatpush1.msra.mxu0 0.0
        %5681 = vmatprep.subr.mxu0 0.0
        %5682 = vmatpush1.msra.mxu0 0.0
        %5683 = vmatprep.subr.mxu0 0.0
        %5684 = vmatpush1.msra.mxu0 0.0
        %5685 = vmatprep.subr.mxu0 0.0
        %5686 = vmatpush1.msra.mxu0 0.0
        %5687 = vmatprep.subr.mxu0 0.0
        %5688 = vmatpush1.msra.mxu0 0.0
        %5689 = vmatprep.subr.mxu0 0.0
        %5690 = vmatpush1.msra.mxu0 0.0
        %5691 = vmatprep.subr.mxu0 0.0
        %5692 = vmatpush1.msra.mxu0 0.0
        %5693 = vmatprep.subr.mxu0 0.0
        %5694 = vmatpush1.msra.mxu0 0.0
        %5695 = vmatprep.subr.mxu0 0.0
        %5696 = vmatpush1.msra.mxu0 0.0
        %5697 = vmatprep.subr.mxu0 0.0
        %5698 = vmatpush1.msra.mxu0 0.0
        %5699 = vmatprep.subr.mxu0 0.0
        %5700 = vmatpush1.msra.mxu0 0.0
        %5701 = vmatprep.mubr.f32.mxu0 0.0
        %5702 = vmatmul.mubr.f32.gmra.mrb[0].mxu0 %v5448
        %v5703 = vpop.f32.mrb[0].mxu0
        %v5704 = vadd.f32 0.0, %v5703
        %v5705 = vpop.f32.mrb[0].mxu0
        %v5706 = vadd.f32 0.0, %v5705
        %5707 = vmatprep.mubr.f32.mxu0 0.0
        %5708 = vmatmul.mubr.f32.gmra.mrb[0].mxu0 %v5451
        %v5709 = vpop.f32.mrb[0].mxu0
        %v5710 = vadd.f32 0.0, %v5709
        %v5711 = vpop.f32.mrb[0].mxu0
        %v5712 = vadd.f32 0.0, %v5711
        %5713 = vmatprep.mubr.f32.mxu0 0.0
        %5714 = vmatmul.mubr.f32.gmra.mrb[0].mxu0 %v5454
        %v5715 = vpop.f32.mrb[0].mxu0
        %v5716 = vadd.f32 0.0, %v5715
        %v5717 = vpop.f32.mrb[0].mxu0
        %v5718 = vadd.f32 0.0, %v5717
        %5719 = vmatprep.mubr.f32.mxu0 0.0
        %5720 = vmatmul.mubr.f32.gmra.mrb[0].mxu0 %v5457
        %v5721 = vpop.f32.mrb[0].mxu0
        %v5722 = vadd.f32 0.0, %v5721
        %v5723 = vpop.f32.mrb[0].mxu0
        %v5724 = vadd.f32 0.0, %v5723
        %5725 = vdwg.mxu0
        %5726 = vmatprep.subr.mxu0 %v5433
        %5727 = vmatpush1.msra.mxu0 %v5432
        %5728 = vmatprep.subr.mxu0 %v5441
        %5729 = vmatpush1.msra.mxu0 %v5440
        %5730 = vmatprep.subr.mxu0 0.0
        %5731 = vmatpush1.msra.mxu0 0.0
        %5732 = vmatprep.subr.mxu0 0.0
        %5733 = vmatpush1.msra.mxu0 0.0
        %5734 = vmatprep.subr.mxu0 0.0
        %5735 = vmatpush1.msra.mxu0 0.0
        %5736 = vmatprep.subr.mxu0 0.0
        %5737 = vmatpush1.msra.mxu0 0.0
        %5738 = vmatprep.subr.mxu0 0.0
        %5739 = vmatpush1.msra.mxu0 0.0
        %5740 = vmatprep.subr.mxu0 0.0
        %5741 = vmatpush1.msra.mxu0 0.0
        %5742 = vmatprep.subr.mxu0 0.0
        %5743 = vmatpush1.msra.mxu0 0.0
        %5744 = vmatprep.subr.mxu0 0.0
        %5745 = vmatpush1.msra.mxu0 0.0
        %5746 = vmatprep.subr.mxu0 0.0
        %5747 = vmatpush1.msra.mxu0 0.0
        %5748 = vmatprep.subr.mxu0 0.0
        %5749 = vmatpush1.msra.mxu0 0.0
        %5750 = vmatprep.subr.mxu0 0.0
        %5751 = vmatpush1.msra.mxu0 0.0
        %5752 = vmatprep.subr.mxu0 0.0
        %5753 = vmatpush1.msra.mxu0 0.0
        %5754 = vmatprep.subr.mxu0 0.0
        %5755 = vmatpush1.msra.mxu0 0.0
        %5756 = vmatprep.subr.mxu0 0.0
        %5757 = vmatpush1.msra.mxu0 0.0
        %5758 = vmatprep.subr.mxu0 0.0
        %5759 = vmatpush1.msra.mxu0 0.0
        %5760 = vmatprep.subr.mxu0 0.0
        %5761 = vmatpush1.msra.mxu0 0.0
        %5762 = vmatprep.subr.mxu0 0.0
        %5763 = vmatpush1.msra.mxu0 0.0
        %5764 = vmatprep.subr.mxu0 0.0
        %5765 = vmatpush1.msra.mxu0 0.0
        %5766 = vmatprep.subr.mxu0 0.0
        %5767 = vmatpush1.msra.mxu0 0.0
        %5768 = vmatprep.subr.mxu0 0.0
        %5769 = vmatpush1.msra.mxu0 0.0
        %5770 = vmatprep.subr.mxu0 0.0
        %5771 = vmatpush1.msra.mxu0 0.0
        %5772 = vmatprep.subr.mxu0 0.0
        %5773 = vmatpush1.msra.mxu0 0.0
        %5774 = vmatprep.subr.mxu0 0.0
        %5775 = vmatpush1.msra.mxu0 0.0
        %5776 = vmatprep.subr.mxu0 0.0
        %5777 = vmatpush1.msra.mxu0 0.0
        %5778 = vmatprep.subr.mxu0 0.0
        %5779 = vmatpush1.msra.mxu0 0.0
        %5780 = vmatprep.subr.mxu0 0.0
        %5781 = vmatpush1.msra.mxu0 0.0
        %5782 = vmatprep.subr.mxu0 0.0
        %5783 = vmatpush1.msra.mxu0 0.0
        %5784 = vmatprep.subr.mxu0 0.0
        %5785 = vmatpush1.msra.mxu0 0.0
        %5786 = vmatprep.subr.mxu0 0.0
        %5787 = vmatpush1.msra.mxu0 0.0
        %5788 = vmatprep.subr.mxu0 0.0
        %5789 = vmatpush1.msra.mxu0 0.0
        %5790 = vmatprep.mubr.f32.mxu0 0.0
        %5791 = vmatmul.mubr.f32.gmra.mrb[0].mxu0 %v5448
        %v5792 = vpop.f32.mrb[0].mxu0
        %v5793 = vadd.f32 0.0, %v5792
        %v5794 = vpop.f32.mrb[0].mxu0
        %v5795 = vadd.f32 0.0, %v5794
        %5796 = vmatprep.mubr.f32.mxu0 0.0
        %5797 = vmatmul.mubr.f32.gmra.mrb[0].mxu0 %v5451
        %v5798 = vpop.f32.mrb[0].mxu0
        %v5799 = vadd.f32 0.0, %v5798
        %v5800 = vpop.f32.mrb[0].mxu0
        %v5801 = vadd.f32 0.0, %v5800
        %5802 = vmatprep.mubr.f32.mxu0 0.0
        %5803 = vmatmul.mubr.f32.gmra.mrb[0].mxu0 %v5454
        %v5804 = vpop.f32.mrb[0].mxu0
        %v5805 = vadd.f32 0.0, %v5804
        %v5806 = vpop.f32.mrb[0].mxu0
        %v5807 = vadd.f32 0.0, %v5806
        %5808 = vmatprep.mubr.f32.mxu0 0.0
        %5809 = vmatmul.mubr.f32.gmra.mrb[0].mxu0 %v5457
        %v5810 = vpop.f32.mrb[0].mxu0
        %v5811 = vadd.f32 0.0, %v5810
        %v5812 = vpop.f32.mrb[0].mxu0
        %v5813 = vadd.f32 0.0, %v5812
        %5814 = vdwg.mxu0
        %v5815 = vadd.f32 %v5330, %v5526
        %v5816 = vadd.f32 %v5331, %v5528
        %v5817 = vadd.f32 %v5332, %v5615
        %v5818 = vadd.f32 %v5333, %v5617
        %v5819 = vadd.f32 %v5334, %v5704
        %v5820 = vadd.f32 %v5335, %v5706
        %v5821 = vadd.f32 %v5336, %v5793
        %v5822 = vadd.f32 %v5337, %v5795
        %v5823 = vadd.f32 %v5338, %v5532
        %v5824 = vadd.f32 %v5339, %v5534
        %v5825 = vadd.f32 %v5340, %v5621
        %v5826 = vadd.f32 %v5341, %v5623
        %v5827 = vadd.f32 %v5342, %v5710
        %v5828 = vadd.f32 %v5343, %v5712
        %v5829 = vadd.f32 %v5344, %v5799
        %v5830 = vadd.f32 %v5345, %v5801
        %v5831 = vadd.f32 %v5346, %v5538
        %v5832 = vadd.f32 %v5347, %v5540
        %v5833 = vadd.f32 %v5348, %v5627
        %v5834 = vadd.f32 %v5349, %v5629
        %v5835 = vadd.f32 %v5350, %v5716
        %v5836 = vadd.f32 %v5351, %v5718
        %v5837 = vadd.f32 %v5352, %v5805
        %v5838 = vadd.f32 %v5353, %v5807
        %v5839 = vadd.f32 %v5354, %v5544
        %v5840 = vadd.f32 %v5355, %v5546
        %v5841 = vadd.f32 %v5356, %v5633
        %v5842 = vadd.f32 %v5357, %v5635
        %v5843 = vadd.f32 %v5358, %v5722
        %v5844 = vadd.f32 %v5359, %v5724
        %v5845 = vadd.f32 %v5360, %v5811
        %v5846 = vadd.f32 %v5361, %v5813
        %s5847 = scalar_lea.vmem %s3, 128
        %v5848 = vld [vmem:[%s5847] sm:$0xff]
        %v5849 = vld [vmem:[%s5847 + $0x8] sm:$0xff]
        %v5850 = vld [vmem:[%s5847 + $0x10] sm:$0xff]
        %v5851 = vld [vmem:[%s5847 + $0x18] sm:$0xff]
        %v5853 = vsel %vm4140, %v5848, 0
        %v5856 = vsel %vm4140, %v5849, 0
        %v5859 = vsel %vm4140, %v5850, 0
        %v5862 = vsel %vm4140, %v5851, 0
        %5864 = vmatprep.subr.mxu0 %v3956
        %5865 = vmatpush1.msra.mxu0 %v3955
        %5866 = vmatprep.subr.mxu0 %v3964
        %5867 = vmatpush1.msra.mxu0 %v3963
        %5868 = vmatprep.subr.mxu0 0.0
        %5869 = vmatpush1.msra.mxu0 0.0
        %5870 = vmatprep.subr.mxu0 0.0
        %5871 = vmatpush1.msra.mxu0 0.0
        %5872 = vmatprep.subr.mxu0 0.0
        %5873 = vmatpush1.msra.mxu0 0.0
        %5874 = vmatprep.subr.mxu0 0.0
        %5875 = vmatpush1.msra.mxu0 0.0
        %5876 = vmatprep.subr.mxu0 0.0
        %5877 = vmatpush1.msra.mxu0 0.0
        %5878 = vmatprep.subr.mxu0 0.0
        %5879 = vmatpush1.msra.mxu0 0.0
        %5880 = vmatprep.subr.mxu0 0.0
        %5881 = vmatpush1.msra.mxu0 0.0
        %5882 = vmatprep.subr.mxu0 0.0
        %5883 = vmatpush1.msra.mxu0 0.0
        %5884 = vmatprep.subr.mxu0 0.0
        %5885 = vmatpush1.msra.mxu0 0.0
        %5886 = vmatprep.subr.mxu0 0.0
        %5887 = vmatpush1.msra.mxu0 0.0
        %5888 = vmatprep.subr.mxu0 0.0
        %5889 = vmatpush1.msra.mxu0 0.0
        %5890 = vmatprep.subr.mxu0 0.0
        %5891 = vmatpush1.msra.mxu0 0.0
        %5892 = vmatprep.subr.mxu0 0.0
        %5893 = vmatpush1.msra.mxu0 0.0
        %5894 = vmatprep.subr.mxu0 0.0
        %5895 = vmatpush1.msra.mxu0 0.0
        %5896 = vmatprep.subr.mxu0 0.0
        %5897 = vmatpush1.msra.mxu0 0.0
        %5898 = vmatprep.subr.mxu0 0.0
        %5899 = vmatpush1.msra.mxu0 0.0
        %5900 = vmatprep.subr.mxu0 0.0
        %5901 = vmatpush1.msra.mxu0 0.0
        %5902 = vmatprep.subr.mxu0 0.0
        %5903 = vmatpush1.msra.mxu0 0.0
        %5904 = vmatprep.subr.mxu0 0.0
        %5905 = vmatpush1.msra.mxu0 0.0
        %5906 = vmatprep.subr.mxu0 0.0
        %5907 = vmatpush1.msra.mxu0 0.0
        %5908 = vmatprep.subr.mxu0 0.0
        %5909 = vmatpush1.msra.mxu0 0.0
        %5910 = vmatprep.subr.mxu0 0.0
        %5911 = vmatpush1.msra.mxu0 0.0
        %5912 = vmatprep.subr.mxu0 0.0
        %5913 = vmatpush1.msra.mxu0 0.0
        %5914 = vmatprep.subr.mxu0 0.0
        %5915 = vmatpush1.msra.mxu0 0.0
        %5916 = vmatprep.subr.mxu0 0.0
        %5917 = vmatpush1.msra.mxu0 0.0
        %5918 = vmatprep.subr.mxu0 0.0
        %5919 = vmatpush1.msra.mxu0 0.0
        %5920 = vmatprep.subr.mxu0 0.0
        %5921 = vmatpush1.msra.mxu0 0.0
        %5922 = vmatprep.subr.mxu0 0.0
        %5923 = vmatpush1.msra.mxu0 0.0
        %5924 = vmatprep.subr.mxu0 0.0
        %5925 = vmatpush1.msra.mxu0 0.0
        %5926 = vmatprep.subr.mxu0 0.0
        %5927 = vmatpush1.msra.mxu0 0.0
        %5928 = vmatprep.mubr.f32.mxu0 0.0
        %5929 = vmatmul.mubr.f32.gmra.mrb[0].mxu0 %v5853
        %v5930 = vpop.f32.mrb[0].mxu0
        %v5931 = vadd.f32 0.0, %v5930
        %v5932 = vpop.f32.mrb[0].mxu0
        %v5933 = vadd.f32 0.0, %v5932
        %5934 = vmatprep.mubr.f32.mxu0 0.0
        %5935 = vmatmul.mubr.f32.gmra.mrb[0].mxu0 %v5856
        %v5936 = vpop.f32.mrb[0].mxu0
        %v5937 = vadd.f32 0.0, %v5936
        %v5938 = vpop.f32.mrb[0].mxu0
        %v5939 = vadd.f32 0.0, %v5938
        %5940 = vmatprep.mubr.f32.mxu0 0.0
        %5941 = vmatmul.mubr.f32.gmra.mrb[0].mxu0 %v5859
        %v5942 = vpop.f32.mrb[0].mxu0
        %v5943 = vadd.f32 0.0, %v5942
        %v5944 = vpop.f32.mrb[0].mxu0
        %v5945 = vadd.f32 0.0, %v5944
        %5946 = vmatprep.mubr.f32.mxu0 0.0
        %5947 = vmatmul.mubr.f32.gmra.mrb[0].mxu0 %v5862
        %v5948 = vpop.f32.mrb[0].mxu0
        %v5949 = vadd.f32 0.0, %v5948
        %v5950 = vpop.f32.mrb[0].mxu0
        %v5951 = vadd.f32 0.0, %v5950
        %5952 = vdwg.mxu0
        %5953 = vmatprep.subr.mxu0 %v3958
        %5954 = vmatpush1.msra.mxu0 %v3957
        %5955 = vmatprep.subr.mxu0 %v3966
        %5956 = vmatpush1.msra.mxu0 %v3965
        %5957 = vmatprep.subr.mxu0 0.0
        %5958 = vmatpush1.msra.mxu0 0.0
        %5959 = vmatprep.subr.mxu0 0.0
        %5960 = vmatpush1.msra.mxu0 0.0
        %5961 = vmatprep.subr.mxu0 0.0
        %5962 = vmatpush1.msra.mxu0 0.0
        %5963 = vmatprep.subr.mxu0 0.0
        %5964 = vmatpush1.msra.mxu0 0.0
        %5965 = vmatprep.subr.mxu0 0.0
        %5966 = vmatpush1.msra.mxu0 0.0
        %5967 = vmatprep.subr.mxu0 0.0
        %5968 = vmatpush1.msra.mxu0 0.0
        %5969 = vmatprep.subr.mxu0 0.0
        %5970 = vmatpush1.msra.mxu0 0.0
        %5971 = vmatprep.subr.mxu0 0.0
        %5972 = vmatpush1.msra.mxu0 0.0
        %5973 = vmatprep.subr.mxu0 0.0
        %5974 = vmatpush1.msra.mxu0 0.0
        %5975 = vmatprep.subr.mxu0 0.0
        %5976 = vmatpush1.msra.mxu0 0.0
        %5977 = vmatprep.subr.mxu0 0.0
        %5978 = vmatpush1.msra.mxu0 0.0
        %5979 = vmatprep.subr.mxu0 0.0
        %5980 = vmatpush1.msra.mxu0 0.0
        %5981 = vmatprep.subr.mxu0 0.0
        %5982 = vmatpush1.msra.mxu0 0.0
        %5983 = vmatprep.subr.mxu0 0.0
        %5984 = vmatpush1.msra.mxu0 0.0
        %5985 = vmatprep.subr.mxu0 0.0
        %5986 = vmatpush1.msra.mxu0 0.0
        %5987 = vmatprep.subr.mxu0 0.0
        %5988 = vmatpush1.msra.mxu0 0.0
        %5989 = vmatprep.subr.mxu0 0.0
        %5990 = vmatpush1.msra.mxu0 0.0
        %5991 = vmatprep.subr.mxu0 0.0
        %5992 = vmatpush1.msra.mxu0 0.0
        %5993 = vmatprep.subr.mxu0 0.0
        %5994 = vmatpush1.msra.mxu0 0.0
        %5995 = vmatprep.subr.mxu0 0.0
        %5996 = vmatpush1.msra.mxu0 0.0
        %5997 = vmatprep.subr.mxu0 0.0
        %5998 = vmatpush1.msra.mxu0 0.0
        %5999 = vmatprep.subr.mxu0 0.0
        %6000 = vmatpush1.msra.mxu0 0.0
        %6001 = vmatprep.subr.mxu0 0.0
        %6002 = vmatpush1.msra.mxu0 0.0
        %6003 = vmatprep.subr.mxu0 0.0
        %6004 = vmatpush1.msra.mxu0 0.0
        %6005 = vmatprep.subr.mxu0 0.0
        %6006 = vmatpush1.msra.mxu0 0.0
        %6007 = vmatprep.subr.mxu0 0.0
        %6008 = vmatpush1.msra.mxu0 0.0
        %6009 = vmatprep.subr.mxu0 0.0
        %6010 = vmatpush1.msra.mxu0 0.0
        %6011 = vmatprep.subr.mxu0 0.0
        %6012 = vmatpush1.msra.mxu0 0.0
        %6013 = vmatprep.subr.mxu0 0.0
        %6014 = vmatpush1.msra.mxu0 0.0
        %6015 = vmatprep.subr.mxu0 0.0
        %6016 = vmatpush1.msra.mxu0 0.0
        %6017 = vmatprep.mubr.f32.mxu0 0.0
        %6018 = vmatmul.mubr.f32.gmra.mrb[0].mxu0 %v5853
        %v6019 = vpop.f32.mrb[0].mxu0
        %v6020 = vadd.f32 0.0, %v6019
        %v6021 = vpop.f32.mrb[0].mxu0
        %v6022 = vadd.f32 0.0, %v6021
        %6023 = vmatprep.mubr.f32.mxu0 0.0
        %6024 = vmatmul.mubr.f32.gmra.mrb[0].mxu0 %v5856
        %v6025 = vpop.f32.mrb[0].mxu0
        %v6026 = vadd.f32 0.0, %v6025
        %v6027 = vpop.f32.mrb[0].mxu0
        %v6028 = vadd.f32 0.0, %v6027
        %6029 = vmatprep.mubr.f32.mxu0 0.0
        %6030 = vmatmul.mubr.f32.gmra.mrb[0].mxu0 %v5859
        %v6031 = vpop.f32.mrb[0].mxu0
        %v6032 = vadd.f32 0.0, %v6031
        %v6033 = vpop.f32.mrb[0].mxu0
        %v6034 = vadd.f32 0.0, %v6033
        %6035 = vmatprep.mubr.f32.mxu0 0.0
        %6036 = vmatmul.mubr.f32.gmra.mrb[0].mxu0 %v5862
        %v6037 = vpop.f32.mrb[0].mxu0
        %v6038 = vadd.f32 0.0, %v6037
        %v6039 = vpop.f32.mrb[0].mxu0
        %v6040 = vadd.f32 0.0, %v6039
        %6041 = vdwg.mxu0
        %6042 = vmatprep.subr.mxu0 %v3960
        %6043 = vmatpush1.msra.mxu0 %v3959
        %6044 = vmatprep.subr.mxu0 %v3968
        %6045 = vmatpush1.msra.mxu0 %v3967
        %6046 = vmatprep.subr.mxu0 0.0
        %6047 = vmatpush1.msra.mxu0 0.0
        %6048 = vmatprep.subr.mxu0 0.0
        %6049 = vmatpush1.msra.mxu0 0.0
        %6050 = vmatprep.subr.mxu0 0.0
        %6051 = vmatpush1.msra.mxu0 0.0
        %6052 = vmatprep.subr.mxu0 0.0
        %6053 = vmatpush1.msra.mxu0 0.0
        %6054 = vmatprep.subr.mxu0 0.0
        %6055 = vmatpush1.msra.mxu0 0.0
        %6056 = vmatprep.subr.mxu0 0.0
        %6057 = vmatpush1.msra.mxu0 0.0
        %6058 = vmatprep.subr.mxu0 0.0
        %6059 = vmatpush1.msra.mxu0 0.0
        %6060 = vmatprep.subr.mxu0 0.0
        %6061 = vmatpush1.msra.mxu0 0.0
        %6062 = vmatprep.subr.mxu0 0.0
        %6063 = vmatpush1.msra.mxu0 0.0
        %6064 = vmatprep.subr.mxu0 0.0
        %6065 = vmatpush1.msra.mxu0 0.0
        %6066 = vmatprep.subr.mxu0 0.0
        %6067 = vmatpush1.msra.mxu0 0.0
        %6068 = vmatprep.subr.mxu0 0.0
        %6069 = vmatpush1.msra.mxu0 0.0
        %6070 = vmatprep.subr.mxu0 0.0
        %6071 = vmatpush1.msra.mxu0 0.0
        %6072 = vmatprep.subr.mxu0 0.0
        %6073 = vmatpush1.msra.mxu0 0.0
        %6074 = vmatprep.subr.mxu0 0.0
        %6075 = vmatpush1.msra.mxu0 0.0
        %6076 = vmatprep.subr.mxu0 0.0
        %6077 = vmatpush1.msra.mxu0 0.0
        %6078 = vmatprep.subr.mxu0 0.0
        %6079 = vmatpush1.msra.mxu0 0.0
        %6080 = vmatprep.subr.mxu0 0.0
        %6081 = vmatpush1.msra.mxu0 0.0
        %6082 = vmatprep.subr.mxu0 0.0
        %6083 = vmatpush1.msra.mxu0 0.0
        %6084 = vmatprep.subr.mxu0 0.0
        %6085 = vmatpush1.msra.mxu0 0.0
        %6086 = vmatprep.subr.mxu0 0.0
        %6087 = vmatpush1.msra.mxu0 0.0
        %6088 = vmatprep.subr.mxu0 0.0
        %6089 = vmatpush1.msra.mxu0 0.0
        %6090 = vmatprep.subr.mxu0 0.0
        %6091 = vmatpush1.msra.mxu0 0.0
        %6092 = vmatprep.subr.mxu0 0.0
        %6093 = vmatpush1.msra.mxu0 0.0
        %6094 = vmatprep.subr.mxu0 0.0
        %6095 = vmatpush1.msra.mxu0 0.0
        %6096 = vmatprep.subr.mxu0 0.0
        %6097 = vmatpush1.msra.mxu0 0.0
        %6098 = vmatprep.subr.mxu0 0.0
        %6099 = vmatpush1.msra.mxu0 0.0
        %6100 = vmatprep.subr.mxu0 0.0
        %6101 = vmatpush1.msra.mxu0 0.0
        %6102 = vmatprep.subr.mxu0 0.0
        %6103 = vmatpush1.msra.mxu0 0.0
        %6104 = vmatprep.subr.mxu0 0.0
        %6105 = vmatpush1.msra.mxu0 0.0
        %6106 = vmatprep.mubr.f32.mxu0 0.0
        %6107 = vmatmul.mubr.f32.gmra.mrb[0].mxu0 %v5853
        %v6108 = vpop.f32.mrb[0].mxu0
        %v6109 = vadd.f32 0.0, %v6108
        %v6110 = vpop.f32.mrb[0].mxu0
        %v6111 = vadd.f32 0.0, %v6110
        %6112 = vmatprep.mubr.f32.mxu0 0.0
        %6113 = vmatmul.mubr.f32.gmra.mrb[0].mxu0 %v5856
        %v6114 = vpop.f32.mrb[0].mxu0
        %v6115 = vadd.f32 0.0, %v6114
        %v6116 = vpop.f32.mrb[0].mxu0
        %v6117 = vadd.f32 0.0, %v6116
        %6118 = vmatprep.mubr.f32.mxu0 0.0
        %6119 = vmatmul.mubr.f32.gmra.mrb[0].mxu0 %v5859
        %v6120 = vpop.f32.mrb[0].mxu0
        %v6121 = vadd.f32 0.0, %v6120
        %v6122 = vpop.f32.mrb[0].mxu0
        %v6123 = vadd.f32 0.0, %v6122
        %6124 = vmatprep.mubr.f32.mxu0 0.0
        %6125 = vmatmul.mubr.f32.gmra.mrb[0].mxu0 %v5862
        %v6126 = vpop.f32.mrb[0].mxu0
        %v6127 = vadd.f32 0.0, %v6126
        %v6128 = vpop.f32.mrb[0].mxu0
        %v6129 = vadd.f32 0.0, %v6128
        %6130 = vdwg.mxu0
        %6131 = vmatprep.subr.mxu0 %v3962
        %6132 = vmatpush1.msra.mxu0 %v3961
        %6133 = vmatprep.subr.mxu0 %v3970
        %6134 = vmatpush1.msra.mxu0 %v3969
        %6135 = vmatprep.subr.mxu0 0.0
        %6136 = vmatpush1.msra.mxu0 0.0
        %6137 = vmatprep.subr.mxu0 0.0
        %6138 = vmatpush1.msra.mxu0 0.0
        %6139 = vmatprep.subr.mxu0 0.0
        %6140 = vmatpush1.msra.mxu0 0.0
        %6141 = vmatprep.subr.mxu0 0.0
        %6142 = vmatpush1.msra.mxu0 0.0
        %6143 = vmatprep.subr.mxu0 0.0
        %6144 = vmatpush1.msra.mxu0 0.0
        %6145 = vmatprep.subr.mxu0 0.0
        %6146 = vmatpush1.msra.mxu0 0.0
        %6147 = vmatprep.subr.mxu0 0.0
        %6148 = vmatpush1.msra.mxu0 0.0
        %6149 = vmatprep.subr.mxu0 0.0
        %6150 = vmatpush1.msra.mxu0 0.0
        %6151 = vmatprep.subr.mxu0 0.0
        %6152 = vmatpush1.msra.mxu0 0.0
        %6153 = vmatprep.subr.mxu0 0.0
        %6154 = vmatpush1.msra.mxu0 0.0
        %6155 = vmatprep.subr.mxu0 0.0
        %6156 = vmatpush1.msra.mxu0 0.0
        %6157 = vmatprep.subr.mxu0 0.0
        %6158 = vmatpush1.msra.mxu0 0.0
        %6159 = vmatprep.subr.mxu0 0.0
        %6160 = vmatpush1.msra.mxu0 0.0
        %6161 = vmatprep.subr.mxu0 0.0
        %6162 = vmatpush1.msra.mxu0 0.0
        %6163 = vmatprep.subr.mxu0 0.0
        %6164 = vmatpush1.msra.mxu0 0.0
        %6165 = vmatprep.subr.mxu0 0.0
        %6166 = vmatpush1.msra.mxu0 0.0
        %6167 = vmatprep.subr.mxu0 0.0
        %6168 = vmatpush1.msra.mxu0 0.0
        %6169 = vmatprep.subr.mxu0 0.0
        %6170 = vmatpush1.msra.mxu0 0.0
        %6171 = vmatprep.subr.mxu0 0.0
        %6172 = vmatpush1.msra.mxu0 0.0
        %6173 = vmatprep.subr.mxu0 0.0
        %6174 = vmatpush1.msra.mxu0 0.0
        %6175 = vmatprep.subr.mxu0 0.0
        %6176 = vmatpush1.msra.mxu0 0.0
        %6177 = vmatprep.subr.mxu0 0.0
        %6178 = vmatpush1.msra.mxu0 0.0
        %6179 = vmatprep.subr.mxu0 0.0
        %6180 = vmatpush1.msra.mxu0 0.0
        %6181 = vmatprep.subr.mxu0 0.0
        %6182 = vmatpush1.msra.mxu0 0.0
        %6183 = vmatprep.subr.mxu0 0.0
        %6184 = vmatpush1.msra.mxu0 0.0
        %6185 = vmatprep.subr.mxu0 0.0
        %6186 = vmatpush1.msra.mxu0 0.0
        %6187 = vmatprep.subr.mxu0 0.0
        %6188 = vmatpush1.msra.mxu0 0.0
        %6189 = vmatprep.subr.mxu0 0.0
        %6190 = vmatpush1.msra.mxu0 0.0
        %6191 = vmatprep.subr.mxu0 0.0
        %6192 = vmatpush1.msra.mxu0 0.0
        %6193 = vmatprep.subr.mxu0 0.0
        %6194 = vmatpush1.msra.mxu0 0.0
        %6195 = vmatprep.mubr.f32.mxu0 0.0
        %6196 = vmatmul.mubr.f32.gmra.mrb[0].mxu0 %v5853
        %v6197 = vpop.f32.mrb[0].mxu0
        %v6198 = vadd.f32 0.0, %v6197
        %v6199 = vpop.f32.mrb[0].mxu0
        %v6200 = vadd.f32 0.0, %v6199
        %6201 = vmatprep.mubr.f32.mxu0 0.0
        %6202 = vmatmul.mubr.f32.gmra.mrb[0].mxu0 %v5856
        %v6203 = vpop.f32.mrb[0].mxu0
        %v6204 = vadd.f32 0.0, %v6203
        %v6205 = vpop.f32.mrb[0].mxu0
        %v6206 = vadd.f32 0.0, %v6205
        %6207 = vmatprep.mubr.f32.mxu0 0.0
        %6208 = vmatmul.mubr.f32.gmra.mrb[0].mxu0 %v5859
        %v6209 = vpop.f32.mrb[0].mxu0
        %v6210 = vadd.f32 0.0, %v6209
        %v6211 = vpop.f32.mrb[0].mxu0
        %v6212 = vadd.f32 0.0, %v6211
        %6213 = vmatprep.mubr.f32.mxu0 0.0
        %6214 = vmatmul.mubr.f32.gmra.mrb[0].mxu0 %v5862
        %v6215 = vpop.f32.mrb[0].mxu0
        %v6216 = vadd.f32 0.0, %v6215
        %v6217 = vpop.f32.mrb[0].mxu0
        %v6218 = vadd.f32 0.0, %v6217
        %6219 = vdwg.mxu0
        %v6220 = vadd.f32 %v5815, %v5931
        %v6221 = vadd.f32 %v5816, %v5933
        %v6222 = vadd.f32 %v5817, %v6020
        %v6223 = vadd.f32 %v5818, %v6022
        %v6224 = vadd.f32 %v5819, %v6109
        %v6225 = vadd.f32 %v5820, %v6111
        %v6226 = vadd.f32 %v5821, %v6198
        %v6227 = vadd.f32 %v5822, %v6200
        %v6228 = vadd.f32 %v5823, %v5937
        %v6229 = vadd.f32 %v5824, %v5939
        %v6230 = vadd.f32 %v5825, %v6026
        %v6231 = vadd.f32 %v5826, %v6028
        %v6232 = vadd.f32 %v5827, %v6115
        %v6233 = vadd.f32 %v5828, %v6117
        %v6234 = vadd.f32 %v5829, %v6204
        %v6235 = vadd.f32 %v5830, %v6206
        %v6236 = vadd.f32 %v5831, %v5943
        %v6237 = vadd.f32 %v5832, %v5945
        %v6238 = vadd.f32 %v5833, %v6032
        %v6239 = vadd.f32 %v5834, %v6034
        %v6240 = vadd.f32 %v5835, %v6121
        %v6241 = vadd.f32 %v5836, %v6123
        %v6242 = vadd.f32 %v5837, %v6210
        %v6243 = vadd.f32 %v5838, %v6212
        %v6244 = vadd.f32 %v5839, %v5949
        %v6245 = vadd.f32 %v5840, %v5951
        %v6246 = vadd.f32 %v5841, %v6038
        %v6247 = vadd.f32 %v5842, %v6040
        %v6248 = vadd.f32 %v5843, %v6127
        %v6249 = vadd.f32 %v5844, %v6129
        %v6250 = vadd.f32 %v5845, %v6216
        %v6251 = vadd.f32 %v5846, %v6218
        %6252 = vrot.lane.b32.xlu0 %v3955, 127
        %v6253 = vpop.permute.xlu0 %6252
        %6254 = vrot.lane.b32.xlu0 %v3956, 127
        %v6255 = vpop.permute.xlu0 %6254
        %6256 = vrot.lane.b32.xlu0 %v3957, 127
        %v6257 = vpop.permute.xlu0 %6256
        %6258 = vrot.lane.b32.xlu0 %v3958, 127
        %v6259 = vpop.permute.xlu0 %6258
        %6260 = vrot.lane.b32.xlu0 %v3959, 127
        %v6261 = vpop.permute.xlu0 %6260
        %6262 = vrot.lane.b32.xlu0 %v3960, 127
        %v6263 = vpop.permute.xlu0 %6262
        %6264 = vrot.lane.b32.xlu0 %v3961, 127
        %v6265 = vpop.permute.xlu0 %6264
        %6266 = vrot.lane.b32.xlu0 %v3962, 127
        %v6267 = vpop.permute.xlu0 %6266
        %6268 = vrot.lane.b32.xlu0 %v3963, 127
        %v6269 = vpop.permute.xlu0 %6268
        %6270 = vrot.lane.b32.xlu0 %v3964, 127
        %v6271 = vpop.permute.xlu0 %6270
        %6272 = vrot.lane.b32.xlu0 %v3965, 127
        %v6273 = vpop.permute.xlu0 %6272
        %6274 = vrot.lane.b32.xlu0 %v3966, 127
        %v6275 = vpop.permute.xlu0 %6274
        %6276 = vrot.lane.b32.xlu0 %v3967, 127
        %v6277 = vpop.permute.xlu0 %6276
        %6278 = vrot.lane.b32.xlu0 %v3968, 127
        %v6279 = vpop.permute.xlu0 %6278
        %6280 = vrot.lane.b32.xlu0 %v3969, 127
        %v6281 = vpop.permute.xlu0 %6280
        %6282 = vrot.lane.b32.xlu0 %v3970, 127
        %v6283 = vpop.permute.xlu0 %6282
        %v6284 = vsel %vm2373, %v6253, %v6255
        %v6285 = vsel %vm2373, %v6255, %v6257
        %v6286 = vsel %vm2373, %v6257, %v6259
        %v6287 = vsel %vm2373, %v6259, %v6261
        %v6288 = vsel %vm2373, %v6261, %v6263
        %v6289 = vsel %vm2373, %v6263, %v6265
        %v6290 = vsel %vm2373, %v6265, %v6267
        %v6291 = vsel %vm2373, %v6269, %v6271
        %v6292 = vsel %vm2373, %v6271, %v6273
        %v6293 = vsel %vm2373, %v6273, %v6275
        %v6294 = vsel %vm2373, %v6275, %v6277
        %v6295 = vsel %vm2373, %v6277, %v6279
        %v6296 = vsel %vm2373, %v6279, %v6281
        %v6297 = vsel %vm2373, %v6281, %v6283
        %v6314 = vsel %vm2373, %v6267, 0.0
        %v6315 = vsel %vm2373, %v6283, 0.0
        %v6316 = vsel %vm1237, %v6284, 0.0
        %v6317 = vsel %vm1238, %v6285, 0.0
        %v6318 = vsel %vm1239, %v6286, 0.0
        %v6319 = vsel %vm1240, %v6287, 0.0
        %v6320 = vsel %vm1241, %v6288, 0.0
        %v6321 = vsel %vm1242, %v6289, 0.0
        %v6322 = vsel %vm1243, %v6290, 0.0
        %v6323 = vsel %vm1244, %v6314, 0.0
        %v6324 = vsel %vm1237, %v6291, 0.0
        %v6325 = vsel %vm1238, %v6292, 0.0
        %v6326 = vsel %vm1239, %v6293, 0.0
        %v6327 = vsel %vm1240, %v6294, 0.0
        %v6328 = vsel %vm1241, %v6295, 0.0
        %v6329 = vsel %vm1242, %v6296, 0.0
        %v6330 = vsel %vm1243, %v6297, 0.0
        %v6331 = vsel %vm1244, %v6315, 0.0
        %s6332 = scalar_lea.vmem %s3, 160
        %v6333 = vld [vmem:[%s6332] sm:$0xff]
        %v6334 = vld [vmem:[%s6332 + $0x8] sm:$0xff]
        %v6335 = vld [vmem:[%s6332 + $0x10] sm:$0xff]
        %v6336 = vld [vmem:[%s6332 + $0x18] sm:$0xff]
        %v6338 = vsel %vm4140, %v6333, 0
        %v6341 = vsel %vm4140, %v6334, 0
        %v6344 = vsel %vm4140, %v6335, 0
        %v6347 = vsel %vm4140, %v6336, 0
        %6349 = vmatprep.subr.mxu0 %v6317
        %6350 = vmatpush1.msra.mxu0 %v6316
        %6351 = vmatprep.subr.mxu0 %v6325
        %6352 = vmatpush1.msra.mxu0 %v6324
        %6353 = vmatprep.subr.mxu0 0.0
        %6354 = vmatpush1.msra.mxu0 0.0
        %6355 = vmatprep.subr.mxu0 0.0
        %6356 = vmatpush1.msra.mxu0 0.0
        %6357 = vmatprep.subr.mxu0 0.0
        %6358 = vmatpush1.msra.mxu0 0.0
        %6359 = vmatprep.subr.mxu0 0.0
        %6360 = vmatpush1.msra.mxu0 0.0
        %6361 = vmatprep.subr.mxu0 0.0
        %6362 = vmatpush1.msra.mxu0 0.0
        %6363 = vmatprep.subr.mxu0 0.0
        %6364 = vmatpush1.msra.mxu0 0.0
        %6365 = vmatprep.subr.mxu0 0.0
        %6366 = vmatpush1.msra.mxu0 0.0
        %6367 = vmatprep.subr.mxu0 0.0
        %6368 = vmatpush1.msra.mxu0 0.0
        %6369 = vmatprep.subr.mxu0 0.0
        %6370 = vmatpush1.msra.mxu0 0.0
        %6371 = vmatprep.subr.mxu0 0.0
        %6372 = vmatpush1.msra.mxu0 0.0
        %6373 = vmatprep.subr.mxu0 0.0
        %6374 = vmatpush1.msra.mxu0 0.0
        %6375 = vmatprep.subr.mxu0 0.0
        %6376 = vmatpush1.msra.mxu0 0.0
        %6377 = vmatprep.subr.mxu0 0.0
        %6378 = vmatpush1.msra.mxu0 0.0
        %6379 = vmatprep.subr.mxu0 0.0
        %6380 = vmatpush1.msra.mxu0 0.0
        %6381 = vmatprep.subr.mxu0 0.0
        %6382 = vmatpush1.msra.mxu0 0.0
        %6383 = vmatprep.subr.mxu0 0.0
        %6384 = vmatpush1.msra.mxu0 0.0
        %6385 = vmatprep.subr.mxu0 0.0
        %6386 = vmatpush1.msra.mxu0 0.0
        %6387 = vmatprep.subr.mxu0 0.0
        %6388 = vmatpush1.msra.mxu0 0.0
        %6389 = vmatprep.subr.mxu0 0.0
        %6390 = vmatpush1.msra.mxu0 0.0
        %6391 = vmatprep.subr.mxu0 0.0
        %6392 = vmatpush1.msra.mxu0 0.0
        %6393 = vmatprep.subr.mxu0 0.0
        %6394 = vmatpush1.msra.mxu0 0.0
        %6395 = vmatprep.subr.mxu0 0.0
        %6396 = vmatpush1.msra.mxu0 0.0
        %6397 = vmatprep.subr.mxu0 0.0
        %6398 = vmatpush1.msra.mxu0 0.0
        %6399 = vmatprep.subr.mxu0 0.0
        %6400 = vmatpush1.msra.mxu0 0.0
        %6401 = vmatprep.subr.mxu0 0.0
        %6402 = vmatpush1.msra.mxu0 0.0
        %6403 = vmatprep.subr.mxu0 0.0
        %6404 = vmatpush1.msra.mxu0 0.0
        %6405 = vmatprep.subr.mxu0 0.0
        %6406 = vmatpush1.msra.mxu0 0.0
        %6407 = vmatprep.subr.mxu0 0.0
        %6408 = vmatpush1.msra.mxu0 0.0
        %6409 = vmatprep.subr.mxu0 0.0
        %6410 = vmatpush1.msra.mxu0 0.0
        %6411 = vmatprep.subr.mxu0 0.0
        %6412 = vmatpush1.msra.mxu0 0.0
        %6413 = vmatprep.mubr.f32.mxu0 0.0
        %6414 = vmatmul.mubr.f32.gmra.mrb[0].mxu0 %v6338
        %v6415 = vpop.f32.mrb[0].mxu0
        %v6416 = vadd.f32 0.0, %v6415
        %v6417 = vpop.f32.mrb[0].mxu0
        %v6418 = vadd.f32 0.0, %v6417
        %6419 = vmatprep.mubr.f32.mxu0 0.0
        %6420 = vmatmul.mubr.f32.gmra.mrb[0].mxu0 %v6341
        %v6421 = vpop.f32.mrb[0].mxu0
        %v6422 = vadd.f32 0.0, %v6421
        %v6423 = vpop.f32.mrb[0].mxu0
        %v6424 = vadd.f32 0.0, %v6423
        %6425 = vmatprep.mubr.f32.mxu0 0.0
        %6426 = vmatmul.mubr.f32.gmra.mrb[0].mxu0 %v6344
        %v6427 = vpop.f32.mrb[0].mxu0
        %v6428 = vadd.f32 0.0, %v6427
        %v6429 = vpop.f32.mrb[0].mxu0
        %v6430 = vadd.f32 0.0, %v6429
        %6431 = vmatprep.mubr.f32.mxu0 0.0
        %6432 = vmatmul.mubr.f32.gmra.mrb[0].mxu0 %v6347
        %v6433 = vpop.f32.mrb[0].mxu0
        %v6434 = vadd.f32 0.0, %v6433
        %v6435 = vpop.f32.mrb[0].mxu0
        %v6436 = vadd.f32 0.0, %v6435
        %6437 = vdwg.mxu0
        %6438 = vmatprep.subr.mxu0 %v6319
        %6439 = vmatpush1.msra.mxu0 %v6318
        %6440 = vmatprep.subr.mxu0 %v6327
        %6441 = vmatpush1.msra.mxu0 %v6326
        %6442 = vmatprep.subr.mxu0 0.0
        %6443 = vmatpush1.msra.mxu0 0.0
        %6444 = vmatprep.subr.mxu0 0.0
        %6445 = vmatpush1.msra.mxu0 0.0
        %6446 = vmatprep.subr.mxu0 0.0
        %6447 = vmatpush1.msra.mxu0 0.0
        %6448 = vmatprep.subr.mxu0 0.0
        %6449 = vmatpush1.msra.mxu0 0.0
        %6450 = vmatprep.subr.mxu0 0.0
        %6451 = vmatpush1.msra.mxu0 0.0
        %6452 = vmatprep.subr.mxu0 0.0
        %6453 = vmatpush1.msra.mxu0 0.0
        %6454 = vmatprep.subr.mxu0 0.0
        %6455 = vmatpush1.msra.mxu0 0.0
        %6456 = vmatprep.subr.mxu0 0.0
        %6457 = vmatpush1.msra.mxu0 0.0
        %6458 = vmatprep.subr.mxu0 0.0
        %6459 = vmatpush1.msra.mxu0 0.0
        %6460 = vmatprep.subr.mxu0 0.0
        %6461 = vmatpush1.msra.mxu0 0.0
        %6462 = vmatprep.subr.mxu0 0.0
        %6463 = vmatpush1.msra.mxu0 0.0
        %6464 = vmatprep.subr.mxu0 0.0
        %6465 = vmatpush1.msra.mxu0 0.0
        %6466 = vmatprep.subr.mxu0 0.0
        %6467 = vmatpush1.msra.mxu0 0.0
        %6468 = vmatprep.subr.mxu0 0.0
        %6469 = vmatpush1.msra.mxu0 0.0
        %6470 = vmatprep.subr.mxu0 0.0
        %6471 = vmatpush1.msra.mxu0 0.0
        %6472 = vmatprep.subr.mxu0 0.0
        %6473 = vmatpush1.msra.mxu0 0.0
        %6474 = vmatprep.subr.mxu0 0.0
        %6475 = vmatpush1.msra.mxu0 0.0
        %6476 = vmatprep.subr.mxu0 0.0
        %6477 = vmatpush1.msra.mxu0 0.0
        %6478 = vmatprep.subr.mxu0 0.0
        %6479 = vmatpush1.msra.mxu0 0.0
        %6480 = vmatprep.subr.mxu0 0.0
        %6481 = vmatpush1.msra.mxu0 0.0
        %6482 = vmatprep.subr.mxu0 0.0
        %6483 = vmatpush1.msra.mxu0 0.0
        %6484 = vmatprep.subr.mxu0 0.0
        %6485 = vmatpush1.msra.mxu0 0.0
        %6486 = vmatprep.subr.mxu0 0.0
        %6487 = vmatpush1.msra.mxu0 0.0
        %6488 = vmatprep.subr.mxu0 0.0
        %6489 = vmatpush1.msra.mxu0 0.0
        %6490 = vmatprep.subr.mxu0 0.0
        %6491 = vmatpush1.msra.mxu0 0.0
        %6492 = vmatprep.subr.mxu0 0.0
        %6493 = vmatpush1.msra.mxu0 0.0
        %6494 = vmatprep.subr.mxu0 0.0
        %6495 = vmatpush1.msra.mxu0 0.0
        %6496 = vmatprep.subr.mxu0 0.0
        %6497 = vmatpush1.msra.mxu0 0.0
        %6498 = vmatprep.subr.mxu0 0.0
        %6499 = vmatpush1.msra.mxu0 0.0
        %6500 = vmatprep.subr.mxu0 0.0
        %6501 = vmatpush1.msra.mxu0 0.0
        %6502 = vmatprep.mubr.f32.mxu0 0.0
        %6503 = vmatmul.mubr.f32.gmra.mrb[0].mxu0 %v6338
        %v6504 = vpop.f32.mrb[0].mxu0
        %v6505 = vadd.f32 0.0, %v6504
        %v6506 = vpop.f32.mrb[0].mxu0
        %v6507 = vadd.f32 0.0, %v6506
        %6508 = vmatprep.mubr.f32.mxu0 0.0
        %6509 = vmatmul.mubr.f32.gmra.mrb[0].mxu0 %v6341
        %v6510 = vpop.f32.mrb[0].mxu0
        %v6511 = vadd.f32 0.0, %v6510
        %v6512 = vpop.f32.mrb[0].mxu0
        %v6513 = vadd.f32 0.0, %v6512
        %6514 = vmatprep.mubr.f32.mxu0 0.0
        %6515 = vmatmul.mubr.f32.gmra.mrb[0].mxu0 %v6344
        %v6516 = vpop.f32.mrb[0].mxu0
        %v6517 = vadd.f32 0.0, %v6516
        %v6518 = vpop.f32.mrb[0].mxu0
        %v6519 = vadd.f32 0.0, %v6518
        %6520 = vmatprep.mubr.f32.mxu0 0.0
        %6521 = vmatmul.mubr.f32.gmra.mrb[0].mxu0 %v6347
        %v6522 = vpop.f32.mrb[0].mxu0
        %v6523 = vadd.f32 0.0, %v6522
        %v6524 = vpop.f32.mrb[0].mxu0
        %v6525 = vadd.f32 0.0, %v6524
        %6526 = vdwg.mxu0
        %6527 = vmatprep.subr.mxu0 %v6321
        %6528 = vmatpush1.msra.mxu0 %v6320
        %6529 = vmatprep.subr.mxu0 %v6329
        %6530 = vmatpush1.msra.mxu0 %v6328
        %6531 = vmatprep.subr.mxu0 0.0
        %6532 = vmatpush1.msra.mxu0 0.0
        %6533 = vmatprep.subr.mxu0 0.0
        %6534 = vmatpush1.msra.mxu0 0.0
        %6535 = vmatprep.subr.mxu0 0.0
        %6536 = vmatpush1.msra.mxu0 0.0
        %6537 = vmatprep.subr.mxu0 0.0
        %6538 = vmatpush1.msra.mxu0 0.0
        %6539 = vmatprep.subr.mxu0 0.0
        %6540 = vmatpush1.msra.mxu0 0.0
        %6541 = vmatprep.subr.mxu0 0.0
        %6542 = vmatpush1.msra.mxu0 0.0
        %6543 = vmatprep.subr.mxu0 0.0
        %6544 = vmatpush1.msra.mxu0 0.0
        %6545 = vmatprep.subr.mxu0 0.0
        %6546 = vmatpush1.msra.mxu0 0.0
        %6547 = vmatprep.subr.mxu0 0.0
        %6548 = vmatpush1.msra.mxu0 0.0
        %6549 = vmatprep.subr.mxu0 0.0
        %6550 = vmatpush1.msra.mxu0 0.0
        %6551 = vmatprep.subr.mxu0 0.0
        %6552 = vmatpush1.msra.mxu0 0.0
        %6553 = vmatprep.subr.mxu0 0.0
        %6554 = vmatpush1.msra.mxu0 0.0
        %6555 = vmatprep.subr.mxu0 0.0
        %6556 = vmatpush1.msra.mxu0 0.0
        %6557 = vmatprep.subr.mxu0 0.0
        %6558 = vmatpush1.msra.mxu0 0.0
        %6559 = vmatprep.subr.mxu0 0.0
        %6560 = vmatpush1.msra.mxu0 0.0
        %6561 = vmatprep.subr.mxu0 0.0
        %6562 = vmatpush1.msra.mxu0 0.0
        %6563 = vmatprep.subr.mxu0 0.0
        %6564 = vmatpush1.msra.mxu0 0.0
        %6565 = vmatprep.subr.mxu0 0.0
        %6566 = vmatpush1.msra.mxu0 0.0
        %6567 = vmatprep.subr.mxu0 0.0
        %6568 = vmatpush1.msra.mxu0 0.0
        %6569 = vmatprep.subr.mxu0 0.0
        %6570 = vmatpush1.msra.mxu0 0.0
        %6571 = vmatprep.subr.mxu0 0.0
        %6572 = vmatpush1.msra.mxu0 0.0
        %6573 = vmatprep.subr.mxu0 0.0
        %6574 = vmatpush1.msra.mxu0 0.0
        %6575 = vmatprep.subr.mxu0 0.0
        %6576 = vmatpush1.msra.mxu0 0.0
        %6577 = vmatprep.subr.mxu0 0.0
        %6578 = vmatpush1.msra.mxu0 0.0
        %6579 = vmatprep.subr.mxu0 0.0
        %6580 = vmatpush1.msra.mxu0 0.0
        %6581 = vmatprep.subr.mxu0 0.0
        %6582 = vmatpush1.msra.mxu0 0.0
        %6583 = vmatprep.subr.mxu0 0.0
        %6584 = vmatpush1.msra.mxu0 0.0
        %6585 = vmatprep.subr.mxu0 0.0
        %6586 = vmatpush1.msra.mxu0 0.0
        %6587 = vmatprep.subr.mxu0 0.0
        %6588 = vmatpush1.msra.mxu0 0.0
        %6589 = vmatprep.subr.mxu0 0.0
        %6590 = vmatpush1.msra.mxu0 0.0
        %6591 = vmatprep.mubr.f32.mxu0 0.0
        %6592 = vmatmul.mubr.f32.gmra.mrb[0].mxu0 %v6338
        %v6593 = vpop.f32.mrb[0].mxu0
        %v6594 = vadd.f32 0.0, %v6593
        %v6595 = vpop.f32.mrb[0].mxu0
        %v6596 = vadd.f32 0.0, %v6595
        %6597 = vmatprep.mubr.f32.mxu0 0.0
        %6598 = vmatmul.mubr.f32.gmra.mrb[0].mxu0 %v6341
        %v6599 = vpop.f32.mrb[0].mxu0
        %v6600 = vadd.f32 0.0, %v6599
        %v6601 = vpop.f32.mrb[0].mxu0
        %v6602 = vadd.f32 0.0, %v6601
        %6603 = vmatprep.mubr.f32.mxu0 0.0
        %6604 = vmatmul.mubr.f32.gmra.mrb[0].mxu0 %v6344
        %v6605 = vpop.f32.mrb[0].mxu0
        %v6606 = vadd.f32 0.0, %v6605
        %v6607 = vpop.f32.mrb[0].mxu0
        %v6608 = vadd.f32 0.0, %v6607
        %6609 = vmatprep.mubr.f32.mxu0 0.0
        %6610 = vmatmul.mubr.f32.gmra.mrb[0].mxu0 %v6347
        %v6611 = vpop.f32.mrb[0].mxu0
        %v6612 = vadd.f32 0.0, %v6611
        %v6613 = vpop.f32.mrb[0].mxu0
        %v6614 = vadd.f32 0.0, %v6613
        %6615 = vdwg.mxu0
        %6616 = vmatprep.subr.mxu0 %v6323
        %6617 = vmatpush1.msra.mxu0 %v6322
        %6618 = vmatprep.subr.mxu0 %v6331
        %6619 = vmatpush1.msra.mxu0 %v6330
        %6620 = vmatprep.subr.mxu0 0.0
        %6621 = vmatpush1.msra.mxu0 0.0
        %6622 = vmatprep.subr.mxu0 0.0
        %6623 = vmatpush1.msra.mxu0 0.0
        %6624 = vmatprep.subr.mxu0 0.0
        %6625 = vmatpush1.msra.mxu0 0.0
        %6626 = vmatprep.subr.mxu0 0.0
        %6627 = vmatpush1.msra.mxu0 0.0
        %6628 = vmatprep.subr.mxu0 0.0
        %6629 = vmatpush1.msra.mxu0 0.0
        %6630 = vmatprep.subr.mxu0 0.0
        %6631 = vmatpush1.msra.mxu0 0.0
        %6632 = vmatprep.subr.mxu0 0.0
        %6633 = vmatpush1.msra.mxu0 0.0
        %6634 = vmatprep.subr.mxu0 0.0
        %6635 = vmatpush1.msra.mxu0 0.0
        %6636 = vmatprep.subr.mxu0 0.0
        %6637 = vmatpush1.msra.mxu0 0.0
        %6638 = vmatprep.subr.mxu0 0.0
        %6639 = vmatpush1.msra.mxu0 0.0
        %6640 = vmatprep.subr.mxu0 0.0
        %6641 = vmatpush1.msra.mxu0 0.0
        %6642 = vmatprep.subr.mxu0 0.0
        %6643 = vmatpush1.msra.mxu0 0.0
        %6644 = vmatprep.subr.mxu0 0.0
        %6645 = vmatpush1.msra.mxu0 0.0
        %6646 = vmatprep.subr.mxu0 0.0
        %6647 = vmatpush1.msra.mxu0 0.0
        %6648 = vmatprep.subr.mxu0 0.0
        %6649 = vmatpush1.msra.mxu0 0.0
        %6650 = vmatprep.subr.mxu0 0.0
        %6651 = vmatpush1.msra.mxu0 0.0
        %6652 = vmatprep.subr.mxu0 0.0
        %6653 = vmatpush1.msra.mxu0 0.0
        %6654 = vmatprep.subr.mxu0 0.0
        %6655 = vmatpush1.msra.mxu0 0.0
        %6656 = vmatprep.subr.mxu0 0.0
        %6657 = vmatpush1.msra.mxu0 0.0
        %6658 = vmatprep.subr.mxu0 0.0
        %6659 = vmatpush1.msra.mxu0 0.0
        %6660 = vmatprep.subr.mxu0 0.0
        %6661 = vmatpush1.msra.mxu0 0.0
        %6662 = vmatprep.subr.mxu0 0.0
        %6663 = vmatpush1.msra.mxu0 0.0
        %6664 = vmatprep.subr.mxu0 0.0
        %6665 = vmatpush1.msra.mxu0 0.0
        %6666 = vmatprep.subr.mxu0 0.0
        %6667 = vmatpush1.msra.mxu0 0.0
        %6668 = vmatprep.subr.mxu0 0.0
        %6669 = vmatpush1.msra.mxu0 0.0
        %6670 = vmatprep.subr.mxu0 0.0
        %6671 = vmatpush1.msra.mxu0 0.0
        %6672 = vmatprep.subr.mxu0 0.0
        %6673 = vmatpush1.msra.mxu0 0.0
        %6674 = vmatprep.subr.mxu0 0.0
        %6675 = vmatpush1.msra.mxu0 0.0
        %6676 = vmatprep.subr.mxu0 0.0
        %6677 = vmatpush1.msra.mxu0 0.0
        %6678 = vmatprep.subr.mxu0 0.0
        %6679 = vmatpush1.msra.mxu0 0.0
        %6680 = vmatprep.mubr.f32.mxu0 0.0
        %6681 = vmatmul.mubr.f32.gmra.mrb[0].mxu0 %v6338
        %v6682 = vpop.f32.mrb[0].mxu0
        %v6683 = vadd.f32 0.0, %v6682
        %v6684 = vpop.f32.mrb[0].mxu0
        %v6685 = vadd.f32 0.0, %v6684
        %6686 = vmatprep.mubr.f32.mxu0 0.0
        %6687 = vmatmul.mubr.f32.gmra.mrb[0].mxu0 %v6341
        %v6688 = vpop.f32.mrb[0].mxu0
        %v6689 = vadd.f32 0.0, %v6688
        %v6690 = vpop.f32.mrb[0].mxu0
        %v6691 = vadd.f32 0.0, %v6690
        %6692 = vmatprep.mubr.f32.mxu0 0.0
        %6693 = vmatmul.mubr.f32.gmra.mrb[0].mxu0 %v6344
        %v6694 = vpop.f32.mrb[0].mxu0
        %v6695 = vadd.f32 0.0, %v6694
        %v6696 = vpop.f32.mrb[0].mxu0
        %v6697 = vadd.f32 0.0, %v6696
        %6698 = vmatprep.mubr.f32.mxu0 0.0
        %6699 = vmatmul.mubr.f32.gmra.mrb[0].mxu0 %v6347
        %v6700 = vpop.f32.mrb[0].mxu0
        %v6701 = vadd.f32 0.0, %v6700
        %v6702 = vpop.f32.mrb[0].mxu0
        %v6703 = vadd.f32 0.0, %v6702
        %6704 = vdwg.mxu0
        %v6705 = vadd.f32 %v6220, %v6416
        %v6706 = vadd.f32 %v6221, %v6418
        %v6707 = vadd.f32 %v6222, %v6505
        %v6708 = vadd.f32 %v6223, %v6507
        %v6709 = vadd.f32 %v6224, %v6594
        %v6710 = vadd.f32 %v6225, %v6596
        %v6711 = vadd.f32 %v6226, %v6683
        %v6712 = vadd.f32 %v6227, %v6685
        %v6713 = vadd.f32 %v6228, %v6422
        %v6714 = vadd.f32 %v6229, %v6424
        %v6715 = vadd.f32 %v6230, %v6511
        %v6716 = vadd.f32 %v6231, %v6513
        %v6717 = vadd.f32 %v6232, %v6600
        %v6718 = vadd.f32 %v6233, %v6602
        %v6719 = vadd.f32 %v6234, %v6689
        %v6720 = vadd.f32 %v6235, %v6691
        %v6721 = vadd.f32 %v6236, %v6428
        %v6722 = vadd.f32 %v6237, %v6430
        %v6723 = vadd.f32 %v6238, %v6517
        %v6724 = vadd.f32 %v6239, %v6519
        %v6725 = vadd.f32 %v6240, %v6606
        %v6726 = vadd.f32 %v6241, %v6608
        %v6727 = vadd.f32 %v6242, %v6695
        %v6728 = vadd.f32 %v6243, %v6697
        %v6729 = vadd.f32 %v6244, %v6434
        %v6730 = vadd.f32 %v6245, %v6436
        %v6731 = vadd.f32 %v6246, %v6523
        %v6732 = vadd.f32 %v6247, %v6525
        %v6733 = vadd.f32 %v6248, %v6612
        %v6734 = vadd.f32 %v6249, %v6614
        %v6735 = vadd.f32 %v6250, %v6701
        %v6736 = vadd.f32 %v6251, %v6703
        %6737 = vrot.lane.b32.xlu0 %v3955, 97
        %v6738 = vpop.permute.xlu0 %6737
        %6739 = vrot.lane.b32.xlu0 %v3956, 97
        %v6740 = vpop.permute.xlu0 %6739
        %6741 = vrot.lane.b32.xlu0 %v3957, 97
        %v6742 = vpop.permute.xlu0 %6741
        %6743 = vrot.lane.b32.xlu0 %v3958, 97
        %v6744 = vpop.permute.xlu0 %6743
        %6745 = vrot.lane.b32.xlu0 %v3959, 97
        %v6746 = vpop.permute.xlu0 %6745
        %6747 = vrot.lane.b32.xlu0 %v3960, 97
        %v6748 = vpop.permute.xlu0 %6747
        %6749 = vrot.lane.b32.xlu0 %v3961, 97
        %v6750 = vpop.permute.xlu0 %6749
        %6751 = vrot.lane.b32.xlu0 %v3962, 97
        %v6752 = vpop.permute.xlu0 %6751
        %6753 = vrot.lane.b32.xlu0 %v3963, 97
        %v6754 = vpop.permute.xlu0 %6753
        %6755 = vrot.lane.b32.xlu0 %v3964, 97
        %v6756 = vpop.permute.xlu0 %6755
        %6757 = vrot.lane.b32.xlu0 %v3965, 97
        %v6758 = vpop.permute.xlu0 %6757
        %6759 = vrot.lane.b32.xlu0 %v3966, 97
        %v6760 = vpop.permute.xlu0 %6759
        %6761 = vrot.lane.b32.xlu0 %v3967, 97
        %v6762 = vpop.permute.xlu0 %6761
        %6763 = vrot.lane.b32.xlu0 %v3968, 97
        %v6764 = vpop.permute.xlu0 %6763
        %6765 = vrot.lane.b32.xlu0 %v3969, 97
        %v6766 = vpop.permute.xlu0 %6765
        %6767 = vrot.lane.b32.xlu0 %v3970, 97
        %v6768 = vpop.permute.xlu0 %6767
        %v6769 = vsel %vm2771, %v6738, %v6740
        %v6770 = vsel %vm2771, %v6740, %v6742
        %v6771 = vsel %vm2771, %v6742, %v6744
        %v6772 = vsel %vm2771, %v6744, %v6746
        %v6773 = vsel %vm2771, %v6746, %v6748
        %v6774 = vsel %vm2771, %v6748, %v6750
        %v6775 = vsel %vm2771, %v6750, %v6752
        %v6776 = vsel %vm2771, %v6754, %v6756
        %v6777 = vsel %vm2771, %v6756, %v6758
        %v6778 = vsel %vm2771, %v6758, %v6760
        %v6779 = vsel %vm2771, %v6760, %v6762
        %v6780 = vsel %vm2771, %v6762, %v6764
        %v6781 = vsel %vm2771, %v6764, %v6766
        %v6782 = vsel %vm2771, %v6766, %v6768
        %v6799 = vsel %vm2771, %v6752, 0.0
        %v6800 = vsel %vm2771, %v6768, 0.0
        %v6801 = vsel %vm478, %v6769, 0.0
        %v6802 = vsel %vm479, %v6770, 0.0
        %v6803 = vsel %vm480, %v6771, 0.0
        %v6804 = vsel %vm481, %v6772, 0.0
        %v6805 = vsel %vm482, %v6773, 0.0
        %v6806 = vsel %vm483, %v6774, 0.0
        %v6807 = vsel %vm484, %v6775, 0.0
        %v6808 = vsel %vm485, %v6799, 0.0
        %v6809 = vsel %vm478, %v6776, 0.0
        %v6810 = vsel %vm479, %v6777, 0.0
        %v6811 = vsel %vm480, %v6778, 0.0
        %v6812 = vsel %vm481, %v6779, 0.0
        %v6813 = vsel %vm482, %v6780, 0.0
        %v6814 = vsel %vm483, %v6781, 0.0
        %v6815 = vsel %vm484, %v6782, 0.0
        %v6816 = vsel %vm485, %v6800, 0.0
        %s6817 = scalar_lea.vmem %s3, 192
        %v6818 = vld [vmem:[%s6817] sm:$0xff]
        %v6819 = vld [vmem:[%s6817 + $0x8] sm:$0xff]
        %v6820 = vld [vmem:[%s6817 + $0x10] sm:$0xff]
        %v6821 = vld [vmem:[%s6817 + $0x18] sm:$0xff]
        %v6823 = vsel %vm4140, %v6818, 0
        %v6826 = vsel %vm4140, %v6819, 0
        %v6829 = vsel %vm4140, %v6820, 0
        %v6832 = vsel %vm4140, %v6821, 0
        %6834 = vmatprep.subr.mxu0 %v6802
        %6835 = vmatpush1.msra.mxu0 %v6801
        %6836 = vmatprep.subr.mxu0 %v6810
        %6837 = vmatpush1.msra.mxu0 %v6809
        %6838 = vmatprep.subr.mxu0 0.0
        %6839 = vmatpush1.msra.mxu0 0.0
        %6840 = vmatprep.subr.mxu0 0.0
        %6841 = vmatpush1.msra.mxu0 0.0
        %6842 = vmatprep.subr.mxu0 0.0
        %6843 = vmatpush1.msra.mxu0 0.0
        %6844 = vmatprep.subr.mxu0 0.0
        %6845 = vmatpush1.msra.mxu0 0.0
        %6846 = vmatprep.subr.mxu0 0.0
        %6847 = vmatpush1.msra.mxu0 0.0
        %6848 = vmatprep.subr.mxu0 0.0
        %6849 = vmatpush1.msra.mxu0 0.0
        %6850 = vmatprep.subr.mxu0 0.0
        %6851 = vmatpush1.msra.mxu0 0.0
        %6852 = vmatprep.subr.mxu0 0.0
        %6853 = vmatpush1.msra.mxu0 0.0
        %6854 = vmatprep.subr.mxu0 0.0
        %6855 = vmatpush1.msra.mxu0 0.0
        %6856 = vmatprep.subr.mxu0 0.0
        %6857 = vmatpush1.msra.mxu0 0.0
        %6858 = vmatprep.subr.mxu0 0.0
        %6859 = vmatpush1.msra.mxu0 0.0
        %6860 = vmatprep.subr.mxu0 0.0
        %6861 = vmatpush1.msra.mxu0 0.0
        %6862 = vmatprep.subr.mxu0 0.0
        %6863 = vmatpush1.msra.mxu0 0.0
        %6864 = vmatprep.subr.mxu0 0.0
        %6865 = vmatpush1.msra.mxu0 0.0
        %6866 = vmatprep.subr.mxu0 0.0
        %6867 = vmatpush1.msra.mxu0 0.0
        %6868 = vmatprep.subr.mxu0 0.0
        %6869 = vmatpush1.msra.mxu0 0.0
        %6870 = vmatprep.subr.mxu0 0.0
        %6871 = vmatpush1.msra.mxu0 0.0
        %6872 = vmatprep.subr.mxu0 0.0
        %6873 = vmatpush1.msra.mxu0 0.0
        %6874 = vmatprep.subr.mxu0 0.0
        %6875 = vmatpush1.msra.mxu0 0.0
        %6876 = vmatprep.subr.mxu0 0.0
        %6877 = vmatpush1.msra.mxu0 0.0
        %6878 = vmatprep.subr.mxu0 0.0
        %6879 = vmatpush1.msra.mxu0 0.0
        %6880 = vmatprep.subr.mxu0 0.0
        %6881 = vmatpush1.msra.mxu0 0.0
        %6882 = vmatprep.subr.mxu0 0.0
        %6883 = vmatpush1.msra.mxu0 0.0
        %6884 = vmatprep.subr.mxu0 0.0
        %6885 = vmatpush1.msra.mxu0 0.0
        %6886 = vmatprep.subr.mxu0 0.0
        %6887 = vmatpush1.msra.mxu0 0.0
        %6888 = vmatprep.subr.mxu0 0.0
        %6889 = vmatpush1.msra.mxu0 0.0
        %6890 = vmatprep.subr.mxu0 0.0
        %6891 = vmatpush1.msra.mxu0 0.0
        %6892 = vmatprep.subr.mxu0 0.0
        %6893 = vmatpush1.msra.mxu0 0.0
        %6894 = vmatprep.subr.mxu0 0.0
        %6895 = vmatpush1.msra.mxu0 0.0
        %6896 = vmatprep.subr.mxu0 0.0
        %6897 = vmatpush1.msra.mxu0 0.0
        %6898 = vmatprep.mubr.f32.mxu0 0.0
        %6899 = vmatmul.mubr.f32.gmra.mrb[0].mxu0 %v6823
        %v6900 = vpop.f32.mrb[0].mxu0
        %v6901 = vadd.f32 0.0, %v6900
        %v6902 = vpop.f32.mrb[0].mxu0
        %v6903 = vadd.f32 0.0, %v6902
        %6904 = vmatprep.mubr.f32.mxu0 0.0
        %6905 = vmatmul.mubr.f32.gmra.mrb[0].mxu0 %v6826
        %v6906 = vpop.f32.mrb[0].mxu0
        %v6907 = vadd.f32 0.0, %v6906
        %v6908 = vpop.f32.mrb[0].mxu0
        %v6909 = vadd.f32 0.0, %v6908
        %6910 = vmatprep.mubr.f32.mxu0 0.0
        %6911 = vmatmul.mubr.f32.gmra.mrb[0].mxu0 %v6829
        %v6912 = vpop.f32.mrb[0].mxu0
        %v6913 = vadd.f32 0.0, %v6912
        %v6914 = vpop.f32.mrb[0].mxu0
        %v6915 = vadd.f32 0.0, %v6914
        %6916 = vmatprep.mubr.f32.mxu0 0.0
        %6917 = vmatmul.mubr.f32.gmra.mrb[0].mxu0 %v6832
        %v6918 = vpop.f32.mrb[0].mxu0
        %v6919 = vadd.f32 0.0, %v6918
        %v6920 = vpop.f32.mrb[0].mxu0
        %v6921 = vadd.f32 0.0, %v6920
        %6922 = vdwg.mxu0
        %6923 = vmatprep.subr.mxu0 %v6804
        %6924 = vmatpush1.msra.mxu0 %v6803
        %6925 = vmatprep.subr.mxu0 %v6812
        %6926 = vmatpush1.msra.mxu0 %v6811
        %6927 = vmatprep.subr.mxu0 0.0
        %6928 = vmatpush1.msra.mxu0 0.0
        %6929 = vmatprep.subr.mxu0 0.0
        %6930 = vmatpush1.msra.mxu0 0.0
        %6931 = vmatprep.subr.mxu0 0.0
        %6932 = vmatpush1.msra.mxu0 0.0
        %6933 = vmatprep.subr.mxu0 0.0
        %6934 = vmatpush1.msra.mxu0 0.0
        %6935 = vmatprep.subr.mxu0 0.0
        %6936 = vmatpush1.msra.mxu0 0.0
        %6937 = vmatprep.subr.mxu0 0.0
        %6938 = vmatpush1.msra.mxu0 0.0
        %6939 = vmatprep.subr.mxu0 0.0
        %6940 = vmatpush1.msra.mxu0 0.0
        %6941 = vmatprep.subr.mxu0 0.0
        %6942 = vmatpush1.msra.mxu0 0.0
        %6943 = vmatprep.subr.mxu0 0.0
        %6944 = vmatpush1.msra.mxu0 0.0
        %6945 = vmatprep.subr.mxu0 0.0
        %6946 = vmatpush1.msra.mxu0 0.0
        %6947 = vmatprep.subr.mxu0 0.0
        %6948 = vmatpush1.msra.mxu0 0.0
        %6949 = vmatprep.subr.mxu0 0.0
        %6950 = vmatpush1.msra.mxu0 0.0
        %6951 = vmatprep.subr.mxu0 0.0
        %6952 = vmatpush1.msra.mxu0 0.0
        %6953 = vmatprep.subr.mxu0 0.0
        %6954 = vmatpush1.msra.mxu0 0.0
        %6955 = vmatprep.subr.mxu0 0.0
        %6956 = vmatpush1.msra.mxu0 0.0
        %6957 = vmatprep.subr.mxu0 0.0
        %6958 = vmatpush1.msra.mxu0 0.0
        %6959 = vmatprep.subr.mxu0 0.0
        %6960 = vmatpush1.msra.mxu0 0.0
        %6961 = vmatprep.subr.mxu0 0.0
        %6962 = vmatpush1.msra.mxu0 0.0
        %6963 = vmatprep.subr.mxu0 0.0
        %6964 = vmatpush1.msra.mxu0 0.0
        %6965 = vmatprep.subr.mxu0 0.0
        %6966 = vmatpush1.msra.mxu0 0.0
        %6967 = vmatprep.subr.mxu0 0.0
        %6968 = vmatpush1.msra.mxu0 0.0
        %6969 = vmatprep.subr.mxu0 0.0
        %6970 = vmatpush1.msra.mxu0 0.0
        %6971 = vmatprep.subr.mxu0 0.0
        %6972 = vmatpush1.msra.mxu0 0.0
        %6973 = vmatprep.subr.mxu0 0.0
        %6974 = vmatpush1.msra.mxu0 0.0
        %6975 = vmatprep.subr.mxu0 0.0
        %6976 = vmatpush1.msra.mxu0 0.0
        %6977 = vmatprep.subr.mxu0 0.0
        %6978 = vmatpush1.msra.mxu0 0.0
        %6979 = vmatprep.subr.mxu0 0.0
        %6980 = vmatpush1.msra.mxu0 0.0
        %6981 = vmatprep.subr.mxu0 0.0
        %6982 = vmatpush1.msra.mxu0 0.0
        %6983 = vmatprep.subr.mxu0 0.0
        %6984 = vmatpush1.msra.mxu0 0.0
        %6985 = vmatprep.subr.mxu0 0.0
        %6986 = vmatpush1.msra.mxu0 0.0
        %6987 = vmatprep.mubr.f32.mxu0 0.0
        %6988 = vmatmul.mubr.f32.gmra.mrb[0].mxu0 %v6823
        %v6989 = vpop.f32.mrb[0].mxu0
        %v6990 = vadd.f32 0.0, %v6989
        %v6991 = vpop.f32.mrb[0].mxu0
        %v6992 = vadd.f32 0.0, %v6991
        %6993 = vmatprep.mubr.f32.mxu0 0.0
        %6994 = vmatmul.mubr.f32.gmra.mrb[0].mxu0 %v6826
        %v6995 = vpop.f32.mrb[0].mxu0
        %v6996 = vadd.f32 0.0, %v6995
        %v6997 = vpop.f32.mrb[0].mxu0
        %v6998 = vadd.f32 0.0, %v6997
        %6999 = vmatprep.mubr.f32.mxu0 0.0
        %7000 = vmatmul.mubr.f32.gmra.mrb[0].mxu0 %v6829
        %v7001 = vpop.f32.mrb[0].mxu0
        %v7002 = vadd.f32 0.0, %v7001
        %v7003 = vpop.f32.mrb[0].mxu0
        %v7004 = vadd.f32 0.0, %v7003
        %7005 = vmatprep.mubr.f32.mxu0 0.0
        %7006 = vmatmul.mubr.f32.gmra.mrb[0].mxu0 %v6832
        %v7007 = vpop.f32.mrb[0].mxu0
        %v7008 = vadd.f32 0.0, %v7007
        %v7009 = vpop.f32.mrb[0].mxu0
        %v7010 = vadd.f32 0.0, %v7009
        %7011 = vdwg.mxu0
        %7012 = vmatprep.subr.mxu0 %v6806
        %7013 = vmatpush1.msra.mxu0 %v6805
        %7014 = vmatprep.subr.mxu0 %v6814
        %7015 = vmatpush1.msra.mxu0 %v6813
        %7016 = vmatprep.subr.mxu0 0.0
        %7017 = vmatpush1.msra.mxu0 0.0
        %7018 = vmatprep.subr.mxu0 0.0
        %7019 = vmatpush1.msra.mxu0 0.0
        %7020 = vmatprep.subr.mxu0 0.0
        %7021 = vmatpush1.msra.mxu0 0.0
        %7022 = vmatprep.subr.mxu0 0.0
        %7023 = vmatpush1.msra.mxu0 0.0
        %7024 = vmatprep.subr.mxu0 0.0
        %7025 = vmatpush1.msra.mxu0 0.0
        %7026 = vmatprep.subr.mxu0 0.0
        %7027 = vmatpush1.msra.mxu0 0.0
        %7028 = vmatprep.subr.mxu0 0.0
        %7029 = vmatpush1.msra.mxu0 0.0
        %7030 = vmatprep.subr.mxu0 0.0
        %7031 = vmatpush1.msra.mxu0 0.0
        %7032 = vmatprep.subr.mxu0 0.0
        %7033 = vmatpush1.msra.mxu0 0.0
        %7034 = vmatprep.subr.mxu0 0.0
        %7035 = vmatpush1.msra.mxu0 0.0
        %7036 = vmatprep.subr.mxu0 0.0
        %7037 = vmatpush1.msra.mxu0 0.0
        %7038 = vmatprep.subr.mxu0 0.0
        %7039 = vmatpush1.msra.mxu0 0.0
        %7040 = vmatprep.subr.mxu0 0.0
        %7041 = vmatpush1.msra.mxu0 0.0
        %7042 = vmatprep.subr.mxu0 0.0
        %7043 = vmatpush1.msra.mxu0 0.0
        %7044 = vmatprep.subr.mxu0 0.0
        %7045 = vmatpush1.msra.mxu0 0.0
        %7046 = vmatprep.subr.mxu0 0.0
        %7047 = vmatpush1.msra.mxu0 0.0
        %7048 = vmatprep.subr.mxu0 0.0
        %7049 = vmatpush1.msra.mxu0 0.0
        %7050 = vmatprep.subr.mxu0 0.0
        %7051 = vmatpush1.msra.mxu0 0.0
        %7052 = vmatprep.subr.mxu0 0.0
        %7053 = vmatpush1.msra.mxu0 0.0
        %7054 = vmatprep.subr.mxu0 0.0
        %7055 = vmatpush1.msra.mxu0 0.0
        %7056 = vmatprep.subr.mxu0 0.0
        %7057 = vmatpush1.msra.mxu0 0.0
        %7058 = vmatprep.subr.mxu0 0.0
        %7059 = vmatpush1.msra.mxu0 0.0
        %7060 = vmatprep.subr.mxu0 0.0
        %7061 = vmatpush1.msra.mxu0 0.0
        %7062 = vmatprep.subr.mxu0 0.0
        %7063 = vmatpush1.msra.mxu0 0.0
        %7064 = vmatprep.subr.mxu0 0.0
        %7065 = vmatpush1.msra.mxu0 0.0
        %7066 = vmatprep.subr.mxu0 0.0
        %7067 = vmatpush1.msra.mxu0 0.0
        %7068 = vmatprep.subr.mxu0 0.0
        %7069 = vmatpush1.msra.mxu0 0.0
        %7070 = vmatprep.subr.mxu0 0.0
        %7071 = vmatpush1.msra.mxu0 0.0
        %7072 = vmatprep.subr.mxu0 0.0
        %7073 = vmatpush1.msra.mxu0 0.0
        %7074 = vmatprep.subr.mxu0 0.0
        %7075 = vmatpush1.msra.mxu0 0.0
        %7076 = vmatprep.mubr.f32.mxu0 0.0
        %7077 = vmatmul.mubr.f32.gmra.mrb[0].mxu0 %v6823
        %v7078 = vpop.f32.mrb[0].mxu0
        %v7079 = vadd.f32 0.0, %v7078
        %v7080 = vpop.f32.mrb[0].mxu0
        %v7081 = vadd.f32 0.0, %v7080
        %7082 = vmatprep.mubr.f32.mxu0 0.0
        %7083 = vmatmul.mubr.f32.gmra.mrb[0].mxu0 %v6826
        %v7084 = vpop.f32.mrb[0].mxu0
        %v7085 = vadd.f32 0.0, %v7084
        %v7086 = vpop.f32.mrb[0].mxu0
        %v7087 = vadd.f32 0.0, %v7086
        %7088 = vmatprep.mubr.f32.mxu0 0.0
        %7089 = vmatmul.mubr.f32.gmra.mrb[0].mxu0 %v6829
        %v7090 = vpop.f32.mrb[0].mxu0
        %v7091 = vadd.f32 0.0, %v7090
        %v7092 = vpop.f32.mrb[0].mxu0
        %v7093 = vadd.f32 0.0, %v7092
        %7094 = vmatprep.mubr.f32.mxu0 0.0
        %7095 = vmatmul.mubr.f32.gmra.mrb[0].mxu0 %v6832
        %v7096 = vpop.f32.mrb[0].mxu0
        %v7097 = vadd.f32 0.0, %v7096
        %v7098 = vpop.f32.mrb[0].mxu0
        %v7099 = vadd.f32 0.0, %v7098
        %7100 = vdwg.mxu0
        %7101 = vmatprep.subr.mxu0 %v6808
        %7102 = vmatpush1.msra.mxu0 %v6807
        %7103 = vmatprep.subr.mxu0 %v6816
        %7104 = vmatpush1.msra.mxu0 %v6815
        %7105 = vmatprep.subr.mxu0 0.0
        %7106 = vmatpush1.msra.mxu0 0.0
        %7107 = vmatprep.subr.mxu0 0.0
        %7108 = vmatpush1.msra.mxu0 0.0
        %7109 = vmatprep.subr.mxu0 0.0
        %7110 = vmatpush1.msra.mxu0 0.0
        %7111 = vmatprep.subr.mxu0 0.0
        %7112 = vmatpush1.msra.mxu0 0.0
        %7113 = vmatprep.subr.mxu0 0.0
        %7114 = vmatpush1.msra.mxu0 0.0
        %7115 = vmatprep.subr.mxu0 0.0
        %7116 = vmatpush1.msra.mxu0 0.0
        %7117 = vmatprep.subr.mxu0 0.0
        %7118 = vmatpush1.msra.mxu0 0.0
        %7119 = vmatprep.subr.mxu0 0.0
        %7120 = vmatpush1.msra.mxu0 0.0
        %7121 = vmatprep.subr.mxu0 0.0
        %7122 = vmatpush1.msra.mxu0 0.0
        %7123 = vmatprep.subr.mxu0 0.0
        %7124 = vmatpush1.msra.mxu0 0.0
        %7125 = vmatprep.subr.mxu0 0.0
        %7126 = vmatpush1.msra.mxu0 0.0
        %7127 = vmatprep.subr.mxu0 0.0
        %7128 = vmatpush1.msra.mxu0 0.0
        %7129 = vmatprep.subr.mxu0 0.0
        %7130 = vmatpush1.msra.mxu0 0.0
        %7131 = vmatprep.subr.mxu0 0.0
        %7132 = vmatpush1.msra.mxu0 0.0
        %7133 = vmatprep.subr.mxu0 0.0
        %7134 = vmatpush1.msra.mxu0 0.0
        %7135 = vmatprep.subr.mxu0 0.0
        %7136 = vmatpush1.msra.mxu0 0.0
        %7137 = vmatprep.subr.mxu0 0.0
        %7138 = vmatpush1.msra.mxu0 0.0
        %7139 = vmatprep.subr.mxu0 0.0
        %7140 = vmatpush1.msra.mxu0 0.0
        %7141 = vmatprep.subr.mxu0 0.0
        %7142 = vmatpush1.msra.mxu0 0.0
        %7143 = vmatprep.subr.mxu0 0.0
        %7144 = vmatpush1.msra.mxu0 0.0
        %7145 = vmatprep.subr.mxu0 0.0
        %7146 = vmatpush1.msra.mxu0 0.0
        %7147 = vmatprep.subr.mxu0 0.0
        %7148 = vmatpush1.msra.mxu0 0.0
        %7149 = vmatprep.subr.mxu0 0.0
        %7150 = vmatpush1.msra.mxu0 0.0
        %7151 = vmatprep.subr.mxu0 0.0
        %7152 = vmatpush1.msra.mxu0 0.0
        %7153 = vmatprep.subr.mxu0 0.0
        %7154 = vmatpush1.msra.mxu0 0.0
        %7155 = vmatprep.subr.mxu0 0.0
        %7156 = vmatpush1.msra.mxu0 0.0
        %7157 = vmatprep.subr.mxu0 0.0
        %7158 = vmatpush1.msra.mxu0 0.0
        %7159 = vmatprep.subr.mxu0 0.0
        %7160 = vmatpush1.msra.mxu0 0.0
        %7161 = vmatprep.subr.mxu0 0.0
        %7162 = vmatpush1.msra.mxu0 0.0
        %7163 = vmatprep.subr.mxu0 0.0
        %7164 = vmatpush1.msra.mxu0 0.0
        %7165 = vmatprep.mubr.f32.mxu0 0.0
        %7166 = vmatmul.mubr.f32.gmra.mrb[0].mxu0 %v6823
        %v7167 = vpop.f32.mrb[0].mxu0
        %v7168 = vadd.f32 0.0, %v7167
        %v7169 = vpop.f32.mrb[0].mxu0
        %v7170 = vadd.f32 0.0, %v7169
        %7171 = vmatprep.mubr.f32.mxu0 0.0
        %7172 = vmatmul.mubr.f32.gmra.mrb[0].mxu0 %v6826
        %v7173 = vpop.f32.mrb[0].mxu0
        %v7174 = vadd.f32 0.0, %v7173
        %v7175 = vpop.f32.mrb[0].mxu0
        %v7176 = vadd.f32 0.0, %v7175
        %7177 = vmatprep.mubr.f32.mxu0 0.0
        %7178 = vmatmul.mubr.f32.gmra.mrb[0].mxu0 %v6829
        %v7179 = vpop.f32.mrb[0].mxu0
        %v7180 = vadd.f32 0.0, %v7179
        %v7181 = vpop.f32.mrb[0].mxu0
        %v7182 = vadd.f32 0.0, %v7181
        %7183 = vmatprep.mubr.f32.mxu0 0.0
        %7184 = vmatmul.mubr.f32.gmra.mrb[0].mxu0 %v6832
        %v7185 = vpop.f32.mrb[0].mxu0
        %v7186 = vadd.f32 0.0, %v7185
        %v7187 = vpop.f32.mrb[0].mxu0
        %v7188 = vadd.f32 0.0, %v7187
        %7189 = vdwg.mxu0
        %v7190 = vadd.f32 %v6705, %v6901
        %v7191 = vadd.f32 %v6706, %v6903
        %v7192 = vadd.f32 %v6707, %v6990
        %v7193 = vadd.f32 %v6708, %v6992
        %v7194 = vadd.f32 %v6709, %v7079
        %v7195 = vadd.f32 %v6710, %v7081
        %v7196 = vadd.f32 %v6711, %v7168
        %v7197 = vadd.f32 %v6712, %v7170
        %v7198 = vadd.f32 %v6713, %v6907
        %v7199 = vadd.f32 %v6714, %v6909
        %v7200 = vadd.f32 %v6715, %v6996
        %v7201 = vadd.f32 %v6716, %v6998
        %v7202 = vadd.f32 %v6717, %v7085
        %v7203 = vadd.f32 %v6718, %v7087
        %v7204 = vadd.f32 %v6719, %v7174
        %v7205 = vadd.f32 %v6720, %v7176
        %v7206 = vadd.f32 %v6721, %v6913
        %v7207 = vadd.f32 %v6722, %v6915
        %v7208 = vadd.f32 %v6723, %v7002
        %v7209 = vadd.f32 %v6724, %v7004
        %v7210 = vadd.f32 %v6725, %v7091
        %v7211 = vadd.f32 %v6726, %v7093
        %v7212 = vadd.f32 %v6727, %v7180
        %v7213 = vadd.f32 %v6728, %v7182
        %v7214 = vadd.f32 %v6729, %v6919
        %v7215 = vadd.f32 %v6730, %v6921
        %v7216 = vadd.f32 %v6731, %v7008
        %v7217 = vadd.f32 %v6732, %v7010
        %v7218 = vadd.f32 %v6733, %v7097
        %v7219 = vadd.f32 %v6734, %v7099
        %v7220 = vadd.f32 %v6735, %v7186
        %v7221 = vadd.f32 %v6736, %v7188
        %7222 = vrot.lane.b32.xlu0 %v3955, 96
        %v7223 = vpop.permute.xlu0 %7222
        %7224 = vrot.lane.b32.xlu0 %v3956, 96
        %v7225 = vpop.permute.xlu0 %7224
        %7226 = vrot.lane.b32.xlu0 %v3957, 96
        %v7227 = vpop.permute.xlu0 %7226
        %7228 = vrot.lane.b32.xlu0 %v3958, 96
        %v7229 = vpop.permute.xlu0 %7228
        %7230 = vrot.lane.b32.xlu0 %v3959, 96
        %v7231 = vpop.permute.xlu0 %7230
        %7232 = vrot.lane.b32.xlu0 %v3960, 96
        %v7233 = vpop.permute.xlu0 %7232
        %7234 = vrot.lane.b32.xlu0 %v3961, 96
        %v7235 = vpop.permute.xlu0 %7234
        %7236 = vrot.lane.b32.xlu0 %v3962, 96
        %v7237 = vpop.permute.xlu0 %7236
        %7238 = vrot.lane.b32.xlu0 %v3963, 96
        %v7239 = vpop.permute.xlu0 %7238
        %7240 = vrot.lane.b32.xlu0 %v3964, 96
        %v7241 = vpop.permute.xlu0 %7240
        %7242 = vrot.lane.b32.xlu0 %v3965, 96
        %v7243 = vpop.permute.xlu0 %7242
        %7244 = vrot.lane.b32.xlu0 %v3966, 96
        %v7245 = vpop.permute.xlu0 %7244
        %7246 = vrot.lane.b32.xlu0 %v3967, 96
        %v7247 = vpop.permute.xlu0 %7246
        %7248 = vrot.lane.b32.xlu0 %v3968, 96
        %v7249 = vpop.permute.xlu0 %7248
        %7250 = vrot.lane.b32.xlu0 %v3969, 96
        %v7251 = vpop.permute.xlu0 %7250
        %7252 = vrot.lane.b32.xlu0 %v3970, 96
        %v7253 = vpop.permute.xlu0 %7252
        %v7254 = vsel %vm3169, %v7223, %v7225
        %v7255 = vsel %vm3169, %v7225, %v7227
        %v7256 = vsel %vm3169, %v7227, %v7229
        %v7257 = vsel %vm3169, %v7229, %v7231
        %v7258 = vsel %vm3169, %v7231, %v7233
        %v7259 = vsel %vm3169, %v7233, %v7235
        %v7260 = vsel %vm3169, %v7235, %v7237
        %v7261 = vsel %vm3169, %v7239, %v7241
        %v7262 = vsel %vm3169, %v7241, %v7243
        %v7263 = vsel %vm3169, %v7243, %v7245
        %v7264 = vsel %vm3169, %v7245, %v7247
        %v7265 = vsel %vm3169, %v7247, %v7249
        %v7266 = vsel %vm3169, %v7249, %v7251
        %v7267 = vsel %vm3169, %v7251, %v7253
        %v7284 = vsel %vm3169, %v7237, 0.0
        %v7285 = vsel %vm3169, %v7253, 0.0
        %s7286 = scalar_lea.vmem %s3, 224
        %v7287 = vld [vmem:[%s7286] sm:$0xff]
        %v7288 = vld [vmem:[%s7286 + $0x8] sm:$0xff]
        %v7289 = vld [vmem:[%s7286 + $0x10] sm:$0xff]
        %v7290 = vld [vmem:[%s7286 + $0x18] sm:$0xff]
        %v7292 = vsel %vm4140, %v7287, 0
        %v7295 = vsel %vm4140, %v7288, 0
        %v7298 = vsel %vm4140, %v7289, 0
        %v7301 = vsel %vm4140, %v7290, 0
        %7303 = vmatprep.subr.mxu0 %v7255
        %7304 = vmatpush1.msra.mxu0 %v7254
        %7305 = vmatprep.subr.mxu0 %v7262
        %7306 = vmatpush1.msra.mxu0 %v7261
        %7307 = vmatprep.subr.mxu0 0.0
        %7308 = vmatpush1.msra.mxu0 0.0
        %7309 = vmatprep.subr.mxu0 0.0
        %7310 = vmatpush1.msra.mxu0 0.0
        %7311 = vmatprep.subr.mxu0 0.0
        %7312 = vmatpush1.msra.mxu0 0.0
        %7313 = vmatprep.subr.mxu0 0.0
        %7314 = vmatpush1.msra.mxu0 0.0
        %7315 = vmatprep.subr.mxu0 0.0
        %7316 = vmatpush1.msra.mxu0 0.0
        %7317 = vmatprep.subr.mxu0 0.0
        %7318 = vmatpush1.msra.mxu0 0.0
        %7319 = vmatprep.subr.mxu0 0.0
        %7320 = vmatpush1.msra.mxu0 0.0
        %7321 = vmatprep.subr.mxu0 0.0
        %7322 = vmatpush1.msra.mxu0 0.0
        %7323 = vmatprep.subr.mxu0 0.0
        %7324 = vmatpush1.msra.mxu0 0.0
        %7325 = vmatprep.subr.mxu0 0.0
        %7326 = vmatpush1.msra.mxu0 0.0
        %7327 = vmatprep.subr.mxu0 0.0
        %7328 = vmatpush1.msra.mxu0 0.0
        %7329 = vmatprep.subr.mxu0 0.0
        %7330 = vmatpush1.msra.mxu0 0.0
        %7331 = vmatprep.subr.mxu0 0.0
        %7332 = vmatpush1.msra.mxu0 0.0
        %7333 = vmatprep.subr.mxu0 0.0
        %7334 = vmatpush1.msra.mxu0 0.0
        %7335 = vmatprep.subr.mxu0 0.0
        %7336 = vmatpush1.msra.mxu0 0.0
        %7337 = vmatprep.subr.mxu0 0.0
        %7338 = vmatpush1.msra.mxu0 0.0
        %7339 = vmatprep.subr.mxu0 0.0
        %7340 = vmatpush1.msra.mxu0 0.0
        %7341 = vmatprep.subr.mxu0 0.0
        %7342 = vmatpush1.msra.mxu0 0.0
        %7343 = vmatprep.subr.mxu0 0.0
        %7344 = vmatpush1.msra.mxu0 0.0
        %7345 = vmatprep.subr.mxu0 0.0
        %7346 = vmatpush1.msra.mxu0 0.0
        %7347 = vmatprep.subr.mxu0 0.0
        %7348 = vmatpush1.msra.mxu0 0.0
        %7349 = vmatprep.subr.mxu0 0.0
        %7350 = vmatpush1.msra.mxu0 0.0
        %7351 = vmatprep.subr.mxu0 0.0
        %7352 = vmatpush1.msra.mxu0 0.0
        %7353 = vmatprep.subr.mxu0 0.0
        %7354 = vmatpush1.msra.mxu0 0.0
        %7355 = vmatprep.subr.mxu0 0.0
        %7356 = vmatpush1.msra.mxu0 0.0
        %7357 = vmatprep.subr.mxu0 0.0
        %7358 = vmatpush1.msra.mxu0 0.0
        %7359 = vmatprep.subr.mxu0 0.0
        %7360 = vmatpush1.msra.mxu0 0.0
        %7361 = vmatprep.subr.mxu0 0.0
        %7362 = vmatpush1.msra.mxu0 0.0
        %7363 = vmatprep.subr.mxu0 0.0
        %7364 = vmatpush1.msra.mxu0 0.0
        %7365 = vmatprep.subr.mxu0 0.0
        %7366 = vmatpush1.msra.mxu0 0.0
        %7367 = vmatprep.mubr.f32.mxu0 0.0
        %7368 = vmatmul.mubr.f32.gmra.mrb[0].mxu0 %v7292
        %v7369 = vpop.f32.mrb[0].mxu0
        %v7370 = vadd.f32 0.0, %v7369
        %v7371 = vpop.f32.mrb[0].mxu0
        %v7372 = vadd.f32 0.0, %v7371
        %7373 = vmatprep.mubr.f32.mxu0 0.0
        %7374 = vmatmul.mubr.f32.gmra.mrb[0].mxu0 %v7295
        %v7375 = vpop.f32.mrb[0].mxu0
        %v7376 = vadd.f32 0.0, %v7375
        %v7377 = vpop.f32.mrb[0].mxu0
        %v7378 = vadd.f32 0.0, %v7377
        %7379 = vmatprep.mubr.f32.mxu0 0.0
        %7380 = vmatmul.mubr.f32.gmra.mrb[0].mxu0 %v7298
        %v7381 = vpop.f32.mrb[0].mxu0
        %v7382 = vadd.f32 0.0, %v7381
        %v7383 = vpop.f32.mrb[0].mxu0
        %v7384 = vadd.f32 0.0, %v7383
        %7385 = vmatprep.mubr.f32.mxu0 0.0
        %7386 = vmatmul.mubr.f32.gmra.mrb[0].mxu0 %v7301
        %v7387 = vpop.f32.mrb[0].mxu0
        %v7388 = vadd.f32 0.0, %v7387
        %v7389 = vpop.f32.mrb[0].mxu0
        %v7390 = vadd.f32 0.0, %v7389
        %7391 = vdwg.mxu0
        %7392 = vmatprep.subr.mxu0 %v7257
        %7393 = vmatpush1.msra.mxu0 %v7256
        %7394 = vmatprep.subr.mxu0 %v7264
        %7395 = vmatpush1.msra.mxu0 %v7263
        %7396 = vmatprep.subr.mxu0 0.0
        %7397 = vmatpush1.msra.mxu0 0.0
        %7398 = vmatprep.subr.mxu0 0.0
        %7399 = vmatpush1.msra.mxu0 0.0
        %7400 = vmatprep.subr.mxu0 0.0
        %7401 = vmatpush1.msra.mxu0 0.0
        %7402 = vmatprep.subr.mxu0 0.0
        %7403 = vmatpush1.msra.mxu0 0.0
        %7404 = vmatprep.subr.mxu0 0.0
        %7405 = vmatpush1.msra.mxu0 0.0
        %7406 = vmatprep.subr.mxu0 0.0
        %7407 = vmatpush1.msra.mxu0 0.0
        %7408 = vmatprep.subr.mxu0 0.0
        %7409 = vmatpush1.msra.mxu0 0.0
        %7410 = vmatprep.subr.mxu0 0.0
        %7411 = vmatpush1.msra.mxu0 0.0
        %7412 = vmatprep.subr.mxu0 0.0
        %7413 = vmatpush1.msra.mxu0 0.0
        %7414 = vmatprep.subr.mxu0 0.0
        %7415 = vmatpush1.msra.mxu0 0.0
        %7416 = vmatprep.subr.mxu0 0.0
        %7417 = vmatpush1.msra.mxu0 0.0
        %7418 = vmatprep.subr.mxu0 0.0
        %7419 = vmatpush1.msra.mxu0 0.0
        %7420 = vmatprep.subr.mxu0 0.0
        %7421 = vmatpush1.msra.mxu0 0.0
        %7422 = vmatprep.subr.mxu0 0.0
        %7423 = vmatpush1.msra.mxu0 0.0
        %7424 = vmatprep.subr.mxu0 0.0
        %7425 = vmatpush1.msra.mxu0 0.0
        %7426 = vmatprep.subr.mxu0 0.0
        %7427 = vmatpush1.msra.mxu0 0.0
        %7428 = vmatprep.subr.mxu0 0.0
        %7429 = vmatpush1.msra.mxu0 0.0
        %7430 = vmatprep.subr.mxu0 0.0
        %7431 = vmatpush1.msra.mxu0 0.0
        %7432 = vmatprep.subr.mxu0 0.0
        %7433 = vmatpush1.msra.mxu0 0.0
        %7434 = vmatprep.subr.mxu0 0.0
        %7435 = vmatpush1.msra.mxu0 0.0
        %7436 = vmatprep.subr.mxu0 0.0
        %7437 = vmatpush1.msra.mxu0 0.0
        %7438 = vmatprep.subr.mxu0 0.0
        %7439 = vmatpush1.msra.mxu0 0.0
        %7440 = vmatprep.subr.mxu0 0.0
        %7441 = vmatpush1.msra.mxu0 0.0
        %7442 = vmatprep.subr.mxu0 0.0
        %7443 = vmatpush1.msra.mxu0 0.0
        %7444 = vmatprep.subr.mxu0 0.0
        %7445 = vmatpush1.msra.mxu0 0.0
        %7446 = vmatprep.subr.mxu0 0.0
        %7447 = vmatpush1.msra.mxu0 0.0
        %7448 = vmatprep.subr.mxu0 0.0
        %7449 = vmatpush1.msra.mxu0 0.0
        %7450 = vmatprep.subr.mxu0 0.0
        %7451 = vmatpush1.msra.mxu0 0.0
        %7452 = vmatprep.subr.mxu0 0.0
        %7453 = vmatpush1.msra.mxu0 0.0
        %7454 = vmatprep.subr.mxu0 0.0
        %7455 = vmatpush1.msra.mxu0 0.0
        %7456 = vmatprep.mubr.f32.mxu0 0.0
        %7457 = vmatmul.mubr.f32.gmra.mrb[0].mxu0 %v7292
        %v7458 = vpop.f32.mrb[0].mxu0
        %v7459 = vadd.f32 0.0, %v7458
        %v7460 = vpop.f32.mrb[0].mxu0
        %v7461 = vadd.f32 0.0, %v7460
        %7462 = vmatprep.mubr.f32.mxu0 0.0
        %7463 = vmatmul.mubr.f32.gmra.mrb[0].mxu0 %v7295
        %v7464 = vpop.f32.mrb[0].mxu0
        %v7465 = vadd.f32 0.0, %v7464
        %v7466 = vpop.f32.mrb[0].mxu0
        %v7467 = vadd.f32 0.0, %v7466
        %7468 = vmatprep.mubr.f32.mxu0 0.0
        %7469 = vmatmul.mubr.f32.gmra.mrb[0].mxu0 %v7298
        %v7470 = vpop.f32.mrb[0].mxu0
        %v7471 = vadd.f32 0.0, %v7470
        %v7472 = vpop.f32.mrb[0].mxu0
        %v7473 = vadd.f32 0.0, %v7472
        %7474 = vmatprep.mubr.f32.mxu0 0.0
        %7475 = vmatmul.mubr.f32.gmra.mrb[0].mxu0 %v7301
        %v7476 = vpop.f32.mrb[0].mxu0
        %v7477 = vadd.f32 0.0, %v7476
        %v7478 = vpop.f32.mrb[0].mxu0
        %v7479 = vadd.f32 0.0, %v7478
        %7480 = vdwg.mxu0
        %7481 = vmatprep.subr.mxu0 %v7259
        %7482 = vmatpush1.msra.mxu0 %v7258
        %7483 = vmatprep.subr.mxu0 %v7266
        %7484 = vmatpush1.msra.mxu0 %v7265
        %7485 = vmatprep.subr.mxu0 0.0
        %7486 = vmatpush1.msra.mxu0 0.0
        %7487 = vmatprep.subr.mxu0 0.0
        %7488 = vmatpush1.msra.mxu0 0.0
        %7489 = vmatprep.subr.mxu0 0.0
        %7490 = vmatpush1.msra.mxu0 0.0
        %7491 = vmatprep.subr.mxu0 0.0
        %7492 = vmatpush1.msra.mxu0 0.0
        %7493 = vmatprep.subr.mxu0 0.0
        %7494 = vmatpush1.msra.mxu0 0.0
        %7495 = vmatprep.subr.mxu0 0.0
        %7496 = vmatpush1.msra.mxu0 0.0
        %7497 = vmatprep.subr.mxu0 0.0
        %7498 = vmatpush1.msra.mxu0 0.0
        %7499 = vmatprep.subr.mxu0 0.0
        %7500 = vmatpush1.msra.mxu0 0.0
        %7501 = vmatprep.subr.mxu0 0.0
        %7502 = vmatpush1.msra.mxu0 0.0
        %7503 = vmatprep.subr.mxu0 0.0
        %7504 = vmatpush1.msra.mxu0 0.0
        %7505 = vmatprep.subr.mxu0 0.0
        %7506 = vmatpush1.msra.mxu0 0.0
        %7507 = vmatprep.subr.mxu0 0.0
        %7508 = vmatpush1.msra.mxu0 0.0
        %7509 = vmatprep.subr.mxu0 0.0
        %7510 = vmatpush1.msra.mxu0 0.0
        %7511 = vmatprep.subr.mxu0 0.0
        %7512 = vmatpush1.msra.mxu0 0.0
        %7513 = vmatprep.subr.mxu0 0.0
        %7514 = vmatpush1.msra.mxu0 0.0
        %7515 = vmatprep.subr.mxu0 0.0
        %7516 = vmatpush1.msra.mxu0 0.0
        %7517 = vmatprep.subr.mxu0 0.0
        %7518 = vmatpush1.msra.mxu0 0.0
        %7519 = vmatprep.subr.mxu0 0.0
        %7520 = vmatpush1.msra.mxu0 0.0
        %7521 = vmatprep.subr.mxu0 0.0
        %7522 = vmatpush1.msra.mxu0 0.0
        %7523 = vmatprep.subr.mxu0 0.0
        %7524 = vmatpush1.msra.mxu0 0.0
        %7525 = vmatprep.subr.mxu0 0.0
        %7526 = vmatpush1.msra.mxu0 0.0
        %7527 = vmatprep.subr.mxu0 0.0
        %7528 = vmatpush1.msra.mxu0 0.0
        %7529 = vmatprep.subr.mxu0 0.0
        %7530 = vmatpush1.msra.mxu0 0.0
        %7531 = vmatprep.subr.mxu0 0.0
        %7532 = vmatpush1.msra.mxu0 0.0
        %7533 = vmatprep.subr.mxu0 0.0
        %7534 = vmatpush1.msra.mxu0 0.0
        %7535 = vmatprep.subr.mxu0 0.0
        %7536 = vmatpush1.msra.mxu0 0.0
        %7537 = vmatprep.subr.mxu0 0.0
        %7538 = vmatpush1.msra.mxu0 0.0
        %7539 = vmatprep.subr.mxu0 0.0
        %7540 = vmatpush1.msra.mxu0 0.0
        %7541 = vmatprep.subr.mxu0 0.0
        %7542 = vmatpush1.msra.mxu0 0.0
        %7543 = vmatprep.subr.mxu0 0.0
        %7544 = vmatpush1.msra.mxu0 0.0
        %7545 = vmatprep.mubr.f32.mxu0 0.0
        %7546 = vmatmul.mubr.f32.gmra.mrb[0].mxu0 %v7292
        %v7547 = vpop.f32.mrb[0].mxu0
        %v7548 = vadd.f32 0.0, %v7547
        %v7549 = vpop.f32.mrb[0].mxu0
        %v7550 = vadd.f32 0.0, %v7549
        %7551 = vmatprep.mubr.f32.mxu0 0.0
        %7552 = vmatmul.mubr.f32.gmra.mrb[0].mxu0 %v7295
        %v7553 = vpop.f32.mrb[0].mxu0
        %v7554 = vadd.f32 0.0, %v7553
        %v7555 = vpop.f32.mrb[0].mxu0
        %v7556 = vadd.f32 0.0, %v7555
        %7557 = vmatprep.mubr.f32.mxu0 0.0
        %7558 = vmatmul.mubr.f32.gmra.mrb[0].mxu0 %v7298
        %v7559 = vpop.f32.mrb[0].mxu0
        %v7560 = vadd.f32 0.0, %v7559
        %v7561 = vpop.f32.mrb[0].mxu0
        %v7562 = vadd.f32 0.0, %v7561
        %7563 = vmatprep.mubr.f32.mxu0 0.0
        %7564 = vmatmul.mubr.f32.gmra.mrb[0].mxu0 %v7301
        %v7565 = vpop.f32.mrb[0].mxu0
        %v7566 = vadd.f32 0.0, %v7565
        %v7567 = vpop.f32.mrb[0].mxu0
        %v7568 = vadd.f32 0.0, %v7567
        %7569 = vdwg.mxu0
        %7570 = vmatprep.subr.mxu0 %v7284
        %7571 = vmatpush1.msra.mxu0 %v7260
        %7572 = vmatprep.subr.mxu0 %v7285
        %7573 = vmatpush1.msra.mxu0 %v7267
        %7574 = vmatprep.subr.mxu0 0.0
        %7575 = vmatpush1.msra.mxu0 0.0
        %7576 = vmatprep.subr.mxu0 0.0
        %7577 = vmatpush1.msra.mxu0 0.0
        %7578 = vmatprep.subr.mxu0 0.0
        %7579 = vmatpush1.msra.mxu0 0.0
        %7580 = vmatprep.subr.mxu0 0.0
        %7581 = vmatpush1.msra.mxu0 0.0
        %7582 = vmatprep.subr.mxu0 0.0
        %7583 = vmatpush1.msra.mxu0 0.0
        %7584 = vmatprep.subr.mxu0 0.0
        %7585 = vmatpush1.msra.mxu0 0.0
        %7586 = vmatprep.subr.mxu0 0.0
        %7587 = vmatpush1.msra.mxu0 0.0
        %7588 = vmatprep.subr.mxu0 0.0
        %7589 = vmatpush1.msra.mxu0 0.0
        %7590 = vmatprep.subr.mxu0 0.0
        %7591 = vmatpush1.msra.mxu0 0.0
        %7592 = vmatprep.subr.mxu0 0.0
        %7593 = vmatpush1.msra.mxu0 0.0
        %7594 = vmatprep.subr.mxu0 0.0
        %7595 = vmatpush1.msra.mxu0 0.0
        %7596 = vmatprep.subr.mxu0 0.0
        %7597 = vmatpush1.msra.mxu0 0.0
        %7598 = vmatprep.subr.mxu0 0.0
        %7599 = vmatpush1.msra.mxu0 0.0
        %7600 = vmatprep.subr.mxu0 0.0
        %7601 = vmatpush1.msra.mxu0 0.0
        %7602 = vmatprep.subr.mxu0 0.0
        %7603 = vmatpush1.msra.mxu0 0.0
        %7604 = vmatprep.subr.mxu0 0.0
        %7605 = vmatpush1.msra.mxu0 0.0
        %7606 = vmatprep.subr.mxu0 0.0
        %7607 = vmatpush1.msra.mxu0 0.0
        %7608 = vmatprep.subr.mxu0 0.0
        %7609 = vmatpush1.msra.mxu0 0.0
        %7610 = vmatprep.subr.mxu0 0.0
        %7611 = vmatpush1.msra.mxu0 0.0
        %7612 = vmatprep.subr.mxu0 0.0
        %7613 = vmatpush1.msra.mxu0 0.0
        %7614 = vmatprep.subr.mxu0 0.0
        %7615 = vmatpush1.msra.mxu0 0.0
        %7616 = vmatprep.subr.mxu0 0.0
        %7617 = vmatpush1.msra.mxu0 0.0
        %7618 = vmatprep.subr.mxu0 0.0
        %7619 = vmatpush1.msra.mxu0 0.0
        %7620 = vmatprep.subr.mxu0 0.0
        %7621 = vmatpush1.msra.mxu0 0.0
        %7622 = vmatprep.subr.mxu0 0.0
        %7623 = vmatpush1.msra.mxu0 0.0
        %7624 = vmatprep.subr.mxu0 0.0
        %7625 = vmatpush1.msra.mxu0 0.0
        %7626 = vmatprep.subr.mxu0 0.0
        %7627 = vmatpush1.msra.mxu0 0.0
        %7628 = vmatprep.subr.mxu0 0.0
        %7629 = vmatpush1.msra.mxu0 0.0
        %7630 = vmatprep.subr.mxu0 0.0
        %7631 = vmatpush1.msra.mxu0 0.0
        %7632 = vmatprep.subr.mxu0 0.0
        %7633 = vmatpush1.msra.mxu0 0.0
        %7634 = vmatprep.mubr.f32.mxu0 0.0
        %7635 = vmatmul.mubr.f32.gmra.mrb[0].mxu0 %v7292
        %v7636 = vpop.f32.mrb[0].mxu0
        %v7637 = vadd.f32 0.0, %v7636
        %v7638 = vpop.f32.mrb[0].mxu0
        %v7639 = vadd.f32 0.0, %v7638
        %7640 = vmatprep.mubr.f32.mxu0 0.0
        %7641 = vmatmul.mubr.f32.gmra.mrb[0].mxu0 %v7295
        %v7642 = vpop.f32.mrb[0].mxu0
        %v7643 = vadd.f32 0.0, %v7642
        %v7644 = vpop.f32.mrb[0].mxu0
        %v7645 = vadd.f32 0.0, %v7644
        %7646 = vmatprep.mubr.f32.mxu0 0.0
        %7647 = vmatmul.mubr.f32.gmra.mrb[0].mxu0 %v7298
        %v7648 = vpop.f32.mrb[0].mxu0
        %v7649 = vadd.f32 0.0, %v7648
        %v7650 = vpop.f32.mrb[0].mxu0
        %v7651 = vadd.f32 0.0, %v7650
        %7652 = vmatprep.mubr.f32.mxu0 0.0
        %7653 = vmatmul.mubr.f32.gmra.mrb[0].mxu0 %v7301
        %v7654 = vpop.f32.mrb[0].mxu0
        %v7655 = vadd.f32 0.0, %v7654
        %v7656 = vpop.f32.mrb[0].mxu0
        %v7657 = vadd.f32 0.0, %v7656
        %7658 = vdwg.mxu0
        %v7659 = vadd.f32 %v7190, %v7370
        %v7660 = vadd.f32 %v7191, %v7372
        %v7661 = vadd.f32 %v7192, %v7459
        %v7662 = vadd.f32 %v7193, %v7461
        %v7663 = vadd.f32 %v7194, %v7548
        %v7664 = vadd.f32 %v7195, %v7550
        %v7665 = vadd.f32 %v7196, %v7637
        %v7666 = vadd.f32 %v7197, %v7639
        %v7667 = vadd.f32 %v7198, %v7376
        %v7668 = vadd.f32 %v7199, %v7378
        %v7669 = vadd.f32 %v7200, %v7465
        %v7670 = vadd.f32 %v7201, %v7467
        %v7671 = vadd.f32 %v7202, %v7554
        %v7672 = vadd.f32 %v7203, %v7556
        %v7673 = vadd.f32 %v7204, %v7643
        %v7674 = vadd.f32 %v7205, %v7645
        %v7675 = vadd.f32 %v7206, %v7382
        %v7676 = vadd.f32 %v7207, %v7384
        %v7677 = vadd.f32 %v7208, %v7471
        %v7678 = vadd.f32 %v7209, %v7473
        %v7679 = vadd.f32 %v7210, %v7560
        %v7680 = vadd.f32 %v7211, %v7562
        %v7681 = vadd.f32 %v7212, %v7649
        %v7682 = vadd.f32 %v7213, %v7651
        %v7683 = vadd.f32 %v7214, %v7388
        %v7684 = vadd.f32 %v7215, %v7390
        %v7685 = vadd.f32 %v7216, %v7477
        %v7686 = vadd.f32 %v7217, %v7479
        %v7687 = vadd.f32 %v7218, %v7566
        %v7688 = vadd.f32 %v7219, %v7568
        %v7689 = vadd.f32 %v7220, %v7655
        %v7690 = vadd.f32 %v7221, %v7657
        %7691 = vrot.lane.b32.xlu0 %v3955, 95
        %v7692 = vpop.permute.xlu0 %7691
        %7693 = vrot.lane.b32.xlu0 %v3956, 95
        %v7694 = vpop.permute.xlu0 %7693
        %7695 = vrot.lane.b32.xlu0 %v3957, 95
        %v7696 = vpop.permute.xlu0 %7695
        %7697 = vrot.lane.b32.xlu0 %v3958, 95
        %v7698 = vpop.permute.xlu0 %7697
        %7699 = vrot.lane.b32.xlu0 %v3959, 95
        %v7700 = vpop.permute.xlu0 %7699
        %7701 = vrot.lane.b32.xlu0 %v3960, 95
        %v7702 = vpop.permute.xlu0 %7701
        %7703 = vrot.lane.b32.xlu0 %v3961, 95
        %v7704 = vpop.permute.xlu0 %7703
        %7705 = vrot.lane.b32.xlu0 %v3962, 95
        %v7706 = vpop.permute.xlu0 %7705
        %7707 = vrot.lane.b32.xlu0 %v3963, 95
        %v7708 = vpop.permute.xlu0 %7707
        %7709 = vrot.lane.b32.xlu0 %v3964, 95
        %v7710 = vpop.permute.xlu0 %7709
        %7711 = vrot.lane.b32.xlu0 %v3965, 95
        %v7712 = vpop.permute.xlu0 %7711
        %7713 = vrot.lane.b32.xlu0 %v3966, 95
        %v7714 = vpop.permute.xlu0 %7713
        %7715 = vrot.lane.b32.xlu0 %v3967, 95
        %v7716 = vpop.permute.xlu0 %7715
        %7717 = vrot.lane.b32.xlu0 %v3968, 95
        %v7718 = vpop.permute.xlu0 %7717
        %7719 = vrot.lane.b32.xlu0 %v3969, 95
        %v7720 = vpop.permute.xlu0 %7719
        %7721 = vrot.lane.b32.xlu0 %v3970, 95
        %v7722 = vpop.permute.xlu0 %7721
        %v7723 = vsel %vm3545, %v7692, %v7694
        %v7724 = vsel %vm3545, %v7694, %v7696
        %v7725 = vsel %vm3545, %v7696, %v7698
        %v7726 = vsel %vm3545, %v7698, %v7700
        %v7727 = vsel %vm3545, %v7700, %v7702
        %v7728 = vsel %vm3545, %v7702, %v7704
        %v7729 = vsel %vm3545, %v7704, %v7706
        %v7730 = vsel %vm3545, %v7708, %v7710
        %v7731 = vsel %vm3545, %v7710, %v7712
        %v7732 = vsel %vm3545, %v7712, %v7714
        %v7733 = vsel %vm3545, %v7714, %v7716
        %v7734 = vsel %vm3545, %v7716, %v7718
        %v7735 = vsel %vm3545, %v7718, %v7720
        %v7736 = vsel %vm3545, %v7720, %v7722
        %v7753 = vsel %vm3545, %v7706, 0.0
        %v7754 = vsel %vm3545, %v7722, 0.0
        %v7755 = vsel %vm1237, %v7723, 0.0
        %v7756 = vsel %vm1238, %v7724, 0.0
        %v7757 = vsel %vm1239, %v7725, 0.0
        %v7758 = vsel %vm1240, %v7726, 0.0
        %v7759 = vsel %vm1241, %v7727, 0.0
        %v7760 = vsel %vm1242, %v7728, 0.0
        %v7761 = vsel %vm1243, %v7729, 0.0
        %v7762 = vsel %vm1244, %v7753, 0.0
        %v7763 = vsel %vm1237, %v7730, 0.0
        %v7764 = vsel %vm1238, %v7731, 0.0
        %v7765 = vsel %vm1239, %v7732, 0.0
        %v7766 = vsel %vm1240, %v7733, 0.0
        %v7767 = vsel %vm1241, %v7734, 0.0
        %v7768 = vsel %vm1242, %v7735, 0.0
        %v7769 = vsel %vm1243, %v7736, 0.0
        %v7770 = vsel %vm1244, %v7754, 0.0
        %s7771 = scalar_lea.vmem %s3, 256
        %v7772 = vld [vmem:[%s7771] sm:$0xff]
        %v7773 = vld [vmem:[%s7771 + $0x8] sm:$0xff]
        %v7774 = vld [vmem:[%s7771 + $0x10] sm:$0xff]
        %v7775 = vld [vmem:[%s7771 + $0x18] sm:$0xff]
        %v7777 = vsel %vm4140, %v7772, 0
        %v7780 = vsel %vm4140, %v7773, 0
        %v7783 = vsel %vm4140, %v7774, 0
        %v7786 = vsel %vm4140, %v7775, 0
        %7788 = vmatprep.subr.mxu0 %v7756
        %7789 = vmatpush1.msra.mxu0 %v7755
        %7790 = vmatprep.subr.mxu0 %v7764
        %7791 = vmatpush1.msra.mxu0 %v7763
        %7792 = vmatprep.subr.mxu0 0.0
        %7793 = vmatpush1.msra.mxu0 0.0
        %7794 = vmatprep.subr.mxu0 0.0
        %7795 = vmatpush1.msra.mxu0 0.0
        %7796 = vmatprep.subr.mxu0 0.0
        %7797 = vmatpush1.msra.mxu0 0.0
        %7798 = vmatprep.subr.mxu0 0.0
        %7799 = vmatpush1.msra.mxu0 0.0
        %7800 = vmatprep.subr.mxu0 0.0
        %7801 = vmatpush1.msra.mxu0 0.0
        %7802 = vmatprep.subr.mxu0 0.0
        %7803 = vmatpush1.msra.mxu0 0.0
        %7804 = vmatprep.subr.mxu0 0.0
        %7805 = vmatpush1.msra.mxu0 0.0
        %7806 = vmatprep.subr.mxu0 0.0
        %7807 = vmatpush1.msra.mxu0 0.0
        %7808 = vmatprep.subr.mxu0 0.0
        %7809 = vmatpush1.msra.mxu0 0.0
        %7810 = vmatprep.subr.mxu0 0.0
        %7811 = vmatpush1.msra.mxu0 0.0
        %7812 = vmatprep.subr.mxu0 0.0
        %7813 = vmatpush1.msra.mxu0 0.0
        %7814 = vmatprep.subr.mxu0 0.0
        %7815 = vmatpush1.msra.mxu0 0.0
        %7816 = vmatprep.subr.mxu0 0.0
        %7817 = vmatpush1.msra.mxu0 0.0
        %7818 = vmatprep.subr.mxu0 0.0
        %7819 = vmatpush1.msra.mxu0 0.0
        %7820 = vmatprep.subr.mxu0 0.0
        %7821 = vmatpush1.msra.mxu0 0.0
        %7822 = vmatprep.subr.mxu0 0.0
        %7823 = vmatpush1.msra.mxu0 0.0
        %7824 = vmatprep.subr.mxu0 0.0
        %7825 = vmatpush1.msra.mxu0 0.0
        %7826 = vmatprep.subr.mxu0 0.0
        %7827 = vmatpush1.msra.mxu0 0.0
        %7828 = vmatprep.subr.mxu0 0.0
        %7829 = vmatpush1.msra.mxu0 0.0
        %7830 = vmatprep.subr.mxu0 0.0
        %7831 = vmatpush1.msra.mxu0 0.0
        %7832 = vmatprep.subr.mxu0 0.0
        %7833 = vmatpush1.msra.mxu0 0.0
        %7834 = vmatprep.subr.mxu0 0.0
        %7835 = vmatpush1.msra.mxu0 0.0
        %7836 = vmatprep.subr.mxu0 0.0
        %7837 = vmatpush1.msra.mxu0 0.0
        %7838 = vmatprep.subr.mxu0 0.0
        %7839 = vmatpush1.msra.mxu0 0.0
        %7840 = vmatprep.subr.mxu0 0.0
        %7841 = vmatpush1.msra.mxu0 0.0
        %7842 = vmatprep.subr.mxu0 0.0
        %7843 = vmatpush1.msra.mxu0 0.0
        %7844 = vmatprep.subr.mxu0 0.0
        %7845 = vmatpush1.msra.mxu0 0.0
        %7846 = vmatprep.subr.mxu0 0.0
        %7847 = vmatpush1.msra.mxu0 0.0
        %7848 = vmatprep.subr.mxu0 0.0
        %7849 = vmatpush1.msra.mxu0 0.0
        %7850 = vmatprep.subr.mxu0 0.0
        %7851 = vmatpush1.msra.mxu0 0.0
        %7852 = vmatprep.mubr.f32.mxu0 0.0
        %7853 = vmatmul.mubr.f32.gmra.mrb[0].mxu0 %v7777
        %v7854 = vpop.f32.mrb[0].mxu0
        %v7855 = vadd.f32 0.0, %v7854
        %v7856 = vpop.f32.mrb[0].mxu0
        %v7857 = vadd.f32 0.0, %v7856
        %7858 = vmatprep.mubr.f32.mxu0 0.0
        %7859 = vmatmul.mubr.f32.gmra.mrb[0].mxu0 %v7780
        %v7860 = vpop.f32.mrb[0].mxu0
        %v7861 = vadd.f32 0.0, %v7860
        %v7862 = vpop.f32.mrb[0].mxu0
        %v7863 = vadd.f32 0.0, %v7862
        %7864 = vmatprep.mubr.f32.mxu0 0.0
        %7865 = vmatmul.mubr.f32.gmra.mrb[0].mxu0 %v7783
        %v7866 = vpop.f32.mrb[0].mxu0
        %v7867 = vadd.f32 0.0, %v7866
        %v7868 = vpop.f32.mrb[0].mxu0
        %v7869 = vadd.f32 0.0, %v7868
        %7870 = vmatprep.mubr.f32.mxu0 0.0
        %7871 = vmatmul.mubr.f32.gmra.mrb[0].mxu0 %v7786
        %v7872 = vpop.f32.mrb[0].mxu0
        %v7873 = vadd.f32 0.0, %v7872
        %v7874 = vpop.f32.mrb[0].mxu0
        %v7875 = vadd.f32 0.0, %v7874
        %7876 = vdwg.mxu0
        %7877 = vmatprep.subr.mxu0 %v7758
        %7878 = vmatpush1.msra.mxu0 %v7757
        %7879 = vmatprep.subr.mxu0 %v7766
        %7880 = vmatpush1.msra.mxu0 %v7765
        %7881 = vmatprep.subr.mxu0 0.0
        %7882 = vmatpush1.msra.mxu0 0.0
        %7883 = vmatprep.subr.mxu0 0.0
        %7884 = vmatpush1.msra.mxu0 0.0
        %7885 = vmatprep.subr.mxu0 0.0
        %7886 = vmatpush1.msra.mxu0 0.0
        %7887 = vmatprep.subr.mxu0 0.0
        %7888 = vmatpush1.msra.mxu0 0.0
        %7889 = vmatprep.subr.mxu0 0.0
        %7890 = vmatpush1.msra.mxu0 0.0
        %7891 = vmatprep.subr.mxu0 0.0
        %7892 = vmatpush1.msra.mxu0 0.0
        %7893 = vmatprep.subr.mxu0 0.0
        %7894 = vmatpush1.msra.mxu0 0.0
        %7895 = vmatprep.subr.mxu0 0.0
        %7896 = vmatpush1.msra.mxu0 0.0
        %7897 = vmatprep.subr.mxu0 0.0
        %7898 = vmatpush1.msra.mxu0 0.0
        %7899 = vmatprep.subr.mxu0 0.0
        %7900 = vmatpush1.msra.mxu0 0.0
        %7901 = vmatprep.subr.mxu0 0.0
        %7902 = vmatpush1.msra.mxu0 0.0
        %7903 = vmatprep.subr.mxu0 0.0
        %7904 = vmatpush1.msra.mxu0 0.0
        %7905 = vmatprep.subr.mxu0 0.0
        %7906 = vmatpush1.msra.mxu0 0.0
        %7907 = vmatprep.subr.mxu0 0.0
        %7908 = vmatpush1.msra.mxu0 0.0
        %7909 = vmatprep.subr.mxu0 0.0
        %7910 = vmatpush1.msra.mxu0 0.0
        %7911 = vmatprep.subr.mxu0 0.0
        %7912 = vmatpush1.msra.mxu0 0.0
        %7913 = vmatprep.subr.mxu0 0.0
        %7914 = vmatpush1.msra.mxu0 0.0
        %7915 = vmatprep.subr.mxu0 0.0
        %7916 = vmatpush1.msra.mxu0 0.0
        %7917 = vmatprep.subr.mxu0 0.0
        %7918 = vmatpush1.msra.mxu0 0.0
        %7919 = vmatprep.subr.mxu0 0.0
        %7920 = vmatpush1.msra.mxu0 0.0
        %7921 = vmatprep.subr.mxu0 0.0
        %7922 = vmatpush1.msra.mxu0 0.0
        %7923 = vmatprep.subr.mxu0 0.0
        %7924 = vmatpush1.msra.mxu0 0.0
        %7925 = vmatprep.subr.mxu0 0.0
        %7926 = vmatpush1.msra.mxu0 0.0
        %7927 = vmatprep.subr.mxu0 0.0
        %7928 = vmatpush1.msra.mxu0 0.0
        %7929 = vmatprep.subr.mxu0 0.0
        %7930 = vmatpush1.msra.mxu0 0.0
        %7931 = vmatprep.subr.mxu0 0.0
        %7932 = vmatpush1.msra.mxu0 0.0
        %7933 = vmatprep.subr.mxu0 0.0
        %7934 = vmatpush1.msra.mxu0 0.0
        %7935 = vmatprep.subr.mxu0 0.0
        %7936 = vmatpush1.msra.mxu0 0.0
        %7937 = vmatprep.subr.mxu0 0.0
        %7938 = vmatpush1.msra.mxu0 0.0
        %7939 = vmatprep.subr.mxu0 0.0
        %7940 = vmatpush1.msra.mxu0 0.0
        %7941 = vmatprep.mubr.f32.mxu0 0.0
        %7942 = vmatmul.mubr.f32.gmra.mrb[0].mxu0 %v7777
        %v7943 = vpop.f32.mrb[0].mxu0
        %v7944 = vadd.f32 0.0, %v7943
        %v7945 = vpop.f32.mrb[0].mxu0
        %v7946 = vadd.f32 0.0, %v7945
        %7947 = vmatprep.mubr.f32.mxu0 0.0
        %7948 = vmatmul.mubr.f32.gmra.mrb[0].mxu0 %v7780
        %v7949 = vpop.f32.mrb[0].mxu0
        %v7950 = vadd.f32 0.0, %v7949
        %v7951 = vpop.f32.mrb[0].mxu0
        %v7952 = vadd.f32 0.0, %v7951
        %7953 = vmatprep.mubr.f32.mxu0 0.0
        %7954 = vmatmul.mubr.f32.gmra.mrb[0].mxu0 %v7783
        %v7955 = vpop.f32.mrb[0].mxu0
        %v7956 = vadd.f32 0.0, %v7955
        %v7957 = vpop.f32.mrb[0].mxu0
        %v7958 = vadd.f32 0.0, %v7957
        %7959 = vmatprep.mubr.f32.mxu0 0.0
        %7960 = vmatmul.mubr.f32.gmra.mrb[0].mxu0 %v7786
        %v7961 = vpop.f32.mrb[0].mxu0
        %v7962 = vadd.f32 0.0, %v7961
        %v7963 = vpop.f32.mrb[0].mxu0
        %v7964 = vadd.f32 0.0, %v7963
        %7965 = vdwg.mxu0
        %7966 = vmatprep.subr.mxu0 %v7760
        %7967 = vmatpush1.msra.mxu0 %v7759
        %7968 = vmatprep.subr.mxu0 %v7768
        %7969 = vmatpush1.msra.mxu0 %v7767
        %7970 = vmatprep.subr.mxu0 0.0
        %7971 = vmatpush1.msra.mxu0 0.0
        %7972 = vmatprep.subr.mxu0 0.0
        %7973 = vmatpush1.msra.mxu0 0.0
        %7974 = vmatprep.subr.mxu0 0.0
        %7975 = vmatpush1.msra.mxu0 0.0
        %7976 = vmatprep.subr.mxu0 0.0
        %7977 = vmatpush1.msra.mxu0 0.0
        %7978 = vmatprep.subr.mxu0 0.0
        %7979 = vmatpush1.msra.mxu0 0.0
        %7980 = vmatprep.subr.mxu0 0.0
        %7981 = vmatpush1.msra.mxu0 0.0
        %7982 = vmatprep.subr.mxu0 0.0
        %7983 = vmatpush1.msra.mxu0 0.0
        %7984 = vmatprep.subr.mxu0 0.0
        %7985 = vmatpush1.msra.mxu0 0.0
        %7986 = vmatprep.subr.mxu0 0.0
        %7987 = vmatpush1.msra.mxu0 0.0
        %7988 = vmatprep.subr.mxu0 0.0
        %7989 = vmatpush1.msra.mxu0 0.0
        %7990 = vmatprep.subr.mxu0 0.0
        %7991 = vmatpush1.msra.mxu0 0.0
        %7992 = vmatprep.subr.mxu0 0.0
        %7993 = vmatpush1.msra.mxu0 0.0
        %7994 = vmatprep.subr.mxu0 0.0
        %7995 = vmatpush1.msra.mxu0 0.0
        %7996 = vmatprep.subr.mxu0 0.0
        %7997 = vmatpush1.msra.mxu0 0.0
        %7998 = vmatprep.subr.mxu0 0.0
        %7999 = vmatpush1.msra.mxu0 0.0
        %8000 = vmatprep.subr.mxu0 0.0
        %8001 = vmatpush1.msra.mxu0 0.0
        %8002 = vmatprep.subr.mxu0 0.0
        %8003 = vmatpush1.msra.mxu0 0.0
        %8004 = vmatprep.subr.mxu0 0.0
        %8005 = vmatpush1.msra.mxu0 0.0
        %8006 = vmatprep.subr.mxu0 0.0
        %8007 = vmatpush1.msra.mxu0 0.0
        %8008 = vmatprep.subr.mxu0 0.0
        %8009 = vmatpush1.msra.mxu0 0.0
        %8010 = vmatprep.subr.mxu0 0.0
        %8011 = vmatpush1.msra.mxu0 0.0
        %8012 = vmatprep.subr.mxu0 0.0
        %8013 = vmatpush1.msra.mxu0 0.0
        %8014 = vmatprep.subr.mxu0 0.0
        %8015 = vmatpush1.msra.mxu0 0.0
        %8016 = vmatprep.subr.mxu0 0.0
        %8017 = vmatpush1.msra.mxu0 0.0
        %8018 = vmatprep.subr.mxu0 0.0
        %8019 = vmatpush1.msra.mxu0 0.0
        %8020 = vmatprep.subr.mxu0 0.0
        %8021 = vmatpush1.msra.mxu0 0.0
        %8022 = vmatprep.subr.mxu0 0.0
        %8023 = vmatpush1.msra.mxu0 0.0
        %8024 = vmatprep.subr.mxu0 0.0
        %8025 = vmatpush1.msra.mxu0 0.0
        %8026 = vmatprep.subr.mxu0 0.0
        %8027 = vmatpush1.msra.mxu0 0.0
        %8028 = vmatprep.subr.mxu0 0.0
        %8029 = vmatpush1.msra.mxu0 0.0
        %8030 = vmatprep.mubr.f32.mxu0 0.0
        %8031 = vmatmul.mubr.f32.gmra.mrb[0].mxu0 %v7777
        %v8032 = vpop.f32.mrb[0].mxu0
        %v8033 = vadd.f32 0.0, %v8032
        %v8034 = vpop.f32.mrb[0].mxu0
        %v8035 = vadd.f32 0.0, %v8034
        %8036 = vmatprep.mubr.f32.mxu0 0.0
        %8037 = vmatmul.mubr.f32.gmra.mrb[0].mxu0 %v7780
        %v8038 = vpop.f32.mrb[0].mxu0
        %v8039 = vadd.f32 0.0, %v8038
        %v8040 = vpop.f32.mrb[0].mxu0
        %v8041 = vadd.f32 0.0, %v8040
        %8042 = vmatprep.mubr.f32.mxu0 0.0
        %8043 = vmatmul.mubr.f32.gmra.mrb[0].mxu0 %v7783
        %v8044 = vpop.f32.mrb[0].mxu0
        %v8045 = vadd.f32 0.0, %v8044
        %v8046 = vpop.f32.mrb[0].mxu0
        %v8047 = vadd.f32 0.0, %v8046
        %8048 = vmatprep.mubr.f32.mxu0 0.0
        %8049 = vmatmul.mubr.f32.gmra.mrb[0].mxu0 %v7786
        %v8050 = vpop.f32.mrb[0].mxu0
        %v8051 = vadd.f32 0.0, %v8050
        %v8052 = vpop.f32.mrb[0].mxu0
        %v8053 = vadd.f32 0.0, %v8052
        %8054 = vdwg.mxu0
        %8055 = vmatprep.subr.mxu0 %v7762
        %8056 = vmatpush1.msra.mxu0 %v7761
        %8057 = vmatprep.subr.mxu0 %v7770
        %8058 = vmatpush1.msra.mxu0 %v7769
        %8059 = vmatprep.subr.mxu0 0.0
        %8060 = vmatpush1.msra.mxu0 0.0
        %8061 = vmatprep.subr.mxu0 0.0
        %8062 = vmatpush1.msra.mxu0 0.0
        %8063 = vmatprep.subr.mxu0 0.0
        %8064 = vmatpush1.msra.mxu0 0.0
        %8065 = vmatprep.subr.mxu0 0.0
        %8066 = vmatpush1.msra.mxu0 0.0
        %8067 = vmatprep.subr.mxu0 0.0
        %8068 = vmatpush1.msra.mxu0 0.0
        %8069 = vmatprep.subr.mxu0 0.0
        %8070 = vmatpush1.msra.mxu0 0.0
        %8071 = vmatprep.subr.mxu0 0.0
        %8072 = vmatpush1.msra.mxu0 0.0
        %8073 = vmatprep.subr.mxu0 0.0
        %8074 = vmatpush1.msra.mxu0 0.0
        %8075 = vmatprep.subr.mxu0 0.0
        %8076 = vmatpush1.msra.mxu0 0.0
        %8077 = vmatprep.subr.mxu0 0.0
        %8078 = vmatpush1.msra.mxu0 0.0
        %8079 = vmatprep.subr.mxu0 0.0
        %8080 = vmatpush1.msra.mxu0 0.0
        %8081 = vmatprep.subr.mxu0 0.0
        %8082 = vmatpush1.msra.mxu0 0.0
        %8083 = vmatprep.subr.mxu0 0.0
        %8084 = vmatpush1.msra.mxu0 0.0
        %8085 = vmatprep.subr.mxu0 0.0
        %8086 = vmatpush1.msra.mxu0 0.0
        %8087 = vmatprep.subr.mxu0 0.0
        %8088 = vmatpush1.msra.mxu0 0.0
        %8089 = vmatprep.subr.mxu0 0.0
        %8090 = vmatpush1.msra.mxu0 0.0
        %8091 = vmatprep.subr.mxu0 0.0
        %8092 = vmatpush1.msra.mxu0 0.0
        %8093 = vmatprep.subr.mxu0 0.0
        %8094 = vmatpush1.msra.mxu0 0.0
        %8095 = vmatprep.subr.mxu0 0.0
        %8096 = vmatpush1.msra.mxu0 0.0
        %8097 = vmatprep.subr.mxu0 0.0
        %8098 = vmatpush1.msra.mxu0 0.0
        %8099 = vmatprep.subr.mxu0 0.0
        %8100 = vmatpush1.msra.mxu0 0.0
        %8101 = vmatprep.subr.mxu0 0.0
        %8102 = vmatpush1.msra.mxu0 0.0
        %8103 = vmatprep.subr.mxu0 0.0
        %8104 = vmatpush1.msra.mxu0 0.0
        %8105 = vmatprep.subr.mxu0 0.0
        %8106 = vmatpush1.msra.mxu0 0.0
        %8107 = vmatprep.subr.mxu0 0.0
        %8108 = vmatpush1.msra.mxu0 0.0
        %8109 = vmatprep.subr.mxu0 0.0
        %8110 = vmatpush1.msra.mxu0 0.0
        %8111 = vmatprep.subr.mxu0 0.0
        %8112 = vmatpush1.msra.mxu0 0.0
        %8113 = vmatprep.subr.mxu0 0.0
        %8114 = vmatpush1.msra.mxu0 0.0
        %8115 = vmatprep.subr.mxu0 0.0
        %8116 = vmatpush1.msra.mxu0 0.0
        %8117 = vmatprep.subr.mxu0 0.0
        %8118 = vmatpush1.msra.mxu0 0.0
        %8119 = vmatprep.mubr.f32.mxu0 0.0
        %8120 = vmatmul.mubr.f32.gmra.mrb[0].mxu0 %v7777
        %v8121 = vpop.f32.mrb[0].mxu0
        %v8122 = vadd.f32 0.0, %v8121
        %v8123 = vpop.f32.mrb[0].mxu0
        %v8124 = vadd.f32 0.0, %v8123
        %8125 = vmatprep.mubr.f32.mxu0 0.0
        %8126 = vmatmul.mubr.f32.gmra.mrb[0].mxu0 %v7780
        %v8127 = vpop.f32.mrb[0].mxu0
        %v8128 = vadd.f32 0.0, %v8127
        %v8129 = vpop.f32.mrb[0].mxu0
        %v8130 = vadd.f32 0.0, %v8129
        %8131 = vmatprep.mubr.f32.mxu0 0.0
        %8132 = vmatmul.mubr.f32.gmra.mrb[0].mxu0 %v7783
        %v8133 = vpop.f32.mrb[0].mxu0
        %v8134 = vadd.f32 0.0, %v8133
        %v8135 = vpop.f32.mrb[0].mxu0
        %v8136 = vadd.f32 0.0, %v8135
        %8137 = vmatprep.mubr.f32.mxu0 0.0
        %8138 = vmatmul.mubr.f32.gmra.mrb[0].mxu0 %v7786
        %v8139 = vpop.f32.mrb[0].mxu0
        %v8140 = vadd.f32 0.0, %v8139
        %v8141 = vpop.f32.mrb[0].mxu0
        %v8142 = vadd.f32 0.0, %v8141
        %8143 = vdwg.mxu0
        %v8144 = vadd.f32 %v7659, %v7855
        %v8145 = vadd.f32 %v7660, %v7857
        %v8146 = vadd.f32 %v7661, %v7944
        %v8147 = vadd.f32 %v7662, %v7946
        %v8148 = vadd.f32 %v7663, %v8033
        %v8149 = vadd.f32 %v7664, %v8035
        %v8150 = vadd.f32 %v7665, %v8122
        %v8151 = vadd.f32 %v7666, %v8124
        %v8152 = vadd.f32 %v7667, %v7861
        %v8153 = vadd.f32 %v7668, %v7863
        %v8154 = vadd.f32 %v7669, %v7950
        %v8155 = vadd.f32 %v7670, %v7952
        %v8156 = vadd.f32 %v7671, %v8039
        %v8157 = vadd.f32 %v7672, %v8041
        %v8158 = vadd.f32 %v7673, %v8128
        %v8159 = vadd.f32 %v7674, %v8130
        %v8160 = vadd.f32 %v7675, %v7867
        %v8161 = vadd.f32 %v7676, %v7869
        %v8162 = vadd.f32 %v7677, %v7956
        %v8163 = vadd.f32 %v7678, %v7958
        %v8164 = vadd.f32 %v7679, %v8045
        %v8165 = vadd.f32 %v7680, %v8047
        %v8166 = vadd.f32 %v7681, %v8134
        %v8167 = vadd.f32 %v7682, %v8136
        %v8168 = vadd.f32 %v7683, %v7873
        %v8169 = vadd.f32 %v7684, %v7875
        %v8170 = vadd.f32 %v7685, %v7962
        %v8171 = vadd.f32 %v7686, %v7964
        %v8172 = vadd.f32 %v7687, %v8051
        %v8173 = vadd.f32 %v7688, %v8053
        %v8174 = vadd.f32 %v7689, %v8140
        %v8175 = vadd.f32 %v7690, %v8142
        %v8176 = vld [vmem:[%s4] sm:$0xff]
        %v8177 = vld [vmem:[%s4 + $0x8] sm:$0xff]
        %v8178 = vld [vmem:[%s4 + $0x10] sm:$0xff]
        %v8179 = vld [vmem:[%s4 + $0x18] sm:$0xff]
        %8181 = vset.pattern.permute.xlu0 0
        %8182 = vperm.xlu0 %8181, %v8176
        %v8183 = vpop.permute.xlu0 %8182
        %8186 = vset.pattern.permute.xlu0 0
        %8187 = vperm.xlu0 %8186, %v8177
        %v8188 = vpop.permute.xlu0 %8187
        %8191 = vset.pattern.permute.xlu0 0
        %8192 = vperm.xlu0 %8191, %v8178
        %v8193 = vpop.permute.xlu0 %8192
        %8196 = vset.pattern.permute.xlu0 0
        %8197 = vperm.xlu0 %8196, %v8179
        %v8198 = vpop.permute.xlu0 %8197
        %v8200 = vadd.f32 %v8144, %v8183
        %v8201 = vadd.f32 %v8145, %v8183
        %v8202 = vadd.f32 %v8146, %v8183
        %v8203 = vadd.f32 %v8147, %v8183
        %v8204 = vadd.f32 %v8148, %v8183
        %v8205 = vadd.f32 %v8149, %v8183
        %v8206 = vadd.f32 %v8150, %v8183
        %v8207 = vadd.f32 %v8151, %v8183
        %v8208 = vadd.f32 %v8152, %v8188
        %v8209 = vadd.f32 %v8153, %v8188
        %v8210 = vadd.f32 %v8154, %v8188
        %v8211 = vadd.f32 %v8155, %v8188
        %v8212 = vadd.f32 %v8156, %v8188
        %v8213 = vadd.f32 %v8157, %v8188
        %v8214 = vadd.f32 %v8158, %v8188
        %v8215 = vadd.f32 %v8159, %v8188
        %v8216 = vadd.f32 %v8160, %v8193
        %v8217 = vadd.f32 %v8161, %v8193
        %v8218 = vadd.f32 %v8162, %v8193
        %v8219 = vadd.f32 %v8163, %v8193
        %v8220 = vadd.f32 %v8164, %v8193
        %v8221 = vadd.f32 %v8165, %v8193
        %v8222 = vadd.f32 %v8166, %v8193
        %v8223 = vadd.f32 %v8167, %v8193
        %v8224 = vadd.f32 %v8168, %v8198
        %v8225 = vadd.f32 %v8169, %v8198
        %v8226 = vadd.f32 %v8170, %v8198
        %v8227 = vadd.f32 %v8171, %v8198
        %v8228 = vadd.f32 %v8172, %v8198
        %v8229 = vadd.f32 %v8173, %v8198
        %v8230 = vadd.f32 %v8174, %v8198
        %v8231 = vadd.f32 %v8175, %v8198
        %v8232 = vmax.f32 %v8200, 0.0
        %v8233 = vmax.f32 %v8201, 0.0
        %v8234 = vmax.f32 %v8202, 0.0
        %v8235 = vmax.f32 %v8203, 0.0
        %v8236 = vmax.f32 %v8204, 0.0
        %v8237 = vmax.f32 %v8205, 0.0
        %v8238 = vmax.f32 %v8206, 0.0
        %v8239 = vmax.f32 %v8207, 0.0
        %v8240 = vmax.f32 %v8208, 0.0
        %v8241 = vmax.f32 %v8209, 0.0
        %v8242 = vmax.f32 %v8210, 0.0
        %v8243 = vmax.f32 %v8211, 0.0
        %v8244 = vmax.f32 %v8212, 0.0
        %v8245 = vmax.f32 %v8213, 0.0
        %v8246 = vmax.f32 %v8214, 0.0
        %v8247 = vmax.f32 %v8215, 0.0
        %v8248 = vmax.f32 %v8216, 0.0
        %v8249 = vmax.f32 %v8217, 0.0
        %v8250 = vmax.f32 %v8218, 0.0
        %v8251 = vmax.f32 %v8219, 0.0
        %v8252 = vmax.f32 %v8220, 0.0
        %v8253 = vmax.f32 %v8221, 0.0
        %v8254 = vmax.f32 %v8222, 0.0
        %v8255 = vmax.f32 %v8223, 0.0
        %v8256 = vmax.f32 %v8224, 0.0
        %v8257 = vmax.f32 %v8225, 0.0
        %v8258 = vmax.f32 %v8226, 0.0
        %v8259 = vmax.f32 %v8227, 0.0
        %v8260 = vmax.f32 %v8228, 0.0
        %v8261 = vmax.f32 %v8229, 0.0
        %v8262 = vmax.f32 %v8230, 0.0
        %v8263 = vmax.f32 %v8231, 0.0
        %v8264 = vld [vmem:[#allocation5] sm:$0x1]
        %v8265 = vld [vmem:[#allocation2] sm:$0xff]
        %v8266 = vld [vmem:[#allocation2 + $0x8] sm:$0xff]
        %v8267 = vld [vmem:[#allocation2 + $0x10] sm:$0xff]
        %v8268 = vld [vmem:[#allocation2 + $0x18] sm:$0xff]
        %v8269 = vld [vmem:[#allocation2 + $0x20] sm:$0xff]
        %v8270 = vld [vmem:[#allocation2 + $0x28] sm:$0xff]
        %v8271 = vld [vmem:[#allocation2 + $0x30] sm:$0xff]
        %v8272 = vld [vmem:[#allocation2 + $0x38] sm:$0xff]
        %v8273 = vld [vmem:[#allocation2 + $0x40] sm:$0xff]
        %v8274 = vld [vmem:[#allocation2 + $0x48] sm:$0xff]
        %v8275 = vld [vmem:[#allocation2 + $0x50] sm:$0xff]
        %v8276 = vld [vmem:[#allocation2 + $0x58] sm:$0xff]
        %v8277 = vld [vmem:[#allocation2 + $0x60] sm:$0xff]
        %v8278 = vld [vmem:[#allocation2 + $0x68] sm:$0xff]
        %v8279 = vld [vmem:[#allocation2 + $0x70] sm:$0xff]
        %v8280 = vld [vmem:[#allocation2 + $0x78] sm:$0xff]
        %v8281 = vld [vmem:[#allocation2 + $0x80] sm:$0xff]
        %v8282 = vld [vmem:[#allocation2 + $0x88] sm:$0xff]
        %v8283 = vld [vmem:[#allocation2 + $0x90] sm:$0xff]
        %v8284 = vld [vmem:[#allocation2 + $0x98] sm:$0xff]
        %v8285 = vld [vmem:[#allocation2 + $0xa0] sm:$0xff]
        %v8286 = vld [vmem:[#allocation2 + $0xa8] sm:$0xff]
        %v8287 = vld [vmem:[#allocation2 + $0xb0] sm:$0xff]
        %v8288 = vld [vmem:[#allocation2 + $0xb8] sm:$0xff]
        %v8289 = vld [vmem:[#allocation2 + $0xc0] sm:$0xff]
        %v8290 = vld [vmem:[#allocation2 + $0xc8] sm:$0xff]
        %v8291 = vld [vmem:[#allocation2 + $0xd0] sm:$0xff]
        %v8292 = vld [vmem:[#allocation2 + $0xd8] sm:$0xff]
        %v8293 = vld [vmem:[#allocation2 + $0xe0] sm:$0xff]
        %v8294 = vld [vmem:[#allocation2 + $0xe8] sm:$0xff]
        %v8295 = vld [vmem:[#allocation2 + $0xf0] sm:$0xff]
        %v8296 = vld [vmem:[#allocation2 + $0xf8] sm:$0xff]
        %v8297 = vmul.f32 %v8265, %v8232
        %v8298 = vmul.f32 %v8266, %v8233
        %v8299 = vmul.f32 %v8267, %v8234
        %v8300 = vmul.f32 %v8268, %v8235
        %v8301 = vmul.f32 %v8269, %v8236
        %v8302 = vmul.f32 %v8270, %v8237
        %v8303 = vmul.f32 %v8271, %v8238
        %v8304 = vmul.f32 %v8272, %v8239
        %v8305 = vmul.f32 %v8273, %v8240
        %v8306 = vmul.f32 %v8274, %v8241
        %v8307 = vmul.f32 %v8275, %v8242
        %v8308 = vmul.f32 %v8276, %v8243
        %v8309 = vmul.f32 %v8277, %v8244
        %v8310 = vmul.f32 %v8278, %v8245
        %v8311 = vmul.f32 %v8279, %v8246
        %v8312 = vmul.f32 %v8280, %v8247
        %v8313 = vmul.f32 %v8281, %v8248
        %v8314 = vmul.f32 %v8282, %v8249
        %v8315 = vmul.f32 %v8283, %v8250
        %v8316 = vmul.f32 %v8284, %v8251
        %v8317 = vmul.f32 %v8285, %v8252
        %v8318 = vmul.f32 %v8286, %v8253
        %v8319 = vmul.f32 %v8287, %v8254
        %v8320 = vmul.f32 %v8288, %v8255
        %v8321 = vmul.f32 %v8289, %v8256
        %v8322 = vmul.f32 %v8290, %v8257
        %v8323 = vmul.f32 %v8291, %v8258
        %v8324 = vmul.f32 %v8292, %v8259
        %v8325 = vmul.f32 %v8293, %v8260
        %v8326 = vmul.f32 %v8294, %v8261
        %v8327 = vmul.f32 %v8295, %v8262
        %v8328 = vmul.f32 %v8296, %v8263
        %v8329 = vadd.f32 %v8297, %v8298
        %v8330 = vadd.f32 %v8329, %v8299
        %v8331 = vadd.f32 %v8330, %v8300
        %v8332 = vadd.f32 %v8331, %v8301
        %v8333 = vadd.f32 %v8332, %v8302
        %v8334 = vadd.f32 %v8333, %v8303
        %v8335 = vadd.f32 %v8334, %v8304
        %8336 = vadd.xlane.f32.xlu0 %v8335
        %v8337 = vpop.xlane.xlu0 %8336
        %v8338 = vadd.f32 %v8305, %v8306
        %v8339 = vadd.f32 %v8338, %v8307
        %v8340 = vadd.f32 %v8339, %v8308
        %v8341 = vadd.f32 %v8340, %v8309
        %v8342 = vadd.f32 %v8341, %v8310
        %v8343 = vadd.f32 %v8342, %v8311
        %v8344 = vadd.f32 %v8343, %v8312
        %8345 = vadd.xlane.f32.xlu0 %v8344
        %v8346 = vpop.xlane.xlu0 %8345
        %v8347 = vadd.f32 %v8313, %v8314
        %v8348 = vadd.f32 %v8347, %v8315
        %v8349 = vadd.f32 %v8348, %v8316
        %v8350 = vadd.f32 %v8349, %v8317
        %v8351 = vadd.f32 %v8350, %v8318
        %v8352 = vadd.f32 %v8351, %v8319
        %v8353 = vadd.f32 %v8352, %v8320
        %8354 = vadd.xlane.f32.xlu0 %v8353
        %v8355 = vpop.xlane.xlu0 %8354
        %v8356 = vadd.f32 %v8321, %v8322
        %v8357 = vadd.f32 %v8356, %v8323
        %v8358 = vadd.f32 %v8357, %v8324
        %v8359 = vadd.f32 %v8358, %v8325
        %v8360 = vadd.f32 %v8359, %v8326
        %v8361 = vadd.f32 %v8360, %v8327
        %v8362 = vadd.f32 %v8361, %v8328
        %8363 = vadd.xlane.f32.xlu0 %v8362
        %v8364 = vpop.xlane.xlu0 %8363
        %v8365 = vadd.f32 %v8337, %v8346
        %v8366 = vadd.f32 %v8365, %v8355
        %v8367 = vadd.f32 %v8366, %v8364
        %v8368 = vrot.slane %v8367, 4
        %v8369 = vadd.f32 %v8367, %v8368
        %v8370 = vrot.slane %v8369, 2
        %v8371 = vadd.f32 %v8369, %v8370
        %v8372 = vrot.slane %v8371, 1
        %v8373 = vadd.f32 %v8371, %v8372
        %vm8374 = vcmp.eq.s32.totalorder %v305, 0
        %v8375 = vsel %vm8374, %v8373, 0.0
        %v8376 = vadd.f32 %v8264, %v8375
        %s8377 = scalar_lea.vmem [#allocation2], 256
        %v8378 = vld [vmem:[%s8377] sm:$0xff]
        %v8379 = vld [vmem:[%s8377 + $0x8] sm:$0xff]
        %v8380 = vld [vmem:[%s8377 + $0x10] sm:$0xff]
        %v8381 = vld [vmem:[%s8377 + $0x18] sm:$0xff]
        %v8382 = vld [vmem:[%s8377 + $0x20] sm:$0xff]
        %v8383 = vld [vmem:[%s8377 + $0x28] sm:$0xff]
        %v8384 = vld [vmem:[%s8377 + $0x30] sm:$0xff]
        %v8385 = vld [vmem:[%s8377 + $0x38] sm:$0xff]
        %v8386 = vld [vmem:[%s8377 + $0x40] sm:$0xff]
        %v8387 = vld [vmem:[%s8377 + $0x48] sm:$0xff]
        %v8388 = vld [vmem:[%s8377 + $0x50] sm:$0xff]
        %v8389 = vld [vmem:[%s8377 + $0x58] sm:$0xff]
        %v8390 = vld [vmem:[%s8377 + $0x60] sm:$0xff]
        %v8391 = vld [vmem:[%s8377 + $0x68] sm:$0xff]
        %v8392 = vld [vmem:[%s8377 + $0x70] sm:$0xff]
        %v8393 = vld [vmem:[%s8377 + $0x78] sm:$0xff]
        %v8394 = vld [vmem:[%s8377 + $0x80] sm:$0xff]
        %v8395 = vld [vmem:[%s8377 + $0x88] sm:$0xff]
        %v8396 = vld [vmem:[%s8377 + $0x90] sm:$0xff]
        %v8397 = vld [vmem:[%s8377 + $0x98] sm:$0xff]
        %v8398 = vld [vmem:[%s8377 + $0xa0] sm:$0xff]
        %v8399 = vld [vmem:[%s8377 + $0xa8] sm:$0xff]
        %v8400 = vld [vmem:[%s8377 + $0xb0] sm:$0xff]
        %v8401 = vld [vmem:[%s8377 + $0xb8] sm:$0xff]
        %v8402 = vld [vmem:[%s8377 + $0xc0] sm:$0xff]
        %v8403 = vld [vmem:[%s8377 + $0xc8] sm:$0xff]
        %v8404 = vld [vmem:[%s8377 + $0xd0] sm:$0xff]
        %v8405 = vld [vmem:[%s8377 + $0xd8] sm:$0xff]
        %v8406 = vld [vmem:[%s8377 + $0xe0] sm:$0xff]
        %v8407 = vld [vmem:[%s8377 + $0xe8] sm:$0xff]
        %v8408 = vld [vmem:[%s8377 + $0xf0] sm:$0xff]
        %v8409 = vld [vmem:[%s8377 + $0xf8] sm:$0xff]
        %v8410 = vmul.f32 %v8378, %v8232
        %v8411 = vmul.f32 %v8379, %v8233
        %v8412 = vmul.f32 %v8380, %v8234
        %v8413 = vmul.f32 %v8381, %v8235
        %v8414 = vmul.f32 %v8382, %v8236
        %v8415 = vmul.f32 %v8383, %v8237
        %v8416 = vmul.f32 %v8384, %v8238
        %v8417 = vmul.f32 %v8385, %v8239
        %v8418 = vmul.f32 %v8386, %v8240
        %v8419 = vmul.f32 %v8387, %v8241
        %v8420 = vmul.f32 %v8388, %v8242
        %v8421 = vmul.f32 %v8389, %v8243
        %v8422 = vmul.f32 %v8390, %v8244
        %v8423 = vmul.f32 %v8391, %v8245
        %v8424 = vmul.f32 %v8392, %v8246
        %v8425 = vmul.f32 %v8393, %v8247
        %v8426 = vmul.f32 %v8394, %v8248
        %v8427 = vmul.f32 %v8395, %v8249
        %v8428 = vmul.f32 %v8396, %v8250
        %v8429 = vmul.f32 %v8397, %v8251
        %v8430 = vmul.f32 %v8398, %v8252
        %v8431 = vmul.f32 %v8399, %v8253
        %v8432 = vmul.f32 %v8400, %v8254
        %v8433 = vmul.f32 %v8401, %v8255
        %v8434 = vmul.f32 %v8402, %v8256
        %v8435 = vmul.f32 %v8403, %v8257
        %v8436 = vmul.f32 %v8404, %v8258
        %v8437 = vmul.f32 %v8405, %v8259
        %v8438 = vmul.f32 %v8406, %v8260
        %v8439 = vmul.f32 %v8407, %v8261
        %v8440 = vmul.f32 %v8408, %v8262
        %v8441 = vmul.f32 %v8409, %v8263
        %v8442 = vadd.f32 %v8410, %v8411
        %v8443 = vadd.f32 %v8442, %v8412
        %v8444 = vadd.f32 %v8443, %v8413
        %v8445 = vadd.f32 %v8444, %v8414
        %v8446 = vadd.f32 %v8445, %v8415
        %v8447 = vadd.f32 %v8446, %v8416
        %v8448 = vadd.f32 %v8447, %v8417
        %8449 = vadd.xlane.f32.xlu0 %v8448
        %v8450 = vpop.xlane.xlu0 %8449
        %v8451 = vadd.f32 %v8418, %v8419
        %v8452 = vadd.f32 %v8451, %v8420
        %v8453 = vadd.f32 %v8452, %v8421
        %v8454 = vadd.f32 %v8453, %v8422
        %v8455 = vadd.f32 %v8454, %v8423
        %v8456 = vadd.f32 %v8455, %v8424
        %v8457 = vadd.f32 %v8456, %v8425
        %8458 = vadd.xlane.f32.xlu0 %v8457
        %v8459 = vpop.xlane.xlu0 %8458
        %v8460 = vadd.f32 %v8426, %v8427
        %v8461 = vadd.f32 %v8460, %v8428
        %v8462 = vadd.f32 %v8461, %v8429
        %v8463 = vadd.f32 %v8462, %v8430
        %v8464 = vadd.f32 %v8463, %v8431
        %v8465 = vadd.f32 %v8464, %v8432
        %v8466 = vadd.f32 %v8465, %v8433
        %8467 = vadd.xlane.f32.xlu0 %v8466
        %v8468 = vpop.xlane.xlu0 %8467
        %v8469 = vadd.f32 %v8434, %v8435
        %v8470 = vadd.f32 %v8469, %v8436
        %v8471 = vadd.f32 %v8470, %v8437
        %v8472 = vadd.f32 %v8471, %v8438
        %v8473 = vadd.f32 %v8472, %v8439
        %v8474 = vadd.f32 %v8473, %v8440
        %v8475 = vadd.f32 %v8474, %v8441
        %8476 = vadd.xlane.f32.xlu0 %v8475
        %v8477 = vpop.xlane.xlu0 %8476
        %v8478 = vadd.f32 %v8450, %v8459
        %v8479 = vadd.f32 %v8478, %v8468
        %v8480 = vadd.f32 %v8479, %v8477
        %v8481 = vrot.slane %v8480, 4
        %v8482 = vadd.f32 %v8480, %v8481
        %v8483 = vrot.slane %v8482, 2
        %v8484 = vadd.f32 %v8482, %v8483
        %v8485 = vrot.slane %v8484, 1
        %v8486 = vadd.f32 %v8484, %v8485
        %vm8487 = vcmp.eq.s32.totalorder %v305, 1
        %v8488 = vsel %vm8487, %v8486, 0.0
        %v8489 = vadd.f32 %v8376, %v8488
        %s8490 = scalar_lea.vmem [#allocation2], 512
        %v8491 = vld [vmem:[%s8490] sm:$0xff]
        %v8492 = vld [vmem:[%s8490 + $0x8] sm:$0xff]
        %v8493 = vld [vmem:[%s8490 + $0x10] sm:$0xff]
        %v8494 = vld [vmem:[%s8490 + $0x18] sm:$0xff]
        %v8495 = vld [vmem:[%s8490 + $0x20] sm:$0xff]
        %v8496 = vld [vmem:[%s8490 + $0x28] sm:$0xff]
        %v8497 = vld [vmem:[%s8490 + $0x30] sm:$0xff]
        %v8498 = vld [vmem:[%s8490 + $0x38] sm:$0xff]
        %v8499 = vld [vmem:[%s8490 + $0x40] sm:$0xff]
        %v8500 = vld [vmem:[%s8490 + $0x48] sm:$0xff]
        %v8501 = vld [vmem:[%s8490 + $0x50] sm:$0xff]
        %v8502 = vld [vmem:[%s8490 + $0x58] sm:$0xff]
        %v8503 = vld [vmem:[%s8490 + $0x60] sm:$0xff]
        %v8504 = vld [vmem:[%s8490 + $0x68] sm:$0xff]
        %v8505 = vld [vmem:[%s8490 + $0x70] sm:$0xff]
        %v8506 = vld [vmem:[%s8490 + $0x78] sm:$0xff]
        %v8507 = vld [vmem:[%s8490 + $0x80] sm:$0xff]
        %v8508 = vld [vmem:[%s8490 + $0x88] sm:$0xff]
        %v8509 = vld [vmem:[%s8490 + $0x90] sm:$0xff]
        %v8510 = vld [vmem:[%s8490 + $0x98] sm:$0xff]
        %v8511 = vld [vmem:[%s8490 + $0xa0] sm:$0xff]
        %v8512 = vld [vmem:[%s8490 + $0xa8] sm:$0xff]
        %v8513 = vld [vmem:[%s8490 + $0xb0] sm:$0xff]
        %v8514 = vld [vmem:[%s8490 + $0xb8] sm:$0xff]
        %v8515 = vld [vmem:[%s8490 + $0xc0] sm:$0xff]
        %v8516 = vld [vmem:[%s8490 + $0xc8] sm:$0xff]
        %v8517 = vld [vmem:[%s8490 + $0xd0] sm:$0xff]
        %v8518 = vld [vmem:[%s8490 + $0xd8] sm:$0xff]
        %v8519 = vld [vmem:[%s8490 + $0xe0] sm:$0xff]
        %v8520 = vld [vmem:[%s8490 + $0xe8] sm:$0xff]
        %v8521 = vld [vmem:[%s8490 + $0xf0] sm:$0xff]
        %v8522 = vld [vmem:[%s8490 + $0xf8] sm:$0xff]
        %v8523 = vmul.f32 %v8491, %v8232
        %v8524 = vmul.f32 %v8492, %v8233
        %v8525 = vmul.f32 %v8493, %v8234
        %v8526 = vmul.f32 %v8494, %v8235
        %v8527 = vmul.f32 %v8495, %v8236
        %v8528 = vmul.f32 %v8496, %v8237
        %v8529 = vmul.f32 %v8497, %v8238
        %v8530 = vmul.f32 %v8498, %v8239
        %v8531 = vmul.f32 %v8499, %v8240
        %v8532 = vmul.f32 %v8500, %v8241
        %v8533 = vmul.f32 %v8501, %v8242
        %v8534 = vmul.f32 %v8502, %v8243
        %v8535 = vmul.f32 %v8503, %v8244
        %v8536 = vmul.f32 %v8504, %v8245
        %v8537 = vmul.f32 %v8505, %v8246
        %v8538 = vmul.f32 %v8506, %v8247
        %v8539 = vmul.f32 %v8507, %v8248
        %v8540 = vmul.f32 %v8508, %v8249
        %v8541 = vmul.f32 %v8509, %v8250
        %v8542 = vmul.f32 %v8510, %v8251
        %v8543 = vmul.f32 %v8511, %v8252
        %v8544 = vmul.f32 %v8512, %v8253
        %v8545 = vmul.f32 %v8513, %v8254
        %v8546 = vmul.f32 %v8514, %v8255
        %v8547 = vmul.f32 %v8515, %v8256
        %v8548 = vmul.f32 %v8516, %v8257
        %v8549 = vmul.f32 %v8517, %v8258
        %v8550 = vmul.f32 %v8518, %v8259
        %v8551 = vmul.f32 %v8519, %v8260
        %v8552 = vmul.f32 %v8520, %v8261
        %v8553 = vmul.f32 %v8521, %v8262
        %v8554 = vmul.f32 %v8522, %v8263
        %v8555 = vadd.f32 %v8523, %v8524
        %v8556 = vadd.f32 %v8555, %v8525
        %v8557 = vadd.f32 %v8556, %v8526
        %v8558 = vadd.f32 %v8557, %v8527
        %v8559 = vadd.f32 %v8558, %v8528
        %v8560 = vadd.f32 %v8559, %v8529
        %v8561 = vadd.f32 %v8560, %v8530
        %8562 = vadd.xlane.f32.xlu0 %v8561
        %v8563 = vpop.xlane.xlu0 %8562
        %v8564 = vadd.f32 %v8531, %v8532
        %v8565 = vadd.f32 %v8564, %v8533
        %v8566 = vadd.f32 %v8565, %v8534
        %v8567 = vadd.f32 %v8566, %v8535
        %v8568 = vadd.f32 %v8567, %v8536
        %v8569 = vadd.f32 %v8568, %v8537
        %v8570 = vadd.f32 %v8569, %v8538
        %8571 = vadd.xlane.f32.xlu0 %v8570
        %v8572 = vpop.xlane.xlu0 %8571
        %v8573 = vadd.f32 %v8539, %v8540
        %v8574 = vadd.f32 %v8573, %v8541
        %v8575 = vadd.f32 %v8574, %v8542
        %v8576 = vadd.f32 %v8575, %v8543
        %v8577 = vadd.f32 %v8576, %v8544
        %v8578 = vadd.f32 %v8577, %v8545
        %v8579 = vadd.f32 %v8578, %v8546
        %8580 = vadd.xlane.f32.xlu0 %v8579
        %v8581 = vpop.xlane.xlu0 %8580
        %v8582 = vadd.f32 %v8547, %v8548
        %v8583 = vadd.f32 %v8582, %v8549
        %v8584 = vadd.f32 %v8583, %v8550
        %v8585 = vadd.f32 %v8584, %v8551
        %v8586 = vadd.f32 %v8585, %v8552
        %v8587 = vadd.f32 %v8586, %v8553
        %v8588 = vadd.f32 %v8587, %v8554
        %8589 = vadd.xlane.f32.xlu0 %v8588
        %v8590 = vpop.xlane.xlu0 %8589
        %v8591 = vadd.f32 %v8563, %v8572
        %v8592 = vadd.f32 %v8591, %v8581
        %v8593 = vadd.f32 %v8592, %v8590
        %v8594 = vrot.slane %v8593, 4
        %v8595 = vadd.f32 %v8593, %v8594
        %v8596 = vrot.slane %v8595, 2
        %v8597 = vadd.f32 %v8595, %v8596
        %v8598 = vrot.slane %v8597, 1
        %v8599 = vadd.f32 %v8597, %v8598
        %vm8600 = vcmp.eq.s32.totalorder %v305, 2
        %v8601 = vsel %vm8600, %v8599, 0.0
        %v8602 = vadd.f32 %v8489, %v8601
        %s8603 = scalar_lea.vmem [#allocation2], 768
        %v8604 = vld [vmem:[%s8603] sm:$0xff]
        %v8605 = vld [vmem:[%s8603 + $0x8] sm:$0xff]
        %v8606 = vld [vmem:[%s8603 + $0x10] sm:$0xff]
        %v8607 = vld [vmem:[%s8603 + $0x18] sm:$0xff]
        %v8608 = vld [vmem:[%s8603 + $0x20] sm:$0xff]
        %v8609 = vld [vmem:[%s8603 + $0x28] sm:$0xff]
        %v8610 = vld [vmem:[%s8603 + $0x30] sm:$0xff]
        %v8611 = vld [vmem:[%s8603 + $0x38] sm:$0xff]
        %v8612 = vld [vmem:[%s8603 + $0x40] sm:$0xff]
        %v8613 = vld [vmem:[%s8603 + $0x48] sm:$0xff]
        %v8614 = vld [vmem:[%s8603 + $0x50] sm:$0xff]
        %v8615 = vld [vmem:[%s8603 + $0x58] sm:$0xff]
        %v8616 = vld [vmem:[%s8603 + $0x60] sm:$0xff]
        %v8617 = vld [vmem:[%s8603 + $0x68] sm:$0xff]
        %v8618 = vld [vmem:[%s8603 + $0x70] sm:$0xff]
        %v8619 = vld [vmem:[%s8603 + $0x78] sm:$0xff]
        %v8620 = vld [vmem:[%s8603 + $0x80] sm:$0xff]
        %v8621 = vld [vmem:[%s8603 + $0x88] sm:$0xff]
        %v8622 = vld [vmem:[%s8603 + $0x90] sm:$0xff]
        %v8623 = vld [vmem:[%s8603 + $0x98] sm:$0xff]
        %v8624 = vld [vmem:[%s8603 + $0xa0] sm:$0xff]
        %v8625 = vld [vmem:[%s8603 + $0xa8] sm:$0xff]
        %v8626 = vld [vmem:[%s8603 + $0xb0] sm:$0xff]
        %v8627 = vld [vmem:[%s8603 + $0xb8] sm:$0xff]
        %v8628 = vld [vmem:[%s8603 + $0xc0] sm:$0xff]
        %v8629 = vld [vmem:[%s8603 + $0xc8] sm:$0xff]
        %v8630 = vld [vmem:[%s8603 + $0xd0] sm:$0xff]
        %v8631 = vld [vmem:[%s8603 + $0xd8] sm:$0xff]
        %v8632 = vld [vmem:[%s8603 + $0xe0] sm:$0xff]
        %v8633 = vld [vmem:[%s8603 + $0xe8] sm:$0xff]
        %v8634 = vld [vmem:[%s8603 + $0xf0] sm:$0xff]
        %v8635 = vld [vmem:[%s8603 + $0xf8] sm:$0xff]
        %v8636 = vmul.f32 %v8604, %v8232
        %v8637 = vmul.f32 %v8605, %v8233
        %v8638 = vmul.f32 %v8606, %v8234
        %v8639 = vmul.f32 %v8607, %v8235
        %v8640 = vmul.f32 %v8608, %v8236
        %v8641 = vmul.f32 %v8609, %v8237
        %v8642 = vmul.f32 %v8610, %v8238
        %v8643 = vmul.f32 %v8611, %v8239
        %v8644 = vmul.f32 %v8612, %v8240
        %v8645 = vmul.f32 %v8613, %v8241
        %v8646 = vmul.f32 %v8614, %v8242
        %v8647 = vmul.f32 %v8615, %v8243
        %v8648 = vmul.f32 %v8616, %v8244
        %v8649 = vmul.f32 %v8617, %v8245
        %v8650 = vmul.f32 %v8618, %v8246
        %v8651 = vmul.f32 %v8619, %v8247
        %v8652 = vmul.f32 %v8620, %v8248
        %v8653 = vmul.f32 %v8621, %v8249
        %v8654 = vmul.f32 %v8622, %v8250
        %v8655 = vmul.f32 %v8623, %v8251
        %v8656 = vmul.f32 %v8624, %v8252
        %v8657 = vmul.f32 %v8625, %v8253
        %v8658 = vmul.f32 %v8626, %v8254
        %v8659 = vmul.f32 %v8627, %v8255
        %v8660 = vmul.f32 %v8628, %v8256
        %v8661 = vmul.f32 %v8629, %v8257
        %v8662 = vmul.f32 %v8630, %v8258
        %v8663 = vmul.f32 %v8631, %v8259
        %v8664 = vmul.f32 %v8632, %v8260
        %v8665 = vmul.f32 %v8633, %v8261
        %v8666 = vmul.f32 %v8634, %v8262
        %v8667 = vmul.f32 %v8635, %v8263
        %v8668 = vadd.f32 %v8636, %v8637
        %v8669 = vadd.f32 %v8668, %v8638
        %v8670 = vadd.f32 %v8669, %v8639
        %v8671 = vadd.f32 %v8670, %v8640
        %v8672 = vadd.f32 %v8671, %v8641
        %v8673 = vadd.f32 %v8672, %v8642
        %v8674 = vadd.f32 %v8673, %v8643
        %8675 = vadd.xlane.f32.xlu0 %v8674
        %v8676 = vpop.xlane.xlu0 %8675
        %v8677 = vadd.f32 %v8644, %v8645
        %v8678 = vadd.f32 %v8677, %v8646
        %v8679 = vadd.f32 %v8678, %v8647
        %v8680 = vadd.f32 %v8679, %v8648
        %v8681 = vadd.f32 %v8680, %v8649
        %v8682 = vadd.f32 %v8681, %v8650
        %v8683 = vadd.f32 %v8682, %v8651
        %8684 = vadd.xlane.f32.xlu0 %v8683
        %v8685 = vpop.xlane.xlu0 %8684
        %v8686 = vadd.f32 %v8652, %v8653
        %v8687 = vadd.f32 %v8686, %v8654
        %v8688 = vadd.f32 %v8687, %v8655
        %v8689 = vadd.f32 %v8688, %v8656
        %v8690 = vadd.f32 %v8689, %v8657
        %v8691 = vadd.f32 %v8690, %v8658
        %v8692 = vadd.f32 %v8691, %v8659
        %8693 = vadd.xlane.f32.xlu0 %v8692
        %v8694 = vpop.xlane.xlu0 %8693
        %v8695 = vadd.f32 %v8660, %v8661
        %v8696 = vadd.f32 %v8695, %v8662
        %v8697 = vadd.f32 %v8696, %v8663
        %v8698 = vadd.f32 %v8697, %v8664
        %v8699 = vadd.f32 %v8698, %v8665
        %v8700 = vadd.f32 %v8699, %v8666
        %v8701 = vadd.f32 %v8700, %v8667
        %8702 = vadd.xlane.f32.xlu0 %v8701
        %v8703 = vpop.xlane.xlu0 %8702
        %v8704 = vadd.f32 %v8676, %v8685
        %v8705 = vadd.f32 %v8704, %v8694
        %v8706 = vadd.f32 %v8705, %v8703
        %v8707 = vrot.slane %v8706, 4
        %v8708 = vadd.f32 %v8706, %v8707
        %v8709 = vrot.slane %v8708, 2
        %v8710 = vadd.f32 %v8708, %v8709
        %v8711 = vrot.slane %v8710, 1
        %v8712 = vadd.f32 %v8710, %v8711
        %vm8713 = vcmp.eq.s32.totalorder %v305, 3
        %v8714 = vsel %vm8713, %v8712, 0.0
        %v8715 = vadd.f32 %v8602, %v8714
        %s8716 = scalar_lea.vmem [#allocation2], 1024
        %v8717 = vld [vmem:[%s8716] sm:$0xff]
        %v8718 = vld [vmem:[%s8716 + $0x8] sm:$0xff]
        %v8719 = vld [vmem:[%s8716 + $0x10] sm:$0xff]
        %v8720 = vld [vmem:[%s8716 + $0x18] sm:$0xff]
        %v8721 = vld [vmem:[%s8716 + $0x20] sm:$0xff]
        %v8722 = vld [vmem:[%s8716 + $0x28] sm:$0xff]
        %v8723 = vld [vmem:[%s8716 + $0x30] sm:$0xff]
        %v8724 = vld [vmem:[%s8716 + $0x38] sm:$0xff]
        %v8725 = vld [vmem:[%s8716 + $0x40] sm:$0xff]
        %v8726 = vld [vmem:[%s8716 + $0x48] sm:$0xff]
        %v8727 = vld [vmem:[%s8716 + $0x50] sm:$0xff]
        %v8728 = vld [vmem:[%s8716 + $0x58] sm:$0xff]
        %v8729 = vld [vmem:[%s8716 + $0x60] sm:$0xff]
        %v8730 = vld [vmem:[%s8716 + $0x68] sm:$0xff]
        %v8731 = vld [vmem:[%s8716 + $0x70] sm:$0xff]
        %v8732 = vld [vmem:[%s8716 + $0x78] sm:$0xff]
        %v8733 = vld [vmem:[%s8716 + $0x80] sm:$0xff]
        %v8734 = vld [vmem:[%s8716 + $0x88] sm:$0xff]
        %v8735 = vld [vmem:[%s8716 + $0x90] sm:$0xff]
        %v8736 = vld [vmem:[%s8716 + $0x98] sm:$0xff]
        %v8737 = vld [vmem:[%s8716 + $0xa0] sm:$0xff]
        %v8738 = vld [vmem:[%s8716 + $0xa8] sm:$0xff]
        %v8739 = vld [vmem:[%s8716 + $0xb0] sm:$0xff]
        %v8740 = vld [vmem:[%s8716 + $0xb8] sm:$0xff]
        %v8741 = vld [vmem:[%s8716 + $0xc0] sm:$0xff]
        %v8742 = vld [vmem:[%s8716 + $0xc8] sm:$0xff]
        %v8743 = vld [vmem:[%s8716 + $0xd0] sm:$0xff]
        %v8744 = vld [vmem:[%s8716 + $0xd8] sm:$0xff]
        %v8745 = vld [vmem:[%s8716 + $0xe0] sm:$0xff]
        %v8746 = vld [vmem:[%s8716 + $0xe8] sm:$0xff]
        %v8747 = vld [vmem:[%s8716 + $0xf0] sm:$0xff]
        %v8748 = vld [vmem:[%s8716 + $0xf8] sm:$0xff]
        %v8749 = vmul.f32 %v8717, %v8232
        %v8750 = vmul.f32 %v8718, %v8233
        %v8751 = vmul.f32 %v8719, %v8234
        %v8752 = vmul.f32 %v8720, %v8235
        %v8753 = vmul.f32 %v8721, %v8236
        %v8754 = vmul.f32 %v8722, %v8237
        %v8755 = vmul.f32 %v8723, %v8238
        %v8756 = vmul.f32 %v8724, %v8239
        %v8757 = vmul.f32 %v8725, %v8240
        %v8758 = vmul.f32 %v8726, %v8241
        %v8759 = vmul.f32 %v8727, %v8242
        %v8760 = vmul.f32 %v8728, %v8243
        %v8761 = vmul.f32 %v8729, %v8244
        %v8762 = vmul.f32 %v8730, %v8245
        %v8763 = vmul.f32 %v8731, %v8246
        %v8764 = vmul.f32 %v8732, %v8247
        %v8765 = vmul.f32 %v8733, %v8248
        %v8766 = vmul.f32 %v8734, %v8249
        %v8767 = vmul.f32 %v8735, %v8250
        %v8768 = vmul.f32 %v8736, %v8251
        %v8769 = vmul.f32 %v8737, %v8252
        %v8770 = vmul.f32 %v8738, %v8253
        %v8771 = vmul.f32 %v8739, %v8254
        %v8772 = vmul.f32 %v8740, %v8255
        %v8773 = vmul.f32 %v8741, %v8256
        %v8774 = vmul.f32 %v8742, %v8257
        %v8775 = vmul.f32 %v8743, %v8258
        %v8776 = vmul.f32 %v8744, %v8259
        %v8777 = vmul.f32 %v8745, %v8260
        %v8778 = vmul.f32 %v8746, %v8261
        %v8779 = vmul.f32 %v8747, %v8262
        %v8780 = vmul.f32 %v8748, %v8263
        %v8781 = vadd.f32 %v8749, %v8750
        %v8782 = vadd.f32 %v8781, %v8751
        %v8783 = vadd.f32 %v8782, %v8752
        %v8784 = vadd.f32 %v8783, %v8753
        %v8785 = vadd.f32 %v8784, %v8754
        %v8786 = vadd.f32 %v8785, %v8755
        %v8787 = vadd.f32 %v8786, %v8756
        %8788 = vadd.xlane.f32.xlu0 %v8787
        %v8789 = vpop.xlane.xlu0 %8788
        %v8790 = vadd.f32 %v8757, %v8758
        %v8791 = vadd.f32 %v8790, %v8759
        %v8792 = vadd.f32 %v8791, %v8760
        %v8793 = vadd.f32 %v8792, %v8761
        %v8794 = vadd.f32 %v8793, %v8762
        %v8795 = vadd.f32 %v8794, %v8763
        %v8796 = vadd.f32 %v8795, %v8764
        %8797 = vadd.xlane.f32.xlu0 %v8796
        %v8798 = vpop.xlane.xlu0 %8797
        %v8799 = vadd.f32 %v8765, %v8766
        %v8800 = vadd.f32 %v8799, %v8767
        %v8801 = vadd.f32 %v8800, %v8768
        %v8802 = vadd.f32 %v8801, %v8769
        %v8803 = vadd.f32 %v8802, %v8770
        %v8804 = vadd.f32 %v8803, %v8771
        %v8805 = vadd.f32 %v8804, %v8772
        %8806 = vadd.xlane.f32.xlu0 %v8805
        %v8807 = vpop.xlane.xlu0 %8806
        %v8808 = vadd.f32 %v8773, %v8774
        %v8809 = vadd.f32 %v8808, %v8775
        %v8810 = vadd.f32 %v8809, %v8776
        %v8811 = vadd.f32 %v8810, %v8777
        %v8812 = vadd.f32 %v8811, %v8778
        %v8813 = vadd.f32 %v8812, %v8779
        %v8814 = vadd.f32 %v8813, %v8780
        %8815 = vadd.xlane.f32.xlu0 %v8814
        %v8816 = vpop.xlane.xlu0 %8815
        %v8817 = vadd.f32 %v8789, %v8798
        %v8818 = vadd.f32 %v8817, %v8807
        %v8819 = vadd.f32 %v8818, %v8816
        %v8820 = vrot.slane %v8819, 4
        %v8821 = vadd.f32 %v8819, %v8820
        %v8822 = vrot.slane %v8821, 2
        %v8823 = vadd.f32 %v8821, %v8822
        %v8824 = vrot.slane %v8823, 1
        %v8825 = vadd.f32 %v8823, %v8824
        %vm8826 = vcmp.eq.s32.totalorder %v305, 4
        %v8827 = vsel %vm8826, %v8825, 0.0
        %v8828 = vadd.f32 %v8715, %v8827
        %s8829 = scalar_lea.vmem [#allocation2], 1280
        %v8830 = vld [vmem:[%s8829] sm:$0xff]
        %v8831 = vld [vmem:[%s8829 + $0x8] sm:$0xff]
        %v8832 = vld [vmem:[%s8829 + $0x10] sm:$0xff]
        %v8833 = vld [vmem:[%s8829 + $0x18] sm:$0xff]
        %v8834 = vld [vmem:[%s8829 + $0x20] sm:$0xff]
        %v8835 = vld [vmem:[%s8829 + $0x28] sm:$0xff]
        %v8836 = vld [vmem:[%s8829 + $0x30] sm:$0xff]
        %v8837 = vld [vmem:[%s8829 + $0x38] sm:$0xff]
        %v8838 = vld [vmem:[%s8829 + $0x40] sm:$0xff]
        %v8839 = vld [vmem:[%s8829 + $0x48] sm:$0xff]
        %v8840 = vld [vmem:[%s8829 + $0x50] sm:$0xff]
        %v8841 = vld [vmem:[%s8829 + $0x58] sm:$0xff]
        %v8842 = vld [vmem:[%s8829 + $0x60] sm:$0xff]
        %v8843 = vld [vmem:[%s8829 + $0x68] sm:$0xff]
        %v8844 = vld [vmem:[%s8829 + $0x70] sm:$0xff]
        %v8845 = vld [vmem:[%s8829 + $0x78] sm:$0xff]
        %v8846 = vld [vmem:[%s8829 + $0x80] sm:$0xff]
        %v8847 = vld [vmem:[%s8829 + $0x88] sm:$0xff]
        %v8848 = vld [vmem:[%s8829 + $0x90] sm:$0xff]
        %v8849 = vld [vmem:[%s8829 + $0x98] sm:$0xff]
        %v8850 = vld [vmem:[%s8829 + $0xa0] sm:$0xff]
        %v8851 = vld [vmem:[%s8829 + $0xa8] sm:$0xff]
        %v8852 = vld [vmem:[%s8829 + $0xb0] sm:$0xff]
        %v8853 = vld [vmem:[%s8829 + $0xb8] sm:$0xff]
        %v8854 = vld [vmem:[%s8829 + $0xc0] sm:$0xff]
        %v8855 = vld [vmem:[%s8829 + $0xc8] sm:$0xff]
        %v8856 = vld [vmem:[%s8829 + $0xd0] sm:$0xff]
        %v8857 = vld [vmem:[%s8829 + $0xd8] sm:$0xff]
        %v8858 = vld [vmem:[%s8829 + $0xe0] sm:$0xff]
        %v8859 = vld [vmem:[%s8829 + $0xe8] sm:$0xff]
        %v8860 = vld [vmem:[%s8829 + $0xf0] sm:$0xff]
        %v8861 = vld [vmem:[%s8829 + $0xf8] sm:$0xff]
        %v8862 = vmul.f32 %v8830, %v8232
        %v8863 = vmul.f32 %v8831, %v8233
        %v8864 = vmul.f32 %v8832, %v8234
        %v8865 = vmul.f32 %v8833, %v8235
        %v8866 = vmul.f32 %v8834, %v8236
        %v8867 = vmul.f32 %v8835, %v8237
        %v8868 = vmul.f32 %v8836, %v8238
        %v8869 = vmul.f32 %v8837, %v8239
        %v8870 = vmul.f32 %v8838, %v8240
        %v8871 = vmul.f32 %v8839, %v8241
        %v8872 = vmul.f32 %v8840, %v8242
        %v8873 = vmul.f32 %v8841, %v8243
        %v8874 = vmul.f32 %v8842, %v8244
        %v8875 = vmul.f32 %v8843, %v8245
        %v8876 = vmul.f32 %v8844, %v8246
        %v8877 = vmul.f32 %v8845, %v8247
        %v8878 = vmul.f32 %v8846, %v8248
        %v8879 = vmul.f32 %v8847, %v8249
        %v8880 = vmul.f32 %v8848, %v8250
        %v8881 = vmul.f32 %v8849, %v8251
        %v8882 = vmul.f32 %v8850, %v8252
        %v8883 = vmul.f32 %v8851, %v8253
        %v8884 = vmul.f32 %v8852, %v8254
        %v8885 = vmul.f32 %v8853, %v8255
        %v8886 = vmul.f32 %v8854, %v8256
        %v8887 = vmul.f32 %v8855, %v8257
        %v8888 = vmul.f32 %v8856, %v8258
        %v8889 = vmul.f32 %v8857, %v8259
        %v8890 = vmul.f32 %v8858, %v8260
        %v8891 = vmul.f32 %v8859, %v8261
        %v8892 = vmul.f32 %v8860, %v8262
        %v8893 = vmul.f32 %v8861, %v8263
        %v8894 = vadd.f32 %v8862, %v8863
        %v8895 = vadd.f32 %v8894, %v8864
        %v8896 = vadd.f32 %v8895, %v8865
        %v8897 = vadd.f32 %v8896, %v8866
        %v8898 = vadd.f32 %v8897, %v8867
        %v8899 = vadd.f32 %v8898, %v8868
        %v8900 = vadd.f32 %v8899, %v8869
        %8901 = vadd.xlane.f32.xlu0 %v8900
        %v8902 = vpop.xlane.xlu0 %8901
        %v8903 = vadd.f32 %v8870, %v8871
        %v8904 = vadd.f32 %v8903, %v8872
        %v8905 = vadd.f32 %v8904, %v8873
        %v8906 = vadd.f32 %v8905, %v8874
        %v8907 = vadd.f32 %v8906, %v8875
        %v8908 = vadd.f32 %v8907, %v8876
        %v8909 = vadd.f32 %v8908, %v8877
        %8910 = vadd.xlane.f32.xlu0 %v8909
        %v8911 = vpop.xlane.xlu0 %8910
        %v8912 = vadd.f32 %v8878, %v8879
        %v8913 = vadd.f32 %v8912, %v8880
        %v8914 = vadd.f32 %v8913, %v8881
        %v8915 = vadd.f32 %v8914, %v8882
        %v8916 = vadd.f32 %v8915, %v8883
        %v8917 = vadd.f32 %v8916, %v8884
        %v8918 = vadd.f32 %v8917, %v8885
        %8919 = vadd.xlane.f32.xlu0 %v8918
        %v8920 = vpop.xlane.xlu0 %8919
        %v8921 = vadd.f32 %v8886, %v8887
        %v8922 = vadd.f32 %v8921, %v8888
        %v8923 = vadd.f32 %v8922, %v8889
        %v8924 = vadd.f32 %v8923, %v8890
        %v8925 = vadd.f32 %v8924, %v8891
        %v8926 = vadd.f32 %v8925, %v8892
        %v8927 = vadd.f32 %v8926, %v8893
        %8928 = vadd.xlane.f32.xlu0 %v8927
        %v8929 = vpop.xlane.xlu0 %8928
        %v8930 = vadd.f32 %v8902, %v8911
        %v8931 = vadd.f32 %v8930, %v8920
        %v8932 = vadd.f32 %v8931, %v8929
        %v8933 = vrot.slane %v8932, 4
        %v8934 = vadd.f32 %v8932, %v8933
        %v8935 = vrot.slane %v8934, 2
        %v8936 = vadd.f32 %v8934, %v8935
        %v8937 = vrot.slane %v8936, 1
        %v8938 = vadd.f32 %v8936, %v8937
        %vm8939 = vcmp.eq.s32.totalorder %v305, 5
        %v8940 = vsel %vm8939, %v8938, 0.0
        %v8941 = vadd.f32 %v8828, %v8940
        %s8942 = scalar_lea.vmem [#allocation2], 1536
        %v8943 = vld [vmem:[%s8942] sm:$0xff]
        %v8944 = vld [vmem:[%s8942 + $0x8] sm:$0xff]
        %v8945 = vld [vmem:[%s8942 + $0x10] sm:$0xff]
        %v8946 = vld [vmem:[%s8942 + $0x18] sm:$0xff]
        %v8947 = vld [vmem:[%s8942 + $0x20] sm:$0xff]
        %v8948 = vld [vmem:[%s8942 + $0x28] sm:$0xff]
        %v8949 = vld [vmem:[%s8942 + $0x30] sm:$0xff]
        %v8950 = vld [vmem:[%s8942 + $0x38] sm:$0xff]
        %v8951 = vld [vmem:[%s8942 + $0x40] sm:$0xff]
        %v8952 = vld [vmem:[%s8942 + $0x48] sm:$0xff]
        %v8953 = vld [vmem:[%s8942 + $0x50] sm:$0xff]
        %v8954 = vld [vmem:[%s8942 + $0x58] sm:$0xff]
        %v8955 = vld [vmem:[%s8942 + $0x60] sm:$0xff]
        %v8956 = vld [vmem:[%s8942 + $0x68] sm:$0xff]
        %v8957 = vld [vmem:[%s8942 + $0x70] sm:$0xff]
        %v8958 = vld [vmem:[%s8942 + $0x78] sm:$0xff]
        %v8959 = vld [vmem:[%s8942 + $0x80] sm:$0xff]
        %v8960 = vld [vmem:[%s8942 + $0x88] sm:$0xff]
        %v8961 = vld [vmem:[%s8942 + $0x90] sm:$0xff]
        %v8962 = vld [vmem:[%s8942 + $0x98] sm:$0xff]
        %v8963 = vld [vmem:[%s8942 + $0xa0] sm:$0xff]
        %v8964 = vld [vmem:[%s8942 + $0xa8] sm:$0xff]
        %v8965 = vld [vmem:[%s8942 + $0xb0] sm:$0xff]
        %v8966 = vld [vmem:[%s8942 + $0xb8] sm:$0xff]
        %v8967 = vld [vmem:[%s8942 + $0xc0] sm:$0xff]
        %v8968 = vld [vmem:[%s8942 + $0xc8] sm:$0xff]
        %v8969 = vld [vmem:[%s8942 + $0xd0] sm:$0xff]
        %v8970 = vld [vmem:[%s8942 + $0xd8] sm:$0xff]
        %v8971 = vld [vmem:[%s8942 + $0xe0] sm:$0xff]
        %v8972 = vld [vmem:[%s8942 + $0xe8] sm:$0xff]
        %v8973 = vld [vmem:[%s8942 + $0xf0] sm:$0xff]
        %v8974 = vld [vmem:[%s8942 + $0xf8] sm:$0xff]
        %v8975 = vmul.f32 %v8943, %v8232
        %v8976 = vmul.f32 %v8944, %v8233
        %v8977 = vmul.f32 %v8945, %v8234
        %v8978 = vmul.f32 %v8946, %v8235
        %v8979 = vmul.f32 %v8947, %v8236
        %v8980 = vmul.f32 %v8948, %v8237
        %v8981 = vmul.f32 %v8949, %v8238
        %v8982 = vmul.f32 %v8950, %v8239
        %v8983 = vmul.f32 %v8951, %v8240
        %v8984 = vmul.f32 %v8952, %v8241
        %v8985 = vmul.f32 %v8953, %v8242
        %v8986 = vmul.f32 %v8954, %v8243
        %v8987 = vmul.f32 %v8955, %v8244
        %v8988 = vmul.f32 %v8956, %v8245
        %v8989 = vmul.f32 %v8957, %v8246
        %v8990 = vmul.f32 %v8958, %v8247
        %v8991 = vmul.f32 %v8959, %v8248
        %v8992 = vmul.f32 %v8960, %v8249
        %v8993 = vmul.f32 %v8961, %v8250
        %v8994 = vmul.f32 %v8962, %v8251
        %v8995 = vmul.f32 %v8963, %v8252
        %v8996 = vmul.f32 %v8964, %v8253
        %v8997 = vmul.f32 %v8965, %v8254
        %v8998 = vmul.f32 %v8966, %v8255
        %v8999 = vmul.f32 %v8967, %v8256
        %v9000 = vmul.f32 %v8968, %v8257
        %v9001 = vmul.f32 %v8969, %v8258
        %v9002 = vmul.f32 %v8970, %v8259
        %v9003 = vmul.f32 %v8971, %v8260
        %v9004 = vmul.f32 %v8972, %v8261
        %v9005 = vmul.f32 %v8973, %v8262
        %v9006 = vmul.f32 %v8974, %v8263
        %v9007 = vadd.f32 %v8975, %v8976
        %v9008 = vadd.f32 %v9007, %v8977
        %v9009 = vadd.f32 %v9008, %v8978
        %v9010 = vadd.f32 %v9009, %v8979
        %v9011 = vadd.f32 %v9010, %v8980
        %v9012 = vadd.f32 %v9011, %v8981
        %v9013 = vadd.f32 %v9012, %v8982
        %9014 = vadd.xlane.f32.xlu0 %v9013
        %v9015 = vpop.xlane.xlu0 %9014
        %v9016 = vadd.f32 %v8983, %v8984
        %v9017 = vadd.f32 %v9016, %v8985
        %v9018 = vadd.f32 %v9017, %v8986
        %v9019 = vadd.f32 %v9018, %v8987
        %v9020 = vadd.f32 %v9019, %v8988
        %v9021 = vadd.f32 %v9020, %v8989
        %v9022 = vadd.f32 %v9021, %v8990
        %9023 = vadd.xlane.f32.xlu0 %v9022
        %v9024 = vpop.xlane.xlu0 %9023
        %v9025 = vadd.f32 %v8991, %v8992
        %v9026 = vadd.f32 %v9025, %v8993
        %v9027 = vadd.f32 %v9026, %v8994
        %v9028 = vadd.f32 %v9027, %v8995
        %v9029 = vadd.f32 %v9028, %v8996
        %v9030 = vadd.f32 %v9029, %v8997
        %v9031 = vadd.f32 %v9030, %v8998
        %9032 = vadd.xlane.f32.xlu0 %v9031
        %v9033 = vpop.xlane.xlu0 %9032
        %v9034 = vadd.f32 %v8999, %v9000
        %v9035 = vadd.f32 %v9034, %v9001
        %v9036 = vadd.f32 %v9035, %v9002
        %v9037 = vadd.f32 %v9036, %v9003
        %v9038 = vadd.f32 %v9037, %v9004
        %v9039 = vadd.f32 %v9038, %v9005
        %v9040 = vadd.f32 %v9039, %v9006
        %9041 = vadd.xlane.f32.xlu0 %v9040
        %v9042 = vpop.xlane.xlu0 %9041
        %v9043 = vadd.f32 %v9015, %v9024
        %v9044 = vadd.f32 %v9043, %v9033
        %v9045 = vadd.f32 %v9044, %v9042
        %v9046 = vrot.slane %v9045, 4
        %v9047 = vadd.f32 %v9045, %v9046
        %v9048 = vrot.slane %v9047, 2
        %v9049 = vadd.f32 %v9047, %v9048
        %v9050 = vrot.slane %v9049, 1
        %v9051 = vadd.f32 %v9049, %v9050
        %vm9052 = vcmp.eq.s32.totalorder %v305, 6
        %v9053 = vsel %vm9052, %v9051, 0.0
        %v9054 = vadd.f32 %v8941, %v9053
        %s9055 = scalar_lea.vmem [#allocation2], 1792
        %v9056 = vld [vmem:[%s9055] sm:$0xff]
        %v9057 = vld [vmem:[%s9055 + $0x8] sm:$0xff]
        %v9058 = vld [vmem:[%s9055 + $0x10] sm:$0xff]
        %v9059 = vld [vmem:[%s9055 + $0x18] sm:$0xff]
        %v9060 = vld [vmem:[%s9055 + $0x20] sm:$0xff]
        %v9061 = vld [vmem:[%s9055 + $0x28] sm:$0xff]
        %v9062 = vld [vmem:[%s9055 + $0x30] sm:$0xff]
        %v9063 = vld [vmem:[%s9055 + $0x38] sm:$0xff]
        %v9064 = vld [vmem:[%s9055 + $0x40] sm:$0xff]
        %v9065 = vld [vmem:[%s9055 + $0x48] sm:$0xff]
        %v9066 = vld [vmem:[%s9055 + $0x50] sm:$0xff]
        %v9067 = vld [vmem:[%s9055 + $0x58] sm:$0xff]
        %v9068 = vld [vmem:[%s9055 + $0x60] sm:$0xff]
        %v9069 = vld [vmem:[%s9055 + $0x68] sm:$0xff]
        %v9070 = vld [vmem:[%s9055 + $0x70] sm:$0xff]
        %v9071 = vld [vmem:[%s9055 + $0x78] sm:$0xff]
        %v9072 = vld [vmem:[%s9055 + $0x80] sm:$0xff]
        %v9073 = vld [vmem:[%s9055 + $0x88] sm:$0xff]
        %v9074 = vld [vmem:[%s9055 + $0x90] sm:$0xff]
        %v9075 = vld [vmem:[%s9055 + $0x98] sm:$0xff]
        %v9076 = vld [vmem:[%s9055 + $0xa0] sm:$0xff]
        %v9077 = vld [vmem:[%s9055 + $0xa8] sm:$0xff]
        %v9078 = vld [vmem:[%s9055 + $0xb0] sm:$0xff]
        %v9079 = vld [vmem:[%s9055 + $0xb8] sm:$0xff]
        %v9080 = vld [vmem:[%s9055 + $0xc0] sm:$0xff]
        %v9081 = vld [vmem:[%s9055 + $0xc8] sm:$0xff]
        %v9082 = vld [vmem:[%s9055 + $0xd0] sm:$0xff]
        %v9083 = vld [vmem:[%s9055 + $0xd8] sm:$0xff]
        %v9084 = vld [vmem:[%s9055 + $0xe0] sm:$0xff]
        %v9085 = vld [vmem:[%s9055 + $0xe8] sm:$0xff]
        %v9086 = vld [vmem:[%s9055 + $0xf0] sm:$0xff]
        %v9087 = vld [vmem:[%s9055 + $0xf8] sm:$0xff]
        %v9088 = vmul.f32 %v9056, %v8232
        %v9089 = vmul.f32 %v9057, %v8233
        %v9090 = vmul.f32 %v9058, %v8234
        %v9091 = vmul.f32 %v9059, %v8235
        %v9092 = vmul.f32 %v9060, %v8236
        %v9093 = vmul.f32 %v9061, %v8237
        %v9094 = vmul.f32 %v9062, %v8238
        %v9095 = vmul.f32 %v9063, %v8239
        %v9096 = vmul.f32 %v9064, %v8240
        %v9097 = vmul.f32 %v9065, %v8241
        %v9098 = vmul.f32 %v9066, %v8242
        %v9099 = vmul.f32 %v9067, %v8243
        %v9100 = vmul.f32 %v9068, %v8244
        %v9101 = vmul.f32 %v9069, %v8245
        %v9102 = vmul.f32 %v9070, %v8246
        %v9103 = vmul.f32 %v9071, %v8247
        %v9104 = vmul.f32 %v9072, %v8248
        %v9105 = vmul.f32 %v9073, %v8249
        %v9106 = vmul.f32 %v9074, %v8250
        %v9107 = vmul.f32 %v9075, %v8251
        %v9108 = vmul.f32 %v9076, %v8252
        %v9109 = vmul.f32 %v9077, %v8253
        %v9110 = vmul.f32 %v9078, %v8254
        %v9111 = vmul.f32 %v9079, %v8255
        %v9112 = vmul.f32 %v9080, %v8256
        %v9113 = vmul.f32 %v9081, %v8257
        %v9114 = vmul.f32 %v9082, %v8258
        %v9115 = vmul.f32 %v9083, %v8259
        %v9116 = vmul.f32 %v9084, %v8260
        %v9117 = vmul.f32 %v9085, %v8261
        %v9118 = vmul.f32 %v9086, %v8262
        %v9119 = vmul.f32 %v9087, %v8263
        %v9120 = vadd.f32 %v9088, %v9089
        %v9121 = vadd.f32 %v9120, %v9090
        %v9122 = vadd.f32 %v9121, %v9091
        %v9123 = vadd.f32 %v9122, %v9092
        %v9124 = vadd.f32 %v9123, %v9093
        %v9125 = vadd.f32 %v9124, %v9094
        %v9126 = vadd.f32 %v9125, %v9095
        %9127 = vadd.xlane.f32.xlu0 %v9126
        %v9128 = vpop.xlane.xlu0 %9127
        %v9129 = vadd.f32 %v9096, %v9097
        %v9130 = vadd.f32 %v9129, %v9098
        %v9131 = vadd.f32 %v9130, %v9099
        %v9132 = vadd.f32 %v9131, %v9100
        %v9133 = vadd.f32 %v9132, %v9101
        %v9134 = vadd.f32 %v9133, %v9102
        %v9135 = vadd.f32 %v9134, %v9103
        %9136 = vadd.xlane.f32.xlu0 %v9135
        %v9137 = vpop.xlane.xlu0 %9136
        %v9138 = vadd.f32 %v9104, %v9105
        %v9139 = vadd.f32 %v9138, %v9106
        %v9140 = vadd.f32 %v9139, %v9107
        %v9141 = vadd.f32 %v9140, %v9108
        %v9142 = vadd.f32 %v9141, %v9109
        %v9143 = vadd.f32 %v9142, %v9110
        %v9144 = vadd.f32 %v9143, %v9111
        %9145 = vadd.xlane.f32.xlu0 %v9144
        %v9146 = vpop.xlane.xlu0 %9145
        %v9147 = vadd.f32 %v9112, %v9113
        %v9148 = vadd.f32 %v9147, %v9114
        %v9149 = vadd.f32 %v9148, %v9115
        %v9150 = vadd.f32 %v9149, %v9116
        %v9151 = vadd.f32 %v9150, %v9117
        %v9152 = vadd.f32 %v9151, %v9118
        %v9153 = vadd.f32 %v9152, %v9119
        %9154 = vadd.xlane.f32.xlu0 %v9153
        %v9155 = vpop.xlane.xlu0 %9154
        %v9156 = vadd.f32 %v9128, %v9137
        %v9157 = vadd.f32 %v9156, %v9146
        %v9158 = vadd.f32 %v9157, %v9155
        %v9159 = vrot.slane %v9158, 4
        %v9160 = vadd.f32 %v9158, %v9159
        %v9161 = vrot.slane %v9160, 2
        %v9162 = vadd.f32 %v9160, %v9161
        %v9163 = vrot.slane %v9162, 1
        %v9164 = vadd.f32 %v9162, %v9163
        %vm9165 = vcmp.eq.s32.totalorder %v305, 7
        %v9166 = vsel %vm9165, %v9164, 0.0
        %v9167 = vadd.f32 %v9054, %v9166
        %s9168 = scalar_lea.vmem [#allocation2], 2048
        %v9169 = vld [vmem:[%s9168] sm:$0xff]
        %v9170 = vld [vmem:[%s9168 + $0x8] sm:$0xff]
        %v9171 = vld [vmem:[%s9168 + $0x10] sm:$0xff]
        %v9172 = vld [vmem:[%s9168 + $0x18] sm:$0xff]
        %v9173 = vld [vmem:[%s9168 + $0x20] sm:$0xff]
        %v9174 = vld [vmem:[%s9168 + $0x28] sm:$0xff]
        %v9175 = vld [vmem:[%s9168 + $0x30] sm:$0xff]
        %v9176 = vld [vmem:[%s9168 + $0x38] sm:$0xff]
        %v9177 = vld [vmem:[%s9168 + $0x40] sm:$0xff]
        %v9178 = vld [vmem:[%s9168 + $0x48] sm:$0xff]
        %v9179 = vld [vmem:[%s9168 + $0x50] sm:$0xff]
        %v9180 = vld [vmem:[%s9168 + $0x58] sm:$0xff]
        %v9181 = vld [vmem:[%s9168 + $0x60] sm:$0xff]
        %v9182 = vld [vmem:[%s9168 + $0x68] sm:$0xff]
        %v9183 = vld [vmem:[%s9168 + $0x70] sm:$0xff]
        %v9184 = vld [vmem:[%s9168 + $0x78] sm:$0xff]
        %v9185 = vld [vmem:[%s9168 + $0x80] sm:$0xff]
        %v9186 = vld [vmem:[%s9168 + $0x88] sm:$0xff]
        %v9187 = vld [vmem:[%s9168 + $0x90] sm:$0xff]
        %v9188 = vld [vmem:[%s9168 + $0x98] sm:$0xff]
        %v9189 = vld [vmem:[%s9168 + $0xa0] sm:$0xff]
        %v9190 = vld [vmem:[%s9168 + $0xa8] sm:$0xff]
        %v9191 = vld [vmem:[%s9168 + $0xb0] sm:$0xff]
        %v9192 = vld [vmem:[%s9168 + $0xb8] sm:$0xff]
        %v9193 = vld [vmem:[%s9168 + $0xc0] sm:$0xff]
        %v9194 = vld [vmem:[%s9168 + $0xc8] sm:$0xff]
        %v9195 = vld [vmem:[%s9168 + $0xd0] sm:$0xff]
        %v9196 = vld [vmem:[%s9168 + $0xd8] sm:$0xff]
        %v9197 = vld [vmem:[%s9168 + $0xe0] sm:$0xff]
        %v9198 = vld [vmem:[%s9168 + $0xe8] sm:$0xff]
        %v9199 = vld [vmem:[%s9168 + $0xf0] sm:$0xff]
        %v9200 = vld [vmem:[%s9168 + $0xf8] sm:$0xff]
        %v9201 = vmul.f32 %v9169, %v8232
        %v9202 = vmul.f32 %v9170, %v8233
        %v9203 = vmul.f32 %v9171, %v8234
        %v9204 = vmul.f32 %v9172, %v8235
        %v9205 = vmul.f32 %v9173, %v8236
        %v9206 = vmul.f32 %v9174, %v8237
        %v9207 = vmul.f32 %v9175, %v8238
        %v9208 = vmul.f32 %v9176, %v8239
        %v9209 = vmul.f32 %v9177, %v8240
        %v9210 = vmul.f32 %v9178, %v8241
        %v9211 = vmul.f32 %v9179, %v8242
        %v9212 = vmul.f32 %v9180, %v8243
        %v9213 = vmul.f32 %v9181, %v8244
        %v9214 = vmul.f32 %v9182, %v8245
        %v9215 = vmul.f32 %v9183, %v8246
        %v9216 = vmul.f32 %v9184, %v8247
        %v9217 = vmul.f32 %v9185, %v8248
        %v9218 = vmul.f32 %v9186, %v8249
        %v9219 = vmul.f32 %v9187, %v8250
        %v9220 = vmul.f32 %v9188, %v8251
        %v9221 = vmul.f32 %v9189, %v8252
        %v9222 = vmul.f32 %v9190, %v8253
        %v9223 = vmul.f32 %v9191, %v8254
        %v9224 = vmul.f32 %v9192, %v8255
        %v9225 = vmul.f32 %v9193, %v8256
        %v9226 = vmul.f32 %v9194, %v8257
        %v9227 = vmul.f32 %v9195, %v8258
        %v9228 = vmul.f32 %v9196, %v8259
        %v9229 = vmul.f32 %v9197, %v8260
        %v9230 = vmul.f32 %v9198, %v8261
        %v9231 = vmul.f32 %v9199, %v8262
        %v9232 = vmul.f32 %v9200, %v8263
        %v9233 = vadd.f32 %v9201, %v9202
        %v9234 = vadd.f32 %v9233, %v9203
        %v9235 = vadd.f32 %v9234, %v9204
        %v9236 = vadd.f32 %v9235, %v9205
        %v9237 = vadd.f32 %v9236, %v9206
        %v9238 = vadd.f32 %v9237, %v9207
        %v9239 = vadd.f32 %v9238, %v9208
        %9240 = vadd.xlane.f32.xlu0 %v9239
        %v9241 = vpop.xlane.xlu0 %9240
        %v9242 = vadd.f32 %v9209, %v9210
        %v9243 = vadd.f32 %v9242, %v9211
        %v9244 = vadd.f32 %v9243, %v9212
        %v9245 = vadd.f32 %v9244, %v9213
        %v9246 = vadd.f32 %v9245, %v9214
        %v9247 = vadd.f32 %v9246, %v9215
        %v9248 = vadd.f32 %v9247, %v9216
        %9249 = vadd.xlane.f32.xlu0 %v9248
        %v9250 = vpop.xlane.xlu0 %9249
        %v9251 = vadd.f32 %v9217, %v9218
        %v9252 = vadd.f32 %v9251, %v9219
        %v9253 = vadd.f32 %v9252, %v9220
        %v9254 = vadd.f32 %v9253, %v9221
        %v9255 = vadd.f32 %v9254, %v9222
        %v9256 = vadd.f32 %v9255, %v9223
        %v9257 = vadd.f32 %v9256, %v9224
        %9258 = vadd.xlane.f32.xlu0 %v9257
        %v9259 = vpop.xlane.xlu0 %9258
        %v9260 = vadd.f32 %v9225, %v9226
        %v9261 = vadd.f32 %v9260, %v9227
        %v9262 = vadd.f32 %v9261, %v9228
        %v9263 = vadd.f32 %v9262, %v9229
        %v9264 = vadd.f32 %v9263, %v9230
        %v9265 = vadd.f32 %v9264, %v9231
        %v9266 = vadd.f32 %v9265, %v9232
        %9267 = vadd.xlane.f32.xlu0 %v9266
        %v9268 = vpop.xlane.xlu0 %9267
        %v9269 = vadd.f32 %v9241, %v9250
        %v9270 = vadd.f32 %v9269, %v9259
        %v9271 = vadd.f32 %v9270, %v9268
        %v9272 = vrot.slane %v9271, 4
        %v9273 = vadd.f32 %v9271, %v9272
        %v9274 = vrot.slane %v9273, 2
        %v9275 = vadd.f32 %v9273, %v9274
        %v9276 = vrot.slane %v9275, 1
        %v9277 = vadd.f32 %v9275, %v9276
        %vm9278 = vcmp.eq.s32.totalorder %v305, 8
        %v9279 = vsel %vm9278, %v9277, 0.0
        %v9280 = vadd.f32 %v9167, %v9279
        %s9281 = scalar_lea.vmem [#allocation2], 2304
        %v9282 = vld [vmem:[%s9281] sm:$0xff]
        %v9283 = vld [vmem:[%s9281 + $0x8] sm:$0xff]
        %v9284 = vld [vmem:[%s9281 + $0x10] sm:$0xff]
        %v9285 = vld [vmem:[%s9281 + $0x18] sm:$0xff]
        %v9286 = vld [vmem:[%s9281 + $0x20] sm:$0xff]
        %v9287 = vld [vmem:[%s9281 + $0x28] sm:$0xff]
        %v9288 = vld [vmem:[%s9281 + $0x30] sm:$0xff]
        %v9289 = vld [vmem:[%s9281 + $0x38] sm:$0xff]
        %v9290 = vld [vmem:[%s9281 + $0x40] sm:$0xff]
        %v9291 = vld [vmem:[%s9281 + $0x48] sm:$0xff]
        %v9292 = vld [vmem:[%s9281 + $0x50] sm:$0xff]
        %v9293 = vld [vmem:[%s9281 + $0x58] sm:$0xff]
        %v9294 = vld [vmem:[%s9281 + $0x60] sm:$0xff]
        %v9295 = vld [vmem:[%s9281 + $0x68] sm:$0xff]
        %v9296 = vld [vmem:[%s9281 + $0x70] sm:$0xff]
        %v9297 = vld [vmem:[%s9281 + $0x78] sm:$0xff]
        %v9298 = vld [vmem:[%s9281 + $0x80] sm:$0xff]
        %v9299 = vld [vmem:[%s9281 + $0x88] sm:$0xff]
        %v9300 = vld [vmem:[%s9281 + $0x90] sm:$0xff]
        %v9301 = vld [vmem:[%s9281 + $0x98] sm:$0xff]
        %v9302 = vld [vmem:[%s9281 + $0xa0] sm:$0xff]
        %v9303 = vld [vmem:[%s9281 + $0xa8] sm:$0xff]
        %v9304 = vld [vmem:[%s9281 + $0xb0] sm:$0xff]
        %v9305 = vld [vmem:[%s9281 + $0xb8] sm:$0xff]
        %v9306 = vld [vmem:[%s9281 + $0xc0] sm:$0xff]
        %v9307 = vld [vmem:[%s9281 + $0xc8] sm:$0xff]
        %v9308 = vld [vmem:[%s9281 + $0xd0] sm:$0xff]
        %v9309 = vld [vmem:[%s9281 + $0xd8] sm:$0xff]
        %v9310 = vld [vmem:[%s9281 + $0xe0] sm:$0xff]
        %v9311 = vld [vmem:[%s9281 + $0xe8] sm:$0xff]
        %v9312 = vld [vmem:[%s9281 + $0xf0] sm:$0xff]
        %v9313 = vld [vmem:[%s9281 + $0xf8] sm:$0xff]
        %v9314 = vmul.f32 %v9282, %v8232
        %v9315 = vmul.f32 %v9283, %v8233
        %v9316 = vmul.f32 %v9284, %v8234
        %v9317 = vmul.f32 %v9285, %v8235
        %v9318 = vmul.f32 %v9286, %v8236
        %v9319 = vmul.f32 %v9287, %v8237
        %v9320 = vmul.f32 %v9288, %v8238
        %v9321 = vmul.f32 %v9289, %v8239
        %v9322 = vmul.f32 %v9290, %v8240
        %v9323 = vmul.f32 %v9291, %v8241
        %v9324 = vmul.f32 %v9292, %v8242
        %v9325 = vmul.f32 %v9293, %v8243
        %v9326 = vmul.f32 %v9294, %v8244
        %v9327 = vmul.f32 %v9295, %v8245
        %v9328 = vmul.f32 %v9296, %v8246
        %v9329 = vmul.f32 %v9297, %v8247
        %v9330 = vmul.f32 %v9298, %v8248
        %v9331 = vmul.f32 %v9299, %v8249
        %v9332 = vmul.f32 %v9300, %v8250
        %v9333 = vmul.f32 %v9301, %v8251
        %v9334 = vmul.f32 %v9302, %v8252
        %v9335 = vmul.f32 %v9303, %v8253
        %v9336 = vmul.f32 %v9304, %v8254
        %v9337 = vmul.f32 %v9305, %v8255
        %v9338 = vmul.f32 %v9306, %v8256
        %v9339 = vmul.f32 %v9307, %v8257
        %v9340 = vmul.f32 %v9308, %v8258
        %v9341 = vmul.f32 %v9309, %v8259
        %v9342 = vmul.f32 %v9310, %v8260
        %v9343 = vmul.f32 %v9311, %v8261
        %v9344 = vmul.f32 %v9312, %v8262
        %v9345 = vmul.f32 %v9313, %v8263
        %v9346 = vadd.f32 %v9314, %v9315
        %v9347 = vadd.f32 %v9346, %v9316
        %v9348 = vadd.f32 %v9347, %v9317
        %v9349 = vadd.f32 %v9348, %v9318
        %v9350 = vadd.f32 %v9349, %v9319
        %v9351 = vadd.f32 %v9350, %v9320
        %v9352 = vadd.f32 %v9351, %v9321
        %9353 = vadd.xlane.f32.xlu0 %v9352
        %v9354 = vpop.xlane.xlu0 %9353
        %v9355 = vadd.f32 %v9322, %v9323
        %v9356 = vadd.f32 %v9355, %v9324
        %v9357 = vadd.f32 %v9356, %v9325
        %v9358 = vadd.f32 %v9357, %v9326
        %v9359 = vadd.f32 %v9358, %v9327
        %v9360 = vadd.f32 %v9359, %v9328
        %v9361 = vadd.f32 %v9360, %v9329
        %9362 = vadd.xlane.f32.xlu0 %v9361
        %v9363 = vpop.xlane.xlu0 %9362
        %v9364 = vadd.f32 %v9330, %v9331
        %v9365 = vadd.f32 %v9364, %v9332
        %v9366 = vadd.f32 %v9365, %v9333
        %v9367 = vadd.f32 %v9366, %v9334
        %v9368 = vadd.f32 %v9367, %v9335
        %v9369 = vadd.f32 %v9368, %v9336
        %v9370 = vadd.f32 %v9369, %v9337
        %9371 = vadd.xlane.f32.xlu0 %v9370
        %v9372 = vpop.xlane.xlu0 %9371
        %v9373 = vadd.f32 %v9338, %v9339
        %v9374 = vadd.f32 %v9373, %v9340
        %v9375 = vadd.f32 %v9374, %v9341
        %v9376 = vadd.f32 %v9375, %v9342
        %v9377 = vadd.f32 %v9376, %v9343
        %v9378 = vadd.f32 %v9377, %v9344
        %v9379 = vadd.f32 %v9378, %v9345
        %9380 = vadd.xlane.f32.xlu0 %v9379
        %v9381 = vpop.xlane.xlu0 %9380
        %v9382 = vadd.f32 %v9354, %v9363
        %v9383 = vadd.f32 %v9382, %v9372
        %v9384 = vadd.f32 %v9383, %v9381
        %v9385 = vrot.slane %v9384, 4
        %v9386 = vadd.f32 %v9384, %v9385
        %v9387 = vrot.slane %v9386, 2
        %v9388 = vadd.f32 %v9386, %v9387
        %v9389 = vrot.slane %v9388, 1
        %v9390 = vadd.f32 %v9388, %v9389
        %vm9391 = vcmp.eq.s32.totalorder %v305, 9
        %v9392 = vsel %vm9391, %v9390, 0.0
        %v9393 = vadd.f32 %v9280, %v9392
        %vm9394 = vcmask 73728
        %9395 = vst.msk [vmem:[%s298] sm:$0x1] %vm9394, %v9393
        %s9396 = sand.u32 %s183, 1
        %s9397 = scalar_lea.sflag [#allocation4], %s9396
        %s9398 = sand.u32 %s183, 1
        %s9399 = scalar_lea.vmem [#allocation7], %s9398
        // Predicated region
        $region57: #{cnn_forward.1} parent=47 // pred_check
          %p9400 = pneg %p193
        $region58: #{cnn_forward.1} parent=47 // pred_check_branch
          %9402 = sbr.rel (%p9400) target = $region60
        $region59: #{cnn_forward.1} parent=47 // pred_region
          %s9404 = ssub.s32 16, 16
          %9405 = vsyncadd %s9397, %s9404
          %s9406 = smul.addr %s23, 16
          %s9407 = scalar_lea.hbm %s7, %s9406
          %s9409 = sshll.u32 %s9399, 4
          %s9410 = int_to_ptr.vmem [resolvable:$true] %s9409
          %9412 = dma.vmem_to_hbm [thread:$0]  %s9410, 16, %s9407, %s9397
        $region60: #{cnn_forward.1} parent=47 // pred_fallthru
          _
      $region48: #{cnn_forward.1} parent=5 // pred_fallthru
        _
      %p9413 = scmp.le.s32.totalorder 2, %s18
      // Predicated region
      $region61: #{cnn_forward.1} parent=5 // pred_check
        %p9414 = pneg %p9413
      $region62: #{cnn_forward.1} parent=5 // pred_check_branch
        %9416 = sbr.rel (%p9414) target = $region64
      $region63: #{cnn_forward.1} parent=5 // pred_region
        %s9417 = ssub.s32 %s18, 2
        // Predicated region
        $region65: #{cnn_forward.1} parent=63 // pred_check
          %p9418 = pneg %p199
        $region66: #{cnn_forward.1} parent=63 // pred_check_branch
          %9420 = sbr.rel (%p9418) target = $region68
        $region67: #{cnn_forward.1} parent=63 // pred_region
          %s9421 = sand.u32 %s184, 1
          %s9422 = scalar_lea.sflag [#allocation4], %s9421
          %s9423 = sand.u32 %s184, 1
          %s9424 = scalar_lea.vmem [#allocation7], %s9423
          %9425 = dma.done %s9422, 16
        $region68: #{cnn_forward.1} parent=63 // pred_fallthru
          _
      $region64: #{cnn_forward.1} parent=5 // pred_fallthru
        _
    $region6: #{cnn_forward.1} parent=1 // loop_footer
      %s22 = sadd.s32 1, %s18
    $region7: #{cnn_forward.1} parent=1 // loop_footer_branch
      %17 = sbr.rel target = $region3
    $region8: #{cnn_forward.1} parent=1 // loop_exit
      _
    %9426 = vsyncpa [#allocation3], 1
    %s9427 = scalar_lea.sflag [#allocation3], 1
    %9428 = vsyncpa %s9427, 1
    %9429 = vsyncpa [#allocation6], 1
    %9430 = vsyncpa [#allocation4], 1
    %s9431 = scalar_lea.sflag [#allocation4], 1
    %9432 = vsyncpa %s9431, 1

</llo_original>
